<compile_context>
chip_gen: v5e
topology: v5e:2x2
jax: 0.10.0
libtpu: 0.0.40
codegen_flags: <defaults>
</compile_context>

<pallas_src>
import functools

import jax
import jax.numpy as jnp
import numpy as np
from jax.experimental import pallas as pl
from jax.experimental.pallas import tpu as pltpu


# -----------------------------------------------------------------------------
# Fused kernel: all GLU layers, one row-tile per grid step.
# refs = [x, W_0 ... W_{L-1}, affines, out]
#   per layer l (for each sub-chunk of rows):
#     h   = act @ W_l                                   (one MXU matmul, f32 acc)
#     GBN (per-vbs-chunk batch stats, training mode) on the joint 2*out tensor
#     glu = hn[:, :out] * sigmoid(hn[:, out:])          (VPU/EUP)
#     act = (act + glu) * sqrt(0.5)   if residual else glu
# -----------------------------------------------------------------------------
def _fused_feat_transformer_kernel(*refs, n_layers, residual_flags, vbs,
                                   out_dim, eps, res_scale, sub_rows,
                                   matmul_dtype):
    x_ref = refs[0]
    w_refs = refs[1:1 + n_layers]
    aff_ref = refs[1 + n_layers]
    o_ref = refs[2 + n_layers]

    rows = x_ref.shape[0]
    n_sub = rows // sub_rows
    two_out = 2 * out_dim
    R = sub_rows // vbs                         # ghost batches per sub-chunk

    # Weights / affines are tiny and constant across the grid: load them once,
    # outside the row loop (weights are already pre-cast to matmul_dtype).
    ws = [w_refs[l][...] for l in range(n_layers)]
    aff = aff_ref[...]                          # (2*n_layers, 2*out_dim), f32

    def process(row0):
        act = x_ref[pl.ds(row0, sub_rows), :]   # f32
        for l in range(n_layers):               # static unroll over layers
            # One merged matmul per layer (lin+gate halves together).
            h = jnp.dot(act.astype(matmul_dtype), ws[l],
                        preferred_element_type=jnp.float32)       # (sub, 2*out)
            # Ghost BatchNorm (training mode), one-pass stats on joint tensor.
            # TODO(synk): running_mean/running_var tracking (eval-mode BN) is
            # not implemented; this matches the PyTorch module in train mode.
            hr = h.reshape(R, vbs, two_out)
            mean = jnp.mean(hr, axis=1, keepdims=True)            # (R,1,2*out)
            mean_sq = jnp.mean(hr * hr, axis=1, keepdims=True)
            var = mean_sq - mean * mean
            gamma = aff[2 * l:2 * l + 1, :]                       # (1, 2*out)
            beta = aff[2 * l + 1:2 * l + 2, :]
            scale = gamma * jax.lax.rsqrt(var + eps)              # fold gamma
            shift = beta - mean * scale
            hn = (hr * scale + shift).reshape(sub_rows, two_out)
            # GLU: lin/gate split happens only here (static lane slice).
            glu = hn[:, :out_dim] * jax.nn.sigmoid(hn[:, out_dim:])
            if residual_flags[l]:
                act = (act + glu) * res_scale                     # d_in==out_dim
            else:
                act = glu
        o_ref[pl.ds(row0, sub_rows), :] = act.astype(o_ref.dtype)

    if n_sub == 1:
        process(0)
    else:
        # Bound vreg live ranges: stream the row tile in sub_rows chunks.
        def body(c, carry):
            process(pl.multiple_of(c * sub_rows, sub_rows))
            return carry
        jax.lax.fori_loop(0, n_sub, body, 0)


# -----------------------------------------------------------------------------
# Generation-aware sizing helpers.
# -----------------------------------------------------------------------------
def _tpu_generation():
    """(num_tensorcores_per_chip, vmem_bytes_per_core) with safe fallbacks."""
    num_tc, vmem = 1, 128 << 20                 # v5e / v6e: 1 TC, 128 MiB VMEM
    try:
        kind = jax.devices()[0].device_kind.lower()
        if ("v7" in kind) or ("tpu7" in kind):
            num_tc, vmem = 2, 64 << 20          # v7x: 2 TCs, 64 MiB VMEM / TC
    except Exception:
        pass
    return num_tc, vmem


def _choose_rows_per_step(B, vbs, num_tc, row_bytes, act_budget_bytes):
    """Rows per grid step: a multiple of vbs dividing B.
    v5e/v6e (1 TC): largest tile fitting the VMEM activation budget (fewest
    grid steps -> least per-step overhead).  v7x: split across the 2 TCs only
    when each step still gets >= 256 rows."""
    cap = B
    if row_bytes > 0:
        cap = min(cap, max(vbs, act_budget_bytes // row_bytes))
    if num_tc > 1 and B >= num_tc * max(256, vbs):
        cap = min(cap, B // num_tc)
    best, r = vbs, vbs
    while r <= cap:
        if B % r == 0:
            best = r
        r += vbs
    return best


def _choose_sub_rows(rows_per_step, vbs, target=256):
    """Largest multiple of vbs <= target that divides rows_per_step (bounds
    the live set of lane-sparse (rows, 2*out_dim) temporaries)."""
    cap = min(rows_per_step, max(vbs, target))
    best, r = vbs, vbs
    while r <= cap:
        if rows_per_step % r == 0:
            best = r
        r += vbs
    return best


# -----------------------------------------------------------------------------
# Wrapper: builds inputs / specs and launches the fused kernel.
# -----------------------------------------------------------------------------
def feat_transformer_fused(x, layer_params, residual_flags, *, out_dim, vbs,
                           rows_per_step=None, matmul_dtype=jnp.bfloat16):
    """layer_params: list of (W (d_in, 2*out_dim), gamma (2*out_dim,), beta)."""
    B, d_in0 = x.shape
    n_layers = len(layer_params)
    assert n_layers >= 1 and n_layers == len(residual_flags)
    assert B % vbs == 0, "batch must be a multiple of vbs"
    # TODO(synk): ragged final ghost-batch chunk (B % vbs != 0) not supported.
    two_out = 2 * out_dim

    weights, aff_rows = [], []
    for l, (w, gamma, beta) in enumerate(layer_params):
        assert w.shape[1] == two_out
        if residual_flags[l]:
            assert w.shape[0] == out_dim, "residual GLU layers need d_in == out_dim"
        weights.append(jnp.asarray(w, dtype=matmul_dtype))   # merged lin+gate W
        aff_rows.append(jnp.asarray(gamma, jnp.float32).reshape(1, two_out))
        aff_rows.append(jnp.asarray(beta, jnp.float32).reshape(1, two_out))
    affines = jnp.concatenate(aff_rows, axis=0)               # (2*n_layers, 2*out)

    num_tc, vmem_total = _tpu_generation()
    weight_bytes = sum(int(w.size) * w.dtype.itemsize for w in weights)
    weight_bytes += int(affines.size) * 4

    if rows_per_step is None:
        row_bytes = 4 * 2 * (d_in0 + out_dim)                 # dbl-buffered x/out
        act_budget = max(int(0.6 * vmem_total) - 2 * weight_bytes - (8 << 20),
                         4 << 20)
        rows_per_step = _choose_rows_per_step(B, vbs, num_tc, row_bytes,
                                              act_budget)
    assert B % rows_per_step == 0 and rows_per_step % vbs == 0
    sub_rows = _choose_sub_rows(rows_per_step, vbs)

    kernel = functools.partial(
        _fused_feat_transformer_kernel,
        n_layers=n_layers,
        residual_flags=tuple(bool(f) for f in residual_flags),
        vbs=vbs, out_dim=out_dim, eps=1e-5,
        res_scale=float(np.sqrt(0.5)),
        sub_rows=sub_rows, matmul_dtype=matmul_dtype)

    xmap = lambda i: (i, 0)
    cmap = lambda i: (0, 0)
    in_specs = [pl.BlockSpec((rows_per_step, d_in0), xmap)]
    # Weights / affines: constant index maps -> VMEM resident across steps.
    # TODO(synk): for much larger weight matrices on v7x, mark these specs
    # pipeline_mode=pl.Buffered(1) so never-changing weights aren't dbl-buffered.
    in_specs += [pl.BlockSpec(tuple(w.shape), cmap) for w in weights]
    in_specs += [pl.BlockSpec(tuple(affines.shape), cmap)]
    # (out_dim=16 < 128 lanes means masked vst; a lane-dense (rows/8, 128)
    # out_spec was reviewed as optional/low-priority for this tiny output.)
    out_specs = pl.BlockSpec((rows_per_step, out_dim), xmap)

    # VMEM budget: resident weights (x2 buffers) + pipelined x/out tiles +
    # sub-chunk temporaries, with a generation-aware ceiling (v7x has 64 MiB).
    tile_bytes = 4 * rows_per_step * 2 * (d_in0 + out_dim)
    temp_bytes = 4 * sub_rows * two_out * 12
    est = 2 * weight_bytes + tile_bytes + temp_bytes
    ceiling = (100 << 20) if vmem_total >= (128 << 20) else (44 << 20)
    vmem_limit = int(np.clip(2 * est, 16 << 20, ceiling))

    return pl.pallas_call(
        kernel,
        out_shape=jax.ShapeDtypeStruct((B, out_dim), x.dtype),
        grid_spec=pltpu.PrefetchScalarGridSpec(
            num_scalar_prefetch=0,
            grid=(B // rows_per_step,),
            in_specs=in_specs,
            out_specs=out_specs,
        ),
        compiler_params=pltpu.CompilerParams(
            dimension_semantics=("parallel",),
            vmem_limit_bytes=vmem_limit,
        ),
    )(x, *weights, affines)


def feat_transformer(x, shared_params, specific_params, *, out_dim, vbs,
                     rows_per_step=None, matmul_dtype=jnp.bfloat16):
    """Mirrors FeatTransformer.forward (shared GLU_Block first=True, then
    specific GLU_Block first=False), all fused into one pallas_call."""
    if shared_params:
        layer_params = list(shared_params) + list(specific_params)
        residual_flags = ([False] + [True] * (len(shared_params) - 1)
                          + [True] * len(specific_params))
    else:
        layer_params = list(specific_params)
        residual_flags = [False] + [True] * (len(specific_params) - 1)
    return feat_transformer_fused(x, layer_params, residual_flags,
                                  out_dim=out_dim, vbs=vbs,
                                  rows_per_step=rows_per_step,
                                  matmul_dtype=matmul_dtype)


# -----------------------------------------------------------------------------
# Pure-JAX reference (two-pass BN stats, unsplit weights).  matmul_dtype lets
# the reference mirror the kernel's bf16 MXU-input mode for a tight check.
# -----------------------------------------------------------------------------
def _ref_glu_layer(x, w, gamma, beta, *, out_dim, residual, vbs, matmul_dtype):
    B = x.shape[0]
    h = jnp.dot(x.astype(matmul_dtype), w.astype(matmul_dtype),
                preferred_element_type=jnp.float32)
    hr = h.reshape(B // vbs, vbs, -1)
    mean = hr.mean(1, keepdims=True)
    var = ((hr - mean) ** 2).mean(1, keepdims=True)
    hn = ((hr - mean) / jnp.sqrt(var + 1e-5) * gamma + beta).reshape(B, -1)
    g = hn[:, :out_dim] * jax.nn.sigmoid(hn[:, out_dim:])
    if residual:
        g = (x + g) * jnp.sqrt(0.5)
    return g


def _ref_feat_transformer(x, shared_params, specific_params, *, out_dim, vbs,
                          matmul_dtype=jnp.float32):
    first = True
    for (w, g, b) in list(shared_params) + list(specific_params):
        x = _ref_glu_layer(x, w, g, b, out_dim=out_dim, residual=not first,
                           vbs=vbs, matmul_dtype=matmul_dtype)
        first = False
    return x


# -----------------------------------------------------------------------------
# Deterministic parameter construction (shapes match the PyTorch module).
# -----------------------------------------------------------------------------
def make_glu_params(key, d_in, d_out):
    # Linear(d_in, 2*d_out, bias=False) stored transposed as (d_in, 2*d_out);
    # GBN -> BatchNorm1d(2*d_out): gamma init 1, beta init 0.
    gain = np.sqrt((d_in + 2 * d_out) / np.sqrt(4.0 * d_in))
    std = gain * np.sqrt(2.0 / (d_in + 2 * d_out))     # ~xavier_normal_ w/ gain
    w = jax.random.normal(key, (d_in, 2 * d_out), dtype=jnp.float32) * std
    gamma = jnp.ones((2 * d_out,), dtype=jnp.float32)
    beta = jnp.zeros((2 * d_out,), dtype=jnp.float32)
    return (w, gamma, beta)


if __name__ == "__main__":
    # FeatTransformer config: input_dim=32, output_dim=16, len(shared_layers)=2,
    # n_glu_independent=2, vbs=8, batch=256 (32 ghost batches).
    input_dim, output_dim = 32, 16
    n_shared, n_independent = 2, 2
    vbs, batch = 8, 256

    key = jax.random.PRNGKey(0)
    keys = jax.random.split(key, n_shared + n_independent + 1)

    shared_params = [make_glu_params(keys[0], input_dim, output_dim)]
    for i in range(1, n_shared):
        shared_params.append(make_glu_params(keys[i], output_dim, output_dim))
    specific_params = [
        make_glu_params(keys[n_shared + i], output_dim, output_dim)
        for i in range(n_independent)
    ]

    x = jax.random.normal(keys[-1], (batch, input_dim), dtype=jnp.float32)

    # 1) Exact-semantics check: f32 matmul inputs, tight tolerance.
    out_f32 = feat_transformer(x, shared_params, specific_params,
                               out_dim=output_dim, vbs=vbs,
                               matmul_dtype=jnp.float32)
    out_f32 = jax.block_until_ready(out_f32)
    assert out_f32.shape == (batch, output_dim)
    ref_f32 = _ref_feat_transformer(x, shared_params, specific_params,
                                    out_dim=output_dim, vbs=vbs,
                                    matmul_dtype=jnp.float32)
    np.testing.assert_allclose(np.asarray(out_f32), np.asarray(ref_f32),
                               rtol=2e-4, atol=2e-4)

    # 2) Fast path from the perf review: bf16 MXU inputs, f32 accumulate and
    #    f32 element-wise math; checked against a bf16-matmul reference.
    out_bf16 = feat_transformer(x, shared_params, specific_params,
                                out_dim=output_dim, vbs=vbs,
                                matmul_dtype=jnp.bfloat16)
    out_bf16 = jax.block_until_ready(out_bf16)
    ref_bf16 = _ref_feat_transformer(x, shared_params, specific_params,
                                     out_dim=output_dim, vbs=vbs,
                                     matmul_dtype=jnp.bfloat16)
    np.testing.assert_allclose(np.asarray(out_bf16), np.asarray(ref_bf16),
                               rtol=2e-2, atol=2e-2)

    print("KERNEL_OK")
</pallas_src>

<mosaic_0001>
module attributes {stable_mosaic.version = 11 : i64} {
  func.func @_fused_feat_transformer_kernel(%arg0: i32, %arg1: memref<256x32xf32, #tpu.memory_space<vmem>>, %arg2: memref<32x32xf32, #tpu.memory_space<vmem>>, %arg3: memref<16x32xf32, #tpu.memory_space<vmem>>, %arg4: memref<16x32xf32, #tpu.memory_space<vmem>>, %arg5: memref<16x32xf32, #tpu.memory_space<vmem>>, %arg6: memref<8x32xf32, #tpu.memory_space<vmem>>, %arg7: memref<256x16xf32, #tpu.memory_space<vmem>>) attributes {dimension_semantics = [#tpu.dimension_semantics<parallel>], iteration_bounds = array<i64: 1>, scalar_prefetch = 0 : i64, scratch_operands = 0 : i64, tpu.core_type = #tpu.core_type<tc>, window_params = [{transform_indices = @transform_0, window_bounds = array<i64: 256, 32>}, {pipeline_mode = #tpu.pipeline_mode<synchronous>, transform_indices = @transform_1, window_bounds = array<i64: 32, 32>}, {pipeline_mode = #tpu.pipeline_mode<synchronous>, transform_indices = @transform_2, window_bounds = array<i64: 16, 32>}, {pipeline_mode = #tpu.pipeline_mode<synchronous>, transform_indices = @transform_3, window_bounds = array<i64: 16, 32>}, {pipeline_mode = #tpu.pipeline_mode<synchronous>, transform_indices = @transform_4, window_bounds = array<i64: 16, 32>}, {pipeline_mode = #tpu.pipeline_mode<synchronous>, transform_indices = @transform_5, window_bounds = array<i64: 8, 32>}, {transform_indices = @transform_6, window_bounds = array<i64: 256, 16>}]} {
    %c0 = arith.constant 0 : index
    %c0_0 = arith.constant 0 : index
    %0 = vector.load %arg2[%c0, %c0_0] : memref<32x32xf32, #tpu.memory_space<vmem>>, vector<32x32xf32>
    %c0_1 = arith.constant 0 : index
    %c0_2 = arith.constant 0 : index
    %1 = vector.load %arg3[%c0_1, %c0_2] : memref<16x32xf32, #tpu.memory_space<vmem>>, vector<16x32xf32>
    %c0_3 = arith.constant 0 : index
    %c0_4 = arith.constant 0 : index
    %2 = vector.load %arg4[%c0_3, %c0_4] : memref<16x32xf32, #tpu.memory_space<vmem>>, vector<16x32xf32>
    %c0_5 = arith.constant 0 : index
    %c0_6 = arith.constant 0 : index
    %3 = vector.load %arg5[%c0_5, %c0_6] : memref<16x32xf32, #tpu.memory_space<vmem>>, vector<16x32xf32>
    %c0_7 = arith.constant 0 : index
    %c0_8 = arith.constant 0 : index
    %4 = vector.load %arg6[%c0_7, %c0_8] : memref<8x32xf32, #tpu.memory_space<vmem>>, vector<8x32xf32>
    %c0_9 = arith.constant 0 : index
    %c0_10 = arith.constant 0 : index
    %5 = vector.load %arg1[%c0_9, %c0_10] : memref<256x32xf32, #tpu.memory_space<vmem>>, vector<256x32xf32>
    %cst = arith.constant dense<0.000000e+00> : vector<256x32xf32>
    %6 = tpu.matmul %5, %0, %cst {dimension_numbers = #tpu.dot_dimension_numbers<[1], [0], [0], [1], [0, 0, 1, 1], [], []>} : vector<256x32xf32>, vector<32x32xf32>, vector<256x32xf32> -> vector<256x32xf32>
    %7 = vector.shape_cast %6 : vector<256x32xf32> to vector<32x8x32xf32>
    %cst_11 = arith.constant dense<0.000000e+00> : vector<32x32xf32>
    %8 = vector.multi_reduction <add>, %7, %cst_11 [1] : vector<32x8x32xf32> to vector<32x32xf32>
    %9 = vector.shape_cast %8 : vector<32x32xf32> to vector<32x1x32xf32>
    %cst_12 = arith.constant 8.000000e+00 : f32
    %10 = vector.broadcast %cst_12 : f32 to vector<32x1x32xf32>
    %11 = arith.divf %9, %10 : vector<32x1x32xf32>
    %12 = arith.mulf %7, %7 : vector<32x8x32xf32>
    %cst_13 = arith.constant dense<0.000000e+00> : vector<32x32xf32>
    %13 = vector.multi_reduction <add>, %12, %cst_13 [1] : vector<32x8x32xf32> to vector<32x32xf32>
    %14 = vector.shape_cast %13 : vector<32x32xf32> to vector<32x1x32xf32>
    %cst_14 = arith.constant 8.000000e+00 : f32
    %15 = vector.broadcast %cst_14 : f32 to vector<32x1x32xf32>
    %16 = arith.divf %14, %15 : vector<32x1x32xf32>
    %17 = arith.mulf %11, %11 : vector<32x1x32xf32>
    %18 = arith.subf %16, %17 : vector<32x1x32xf32>
    %19 = vector.extract_strided_slice %4 {offsets = [0, 0], sizes = [1, 32], strides = [1, 1]} : vector<8x32xf32> to vector<1x32xf32>
    %20 = vector.extract_strided_slice %4 {offsets = [1, 0], sizes = [1, 32], strides = [1, 1]} : vector<8x32xf32> to vector<1x32xf32>
    %cst_15 = arith.constant 9.99999974E-6 : f32
    %21 = vector.broadcast %cst_15 : f32 to vector<32x1x32xf32>
    %22 = arith.addf %18, %21 : vector<32x1x32xf32>
    %23 = math.rsqrt %22 : vector<32x1x32xf32>
    %24 = vector.shape_cast %19 : vector<1x32xf32> to vector<1x1x32xf32>
    %25 = vector.broadcast %24 : vector<1x1x32xf32> to vector<32x1x32xf32>
    %26 = arith.mulf %25, %23 : vector<32x1x32xf32>
    %27 = arith.mulf %11, %26 : vector<32x1x32xf32>
    %28 = vector.shape_cast %20 : vector<1x32xf32> to vector<1x1x32xf32>
    %29 = vector.broadcast %28 : vector<1x1x32xf32> to vector<32x1x32xf32>
    %30 = arith.subf %29, %27 : vector<32x1x32xf32>
    %31 = vector.broadcast %26 : vector<32x1x32xf32> to vector<32x8x32xf32>
    %32 = arith.mulf %7, %31 : vector<32x8x32xf32>
    %33 = vector.broadcast %30 : vector<32x1x32xf32> to vector<32x8x32xf32>
    %34 = arith.addf %32, %33 : vector<32x8x32xf32>
    %35 = vector.shape_cast %34 : vector<32x8x32xf32> to vector<256x32xf32>
    %36 = vector.extract_strided_slice %35 {offsets = [0, 0], sizes = [256, 16], strides = [1, 1]} : vector<256x32xf32> to vector<256x16xf32>
    %37 = vector.extract_strided_slice %35 {offsets = [0, 16], sizes = [256, 16], strides = [1, 1]} : vector<256x32xf32> to vector<256x16xf32>
    %38 = arith.negf %37 : vector<256x16xf32>
    %39 = math.exp %38 : vector<256x16xf32>
    %cst_16 = arith.constant 1.000000e+00 : f32
    %40 = vector.broadcast %cst_16 : f32 to vector<256x16xf32>
    %41 = arith.addf %40, %39 : vector<256x16xf32>
    %42 = arith.divf %40, %41 : vector<256x16xf32>
    %43 = arith.mulf %36, %42 : vector<256x16xf32>
    %cst_17 = arith.constant dense<0.000000e+00> : vector<256x32xf32>
    %44 = tpu.matmul %43, %1, %cst_17 {dimension_numbers = #tpu.dot_dimension_numbers<[1], [0], [0], [1], [0, 0, 1, 1], [], []>} : vector<256x16xf32>, vector<16x32xf32>, vector<256x32xf32> -> vector<256x32xf32>
    %45 = vector.shape_cast %44 : vector<256x32xf32> to vector<32x8x32xf32>
    %cst_18 = arith.constant dense<0.000000e+00> : vector<32x32xf32>
    %46 = vector.multi_reduction <add>, %45, %cst_18 [1] : vector<32x8x32xf32> to vector<32x32xf32>
    %47 = vector.shape_cast %46 : vector<32x32xf32> to vector<32x1x32xf32>
    %cst_19 = arith.constant 8.000000e+00 : f32
    %48 = vector.broadcast %cst_19 : f32 to vector<32x1x32xf32>
    %49 = arith.divf %47, %48 : vector<32x1x32xf32>
    %50 = arith.mulf %45, %45 : vector<32x8x32xf32>
    %cst_20 = arith.constant dense<0.000000e+00> : vector<32x32xf32>
    %51 = vector.multi_reduction <add>, %50, %cst_20 [1] : vector<32x8x32xf32> to vector<32x32xf32>
    %52 = vector.shape_cast %51 : vector<32x32xf32> to vector<32x1x32xf32>
    %cst_21 = arith.constant 8.000000e+00 : f32
    %53 = vector.broadcast %cst_21 : f32 to vector<32x1x32xf32>
    %54 = arith.divf %52, %53 : vector<32x1x32xf32>
    %55 = arith.mulf %49, %49 : vector<32x1x32xf32>
    %56 = arith.subf %54, %55 : vector<32x1x32xf32>
    %57 = vector.extract_strided_slice %4 {offsets = [2, 0], sizes = [1, 32], strides = [1, 1]} : vector<8x32xf32> to vector<1x32xf32>
    %58 = vector.extract_strided_slice %4 {offsets = [3, 0], sizes = [1, 32], strides = [1, 1]} : vector<8x32xf32> to vector<1x32xf32>
    %cst_22 = arith.constant 9.99999974E-6 : f32
    %59 = vector.broadcast %cst_22 : f32 to vector<32x1x32xf32>
    %60 = arith.addf %56, %59 : vector<32x1x32xf32>
    %61 = math.rsqrt %60 : vector<32x1x32xf32>
    %62 = vector.shape_cast %57 : vector<1x32xf32> to vector<1x1x32xf32>
    %63 = vector.broadcast %62 : vector<1x1x32xf32> to vector<32x1x32xf32>
    %64 = arith.mulf %63, %61 : vector<32x1x32xf32>
    %65 = arith.mulf %49, %64 : vector<32x1x32xf32>
    %66 = vector.shape_cast %58 : vector<1x32xf32> to vector<1x1x32xf32>
    %67 = vector.broadcast %66 : vector<1x1x32xf32> to vector<32x1x32xf32>
    %68 = arith.subf %67, %65 : vector<32x1x32xf32>
    %69 = vector.broadcast %64 : vector<32x1x32xf32> to vector<32x8x32xf32>
    %70 = arith.mulf %45, %69 : vector<32x8x32xf32>
    %71 = vector.broadcast %68 : vector<32x1x32xf32> to vector<32x8x32xf32>
    %72 = arith.addf %70, %71 : vector<32x8x32xf32>
    %73 = vector.shape_cast %72 : vector<32x8x32xf32> to vector<256x32xf32>
    %74 = vector.extract_strided_slice %73 {offsets = [0, 0], sizes = [256, 16], strides = [1, 1]} : vector<256x32xf32> to vector<256x16xf32>
    %75 = vector.extract_strided_slice %73 {offsets = [0, 16], sizes = [256, 16], strides = [1, 1]} : vector<256x32xf32> to vector<256x16xf32>
    %76 = arith.negf %75 : vector<256x16xf32>
    %77 = math.exp %76 : vector<256x16xf32>
    %cst_23 = arith.constant 1.000000e+00 : f32
    %78 = vector.broadcast %cst_23 : f32 to vector<256x16xf32>
    %79 = arith.addf %78, %77 : vector<256x16xf32>
    %80 = arith.divf %78, %79 : vector<256x16xf32>
    %81 = arith.mulf %74, %80 : vector<256x16xf32>
    %82 = arith.addf %43, %81 : vector<256x16xf32>
    %cst_24 = arith.constant 0.707106769 : f32
    %83 = vector.broadcast %cst_24 : f32 to vector<256x16xf32>
    %84 = arith.mulf %82, %83 : vector<256x16xf32>
    %cst_25 = arith.constant dense<0.000000e+00> : vector<256x32xf32>
    %85 = tpu.matmul %84, %2, %cst_25 {dimension_numbers = #tpu.dot_dimension_numbers<[1], [0], [0], [1], [0, 0, 1, 1], [], []>} : vector<256x16xf32>, vector<16x32xf32>, vector<256x32xf32> -> vector<256x32xf32>
    %86 = vector.shape_cast %85 : vector<256x32xf32> to vector<32x8x32xf32>
    %cst_26 = arith.constant dense<0.000000e+00> : vector<32x32xf32>
    %87 = vector.multi_reduction <add>, %86, %cst_26 [1] : vector<32x8x32xf32> to vector<32x32xf32>
    %88 = vector.shape_cast %87 : vector<32x32xf32> to vector<32x1x32xf32>
    %cst_27 = arith.constant 8.000000e+00 : f32
    %89 = vector.broadcast %cst_27 : f32 to vector<32x1x32xf32>
    %90 = arith.divf %88, %89 : vector<32x1x32xf32>
    %91 = arith.mulf %86, %86 : vector<32x8x32xf32>
    %cst_28 = arith.constant dense<0.000000e+00> : vector<32x32xf32>
    %92 = vector.multi_reduction <add>, %91, %cst_28 [1] : vector<32x8x32xf32> to vector<32x32xf32>
    %93 = vector.shape_cast %92 : vector<32x32xf32> to vector<32x1x32xf32>
    %cst_29 = arith.constant 8.000000e+00 : f32
    %94 = vector.broadcast %cst_29 : f32 to vector<32x1x32xf32>
    %95 = arith.divf %93, %94 : vector<32x1x32xf32>
    %96 = arith.mulf %90, %90 : vector<32x1x32xf32>
    %97 = arith.subf %95, %96 : vector<32x1x32xf32>
    %98 = vector.extract_strided_slice %4 {offsets = [4, 0], sizes = [1, 32], strides = [1, 1]} : vector<8x32xf32> to vector<1x32xf32>
    %99 = vector.extract_strided_slice %4 {offsets = [5, 0], sizes = [1, 32], strides = [1, 1]} : vector<8x32xf32> to vector<1x32xf32>
    %cst_30 = arith.constant 9.99999974E-6 : f32
    %100 = vector.broadcast %cst_30 : f32 to vector<32x1x32xf32>
    %101 = arith.addf %97, %100 : vector<32x1x32xf32>
    %102 = math.rsqrt %101 : vector<32x1x32xf32>
    %103 = vector.shape_cast %98 : vector<1x32xf32> to vector<1x1x32xf32>
    %104 = vector.broadcast %103 : vector<1x1x32xf32> to vector<32x1x32xf32>
    %105 = arith.mulf %104, %102 : vector<32x1x32xf32>
    %106 = arith.mulf %90, %105 : vector<32x1x32xf32>
    %107 = vector.shape_cast %99 : vector<1x32xf32> to vector<1x1x32xf32>
    %108 = vector.broadcast %107 : vector<1x1x32xf32> to vector<32x1x32xf32>
    %109 = arith.subf %108, %106 : vector<32x1x32xf32>
    %110 = vector.broadcast %105 : vector<32x1x32xf32> to vector<32x8x32xf32>
    %111 = arith.mulf %86, %110 : vector<32x8x32xf32>
    %112 = vector.broadcast %109 : vector<32x1x32xf32> to vector<32x8x32xf32>
    %113 = arith.addf %111, %112 : vector<32x8x32xf32>
    %114 = vector.shape_cast %113 : vector<32x8x32xf32> to vector<256x32xf32>
    %115 = vector.extract_strided_slice %114 {offsets = [0, 0], sizes = [256, 16], strides = [1, 1]} : vector<256x32xf32> to vector<256x16xf32>
    %116 = vector.extract_strided_slice %114 {offsets = [0, 16], sizes = [256, 16], strides = [1, 1]} : vector<256x32xf32> to vector<256x16xf32>
    %117 = arith.negf %116 : vector<256x16xf32>
    %118 = math.exp %117 : vector<256x16xf32>
    %cst_31 = arith.constant 1.000000e+00 : f32
    %119 = vector.broadcast %cst_31 : f32 to vector<256x16xf32>
    %120 = arith.addf %119, %118 : vector<256x16xf32>
    %121 = arith.divf %119, %120 : vector<256x16xf32>
    %122 = arith.mulf %115, %121 : vector<256x16xf32>
    %123 = arith.addf %84, %122 : vector<256x16xf32>
    %cst_32 = arith.constant 0.707106769 : f32
    %124 = vector.broadcast %cst_32 : f32 to vector<256x16xf32>
    %125 = arith.mulf %123, %124 : vector<256x16xf32>
    %cst_33 = arith.constant dense<0.000000e+00> : vector<256x32xf32>
    %126 = tpu.matmul %125, %3, %cst_33 {dimension_numbers = #tpu.dot_dimension_numbers<[1], [0], [0], [1], [0, 0, 1, 1], [], []>} : vector<256x16xf32>, vector<16x32xf32>, vector<256x32xf32> -> vector<256x32xf32>
    %127 = vector.shape_cast %126 : vector<256x32xf32> to vector<32x8x32xf32>
    %cst_34 = arith.constant dense<0.000000e+00> : vector<32x32xf32>
    %128 = vector.multi_reduction <add>, %127, %cst_34 [1] : vector<32x8x32xf32> to vector<32x32xf32>
    %129 = vector.shape_cast %128 : vector<32x32xf32> to vector<32x1x32xf32>
    %cst_35 = arith.constant 8.000000e+00 : f32
    %130 = vector.broadcast %cst_35 : f32 to vector<32x1x32xf32>
    %131 = arith.divf %129, %130 : vector<32x1x32xf32>
    %132 = arith.mulf %127, %127 : vector<32x8x32xf32>
    %cst_36 = arith.constant dense<0.000000e+00> : vector<32x32xf32>
    %133 = vector.multi_reduction <add>, %132, %cst_36 [1] : vector<32x8x32xf32> to vector<32x32xf32>
    %134 = vector.shape_cast %133 : vector<32x32xf32> to vector<32x1x32xf32>
    %cst_37 = arith.constant 8.000000e+00 : f32
    %135 = vector.broadcast %cst_37 : f32 to vector<32x1x32xf32>
    %136 = arith.divf %134, %135 : vector<32x1x32xf32>
    %137 = arith.mulf %131, %131 : vector<32x1x32xf32>
    %138 = arith.subf %136, %137 : vector<32x1x32xf32>
    %139 = vector.extract_strided_slice %4 {offsets = [6, 0], sizes = [1, 32], strides = [1, 1]} : vector<8x32xf32> to vector<1x32xf32>
    %140 = vector.extract_strided_slice %4 {offsets = [7, 0], sizes = [1, 32], strides = [1, 1]} : vector<8x32xf32> to vector<1x32xf32>
    %cst_38 = arith.constant 9.99999974E-6 : f32
    %141 = vector.broadcast %cst_38 : f32 to vector<32x1x32xf32>
    %142 = arith.addf %138, %141 : vector<32x1x32xf32>
    %143 = math.rsqrt %142 : vector<32x1x32xf32>
    %144 = vector.shape_cast %139 : vector<1x32xf32> to vector<1x1x32xf32>
    %145 = vector.broadcast %144 : vector<1x1x32xf32> to vector<32x1x32xf32>
    %146 = arith.mulf %145, %143 : vector<32x1x32xf32>
    %147 = arith.mulf %131, %146 : vector<32x1x32xf32>
    %148 = vector.shape_cast %140 : vector<1x32xf32> to vector<1x1x32xf32>
    %149 = vector.broadcast %148 : vector<1x1x32xf32> to vector<32x1x32xf32>
    %150 = arith.subf %149, %147 : vector<32x1x32xf32>
    %151 = vector.broadcast %146 : vector<32x1x32xf32> to vector<32x8x32xf32>
    %152 = arith.mulf %127, %151 : vector<32x8x32xf32>
    %153 = vector.broadcast %150 : vector<32x1x32xf32> to vector<32x8x32xf32>
    %154 = arith.addf %152, %153 : vector<32x8x32xf32>
    %155 = vector.shape_cast %154 : vector<32x8x32xf32> to vector<256x32xf32>
    %156 = vector.extract_strided_slice %155 {offsets = [0, 0], sizes = [256, 16], strides = [1, 1]} : vector<256x32xf32> to vector<256x16xf32>
    %157 = vector.extract_strided_slice %155 {offsets = [0, 16], sizes = [256, 16], strides = [1, 1]} : vector<256x32xf32> to vector<256x16xf32>
    %158 = arith.negf %157 : vector<256x16xf32>
    %159 = math.exp %158 : vector<256x16xf32>
    %cst_39 = arith.constant 1.000000e+00 : f32
    %160 = vector.broadcast %cst_39 : f32 to vector<256x16xf32>
    %161 = arith.addf %160, %159 : vector<256x16xf32>
    %162 = arith.divf %160, %161 : vector<256x16xf32>
    %163 = arith.mulf %156, %162 : vector<256x16xf32>
    %164 = arith.addf %125, %163 : vector<256x16xf32>
    %cst_40 = arith.constant 0.707106769 : f32
    %165 = vector.broadcast %cst_40 : f32 to vector<256x16xf32>
    %166 = arith.mulf %164, %165 : vector<256x16xf32>
    %c0_41 = arith.constant 0 : index
    %c0_42 = arith.constant 0 : index
    %167 = vector.load %arg7[%c0_41, %c0_42] : memref<256x16xf32, #tpu.memory_space<vmem>>, vector<256x16xf32>
    tpu.vector_store %arg7[%c0_41, %c0_42], %166 {strides = array<i32>} : memref<256x16xf32, #tpu.memory_space<vmem>>, vector<256x16xf32>,
    return
  }
  func.func @transform_0(%arg0: i32) -> (i32, i32) {
    %c0_i32 = arith.constant 0 : i32
    %c0_i32_0 = arith.constant 0 : i32
    return %arg0, %c0_i32 : i32, i32
  }
  func.func @transform_1(%arg0: i32) -> (i32, i32) {
    %c0_i32 = arith.constant 0 : i32
    %c0_i32_0 = arith.constant 0 : i32
    %c0_i32_1 = arith.constant 0 : i32
    return %c0_i32, %c0_i32_0 : i32, i32
  }
  func.func @transform_2(%arg0: i32) -> (i32, i32) {
    %c0_i32 = arith.constant 0 : i32
    %c0_i32_0 = arith.constant 0 : i32
    %c0_i32_1 = arith.constant 0 : i32
    return %c0_i32, %c0_i32_0 : i32, i32
  }
  func.func @transform_3(%arg0: i32) -> (i32, i32) {
    %c0_i32 = arith.constant 0 : i32
    %c0_i32_0 = arith.constant 0 : i32
    %c0_i32_1 = arith.constant 0 : i32
    return %c0_i32, %c0_i32_0 : i32, i32
  }
  func.func @transform_4(%arg0: i32) -> (i32, i32) {
    %c0_i32 = arith.constant 0 : i32
    %c0_i32_0 = arith.constant 0 : i32
    %c0_i32_1 = arith.constant 0 : i32
    return %c0_i32, %c0_i32_0 : i32, i32
  }
  func.func @transform_5(%arg0: i32) -> (i32, i32) {
    %c0_i32 = arith.constant 0 : i32
    %c0_i32_0 = arith.constant 0 : i32
    %c0_i32_1 = arith.constant 0 : i32
    return %c0_i32, %c0_i32_0 : i32, i32
  }
  func.func @transform_6(%arg0: i32) -> (i32, i32) {
    %c0_i32 = arith.constant 0 : i32
    %c0_i32_0 = arith.constant 0 : i32
    return %arg0, %c0_i32 : i32, i32
  }
}

</mosaic_0001>

<llo_original>
// kernel: tpu_custom_call.1
$region0: #{tpu_custom_call.1}
  #allocation0 [shape = 'u32[]', space=smem, size = 0x4, offset = 0x4, fixed_abs, tag = 'smem constant byte address 0x4 - core index']
  #allocation1 [shape = 'u32[72,128]{1,0:T(1,128)}', space=vmem, size = 0x9000, scoped, tag = 'internal scratch']
  %s0 = inlined_call_operand.vmem [shape: f32[256,32], index: 0, kind: input, shape index: {}]
  %s1 = inlined_call_operand.vmem [shape: f32[32,32], index: 1, kind: input, shape index: {}]
  %s2 = inlined_call_operand.vmem [shape: f32[16,32], index: 2, kind: input, shape index: {}]
  %s3 = inlined_call_operand.vmem [shape: f32[16,32], index: 3, kind: input, shape index: {}]
  %s4 = inlined_call_operand.vmem [shape: f32[16,32], index: 4, kind: input, shape index: {}]
  %s5 = inlined_call_operand.vmem [shape: f32[8,32], index: 5, kind: input, shape index: {}]
  %s6 = inlined_call_operand.vmem [shape: f32[256,16], index: 6, kind: output, shape index: {}]
  %s7 = sld [smem:[#allocation0]]
  $region34: #{tpu_custom_call.1} parent=0
    _
  %s9 = ssub.s32 1, %s7
  %s10 = scalar_select 0, %s9, %s7
  // Predicated region
  $region2: #{tpu_custom_call.1} parent=0 // pred_check
    _
  $region3: #{tpu_custom_call.1} parent=0 // pred_check_branch
    %12 = sbr.rel (0) target = $region5
  $region4: #{tpu_custom_call.1} parent=0 // pred_region
    _
  $region5: #{tpu_custom_call.1} parent=0 // pred_fallthru
    _
  // Predicated region
  $region6: #{tpu_custom_call.1} parent=0 // pred_check
    _
  $region7: #{tpu_custom_call.1} parent=0 // pred_check_branch
    %14 = sbr.rel (0) target = $region9
  $region8: #{tpu_custom_call.1} parent=0 // pred_region
    _
  $region9: #{tpu_custom_call.1} parent=0 // pred_fallthru
    _
  // Predicated region
  $region10: #{tpu_custom_call.1} parent=0 // pred_check
    _
  $region11: #{tpu_custom_call.1} parent=0 // pred_check_branch
    %16 = sbr.rel (0) target = $region13
  $region12: #{tpu_custom_call.1} parent=0 // pred_region
    _
  $region13: #{tpu_custom_call.1} parent=0 // pred_fallthru
    _
  // Predicated region
  $region14: #{tpu_custom_call.1} parent=0 // pred_check
    _
  $region15: #{tpu_custom_call.1} parent=0 // pred_check_branch
    %18 = sbr.rel (0) target = $region17
  $region16: #{tpu_custom_call.1} parent=0 // pred_region
    _
  $region17: #{tpu_custom_call.1} parent=0 // pred_fallthru
    _
  // Predicated region
  $region18: #{tpu_custom_call.1} parent=0 // pred_check
    _
  $region19: #{tpu_custom_call.1} parent=0 // pred_check_branch
    %20 = sbr.rel (0) target = $region21
  $region20: #{tpu_custom_call.1} parent=0 // pred_region
    _
  $region21: #{tpu_custom_call.1} parent=0 // pred_fallthru
    _
  // Predicated region
  $region22: #{tpu_custom_call.1} parent=0 // pred_check
    _
  $region23: #{tpu_custom_call.1} parent=0 // pred_check_branch
    %22 = sbr.rel (0) target = $region25
  $region24: #{tpu_custom_call.1} parent=0 // pred_region
    _
  $region25: #{tpu_custom_call.1} parent=0 // pred_fallthru
    _
  %v23 = vld [vmem:[%s1] sm:$0xff]
  %v24 = vld [vmem:[%s1 + $0x8] sm:$0xff]
  %v25 = vld [vmem:[%s1 + $0x10] sm:$0xff]
  %v26 = vld [vmem:[%s1 + $0x18] sm:$0xff]
  %v27 = vld [vmem:[%s2] sm:$0xff]
  %v28 = vld [vmem:[%s2 + $0x8] sm:$0xff]
  %v29 = vld [vmem:[%s3] sm:$0xff]
  %v30 = vld [vmem:[%s3 + $0x8] sm:$0xff]
  %v31 = vld [vmem:[%s4] sm:$0xff]
  %v32 = vld [vmem:[%s4 + $0x8] sm:$0xff]
  %v33 = vld [vmem:[%s5] sm:$0xff]
  %v34 = vld [vmem:[%s0] sm:$0xff]
  %v35 = vld [vmem:[%s0 + $0x8] sm:$0xff]
  %v36 = vld [vmem:[%s0 + $0x10] sm:$0xff]
  %v37 = vld [vmem:[%s0 + $0x18] sm:$0xff]
  %v38 = vld [vmem:[%s0 + $0x20] sm:$0xff]
  %v39 = vld [vmem:[%s0 + $0x28] sm:$0xff]
  %v40 = vld [vmem:[%s0 + $0x30] sm:$0xff]
  %v41 = vld [vmem:[%s0 + $0x38] sm:$0xff]
  %v42 = vld [vmem:[%s0 + $0x40] sm:$0xff]
  %v43 = vld [vmem:[%s0 + $0x48] sm:$0xff]
  %v44 = vld [vmem:[%s0 + $0x50] sm:$0xff]
  %v45 = vld [vmem:[%s0 + $0x58] sm:$0xff]
  %v46 = vld [vmem:[%s0 + $0x60] sm:$0xff]
  %v47 = vld [vmem:[%s0 + $0x68] sm:$0xff]
  %v48 = vld [vmem:[%s0 + $0x70] sm:$0xff]
  %v49 = vld [vmem:[%s0 + $0x78] sm:$0xff]
  %v50 = vld [vmem:[%s0 + $0x80] sm:$0xff]
  %v51 = vld [vmem:[%s0 + $0x88] sm:$0xff]
  %v52 = vld [vmem:[%s0 + $0x90] sm:$0xff]
  %v53 = vld [vmem:[%s0 + $0x98] sm:$0xff]
  %v54 = vld [vmem:[%s0 + $0xa0] sm:$0xff]
  %v55 = vld [vmem:[%s0 + $0xa8] sm:$0xff]
  %v56 = vld [vmem:[%s0 + $0xb0] sm:$0xff]
  %v57 = vld [vmem:[%s0 + $0xb8] sm:$0xff]
  %v58 = vld [vmem:[%s0 + $0xc0] sm:$0xff]
  %v59 = vld [vmem:[%s0 + $0xc8] sm:$0xff]
  %v60 = vld [vmem:[%s0 + $0xd0] sm:$0xff]
  %v61 = vld [vmem:[%s0 + $0xd8] sm:$0xff]
  %v62 = vld [vmem:[%s0 + $0xe0] sm:$0xff]
  %v63 = vld [vmem:[%s0 + $0xe8] sm:$0xff]
  %v64 = vld [vmem:[%s0 + $0xf0] sm:$0xff]
  %v65 = vld [vmem:[%s0 + $0xf8] sm:$0xff]
  %vm66 = vcmask 261120
  %v68 = vsel %vm66, %v34, 0
  %v71 = vsel %vm66, %v35, 0
  %v74 = vsel %vm66, %v36, 0
  %v77 = vsel %vm66, %v37, 0
  %v80 = vsel %vm66, %v38, 0
  %v83 = vsel %vm66, %v39, 0
  %v86 = vsel %vm66, %v40, 0
  %v89 = vsel %vm66, %v41, 0
  %v92 = vsel %vm66, %v42, 0
  %v95 = vsel %vm66, %v43, 0
  %v98 = vsel %vm66, %v44, 0
  %v101 = vsel %vm66, %v45, 0
  %v104 = vsel %vm66, %v46, 0
  %v107 = vsel %vm66, %v47, 0
  %v110 = vsel %vm66, %v48, 0
  %v113 = vsel %vm66, %v49, 0
  %v116 = vsel %vm66, %v50, 0
  %v119 = vsel %vm66, %v51, 0
  %v122 = vsel %vm66, %v52, 0
  %v125 = vsel %vm66, %v53, 0
  %v128 = vsel %vm66, %v54, 0
  %v131 = vsel %vm66, %v55, 0
  %v134 = vsel %vm66, %v56, 0
  %v137 = vsel %vm66, %v57, 0
  %v140 = vsel %vm66, %v58, 0
  %v143 = vsel %vm66, %v59, 0
  %v146 = vsel %vm66, %v60, 0
  %v149 = vsel %vm66, %v61, 0
  %v152 = vsel %vm66, %v62, 0
  %v155 = vsel %vm66, %v63, 0
  %v158 = vsel %vm66, %v64, 0
  %v161 = vsel %vm66, %v65, 0
  %163 = vmatpush.msra.mxu0 0.0
  %164 = vmatpush.msra.mxu0 0.0
  %165 = vmatpush.msra.mxu0 0.0
  %166 = vmatpush.msra.mxu0 0.0
  %167 = vmatpush.msra.mxu0 0.0
  %168 = vmatpush.msra.mxu0 0.0
  %169 = vmatpush.msra.mxu0 0.0
  %170 = vmatpush.msra.mxu0 0.0
  %171 = vmatpush.msra.mxu0 0.0
  %172 = vmatpush.msra.mxu0 0.0
  %173 = vmatpush.msra.mxu0 0.0
  %174 = vmatpush.msra.mxu0 0.0
  %175 = vmatpush.msra.mxu0 %v26
  %176 = vmatpush.msra.mxu0 %v25
  %177 = vmatpush.msra.mxu0 %v24
  %178 = vmatpush.msra.mxu0 %v23
  %179 = vmatmul.f32.gmra.mxu0 %v68
  %v180 = vpop.f32.mrf.mxu0
  %v181 = vadd.f32 0.0, %v180
  %182 = vmatmul.f32.gmra.mxu0 %v71
  %v183 = vpop.f32.mrf.mxu0
  %v184 = vadd.f32 0.0, %v183
  %185 = vmatmul.f32.gmra.mxu0 %v74
  %v186 = vpop.f32.mrf.mxu0
  %v187 = vadd.f32 0.0, %v186
  %188 = vmatmul.f32.gmra.mxu0 %v77
  %v189 = vpop.f32.mrf.mxu0
  %v190 = vadd.f32 0.0, %v189
  %191 = vmatmul.f32.gmra.mxu0 %v80
  %v192 = vpop.f32.mrf.mxu0
  %v193 = vadd.f32 0.0, %v192
  %194 = vmatmul.f32.gmra.mxu0 %v83
  %v195 = vpop.f32.mrf.mxu0
  %v196 = vadd.f32 0.0, %v195
  %197 = vmatmul.f32.gmra.mxu0 %v86
  %v198 = vpop.f32.mrf.mxu0
  %v199 = vadd.f32 0.0, %v198
  %200 = vmatmul.f32.gmra.mxu0 %v89
  %v201 = vpop.f32.mrf.mxu0
  %v202 = vadd.f32 0.0, %v201
  %203 = vmatmul.f32.gmra.mxu0 %v92
  %v204 = vpop.f32.mrf.mxu0
  %v205 = vadd.f32 0.0, %v204
  %206 = vmatmul.f32.gmra.mxu0 %v95
  %v207 = vpop.f32.mrf.mxu0
  %v208 = vadd.f32 0.0, %v207
  %209 = vmatmul.f32.gmra.mxu0 %v98
  %v210 = vpop.f32.mrf.mxu0
  %v211 = vadd.f32 0.0, %v210
  %212 = vmatmul.f32.gmra.mxu0 %v101
  %v213 = vpop.f32.mrf.mxu0
  %v214 = vadd.f32 0.0, %v213
  %215 = vmatmul.f32.gmra.mxu0 %v104
  %v216 = vpop.f32.mrf.mxu0
  %v217 = vadd.f32 0.0, %v216
  %218 = vmatmul.f32.gmra.mxu0 %v107
  %v219 = vpop.f32.mrf.mxu0
  %v220 = vadd.f32 0.0, %v219
  %221 = vmatmul.f32.gmra.mxu0 %v110
  %v222 = vpop.f32.mrf.mxu0
  %v223 = vadd.f32 0.0, %v222
  %224 = vmatmul.f32.gmra.mxu0 %v113
  %v225 = vpop.f32.mrf.mxu0
  %v226 = vadd.f32 0.0, %v225
  %227 = vmatmul.f32.gmra.mxu0 %v116
  %v228 = vpop.f32.mrf.mxu0
  %v229 = vadd.f32 0.0, %v228
  %230 = vmatmul.f32.gmra.mxu0 %v119
  %v231 = vpop.f32.mrf.mxu0
  %v232 = vadd.f32 0.0, %v231
  %233 = vmatmul.f32.gmra.mxu0 %v122
  %v234 = vpop.f32.mrf.mxu0
  %v235 = vadd.f32 0.0, %v234
  %236 = vmatmul.f32.gmra.mxu0 %v125
  %v237 = vpop.f32.mrf.mxu0
  %v238 = vadd.f32 0.0, %v237
  %239 = vmatmul.f32.gmra.mxu0 %v128
  %v240 = vpop.f32.mrf.mxu0
  %v241 = vadd.f32 0.0, %v240
  %242 = vmatmul.f32.gmra.mxu0 %v131
  %v243 = vpop.f32.mrf.mxu0
  %v244 = vadd.f32 0.0, %v243
  %245 = vmatmul.f32.gmra.mxu0 %v134
  %v246 = vpop.f32.mrf.mxu0
  %v247 = vadd.f32 0.0, %v246
  %248 = vmatmul.f32.gmra.mxu0 %v137
  %v249 = vpop.f32.mrf.mxu0
  %v250 = vadd.f32 0.0, %v249
  %251 = vmatmul.f32.gmra.mxu0 %v140
  %v252 = vpop.f32.mrf.mxu0
  %v253 = vadd.f32 0.0, %v252
  %254 = vmatmul.f32.gmra.mxu0 %v143
  %v255 = vpop.f32.mrf.mxu0
  %v256 = vadd.f32 0.0, %v255
  %257 = vmatmul.f32.gmra.mxu0 %v146
  %v258 = vpop.f32.mrf.mxu0
  %v259 = vadd.f32 0.0, %v258
  %260 = vmatmul.f32.gmra.mxu0 %v149
  %v261 = vpop.f32.mrf.mxu0
  %v262 = vadd.f32 0.0, %v261
  %263 = vmatmul.f32.gmra.mxu0 %v152
  %v264 = vpop.f32.mrf.mxu0
  %v265 = vadd.f32 0.0, %v264
  %266 = vmatmul.f32.gmra.mxu0 %v155
  %v267 = vpop.f32.mrf.mxu0
  %v268 = vadd.f32 0.0, %v267
  %269 = vmatmul.f32.gmra.mxu0 %v158
  %v270 = vpop.f32.mrf.mxu0
  %v271 = vadd.f32 0.0, %v270
  %272 = vmatmul.f32.gmra.mxu0 %v161
  %v273 = vpop.f32.mrf.mxu0
  %v274 = vadd.f32 0.0, %v273
  %275 = vdwg.mxu0
  %v276 = vsel %vm66, %v181, 0.0
  %v277 = vrot.slane %v276, 4
  %v278 = vadd.f32 %v276, %v277
  %v279 = vrot.slane %v278, 2
  %v280 = vadd.f32 %v278, %v279
  %v281 = vrot.slane %v280, 1
  %v282 = vadd.f32 %v280, %v281
  %v283 = vsel %vm66, %v184, 0.0
  %v284 = vrot.slane %v283, 4
  %v285 = vadd.f32 %v283, %v284
  %v286 = vrot.slane %v285, 2
  %v287 = vadd.f32 %v285, %v286
  %v288 = vrot.slane %v287, 1
  %v289 = vadd.f32 %v287, %v288
  %v290 = vsel %vm66, %v187, 0.0
  %v291 = vrot.slane %v290, 4
  %v292 = vadd.f32 %v290, %v291
  %v293 = vrot.slane %v292, 2
  %v294 = vadd.f32 %v292, %v293
  %v295 = vrot.slane %v294, 1
  %v296 = vadd.f32 %v294, %v295
  %v297 = vsel %vm66, %v190, 0.0
  %v298 = vrot.slane %v297, 4
  %v299 = vadd.f32 %v297, %v298
  %v300 = vrot.slane %v299, 2
  %v301 = vadd.f32 %v299, %v300
  %v302 = vrot.slane %v301, 1
  %v303 = vadd.f32 %v301, %v302
  %v304 = vsel %vm66, %v193, 0.0
  %v305 = vrot.slane %v304, 4
  %v306 = vadd.f32 %v304, %v305
  %v307 = vrot.slane %v306, 2
  %v308 = vadd.f32 %v306, %v307
  %v309 = vrot.slane %v308, 1
  %v310 = vadd.f32 %v308, %v309
  %v311 = vsel %vm66, %v196, 0.0
  %v312 = vrot.slane %v311, 4
  %v313 = vadd.f32 %v311, %v312
  %v314 = vrot.slane %v313, 2
  %v315 = vadd.f32 %v313, %v314
  %v316 = vrot.slane %v315, 1
  %v317 = vadd.f32 %v315, %v316
  %v318 = vsel %vm66, %v199, 0.0
  %v319 = vrot.slane %v318, 4
  %v320 = vadd.f32 %v318, %v319
  %v321 = vrot.slane %v320, 2
  %v322 = vadd.f32 %v320, %v321
  %v323 = vrot.slane %v322, 1
  %v324 = vadd.f32 %v322, %v323
  %v325 = vsel %vm66, %v202, 0.0
  %v326 = vrot.slane %v325, 4
  %v327 = vadd.f32 %v325, %v326
  %v328 = vrot.slane %v327, 2
  %v329 = vadd.f32 %v327, %v328
  %v330 = vrot.slane %v329, 1
  %v331 = vadd.f32 %v329, %v330
  %v332 = vsel %vm66, %v205, 0.0
  %v333 = vrot.slane %v332, 4
  %v334 = vadd.f32 %v332, %v333
  %v335 = vrot.slane %v334, 2
  %v336 = vadd.f32 %v334, %v335
  %v337 = vrot.slane %v336, 1
  %v338 = vadd.f32 %v336, %v337
  %v339 = vsel %vm66, %v208, 0.0
  %v340 = vrot.slane %v339, 4
  %v341 = vadd.f32 %v339, %v340
  %v342 = vrot.slane %v341, 2
  %v343 = vadd.f32 %v341, %v342
  %v344 = vrot.slane %v343, 1
  %v345 = vadd.f32 %v343, %v344
  %v346 = vsel %vm66, %v211, 0.0
  %v347 = vrot.slane %v346, 4
  %v348 = vadd.f32 %v346, %v347
  %v349 = vrot.slane %v348, 2
  %v350 = vadd.f32 %v348, %v349
  %v351 = vrot.slane %v350, 1
  %v352 = vadd.f32 %v350, %v351
  %v353 = vsel %vm66, %v214, 0.0
  %v354 = vrot.slane %v353, 4
  %v355 = vadd.f32 %v353, %v354
  %v356 = vrot.slane %v355, 2
  %v357 = vadd.f32 %v355, %v356
  %v358 = vrot.slane %v357, 1
  %v359 = vadd.f32 %v357, %v358
  %v360 = vsel %vm66, %v217, 0.0
  %v361 = vrot.slane %v360, 4
  %v362 = vadd.f32 %v360, %v361
  %v363 = vrot.slane %v362, 2
  %v364 = vadd.f32 %v362, %v363
  %v365 = vrot.slane %v364, 1
  %v366 = vadd.f32 %v364, %v365
  %v367 = vsel %vm66, %v220, 0.0
  %v368 = vrot.slane %v367, 4
  %v369 = vadd.f32 %v367, %v368
  %v370 = vrot.slane %v369, 2
  %v371 = vadd.f32 %v369, %v370
  %v372 = vrot.slane %v371, 1
  %v373 = vadd.f32 %v371, %v372
  %v374 = vsel %vm66, %v223, 0.0
  %v375 = vrot.slane %v374, 4
  %v376 = vadd.f32 %v374, %v375
  %v377 = vrot.slane %v376, 2
  %v378 = vadd.f32 %v376, %v377
  %v379 = vrot.slane %v378, 1
  %v380 = vadd.f32 %v378, %v379
  %v381 = vsel %vm66, %v226, 0.0
  %v382 = vrot.slane %v381, 4
  %v383 = vadd.f32 %v381, %v382
  %v384 = vrot.slane %v383, 2
  %v385 = vadd.f32 %v383, %v384
  %v386 = vrot.slane %v385, 1
  %v387 = vadd.f32 %v385, %v386
  %v388 = vsel %vm66, %v229, 0.0
  %v389 = vrot.slane %v388, 4
  %v390 = vadd.f32 %v388, %v389
  %v391 = vrot.slane %v390, 2
  %v392 = vadd.f32 %v390, %v391
  %v393 = vrot.slane %v392, 1
  %v394 = vadd.f32 %v392, %v393
  %v395 = vsel %vm66, %v232, 0.0
  %v396 = vrot.slane %v395, 4
  %v397 = vadd.f32 %v395, %v396
  %v398 = vrot.slane %v397, 2
  %v399 = vadd.f32 %v397, %v398
  %v400 = vrot.slane %v399, 1
  %v401 = vadd.f32 %v399, %v400
  %v402 = vsel %vm66, %v235, 0.0
  %v403 = vrot.slane %v402, 4
  %v404 = vadd.f32 %v402, %v403
  %v405 = vrot.slane %v404, 2
  %v406 = vadd.f32 %v404, %v405
  %v407 = vrot.slane %v406, 1
  %v408 = vadd.f32 %v406, %v407
  %v409 = vsel %vm66, %v238, 0.0
  %v410 = vrot.slane %v409, 4
  %v411 = vadd.f32 %v409, %v410
  %v412 = vrot.slane %v411, 2
  %v413 = vadd.f32 %v411, %v412
  %v414 = vrot.slane %v413, 1
  %v415 = vadd.f32 %v413, %v414
  %v416 = vsel %vm66, %v241, 0.0
  %v417 = vrot.slane %v416, 4
  %v418 = vadd.f32 %v416, %v417
  %v419 = vrot.slane %v418, 2
  %v420 = vadd.f32 %v418, %v419
  %v421 = vrot.slane %v420, 1
  %v422 = vadd.f32 %v420, %v421
  %v423 = vsel %vm66, %v244, 0.0
  %v424 = vrot.slane %v423, 4
  %v425 = vadd.f32 %v423, %v424
  %v426 = vrot.slane %v425, 2
  %v427 = vadd.f32 %v425, %v426
  %v428 = vrot.slane %v427, 1
  %v429 = vadd.f32 %v427, %v428
  %v430 = vsel %vm66, %v247, 0.0
  %v431 = vrot.slane %v430, 4
  %v432 = vadd.f32 %v430, %v431
  %v433 = vrot.slane %v432, 2
  %v434 = vadd.f32 %v432, %v433
  %v435 = vrot.slane %v434, 1
  %v436 = vadd.f32 %v434, %v435
  %v437 = vsel %vm66, %v250, 0.0
  %v438 = vrot.slane %v437, 4
  %v439 = vadd.f32 %v437, %v438
  %v440 = vrot.slane %v439, 2
  %v441 = vadd.f32 %v439, %v440
  %v442 = vrot.slane %v441, 1
  %v443 = vadd.f32 %v441, %v442
  %v444 = vsel %vm66, %v253, 0.0
  %v445 = vrot.slane %v444, 4
  %v446 = vadd.f32 %v444, %v445
  %v447 = vrot.slane %v446, 2
  %v448 = vadd.f32 %v446, %v447
  %v449 = vrot.slane %v448, 1
  %v450 = vadd.f32 %v448, %v449
  %v451 = vsel %vm66, %v256, 0.0
  %v452 = vrot.slane %v451, 4
  %v453 = vadd.f32 %v451, %v452
  %v454 = vrot.slane %v453, 2
  %v455 = vadd.f32 %v453, %v454
  %v456 = vrot.slane %v455, 1
  %v457 = vadd.f32 %v455, %v456
  %v458 = vsel %vm66, %v259, 0.0
  %v459 = vrot.slane %v458, 4
  %v460 = vadd.f32 %v458, %v459
  %v461 = vrot.slane %v460, 2
  %v462 = vadd.f32 %v460, %v461
  %v463 = vrot.slane %v462, 1
  %v464 = vadd.f32 %v462, %v463
  %v465 = vsel %vm66, %v262, 0.0
  %v466 = vrot.slane %v465, 4
  %v467 = vadd.f32 %v465, %v466
  %v468 = vrot.slane %v467, 2
  %v469 = vadd.f32 %v467, %v468
  %v470 = vrot.slane %v469, 1
  %v471 = vadd.f32 %v469, %v470
  %v472 = vsel %vm66, %v265, 0.0
  %v473 = vrot.slane %v472, 4
  %v474 = vadd.f32 %v472, %v473
  %v475 = vrot.slane %v474, 2
  %v476 = vadd.f32 %v474, %v475
  %v477 = vrot.slane %v476, 1
  %v478 = vadd.f32 %v476, %v477
  %v479 = vsel %vm66, %v268, 0.0
  %v480 = vrot.slane %v479, 4
  %v481 = vadd.f32 %v479, %v480
  %v482 = vrot.slane %v481, 2
  %v483 = vadd.f32 %v481, %v482
  %v484 = vrot.slane %v483, 1
  %v485 = vadd.f32 %v483, %v484
  %v486 = vsel %vm66, %v271, 0.0
  %v487 = vrot.slane %v486, 4
  %v488 = vadd.f32 %v486, %v487
  %v489 = vrot.slane %v488, 2
  %v490 = vadd.f32 %v488, %v489
  %v491 = vrot.slane %v490, 1
  %v492 = vadd.f32 %v490, %v491
  %v493 = vsel %vm66, %v274, 0.0
  %v494 = vrot.slane %v493, 4
  %v495 = vadd.f32 %v493, %v494
  %v496 = vrot.slane %v495, 2
  %v497 = vadd.f32 %v495, %v496
  %v498 = vrot.slane %v497, 1
  %v499 = vadd.f32 %v497, %v498
  %v500 = vrcp.pop 8.0
  %v501 = vmul.f32 8.0, %v500
  %v502 = vsub.f32 1.0, %v501
  %v503 = vmul.f32 %v500, %v502
  %v504 = vadd.f32 %v500, %v503
  %vm505 = vweird.f32 %v500
  %v506 = vsel %vm505, %v500, %v504
  %v507 = vmul.f32 %v282, %v506
  %v508 = vmul.f32 %v289, %v506
  %v509 = vmul.f32 %v296, %v506
  %v510 = vmul.f32 %v303, %v506
  %v511 = vmul.f32 %v310, %v506
  %v512 = vmul.f32 %v317, %v506
  %v513 = vmul.f32 %v324, %v506
  %v514 = vmul.f32 %v331, %v506
  %v515 = vmul.f32 %v338, %v506
  %v516 = vmul.f32 %v345, %v506
  %v517 = vmul.f32 %v352, %v506
  %v518 = vmul.f32 %v359, %v506
  %v519 = vmul.f32 %v366, %v506
  %v520 = vmul.f32 %v373, %v506
  %v521 = vmul.f32 %v380, %v506
  %v522 = vmul.f32 %v387, %v506
  %v523 = vmul.f32 %v394, %v506
  %v524 = vmul.f32 %v401, %v506
  %v525 = vmul.f32 %v408, %v506
  %v526 = vmul.f32 %v415, %v506
  %v527 = vmul.f32 %v422, %v506
  %v528 = vmul.f32 %v429, %v506
  %v529 = vmul.f32 %v436, %v506
  %v530 = vmul.f32 %v443, %v506
  %v531 = vmul.f32 %v450, %v506
  %v532 = vmul.f32 %v457, %v506
  %v533 = vmul.f32 %v464, %v506
  %v534 = vmul.f32 %v471, %v506
  %v535 = vmul.f32 %v478, %v506
  %v536 = vmul.f32 %v485, %v506
  %v537 = vmul.f32 %v492, %v506
  %v538 = vmul.f32 %v499, %v506
  %v539 = vmul.f32 %v181, %v181
  %v540 = vmul.f32 %v184, %v184
  %v541 = vmul.f32 %v187, %v187
  %v542 = vmul.f32 %v190, %v190
  %v543 = vmul.f32 %v193, %v193
  %v544 = vmul.f32 %v196, %v196
  %v545 = vmul.f32 %v199, %v199
  %v546 = vmul.f32 %v202, %v202
  %v547 = vmul.f32 %v205, %v205
  %v548 = vmul.f32 %v208, %v208
  %v549 = vmul.f32 %v211, %v211
  %v550 = vmul.f32 %v214, %v214
  %v551 = vmul.f32 %v217, %v217
  %v552 = vmul.f32 %v220, %v220
  %v553 = vmul.f32 %v223, %v223
  %v554 = vmul.f32 %v226, %v226
  %v555 = vmul.f32 %v229, %v229
  %v556 = vmul.f32 %v232, %v232
  %v557 = vmul.f32 %v235, %v235
  %v558 = vmul.f32 %v238, %v238
  %v559 = vmul.f32 %v241, %v241
  %v560 = vmul.f32 %v244, %v244
  %v561 = vmul.f32 %v247, %v247
  %v562 = vmul.f32 %v250, %v250
  %v563 = vmul.f32 %v253, %v253
  %v564 = vmul.f32 %v256, %v256
  %v565 = vmul.f32 %v259, %v259
  %v566 = vmul.f32 %v262, %v262
  %v567 = vmul.f32 %v265, %v265
  %v568 = vmul.f32 %v268, %v268
  %v569 = vmul.f32 %v271, %v271
  %v570 = vmul.f32 %v274, %v274
  %v571 = vsel %vm66, %v539, 0.0
  %v572 = vrot.slane %v571, 4
  %v573 = vadd.f32 %v571, %v572
  %v574 = vrot.slane %v573, 2
  %v575 = vadd.f32 %v573, %v574
  %v576 = vrot.slane %v575, 1
  %v577 = vadd.f32 %v575, %v576
  %v578 = vsel %vm66, %v540, 0.0
  %v579 = vrot.slane %v578, 4
  %v580 = vadd.f32 %v578, %v579
  %v581 = vrot.slane %v580, 2
  %v582 = vadd.f32 %v580, %v581
  %v583 = vrot.slane %v582, 1
  %v584 = vadd.f32 %v582, %v583
  %v585 = vsel %vm66, %v541, 0.0
  %v586 = vrot.slane %v585, 4
  %v587 = vadd.f32 %v585, %v586
  %v588 = vrot.slane %v587, 2
  %v589 = vadd.f32 %v587, %v588
  %v590 = vrot.slane %v589, 1
  %v591 = vadd.f32 %v589, %v590
  %v592 = vsel %vm66, %v542, 0.0
  %v593 = vrot.slane %v592, 4
  %v594 = vadd.f32 %v592, %v593
  %v595 = vrot.slane %v594, 2
  %v596 = vadd.f32 %v594, %v595
  %v597 = vrot.slane %v596, 1
  %v598 = vadd.f32 %v596, %v597
  %v599 = vsel %vm66, %v543, 0.0
  %v600 = vrot.slane %v599, 4
  %v601 = vadd.f32 %v599, %v600
  %v602 = vrot.slane %v601, 2
  %v603 = vadd.f32 %v601, %v602
  %v604 = vrot.slane %v603, 1
  %v605 = vadd.f32 %v603, %v604
  %v606 = vsel %vm66, %v544, 0.0
  %v607 = vrot.slane %v606, 4
  %v608 = vadd.f32 %v606, %v607
  %v609 = vrot.slane %v608, 2
  %v610 = vadd.f32 %v608, %v609
  %v611 = vrot.slane %v610, 1
  %v612 = vadd.f32 %v610, %v611
  %v613 = vsel %vm66, %v545, 0.0
  %v614 = vrot.slane %v613, 4
  %v615 = vadd.f32 %v613, %v614
  %v616 = vrot.slane %v615, 2
  %v617 = vadd.f32 %v615, %v616
  %v618 = vrot.slane %v617, 1
  %v619 = vadd.f32 %v617, %v618
  %v620 = vsel %vm66, %v546, 0.0
  %v621 = vrot.slane %v620, 4
  %v622 = vadd.f32 %v620, %v621
  %v623 = vrot.slane %v622, 2
  %v624 = vadd.f32 %v622, %v623
  %v625 = vrot.slane %v624, 1
  %v626 = vadd.f32 %v624, %v625
  %v627 = vsel %vm66, %v547, 0.0
  %v628 = vrot.slane %v627, 4
  %v629 = vadd.f32 %v627, %v628
  %v630 = vrot.slane %v629, 2
  %v631 = vadd.f32 %v629, %v630
  %v632 = vrot.slane %v631, 1
  %v633 = vadd.f32 %v631, %v632
  %v634 = vsel %vm66, %v548, 0.0
  %v635 = vrot.slane %v634, 4
  %v636 = vadd.f32 %v634, %v635
  %v637 = vrot.slane %v636, 2
  %v638 = vadd.f32 %v636, %v637
  %v639 = vrot.slane %v638, 1
  %v640 = vadd.f32 %v638, %v639
  %v641 = vsel %vm66, %v549, 0.0
  %v642 = vrot.slane %v641, 4
  %v643 = vadd.f32 %v641, %v642
  %v644 = vrot.slane %v643, 2
  %v645 = vadd.f32 %v643, %v644
  %v646 = vrot.slane %v645, 1
  %v647 = vadd.f32 %v645, %v646
  %v648 = vsel %vm66, %v550, 0.0
  %v649 = vrot.slane %v648, 4
  %v650 = vadd.f32 %v648, %v649
  %v651 = vrot.slane %v650, 2
  %v652 = vadd.f32 %v650, %v651
  %v653 = vrot.slane %v652, 1
  %v654 = vadd.f32 %v652, %v653
  %v655 = vsel %vm66, %v551, 0.0
  %v656 = vrot.slane %v655, 4
  %v657 = vadd.f32 %v655, %v656
  %v658 = vrot.slane %v657, 2
  %v659 = vadd.f32 %v657, %v658
  %v660 = vrot.slane %v659, 1
  %v661 = vadd.f32 %v659, %v660
  %v662 = vsel %vm66, %v552, 0.0
  %v663 = vrot.slane %v662, 4
  %v664 = vadd.f32 %v662, %v663
  %v665 = vrot.slane %v664, 2
  %v666 = vadd.f32 %v664, %v665
  %v667 = vrot.slane %v666, 1
  %v668 = vadd.f32 %v666, %v667
  %v669 = vsel %vm66, %v553, 0.0
  %v670 = vrot.slane %v669, 4
  %v671 = vadd.f32 %v669, %v670
  %v672 = vrot.slane %v671, 2
  %v673 = vadd.f32 %v671, %v672
  %v674 = vrot.slane %v673, 1
  %v675 = vadd.f32 %v673, %v674
  %v676 = vsel %vm66, %v554, 0.0
  %v677 = vrot.slane %v676, 4
  %v678 = vadd.f32 %v676, %v677
  %v679 = vrot.slane %v678, 2
  %v680 = vadd.f32 %v678, %v679
  %v681 = vrot.slane %v680, 1
  %v682 = vadd.f32 %v680, %v681
  %v683 = vsel %vm66, %v555, 0.0
  %v684 = vrot.slane %v683, 4
  %v685 = vadd.f32 %v683, %v684
  %v686 = vrot.slane %v685, 2
  %v687 = vadd.f32 %v685, %v686
  %v688 = vrot.slane %v687, 1
  %v689 = vadd.f32 %v687, %v688
  %v690 = vsel %vm66, %v556, 0.0
  %v691 = vrot.slane %v690, 4
  %v692 = vadd.f32 %v690, %v691
  %v693 = vrot.slane %v692, 2
  %v694 = vadd.f32 %v692, %v693
  %v695 = vrot.slane %v694, 1
  %v696 = vadd.f32 %v694, %v695
  %v697 = vsel %vm66, %v557, 0.0
  %v698 = vrot.slane %v697, 4
  %v699 = vadd.f32 %v697, %v698
  %v700 = vrot.slane %v699, 2
  %v701 = vadd.f32 %v699, %v700
  %v702 = vrot.slane %v701, 1
  %v703 = vadd.f32 %v701, %v702
  %v704 = vsel %vm66, %v558, 0.0
  %v705 = vrot.slane %v704, 4
  %v706 = vadd.f32 %v704, %v705
  %v707 = vrot.slane %v706, 2
  %v708 = vadd.f32 %v706, %v707
  %v709 = vrot.slane %v708, 1
  %v710 = vadd.f32 %v708, %v709
  %v711 = vsel %vm66, %v559, 0.0
  %v712 = vrot.slane %v711, 4
  %v713 = vadd.f32 %v711, %v712
  %v714 = vrot.slane %v713, 2
  %v715 = vadd.f32 %v713, %v714
  %v716 = vrot.slane %v715, 1
  %v717 = vadd.f32 %v715, %v716
  %v718 = vsel %vm66, %v560, 0.0
  %v719 = vrot.slane %v718, 4
  %v720 = vadd.f32 %v718, %v719
  %v721 = vrot.slane %v720, 2
  %v722 = vadd.f32 %v720, %v721
  %v723 = vrot.slane %v722, 1
  %v724 = vadd.f32 %v722, %v723
  %v725 = vsel %vm66, %v561, 0.0
  %v726 = vrot.slane %v725, 4
  %v727 = vadd.f32 %v725, %v726
  %v728 = vrot.slane %v727, 2
  %v729 = vadd.f32 %v727, %v728
  %v730 = vrot.slane %v729, 1
  %v731 = vadd.f32 %v729, %v730
  %v732 = vsel %vm66, %v562, 0.0
  %v733 = vrot.slane %v732, 4
  %v734 = vadd.f32 %v732, %v733
  %v735 = vrot.slane %v734, 2
  %v736 = vadd.f32 %v734, %v735
  %v737 = vrot.slane %v736, 1
  %v738 = vadd.f32 %v736, %v737
  %v739 = vsel %vm66, %v563, 0.0
  %v740 = vrot.slane %v739, 4
  %v741 = vadd.f32 %v739, %v740
  %v742 = vrot.slane %v741, 2
  %v743 = vadd.f32 %v741, %v742
  %v744 = vrot.slane %v743, 1
  %v745 = vadd.f32 %v743, %v744
  %v746 = vsel %vm66, %v564, 0.0
  %v747 = vrot.slane %v746, 4
  %v748 = vadd.f32 %v746, %v747
  %v749 = vrot.slane %v748, 2
  %v750 = vadd.f32 %v748, %v749
  %v751 = vrot.slane %v750, 1
  %v752 = vadd.f32 %v750, %v751
  %v753 = vsel %vm66, %v565, 0.0
  %v754 = vrot.slane %v753, 4
  %v755 = vadd.f32 %v753, %v754
  %v756 = vrot.slane %v755, 2
  %v757 = vadd.f32 %v755, %v756
  %v758 = vrot.slane %v757, 1
  %v759 = vadd.f32 %v757, %v758
  %v760 = vsel %vm66, %v566, 0.0
  %v761 = vrot.slane %v760, 4
  %v762 = vadd.f32 %v760, %v761
  %v763 = vrot.slane %v762, 2
  %v764 = vadd.f32 %v762, %v763
  %v765 = vrot.slane %v764, 1
  %v766 = vadd.f32 %v764, %v765
  %v767 = vsel %vm66, %v567, 0.0
  %v768 = vrot.slane %v767, 4
  %v769 = vadd.f32 %v767, %v768
  %v770 = vrot.slane %v769, 2
  %v771 = vadd.f32 %v769, %v770
  %v772 = vrot.slane %v771, 1
  %v773 = vadd.f32 %v771, %v772
  %v774 = vsel %vm66, %v568, 0.0
  %v775 = vrot.slane %v774, 4
  %v776 = vadd.f32 %v774, %v775
  %v777 = vrot.slane %v776, 2
  %v778 = vadd.f32 %v776, %v777
  %v779 = vrot.slane %v778, 1
  %v780 = vadd.f32 %v778, %v779
  %v781 = vsel %vm66, %v569, 0.0
  %v782 = vrot.slane %v781, 4
  %v783 = vadd.f32 %v781, %v782
  %v784 = vrot.slane %v783, 2
  %v785 = vadd.f32 %v783, %v784
  %v786 = vrot.slane %v785, 1
  %v787 = vadd.f32 %v785, %v786
  %v788 = vsel %vm66, %v570, 0.0
  %v789 = vrot.slane %v788, 4
  %v790 = vadd.f32 %v788, %v789
  %v791 = vrot.slane %v790, 2
  %v792 = vadd.f32 %v790, %v791
  %v793 = vrot.slane %v792, 1
  %v794 = vadd.f32 %v792, %v793
  %v795 = vmul.f32 %v577, %v506
  %v796 = vmul.f32 %v584, %v506
  %v797 = vmul.f32 %v591, %v506
  %v798 = vmul.f32 %v598, %v506
  %v799 = vmul.f32 %v605, %v506
  %v800 = vmul.f32 %v612, %v506
  %v801 = vmul.f32 %v619, %v506
  %v802 = vmul.f32 %v626, %v506
  %v803 = vmul.f32 %v633, %v506
  %v804 = vmul.f32 %v640, %v506
  %v805 = vmul.f32 %v647, %v506
  %v806 = vmul.f32 %v654, %v506
  %v807 = vmul.f32 %v661, %v506
  %v808 = vmul.f32 %v668, %v506
  %v809 = vmul.f32 %v675, %v506
  %v810 = vmul.f32 %v682, %v506
  %v811 = vmul.f32 %v689, %v506
  %v812 = vmul.f32 %v696, %v506
  %v813 = vmul.f32 %v703, %v506
  %v814 = vmul.f32 %v710, %v506
  %v815 = vmul.f32 %v717, %v506
  %v816 = vmul.f32 %v724, %v506
  %v817 = vmul.f32 %v731, %v506
  %v818 = vmul.f32 %v738, %v506
  %v819 = vmul.f32 %v745, %v506
  %v820 = vmul.f32 %v752, %v506
  %v821 = vmul.f32 %v759, %v506
  %v822 = vmul.f32 %v766, %v506
  %v823 = vmul.f32 %v773, %v506
  %v824 = vmul.f32 %v780, %v506
  %v825 = vmul.f32 %v787, %v506
  %v826 = vmul.f32 %v794, %v506
  %v827 = vmul.f32 %v507, %v507
  %v828 = vmul.f32 %v508, %v508
  %v829 = vmul.f32 %v509, %v509
  %v830 = vmul.f32 %v510, %v510
  %v831 = vmul.f32 %v511, %v511
  %v832 = vmul.f32 %v512, %v512
  %v833 = vmul.f32 %v513, %v513
  %v834 = vmul.f32 %v514, %v514
  %v835 = vmul.f32 %v515, %v515
  %v836 = vmul.f32 %v516, %v516
  %v837 = vmul.f32 %v517, %v517
  %v838 = vmul.f32 %v518, %v518
  %v839 = vmul.f32 %v519, %v519
  %v840 = vmul.f32 %v520, %v520
  %v841 = vmul.f32 %v521, %v521
  %v842 = vmul.f32 %v522, %v522
  %v843 = vmul.f32 %v523, %v523
  %v844 = vmul.f32 %v524, %v524
  %v845 = vmul.f32 %v525, %v525
  %v846 = vmul.f32 %v526, %v526
  %v847 = vmul.f32 %v527, %v527
  %v848 = vmul.f32 %v528, %v528
  %v849 = vmul.f32 %v529, %v529
  %v850 = vmul.f32 %v530, %v530
  %v851 = vmul.f32 %v531, %v531
  %v852 = vmul.f32 %v532, %v532
  %v853 = vmul.f32 %v533, %v533
  %v854 = vmul.f32 %v534, %v534
  %v855 = vmul.f32 %v535, %v535
  %v856 = vmul.f32 %v536, %v536
  %v857 = vmul.f32 %v537, %v537
  %v858 = vmul.f32 %v538, %v538
  %v859 = vsub.f32 %v795, %v827
  %v860 = vsub.f32 %v796, %v828
  %v861 = vsub.f32 %v797, %v829
  %v862 = vsub.f32 %v798, %v830
  %v863 = vsub.f32 %v799, %v831
  %v864 = vsub.f32 %v800, %v832
  %v865 = vsub.f32 %v801, %v833
  %v866 = vsub.f32 %v802, %v834
  %v867 = vsub.f32 %v803, %v835
  %v868 = vsub.f32 %v804, %v836
  %v869 = vsub.f32 %v805, %v837
  %v870 = vsub.f32 %v806, %v838
  %v871 = vsub.f32 %v807, %v839
  %v872 = vsub.f32 %v808, %v840
  %v873 = vsub.f32 %v809, %v841
  %v874 = vsub.f32 %v810, %v842
  %v875 = vsub.f32 %v811, %v843
  %v876 = vsub.f32 %v812, %v844
  %v877 = vsub.f32 %v813, %v845
  %v878 = vsub.f32 %v814, %v846
  %v879 = vsub.f32 %v815, %v847
  %v880 = vsub.f32 %v816, %v848
  %v881 = vsub.f32 %v817, %v849
  %v882 = vsub.f32 %v818, %v850
  %v883 = vsub.f32 %v819, %v851
  %v884 = vsub.f32 %v820, %v852
  %v885 = vsub.f32 %v821, %v853
  %v886 = vsub.f32 %v822, %v854
  %v887 = vsub.f32 %v823, %v855
  %v888 = vsub.f32 %v824, %v856
  %v889 = vsub.f32 %v825, %v857
  %v890 = vsub.f32 %v826, %v858
  %v891 = vadd.f32 %v859, 1e-05
  %v892 = vadd.f32 %v860, 1e-05
  %v893 = vadd.f32 %v861, 1e-05
  %v894 = vadd.f32 %v862, 1e-05
  %v895 = vadd.f32 %v863, 1e-05
  %v896 = vadd.f32 %v864, 1e-05
  %v897 = vadd.f32 %v865, 1e-05
  %v898 = vadd.f32 %v866, 1e-05
  %v899 = vadd.f32 %v867, 1e-05
  %v900 = vadd.f32 %v868, 1e-05
  %v901 = vadd.f32 %v869, 1e-05
  %v902 = vadd.f32 %v870, 1e-05
  %v903 = vadd.f32 %v871, 1e-05
  %v904 = vadd.f32 %v872, 1e-05
  %v905 = vadd.f32 %v873, 1e-05
  %v906 = vadd.f32 %v874, 1e-05
  %v907 = vadd.f32 %v875, 1e-05
  %v908 = vadd.f32 %v876, 1e-05
  %v909 = vadd.f32 %v877, 1e-05
  %v910 = vadd.f32 %v878, 1e-05
  %v911 = vadd.f32 %v879, 1e-05
  %v912 = vadd.f32 %v880, 1e-05
  %v913 = vadd.f32 %v881, 1e-05
  %v914 = vadd.f32 %v882, 1e-05
  %v915 = vadd.f32 %v883, 1e-05
  %v916 = vadd.f32 %v884, 1e-05
  %v917 = vadd.f32 %v885, 1e-05
  %v918 = vadd.f32 %v886, 1e-05
  %v919 = vadd.f32 %v887, 1e-05
  %v920 = vadd.f32 %v888, 1e-05
  %v921 = vadd.f32 %v889, 1e-05
  %v922 = vadd.f32 %v890, 1e-05
  %v923 = vrsqrt.pop %v891
  %v924 = vmul.f32 %v923, %v891
  %v925 = vmul.f32 %v924, %v923
  %v926 = vmul.f32 0.5, %v925
  %v927 = vsub.f32 1.5, %v926
  %v928 = vmul.f32 %v923, %v927
  %vm929 = vweird.f32 %v891
  %vm930 = vweird.f32 %v923
  %vm931 = vmor %vm929, %vm930
  %v932 = vsel %vm931, %v923, %v928
  %v933 = vrsqrt.pop %v892
  %v934 = vmul.f32 %v933, %v892
  %v935 = vmul.f32 %v934, %v933
  %v936 = vmul.f32 0.5, %v935
  %v937 = vsub.f32 1.5, %v936
  %v938 = vmul.f32 %v933, %v937
  %vm939 = vweird.f32 %v892
  %vm940 = vweird.f32 %v933
  %vm941 = vmor %vm939, %vm940
  %v942 = vsel %vm941, %v933, %v938
  %v943 = vrsqrt.pop %v893
  %v944 = vmul.f32 %v943, %v893
  %v945 = vmul.f32 %v944, %v943
  %v946 = vmul.f32 0.5, %v945
  %v947 = vsub.f32 1.5, %v946
  %v948 = vmul.f32 %v943, %v947
  %vm949 = vweird.f32 %v893
  %vm950 = vweird.f32 %v943
  %vm951 = vmor %vm949, %vm950
  %v952 = vsel %vm951, %v943, %v948
  %v953 = vrsqrt.pop %v894
  %v954 = vmul.f32 %v953, %v894
  %v955 = vmul.f32 %v954, %v953
  %v956 = vmul.f32 0.5, %v955
  %v957 = vsub.f32 1.5, %v956
  %v958 = vmul.f32 %v953, %v957
  %vm959 = vweird.f32 %v894
  %vm960 = vweird.f32 %v953
  %vm961 = vmor %vm959, %vm960
  %v962 = vsel %vm961, %v953, %v958
  %v963 = vrsqrt.pop %v895
  %v964 = vmul.f32 %v963, %v895
  %v965 = vmul.f32 %v964, %v963
  %v966 = vmul.f32 0.5, %v965
  %v967 = vsub.f32 1.5, %v966
  %v968 = vmul.f32 %v963, %v967
  %vm969 = vweird.f32 %v895
  %vm970 = vweird.f32 %v963
  %vm971 = vmor %vm969, %vm970
  %v972 = vsel %vm971, %v963, %v968
  %v973 = vrsqrt.pop %v896
  %v974 = vmul.f32 %v973, %v896
  %v975 = vmul.f32 %v974, %v973
  %v976 = vmul.f32 0.5, %v975
  %v977 = vsub.f32 1.5, %v976
  %v978 = vmul.f32 %v973, %v977
  %vm979 = vweird.f32 %v896
  %vm980 = vweird.f32 %v973
  %vm981 = vmor %vm979, %vm980
  %v982 = vsel %vm981, %v973, %v978
  %v983 = vrsqrt.pop %v897
  %v984 = vmul.f32 %v983, %v897
  %v985 = vmul.f32 %v984, %v983
  %v986 = vmul.f32 0.5, %v985
  %v987 = vsub.f32 1.5, %v986
  %v988 = vmul.f32 %v983, %v987
  %vm989 = vweird.f32 %v897
  %vm990 = vweird.f32 %v983
  %vm991 = vmor %vm989, %vm990
  %v992 = vsel %vm991, %v983, %v988
  %v993 = vrsqrt.pop %v898
  %v994 = vmul.f32 %v993, %v898
  %v995 = vmul.f32 %v994, %v993
  %v996 = vmul.f32 0.5, %v995
  %v997 = vsub.f32 1.5, %v996
  %v998 = vmul.f32 %v993, %v997
  %vm999 = vweird.f32 %v898
  %vm1000 = vweird.f32 %v993
  %vm1001 = vmor %vm999, %vm1000
  %v1002 = vsel %vm1001, %v993, %v998
  %v1003 = vrsqrt.pop %v899
  %v1004 = vmul.f32 %v1003, %v899
  %v1005 = vmul.f32 %v1004, %v1003
  %v1006 = vmul.f32 0.5, %v1005
  %v1007 = vsub.f32 1.5, %v1006
  %v1008 = vmul.f32 %v1003, %v1007
  %vm1009 = vweird.f32 %v899
  %vm1010 = vweird.f32 %v1003
  %vm1011 = vmor %vm1009, %vm1010
  %v1012 = vsel %vm1011, %v1003, %v1008
  %v1013 = vrsqrt.pop %v900
  %v1014 = vmul.f32 %v1013, %v900
  %v1015 = vmul.f32 %v1014, %v1013
  %v1016 = vmul.f32 0.5, %v1015
  %v1017 = vsub.f32 1.5, %v1016
  %v1018 = vmul.f32 %v1013, %v1017
  %vm1019 = vweird.f32 %v900
  %vm1020 = vweird.f32 %v1013
  %vm1021 = vmor %vm1019, %vm1020
  %v1022 = vsel %vm1021, %v1013, %v1018
  %v1023 = vrsqrt.pop %v901
  %v1024 = vmul.f32 %v1023, %v901
  %v1025 = vmul.f32 %v1024, %v1023
  %v1026 = vmul.f32 0.5, %v1025
  %v1027 = vsub.f32 1.5, %v1026
  %v1028 = vmul.f32 %v1023, %v1027
  %vm1029 = vweird.f32 %v901
  %vm1030 = vweird.f32 %v1023
  %vm1031 = vmor %vm1029, %vm1030
  %v1032 = vsel %vm1031, %v1023, %v1028
  %v1033 = vrsqrt.pop %v902
  %v1034 = vmul.f32 %v1033, %v902
  %v1035 = vmul.f32 %v1034, %v1033
  %v1036 = vmul.f32 0.5, %v1035
  %v1037 = vsub.f32 1.5, %v1036
  %v1038 = vmul.f32 %v1033, %v1037
  %vm1039 = vweird.f32 %v902
  %vm1040 = vweird.f32 %v1033
  %vm1041 = vmor %vm1039, %vm1040
  %v1042 = vsel %vm1041, %v1033, %v1038
  %v1043 = vrsqrt.pop %v903
  %v1044 = vmul.f32 %v1043, %v903
  %v1045 = vmul.f32 %v1044, %v1043
  %v1046 = vmul.f32 0.5, %v1045
  %v1047 = vsub.f32 1.5, %v1046
  %v1048 = vmul.f32 %v1043, %v1047
  %vm1049 = vweird.f32 %v903
  %vm1050 = vweird.f32 %v1043
  %vm1051 = vmor %vm1049, %vm1050
  %v1052 = vsel %vm1051, %v1043, %v1048
  %v1053 = vrsqrt.pop %v904
  %v1054 = vmul.f32 %v1053, %v904
  %v1055 = vmul.f32 %v1054, %v1053
  %v1056 = vmul.f32 0.5, %v1055
  %v1057 = vsub.f32 1.5, %v1056
  %v1058 = vmul.f32 %v1053, %v1057
  %vm1059 = vweird.f32 %v904
  %vm1060 = vweird.f32 %v1053
  %vm1061 = vmor %vm1059, %vm1060
  %v1062 = vsel %vm1061, %v1053, %v1058
  %v1063 = vrsqrt.pop %v905
  %v1064 = vmul.f32 %v1063, %v905
  %v1065 = vmul.f32 %v1064, %v1063
  %v1066 = vmul.f32 0.5, %v1065
  %v1067 = vsub.f32 1.5, %v1066
  %v1068 = vmul.f32 %v1063, %v1067
  %vm1069 = vweird.f32 %v905
  %vm1070 = vweird.f32 %v1063
  %vm1071 = vmor %vm1069, %vm1070
  %v1072 = vsel %vm1071, %v1063, %v1068
  %v1073 = vrsqrt.pop %v906
  %v1074 = vmul.f32 %v1073, %v906
  %v1075 = vmul.f32 %v1074, %v1073
  %v1076 = vmul.f32 0.5, %v1075
  %v1077 = vsub.f32 1.5, %v1076
  %v1078 = vmul.f32 %v1073, %v1077
  %vm1079 = vweird.f32 %v906
  %vm1080 = vweird.f32 %v1073
  %vm1081 = vmor %vm1079, %vm1080
  %v1082 = vsel %vm1081, %v1073, %v1078
  %v1083 = vrsqrt.pop %v907
  %v1084 = vmul.f32 %v1083, %v907
  %v1085 = vmul.f32 %v1084, %v1083
  %v1086 = vmul.f32 0.5, %v1085
  %v1087 = vsub.f32 1.5, %v1086
  %v1088 = vmul.f32 %v1083, %v1087
  %vm1089 = vweird.f32 %v907
  %vm1090 = vweird.f32 %v1083
  %vm1091 = vmor %vm1089, %vm1090
  %v1092 = vsel %vm1091, %v1083, %v1088
  %v1093 = vrsqrt.pop %v908
  %v1094 = vmul.f32 %v1093, %v908
  %v1095 = vmul.f32 %v1094, %v1093
  %v1096 = vmul.f32 0.5, %v1095
  %v1097 = vsub.f32 1.5, %v1096
  %v1098 = vmul.f32 %v1093, %v1097
  %vm1099 = vweird.f32 %v908
  %vm1100 = vweird.f32 %v1093
  %vm1101 = vmor %vm1099, %vm1100
  %v1102 = vsel %vm1101, %v1093, %v1098
  %v1103 = vrsqrt.pop %v909
  %v1104 = vmul.f32 %v1103, %v909
  %v1105 = vmul.f32 %v1104, %v1103
  %v1106 = vmul.f32 0.5, %v1105
  %v1107 = vsub.f32 1.5, %v1106
  %v1108 = vmul.f32 %v1103, %v1107
  %vm1109 = vweird.f32 %v909
  %vm1110 = vweird.f32 %v1103
  %vm1111 = vmor %vm1109, %vm1110
  %v1112 = vsel %vm1111, %v1103, %v1108
  %v1113 = vrsqrt.pop %v910
  %v1114 = vmul.f32 %v1113, %v910
  %v1115 = vmul.f32 %v1114, %v1113
  %v1116 = vmul.f32 0.5, %v1115
  %v1117 = vsub.f32 1.5, %v1116
  %v1118 = vmul.f32 %v1113, %v1117
  %vm1119 = vweird.f32 %v910
  %vm1120 = vweird.f32 %v1113
  %vm1121 = vmor %vm1119, %vm1120
  %v1122 = vsel %vm1121, %v1113, %v1118
  %v1123 = vrsqrt.pop %v911
  %v1124 = vmul.f32 %v1123, %v911
  %v1125 = vmul.f32 %v1124, %v1123
  %v1126 = vmul.f32 0.5, %v1125
  %v1127 = vsub.f32 1.5, %v1126
  %v1128 = vmul.f32 %v1123, %v1127
  %vm1129 = vweird.f32 %v911
  %vm1130 = vweird.f32 %v1123
  %vm1131 = vmor %vm1129, %vm1130
  %v1132 = vsel %vm1131, %v1123, %v1128
  %v1133 = vrsqrt.pop %v912
  %v1134 = vmul.f32 %v1133, %v912
  %v1135 = vmul.f32 %v1134, %v1133
  %v1136 = vmul.f32 0.5, %v1135
  %v1137 = vsub.f32 1.5, %v1136
  %v1138 = vmul.f32 %v1133, %v1137
  %vm1139 = vweird.f32 %v912
  %vm1140 = vweird.f32 %v1133
  %vm1141 = vmor %vm1139, %vm1140
  %v1142 = vsel %vm1141, %v1133, %v1138
  %v1143 = vrsqrt.pop %v913
  %v1144 = vmul.f32 %v1143, %v913
  %v1145 = vmul.f32 %v1144, %v1143
  %v1146 = vmul.f32 0.5, %v1145
  %v1147 = vsub.f32 1.5, %v1146
  %v1148 = vmul.f32 %v1143, %v1147
  %vm1149 = vweird.f32 %v913
  %vm1150 = vweird.f32 %v1143
  %vm1151 = vmor %vm1149, %vm1150
  %v1152 = vsel %vm1151, %v1143, %v1148
  %v1153 = vrsqrt.pop %v914
  %v1154 = vmul.f32 %v1153, %v914
  %v1155 = vmul.f32 %v1154, %v1153
  %v1156 = vmul.f32 0.5, %v1155
  %v1157 = vsub.f32 1.5, %v1156
  %v1158 = vmul.f32 %v1153, %v1157
  %vm1159 = vweird.f32 %v914
  %vm1160 = vweird.f32 %v1153
  %vm1161 = vmor %vm1159, %vm1160
  %v1162 = vsel %vm1161, %v1153, %v1158
  %v1163 = vrsqrt.pop %v915
  %v1164 = vmul.f32 %v1163, %v915
  %v1165 = vmul.f32 %v1164, %v1163
  %v1166 = vmul.f32 0.5, %v1165
  %v1167 = vsub.f32 1.5, %v1166
  %v1168 = vmul.f32 %v1163, %v1167
  %vm1169 = vweird.f32 %v915
  %vm1170 = vweird.f32 %v1163
  %vm1171 = vmor %vm1169, %vm1170
  %v1172 = vsel %vm1171, %v1163, %v1168
  %v1173 = vrsqrt.pop %v916
  %v1174 = vmul.f32 %v1173, %v916
  %v1175 = vmul.f32 %v1174, %v1173
  %v1176 = vmul.f32 0.5, %v1175
  %v1177 = vsub.f32 1.5, %v1176
  %v1178 = vmul.f32 %v1173, %v1177
  %vm1179 = vweird.f32 %v916
  %vm1180 = vweird.f32 %v1173
  %vm1181 = vmor %vm1179, %vm1180
  %v1182 = vsel %vm1181, %v1173, %v1178
  %v1183 = vrsqrt.pop %v917
  %v1184 = vmul.f32 %v1183, %v917
  %v1185 = vmul.f32 %v1184, %v1183
  %v1186 = vmul.f32 0.5, %v1185
  %v1187 = vsub.f32 1.5, %v1186
  %v1188 = vmul.f32 %v1183, %v1187
  %vm1189 = vweird.f32 %v917
  %vm1190 = vweird.f32 %v1183
  %vm1191 = vmor %vm1189, %vm1190
  %v1192 = vsel %vm1191, %v1183, %v1188
  %v1193 = vrsqrt.pop %v918
  %v1194 = vmul.f32 %v1193, %v918
  %v1195 = vmul.f32 %v1194, %v1193
  %v1196 = vmul.f32 0.5, %v1195
  %v1197 = vsub.f32 1.5, %v1196
  %v1198 = vmul.f32 %v1193, %v1197
  %vm1199 = vweird.f32 %v918
  %vm1200 = vweird.f32 %v1193
  %vm1201 = vmor %vm1199, %vm1200
  %v1202 = vsel %vm1201, %v1193, %v1198
  %v1203 = vrsqrt.pop %v919
  %v1204 = vmul.f32 %v1203, %v919
  %v1205 = vmul.f32 %v1204, %v1203
  %v1206 = vmul.f32 0.5, %v1205
  %v1207 = vsub.f32 1.5, %v1206
  %v1208 = vmul.f32 %v1203, %v1207
  %vm1209 = vweird.f32 %v919
  %vm1210 = vweird.f32 %v1203
  %vm1211 = vmor %vm1209, %vm1210
  %v1212 = vsel %vm1211, %v1203, %v1208
  %v1213 = vrsqrt.pop %v920
  %v1214 = vmul.f32 %v1213, %v920
  %v1215 = vmul.f32 %v1214, %v1213
  %v1216 = vmul.f32 0.5, %v1215
  %v1217 = vsub.f32 1.5, %v1216
  %v1218 = vmul.f32 %v1213, %v1217
  %vm1219 = vweird.f32 %v920
  %vm1220 = vweird.f32 %v1213
  %vm1221 = vmor %vm1219, %vm1220
  %v1222 = vsel %vm1221, %v1213, %v1218
  %v1223 = vrsqrt.pop %v921
  %v1224 = vmul.f32 %v1223, %v921
  %v1225 = vmul.f32 %v1224, %v1223
  %v1226 = vmul.f32 0.5, %v1225
  %v1227 = vsub.f32 1.5, %v1226
  %v1228 = vmul.f32 %v1223, %v1227
  %vm1229 = vweird.f32 %v921
  %vm1230 = vweird.f32 %v1223
  %vm1231 = vmor %vm1229, %vm1230
  %v1232 = vsel %vm1231, %v1223, %v1228
  %v1233 = vrsqrt.pop %v922
  %v1234 = vmul.f32 %v1233, %v922
  %v1235 = vmul.f32 %v1234, %v1233
  %v1236 = vmul.f32 0.5, %v1235
  %v1237 = vsub.f32 1.5, %v1236
  %v1238 = vmul.f32 %v1233, %v1237
  %vm1239 = vweird.f32 %v922
  %vm1240 = vweird.f32 %v1233
  %vm1241 = vmor %vm1239, %vm1240
  %v1242 = vsel %vm1241, %v1233, %v1238
  %v1243 = vmul.f32 %v33, %v932
  %v1244 = vmul.f32 %v33, %v942
  %v1245 = vmul.f32 %v33, %v952
  %v1246 = vmul.f32 %v33, %v962
  %v1247 = vmul.f32 %v33, %v972
  %v1248 = vmul.f32 %v33, %v982
  %v1249 = vmul.f32 %v33, %v992
  %v1250 = vmul.f32 %v33, %v1002
  %v1251 = vmul.f32 %v33, %v1012
  %v1252 = vmul.f32 %v33, %v1022
  %v1253 = vmul.f32 %v33, %v1032
  %v1254 = vmul.f32 %v33, %v1042
  %v1255 = vmul.f32 %v33, %v1052
  %v1256 = vmul.f32 %v33, %v1062
  %v1257 = vmul.f32 %v33, %v1072
  %v1258 = vmul.f32 %v33, %v1082
  %v1259 = vmul.f32 %v33, %v1092
  %v1260 = vmul.f32 %v33, %v1102
  %v1261 = vmul.f32 %v33, %v1112
  %v1262 = vmul.f32 %v33, %v1122
  %v1263 = vmul.f32 %v33, %v1132
  %v1264 = vmul.f32 %v33, %v1142
  %v1265 = vmul.f32 %v33, %v1152
  %v1266 = vmul.f32 %v33, %v1162
  %v1267 = vmul.f32 %v33, %v1172
  %v1268 = vmul.f32 %v33, %v1182
  %v1269 = vmul.f32 %v33, %v1192
  %v1270 = vmul.f32 %v33, %v1202
  %v1271 = vmul.f32 %v33, %v1212
  %v1272 = vmul.f32 %v33, %v1222
  %v1273 = vmul.f32 %v33, %v1232
  %v1274 = vmul.f32 %v33, %v1242
  %v1275 = vmul.f32 %v507, %v1243
  %v1276 = vmul.f32 %v508, %v1244
  %v1277 = vmul.f32 %v509, %v1245
  %v1278 = vmul.f32 %v510, %v1246
  %v1279 = vmul.f32 %v511, %v1247
  %v1280 = vmul.f32 %v512, %v1248
  %v1281 = vmul.f32 %v513, %v1249
  %v1282 = vmul.f32 %v514, %v1250
  %v1283 = vmul.f32 %v515, %v1251
  %v1284 = vmul.f32 %v516, %v1252
  %v1285 = vmul.f32 %v517, %v1253
  %v1286 = vmul.f32 %v518, %v1254
  %v1287 = vmul.f32 %v519, %v1255
  %v1288 = vmul.f32 %v520, %v1256
  %v1289 = vmul.f32 %v521, %v1257
  %v1290 = vmul.f32 %v522, %v1258
  %v1291 = vmul.f32 %v523, %v1259
  %v1292 = vmul.f32 %v524, %v1260
  %v1293 = vmul.f32 %v525, %v1261
  %v1294 = vmul.f32 %v526, %v1262
  %v1295 = vmul.f32 %v527, %v1263
  %v1296 = vmul.f32 %v528, %v1264
  %v1297 = vmul.f32 %v529, %v1265
  %v1298 = vmul.f32 %v530, %v1266
  %v1299 = vmul.f32 %v531, %v1267
  %v1300 = vmul.f32 %v532, %v1268
  %v1301 = vmul.f32 %v533, %v1269
  %v1302 = vmul.f32 %v534, %v1270
  %v1303 = vmul.f32 %v535, %v1271
  %v1304 = vmul.f32 %v536, %v1272
  %v1305 = vmul.f32 %v537, %v1273
  %v1306 = vmul.f32 %v538, %v1274
  %v1339 = vrot.slane %v1275, 7
  %v1340 = vrot.slane %v1276, 7
  %v1341 = vrot.slane %v1277, 7
  %v1342 = vrot.slane %v1278, 7
  %v1343 = vrot.slane %v1279, 7
  %v1344 = vrot.slane %v1280, 7
  %v1345 = vrot.slane %v1281, 7
  %v1346 = vrot.slane %v1282, 7
  %v1347 = vrot.slane %v1283, 7
  %v1348 = vrot.slane %v1284, 7
  %v1349 = vrot.slane %v1285, 7
  %v1350 = vrot.slane %v1286, 7
  %v1351 = vrot.slane %v1287, 7
  %v1352 = vrot.slane %v1288, 7
  %v1353 = vrot.slane %v1289, 7
  %v1354 = vrot.slane %v1290, 7
  %v1355 = vrot.slane %v1291, 7
  %v1356 = vrot.slane %v1292, 7
  %v1357 = vrot.slane %v1293, 7
  %v1358 = vrot.slane %v1294, 7
  %v1359 = vrot.slane %v1295, 7
  %v1360 = vrot.slane %v1296, 7
  %v1361 = vrot.slane %v1297, 7
  %v1362 = vrot.slane %v1298, 7
  %v1363 = vrot.slane %v1299, 7
  %v1364 = vrot.slane %v1300, 7
  %v1365 = vrot.slane %v1301, 7
  %v1366 = vrot.slane %v1302, 7
  %v1367 = vrot.slane %v1303, 7
  %v1368 = vrot.slane %v1304, 7
  %v1369 = vrot.slane %v1305, 7
  %v1370 = vrot.slane %v1306, 7
  %v1403 = vsub.f32 %v33, %v1339
  %v1404 = vsub.f32 %v33, %v1340
  %v1405 = vsub.f32 %v33, %v1341
  %v1406 = vsub.f32 %v33, %v1342
  %v1407 = vsub.f32 %v33, %v1343
  %v1408 = vsub.f32 %v33, %v1344
  %v1409 = vsub.f32 %v33, %v1345
  %v1410 = vsub.f32 %v33, %v1346
  %v1411 = vsub.f32 %v33, %v1347
  %v1412 = vsub.f32 %v33, %v1348
  %v1413 = vsub.f32 %v33, %v1349
  %v1414 = vsub.f32 %v33, %v1350
  %v1415 = vsub.f32 %v33, %v1351
  %v1416 = vsub.f32 %v33, %v1352
  %v1417 = vsub.f32 %v33, %v1353
  %v1418 = vsub.f32 %v33, %v1354
  %v1419 = vsub.f32 %v33, %v1355
  %v1420 = vsub.f32 %v33, %v1356
  %v1421 = vsub.f32 %v33, %v1357
  %v1422 = vsub.f32 %v33, %v1358
  %v1423 = vsub.f32 %v33, %v1359
  %v1424 = vsub.f32 %v33, %v1360
  %v1425 = vsub.f32 %v33, %v1361
  %v1426 = vsub.f32 %v33, %v1362
  %v1427 = vsub.f32 %v33, %v1363
  %v1428 = vsub.f32 %v33, %v1364
  %v1429 = vsub.f32 %v33, %v1365
  %v1430 = vsub.f32 %v33, %v1366
  %v1431 = vsub.f32 %v33, %v1367
  %v1432 = vsub.f32 %v33, %v1368
  %v1433 = vsub.f32 %v33, %v1369
  %v1434 = vsub.f32 %v33, %v1370
  %v1435 = vperm.slane %v1243, 0
  %v1436 = vperm.slane %v1244, 0
  %v1437 = vperm.slane %v1245, 0
  %v1438 = vperm.slane %v1246, 0
  %v1439 = vperm.slane %v1247, 0
  %v1440 = vperm.slane %v1248, 0
  %v1441 = vperm.slane %v1249, 0
  %v1442 = vperm.slane %v1250, 0
  %v1443 = vperm.slane %v1251, 0
  %v1444 = vperm.slane %v1252, 0
  %v1445 = vperm.slane %v1253, 0
  %v1446 = vperm.slane %v1254, 0
  %v1447 = vperm.slane %v1255, 0
  %v1448 = vperm.slane %v1256, 0
  %v1449 = vperm.slane %v1257, 0
  %v1450 = vperm.slane %v1258, 0
  %v1451 = vperm.slane %v1259, 0
  %v1452 = vperm.slane %v1260, 0
  %v1453 = vperm.slane %v1261, 0
  %v1454 = vperm.slane %v1262, 0
  %v1455 = vperm.slane %v1263, 0
  %v1456 = vperm.slane %v1264, 0
  %v1457 = vperm.slane %v1265, 0
  %v1458 = vperm.slane %v1266, 0
  %v1459 = vperm.slane %v1267, 0
  %v1460 = vperm.slane %v1268, 0
  %v1461 = vperm.slane %v1269, 0
  %v1462 = vperm.slane %v1270, 0
  %v1463 = vperm.slane %v1271, 0
  %v1464 = vperm.slane %v1272, 0
  %v1465 = vperm.slane %v1273, 0
  %v1466 = vperm.slane %v1274, 0
  %v1467 = vmul.f32 %v181, %v1435
  %v1468 = vmul.f32 %v184, %v1436
  %v1469 = vmul.f32 %v187, %v1437
  %v1470 = vmul.f32 %v190, %v1438
  %v1471 = vmul.f32 %v193, %v1439
  %v1472 = vmul.f32 %v196, %v1440
  %v1473 = vmul.f32 %v199, %v1441
  %v1474 = vmul.f32 %v202, %v1442
  %v1475 = vmul.f32 %v205, %v1443
  %v1476 = vmul.f32 %v208, %v1444
  %v1477 = vmul.f32 %v211, %v1445
  %v1478 = vmul.f32 %v214, %v1446
  %v1479 = vmul.f32 %v217, %v1447
  %v1480 = vmul.f32 %v220, %v1448
  %v1481 = vmul.f32 %v223, %v1449
  %v1482 = vmul.f32 %v226, %v1450
  %v1483 = vmul.f32 %v229, %v1451
  %v1484 = vmul.f32 %v232, %v1452
  %v1485 = vmul.f32 %v235, %v1453
  %v1486 = vmul.f32 %v238, %v1454
  %v1487 = vmul.f32 %v241, %v1455
  %v1488 = vmul.f32 %v244, %v1456
  %v1489 = vmul.f32 %v247, %v1457
  %v1490 = vmul.f32 %v250, %v1458
  %v1491 = vmul.f32 %v253, %v1459
  %v1492 = vmul.f32 %v256, %v1460
  %v1493 = vmul.f32 %v259, %v1461
  %v1494 = vmul.f32 %v262, %v1462
  %v1495 = vmul.f32 %v265, %v1463
  %v1496 = vmul.f32 %v268, %v1464
  %v1497 = vmul.f32 %v271, %v1465
  %v1498 = vmul.f32 %v274, %v1466
  %v1499 = vperm.slane %v1403, 1
  %v1500 = vperm.slane %v1404, 1
  %v1501 = vperm.slane %v1405, 1
  %v1502 = vperm.slane %v1406, 1
  %v1503 = vperm.slane %v1407, 1
  %v1504 = vperm.slane %v1408, 1
  %v1505 = vperm.slane %v1409, 1
  %v1506 = vperm.slane %v1410, 1
  %v1507 = vperm.slane %v1411, 1
  %v1508 = vperm.slane %v1412, 1
  %v1509 = vperm.slane %v1413, 1
  %v1510 = vperm.slane %v1414, 1
  %v1511 = vperm.slane %v1415, 1
  %v1512 = vperm.slane %v1416, 1
  %v1513 = vperm.slane %v1417, 1
  %v1514 = vperm.slane %v1418, 1
  %v1515 = vperm.slane %v1419, 1
  %v1516 = vperm.slane %v1420, 1
  %v1517 = vperm.slane %v1421, 1
  %v1518 = vperm.slane %v1422, 1
  %v1519 = vperm.slane %v1423, 1
  %v1520 = vperm.slane %v1424, 1
  %v1521 = vperm.slane %v1425, 1
  %v1522 = vperm.slane %v1426, 1
  %v1523 = vperm.slane %v1427, 1
  %v1524 = vperm.slane %v1428, 1
  %v1525 = vperm.slane %v1429, 1
  %v1526 = vperm.slane %v1430, 1
  %v1527 = vperm.slane %v1431, 1
  %v1528 = vperm.slane %v1432, 1
  %v1529 = vperm.slane %v1433, 1
  %v1530 = vperm.slane %v1434, 1
  %v1531 = vadd.f32 %v1467, %v1499
  %v1532 = vadd.f32 %v1468, %v1500
  %v1533 = vadd.f32 %v1469, %v1501
  %v1534 = vadd.f32 %v1470, %v1502
  %v1535 = vadd.f32 %v1471, %v1503
  %v1536 = vadd.f32 %v1472, %v1504
  %v1537 = vadd.f32 %v1473, %v1505
  %v1538 = vadd.f32 %v1474, %v1506
  %v1539 = vadd.f32 %v1475, %v1507
  %v1540 = vadd.f32 %v1476, %v1508
  %v1541 = vadd.f32 %v1477, %v1509
  %v1542 = vadd.f32 %v1478, %v1510
  %v1543 = vadd.f32 %v1479, %v1511
  %v1544 = vadd.f32 %v1480, %v1512
  %v1545 = vadd.f32 %v1481, %v1513
  %v1546 = vadd.f32 %v1482, %v1514
  %v1547 = vadd.f32 %v1483, %v1515
  %v1548 = vadd.f32 %v1484, %v1516
  %v1549 = vadd.f32 %v1485, %v1517
  %v1550 = vadd.f32 %v1486, %v1518
  %v1551 = vadd.f32 %v1487, %v1519
  %v1552 = vadd.f32 %v1488, %v1520
  %v1553 = vadd.f32 %v1489, %v1521
  %v1554 = vadd.f32 %v1490, %v1522
  %v1555 = vadd.f32 %v1491, %v1523
  %v1556 = vadd.f32 %v1492, %v1524
  %v1557 = vadd.f32 %v1493, %v1525
  %v1558 = vadd.f32 %v1494, %v1526
  %v1559 = vadd.f32 %v1495, %v1527
  %v1560 = vadd.f32 %v1496, %v1528
  %v1561 = vadd.f32 %v1497, %v1529
  %v1562 = vadd.f32 %v1498, %v1530
  %v1563 = vxor.u32 %v1531, 2147483648
  %v1564 = vxor.u32 %v1532, 2147483648
  %v1565 = vxor.u32 %v1533, 2147483648
  %v1566 = vxor.u32 %v1534, 2147483648
  %v1567 = vxor.u32 %v1535, 2147483648
  %v1568 = vxor.u32 %v1536, 2147483648
  %v1569 = vxor.u32 %v1537, 2147483648
  %v1570 = vxor.u32 %v1538, 2147483648
  %v1571 = vxor.u32 %v1539, 2147483648
  %v1572 = vxor.u32 %v1540, 2147483648
  %v1573 = vxor.u32 %v1541, 2147483648
  %v1574 = vxor.u32 %v1542, 2147483648
  %v1575 = vxor.u32 %v1543, 2147483648
  %v1576 = vxor.u32 %v1544, 2147483648
  %v1577 = vxor.u32 %v1545, 2147483648
  %v1578 = vxor.u32 %v1546, 2147483648
  %v1579 = vxor.u32 %v1547, 2147483648
  %v1580 = vxor.u32 %v1548, 2147483648
  %v1581 = vxor.u32 %v1549, 2147483648
  %v1582 = vxor.u32 %v1550, 2147483648
  %v1583 = vxor.u32 %v1551, 2147483648
  %v1584 = vxor.u32 %v1552, 2147483648
  %v1585 = vxor.u32 %v1553, 2147483648
  %v1586 = vxor.u32 %v1554, 2147483648
  %v1587 = vxor.u32 %v1555, 2147483648
  %v1588 = vxor.u32 %v1556, 2147483648
  %v1589 = vxor.u32 %v1557, 2147483648
  %v1590 = vxor.u32 %v1558, 2147483648
  %v1591 = vxor.u32 %v1559, 2147483648
  %v1592 = vxor.u32 %v1560, 2147483648
  %v1593 = vxor.u32 %v1561, 2147483648
  %v1594 = vxor.u32 %v1562, 2147483648
  %v1595 = vmul.f32 %v1563, 1.442695
  %v1596 = vpow.pop %v1595
  %v1597 = vmul.f32 %v1564, 1.442695
  %v1598 = vpow.pop %v1597
  %v1599 = vmul.f32 %v1565, 1.442695
  %v1600 = vpow.pop %v1599
  %v1601 = vmul.f32 %v1566, 1.442695
  %v1602 = vpow.pop %v1601
  %v1603 = vmul.f32 %v1567, 1.442695
  %v1604 = vpow.pop %v1603
  %v1605 = vmul.f32 %v1568, 1.442695
  %v1606 = vpow.pop %v1605
  %v1607 = vmul.f32 %v1569, 1.442695
  %v1608 = vpow.pop %v1607
  %v1609 = vmul.f32 %v1570, 1.442695
  %v1610 = vpow.pop %v1609
  %v1611 = vmul.f32 %v1571, 1.442695
  %v1612 = vpow.pop %v1611
  %v1613 = vmul.f32 %v1572, 1.442695
  %v1614 = vpow.pop %v1613
  %v1615 = vmul.f32 %v1573, 1.442695
  %v1616 = vpow.pop %v1615
  %v1617 = vmul.f32 %v1574, 1.442695
  %v1618 = vpow.pop %v1617
  %v1619 = vmul.f32 %v1575, 1.442695
  %v1620 = vpow.pop %v1619
  %v1621 = vmul.f32 %v1576, 1.442695
  %v1622 = vpow.pop %v1621
  %v1623 = vmul.f32 %v1577, 1.442695
  %v1624 = vpow.pop %v1623
  %v1625 = vmul.f32 %v1578, 1.442695
  %v1626 = vpow.pop %v1625
  %v1627 = vmul.f32 %v1579, 1.442695
  %v1628 = vpow.pop %v1627
  %v1629 = vmul.f32 %v1580, 1.442695
  %v1630 = vpow.pop %v1629
  %v1631 = vmul.f32 %v1581, 1.442695
  %v1632 = vpow.pop %v1631
  %v1633 = vmul.f32 %v1582, 1.442695
  %v1634 = vpow.pop %v1633
  %v1635 = vmul.f32 %v1583, 1.442695
  %v1636 = vpow.pop %v1635
  %v1637 = vmul.f32 %v1584, 1.442695
  %v1638 = vpow.pop %v1637
  %v1639 = vmul.f32 %v1585, 1.442695
  %v1640 = vpow.pop %v1639
  %v1641 = vmul.f32 %v1586, 1.442695
  %v1642 = vpow.pop %v1641
  %v1643 = vmul.f32 %v1587, 1.442695
  %v1644 = vpow.pop %v1643
  %v1645 = vmul.f32 %v1588, 1.442695
  %v1646 = vpow.pop %v1645
  %v1647 = vmul.f32 %v1589, 1.442695
  %v1648 = vpow.pop %v1647
  %v1649 = vmul.f32 %v1590, 1.442695
  %v1650 = vpow.pop %v1649
  %v1651 = vmul.f32 %v1591, 1.442695
  %v1652 = vpow.pop %v1651
  %v1653 = vmul.f32 %v1592, 1.442695
  %v1654 = vpow.pop %v1653
  %v1655 = vmul.f32 %v1593, 1.442695
  %v1656 = vpow.pop %v1655
  %v1657 = vmul.f32 %v1594, 1.442695
  %v1658 = vpow.pop %v1657
  %v1659 = vadd.f32 %v1596, 1.0
  %v1660 = vadd.f32 %v1598, 1.0
  %v1661 = vadd.f32 %v1600, 1.0
  %v1662 = vadd.f32 %v1602, 1.0
  %v1663 = vadd.f32 %v1604, 1.0
  %v1664 = vadd.f32 %v1606, 1.0
  %v1665 = vadd.f32 %v1608, 1.0
  %v1666 = vadd.f32 %v1610, 1.0
  %v1667 = vadd.f32 %v1612, 1.0
  %v1668 = vadd.f32 %v1614, 1.0
  %v1669 = vadd.f32 %v1616, 1.0
  %v1670 = vadd.f32 %v1618, 1.0
  %v1671 = vadd.f32 %v1620, 1.0
  %v1672 = vadd.f32 %v1622, 1.0
  %v1673 = vadd.f32 %v1624, 1.0
  %v1674 = vadd.f32 %v1626, 1.0
  %v1675 = vadd.f32 %v1628, 1.0
  %v1676 = vadd.f32 %v1630, 1.0
  %v1677 = vadd.f32 %v1632, 1.0
  %v1678 = vadd.f32 %v1634, 1.0
  %v1679 = vadd.f32 %v1636, 1.0
  %v1680 = vadd.f32 %v1638, 1.0
  %v1681 = vadd.f32 %v1640, 1.0
  %v1682 = vadd.f32 %v1642, 1.0
  %v1683 = vadd.f32 %v1644, 1.0
  %v1684 = vadd.f32 %v1646, 1.0
  %v1685 = vadd.f32 %v1648, 1.0
  %v1686 = vadd.f32 %v1650, 1.0
  %v1687 = vadd.f32 %v1652, 1.0
  %v1688 = vadd.f32 %v1654, 1.0
  %v1689 = vadd.f32 %v1656, 1.0
  %v1690 = vadd.f32 %v1658, 1.0
  %v1691 = vrcp.pop %v1659
  %v1692 = vmul.f32 %v1659, %v1691
  %v1693 = vsub.f32 1.0, %v1692
  %v1694 = vmul.f32 %v1691, %v1693
  %v1695 = vadd.f32 %v1691, %v1694
  %vm1696 = vweird.f32 %v1659
  %vm1697 = vweird.f32 %v1691
  %vm1698 = vmor %vm1696, %vm1697
  %v1699 = vsel %vm1698, %v1691, %v1695
  %v1700 = vand.u32 2147483647, %v1659
  %vm1701 = vcmp.eq.f32.partialorder %v1700, 8.507059e+37
  %v1702 = vand.u32 %v1659, 2147483648
  %v1703 = vor.u32 1.1754944e-38, %v1702
  %v1704 = vsel %vm1701, %v1703, %v1699
  %v1705 = vmul.f32 1.0, %v1704
  %v1706 = vrcp.pop %v1660
  %v1707 = vmul.f32 %v1660, %v1706
  %v1708 = vsub.f32 1.0, %v1707
  %v1709 = vmul.f32 %v1706, %v1708
  %v1710 = vadd.f32 %v1706, %v1709
  %vm1711 = vweird.f32 %v1660
  %vm1712 = vweird.f32 %v1706
  %vm1713 = vmor %vm1711, %vm1712
  %v1714 = vsel %vm1713, %v1706, %v1710
  %v1715 = vand.u32 2147483647, %v1660
  %vm1716 = vcmp.eq.f32.partialorder %v1715, 8.507059e+37
  %v1717 = vand.u32 %v1660, 2147483648
  %v1718 = vor.u32 1.1754944e-38, %v1717
  %v1719 = vsel %vm1716, %v1718, %v1714
  %v1720 = vmul.f32 1.0, %v1719
  %v1721 = vrcp.pop %v1661
  %v1722 = vmul.f32 %v1661, %v1721
  %v1723 = vsub.f32 1.0, %v1722
  %v1724 = vmul.f32 %v1721, %v1723
  %v1725 = vadd.f32 %v1721, %v1724
  %vm1726 = vweird.f32 %v1661
  %vm1727 = vweird.f32 %v1721
  %vm1728 = vmor %vm1726, %vm1727
  %v1729 = vsel %vm1728, %v1721, %v1725
  %v1730 = vand.u32 2147483647, %v1661
  %vm1731 = vcmp.eq.f32.partialorder %v1730, 8.507059e+37
  %v1732 = vand.u32 %v1661, 2147483648
  %v1733 = vor.u32 1.1754944e-38, %v1732
  %v1734 = vsel %vm1731, %v1733, %v1729
  %v1735 = vmul.f32 1.0, %v1734
  %v1736 = vrcp.pop %v1662
  %v1737 = vmul.f32 %v1662, %v1736
  %v1738 = vsub.f32 1.0, %v1737
  %v1739 = vmul.f32 %v1736, %v1738
  %v1740 = vadd.f32 %v1736, %v1739
  %vm1741 = vweird.f32 %v1662
  %vm1742 = vweird.f32 %v1736
  %vm1743 = vmor %vm1741, %vm1742
  %v1744 = vsel %vm1743, %v1736, %v1740
  %v1745 = vand.u32 2147483647, %v1662
  %vm1746 = vcmp.eq.f32.partialorder %v1745, 8.507059e+37
  %v1747 = vand.u32 %v1662, 2147483648
  %v1748 = vor.u32 1.1754944e-38, %v1747
  %v1749 = vsel %vm1746, %v1748, %v1744
  %v1750 = vmul.f32 1.0, %v1749
  %v1751 = vrcp.pop %v1663
  %v1752 = vmul.f32 %v1663, %v1751
  %v1753 = vsub.f32 1.0, %v1752
  %v1754 = vmul.f32 %v1751, %v1753
  %v1755 = vadd.f32 %v1751, %v1754
  %vm1756 = vweird.f32 %v1663
  %vm1757 = vweird.f32 %v1751
  %vm1758 = vmor %vm1756, %vm1757
  %v1759 = vsel %vm1758, %v1751, %v1755
  %v1760 = vand.u32 2147483647, %v1663
  %vm1761 = vcmp.eq.f32.partialorder %v1760, 8.507059e+37
  %v1762 = vand.u32 %v1663, 2147483648
  %v1763 = vor.u32 1.1754944e-38, %v1762
  %v1764 = vsel %vm1761, %v1763, %v1759
  %v1765 = vmul.f32 1.0, %v1764
  %v1766 = vrcp.pop %v1664
  %v1767 = vmul.f32 %v1664, %v1766
  %v1768 = vsub.f32 1.0, %v1767
  %v1769 = vmul.f32 %v1766, %v1768
  %v1770 = vadd.f32 %v1766, %v1769
  %vm1771 = vweird.f32 %v1664
  %vm1772 = vweird.f32 %v1766
  %vm1773 = vmor %vm1771, %vm1772
  %v1774 = vsel %vm1773, %v1766, %v1770
  %v1775 = vand.u32 2147483647, %v1664
  %vm1776 = vcmp.eq.f32.partialorder %v1775, 8.507059e+37
  %v1777 = vand.u32 %v1664, 2147483648
  %v1778 = vor.u32 1.1754944e-38, %v1777
  %v1779 = vsel %vm1776, %v1778, %v1774
  %v1780 = vmul.f32 1.0, %v1779
  %v1781 = vrcp.pop %v1665
  %v1782 = vmul.f32 %v1665, %v1781
  %v1783 = vsub.f32 1.0, %v1782
  %v1784 = vmul.f32 %v1781, %v1783
  %v1785 = vadd.f32 %v1781, %v1784
  %vm1786 = vweird.f32 %v1665
  %vm1787 = vweird.f32 %v1781
  %vm1788 = vmor %vm1786, %vm1787
  %v1789 = vsel %vm1788, %v1781, %v1785
  %v1790 = vand.u32 2147483647, %v1665
  %vm1791 = vcmp.eq.f32.partialorder %v1790, 8.507059e+37
  %v1792 = vand.u32 %v1665, 2147483648
  %v1793 = vor.u32 1.1754944e-38, %v1792
  %v1794 = vsel %vm1791, %v1793, %v1789
  %v1795 = vmul.f32 1.0, %v1794
  %v1796 = vrcp.pop %v1666
  %v1797 = vmul.f32 %v1666, %v1796
  %v1798 = vsub.f32 1.0, %v1797
  %v1799 = vmul.f32 %v1796, %v1798
  %v1800 = vadd.f32 %v1796, %v1799
  %vm1801 = vweird.f32 %v1666
  %vm1802 = vweird.f32 %v1796
  %vm1803 = vmor %vm1801, %vm1802
  %v1804 = vsel %vm1803, %v1796, %v1800
  %v1805 = vand.u32 2147483647, %v1666
  %vm1806 = vcmp.eq.f32.partialorder %v1805, 8.507059e+37
  %v1807 = vand.u32 %v1666, 2147483648
  %v1808 = vor.u32 1.1754944e-38, %v1807
  %v1809 = vsel %vm1806, %v1808, %v1804
  %v1810 = vmul.f32 1.0, %v1809
  %v1811 = vrcp.pop %v1667
  %v1812 = vmul.f32 %v1667, %v1811
  %v1813 = vsub.f32 1.0, %v1812
  %v1814 = vmul.f32 %v1811, %v1813
  %v1815 = vadd.f32 %v1811, %v1814
  %vm1816 = vweird.f32 %v1667
  %vm1817 = vweird.f32 %v1811
  %vm1818 = vmor %vm1816, %vm1817
  %v1819 = vsel %vm1818, %v1811, %v1815
  %v1820 = vand.u32 2147483647, %v1667
  %vm1821 = vcmp.eq.f32.partialorder %v1820, 8.507059e+37
  %v1822 = vand.u32 %v1667, 2147483648
  %v1823 = vor.u32 1.1754944e-38, %v1822
  %v1824 = vsel %vm1821, %v1823, %v1819
  %v1825 = vmul.f32 1.0, %v1824
  %v1826 = vrcp.pop %v1668
  %v1827 = vmul.f32 %v1668, %v1826
  %v1828 = vsub.f32 1.0, %v1827
  %v1829 = vmul.f32 %v1826, %v1828
  %v1830 = vadd.f32 %v1826, %v1829
  %vm1831 = vweird.f32 %v1668
  %vm1832 = vweird.f32 %v1826
  %vm1833 = vmor %vm1831, %vm1832
  %v1834 = vsel %vm1833, %v1826, %v1830
  %v1835 = vand.u32 2147483647, %v1668
  %vm1836 = vcmp.eq.f32.partialorder %v1835, 8.507059e+37
  %v1837 = vand.u32 %v1668, 2147483648
  %v1838 = vor.u32 1.1754944e-38, %v1837
  %v1839 = vsel %vm1836, %v1838, %v1834
  %v1840 = vmul.f32 1.0, %v1839
  %v1841 = vrcp.pop %v1669
  %v1842 = vmul.f32 %v1669, %v1841
  %v1843 = vsub.f32 1.0, %v1842
  %v1844 = vmul.f32 %v1841, %v1843
  %v1845 = vadd.f32 %v1841, %v1844
  %vm1846 = vweird.f32 %v1669
  %vm1847 = vweird.f32 %v1841
  %vm1848 = vmor %vm1846, %vm1847
  %v1849 = vsel %vm1848, %v1841, %v1845
  %v1850 = vand.u32 2147483647, %v1669
  %vm1851 = vcmp.eq.f32.partialorder %v1850, 8.507059e+37
  %v1852 = vand.u32 %v1669, 2147483648
  %v1853 = vor.u32 1.1754944e-38, %v1852
  %v1854 = vsel %vm1851, %v1853, %v1849
  %v1855 = vmul.f32 1.0, %v1854
  %v1856 = vrcp.pop %v1670
  %v1857 = vmul.f32 %v1670, %v1856
  %v1858 = vsub.f32 1.0, %v1857
  %v1859 = vmul.f32 %v1856, %v1858
  %v1860 = vadd.f32 %v1856, %v1859
  %vm1861 = vweird.f32 %v1670
  %vm1862 = vweird.f32 %v1856
  %vm1863 = vmor %vm1861, %vm1862
  %v1864 = vsel %vm1863, %v1856, %v1860
  %v1865 = vand.u32 2147483647, %v1670
  %vm1866 = vcmp.eq.f32.partialorder %v1865, 8.507059e+37
  %v1867 = vand.u32 %v1670, 2147483648
  %v1868 = vor.u32 1.1754944e-38, %v1867
  %v1869 = vsel %vm1866, %v1868, %v1864
  %v1870 = vmul.f32 1.0, %v1869
  %v1871 = vrcp.pop %v1671
  %v1872 = vmul.f32 %v1671, %v1871
  %v1873 = vsub.f32 1.0, %v1872
  %v1874 = vmul.f32 %v1871, %v1873
  %v1875 = vadd.f32 %v1871, %v1874
  %vm1876 = vweird.f32 %v1671
  %vm1877 = vweird.f32 %v1871
  %vm1878 = vmor %vm1876, %vm1877
  %v1879 = vsel %vm1878, %v1871, %v1875
  %v1880 = vand.u32 2147483647, %v1671
  %vm1881 = vcmp.eq.f32.partialorder %v1880, 8.507059e+37
  %v1882 = vand.u32 %v1671, 2147483648
  %v1883 = vor.u32 1.1754944e-38, %v1882
  %v1884 = vsel %vm1881, %v1883, %v1879
  %v1885 = vmul.f32 1.0, %v1884
  %v1886 = vrcp.pop %v1672
  %v1887 = vmul.f32 %v1672, %v1886
  %v1888 = vsub.f32 1.0, %v1887
  %v1889 = vmul.f32 %v1886, %v1888
  %v1890 = vadd.f32 %v1886, %v1889
  %vm1891 = vweird.f32 %v1672
  %vm1892 = vweird.f32 %v1886
  %vm1893 = vmor %vm1891, %vm1892
  %v1894 = vsel %vm1893, %v1886, %v1890
  %v1895 = vand.u32 2147483647, %v1672
  %vm1896 = vcmp.eq.f32.partialorder %v1895, 8.507059e+37
  %v1897 = vand.u32 %v1672, 2147483648
  %v1898 = vor.u32 1.1754944e-38, %v1897
  %v1899 = vsel %vm1896, %v1898, %v1894
  %v1900 = vmul.f32 1.0, %v1899
  %v1901 = vrcp.pop %v1673
  %v1902 = vmul.f32 %v1673, %v1901
  %v1903 = vsub.f32 1.0, %v1902
  %v1904 = vmul.f32 %v1901, %v1903
  %v1905 = vadd.f32 %v1901, %v1904
  %vm1906 = vweird.f32 %v1673
  %vm1907 = vweird.f32 %v1901
  %vm1908 = vmor %vm1906, %vm1907
  %v1909 = vsel %vm1908, %v1901, %v1905
  %v1910 = vand.u32 2147483647, %v1673
  %vm1911 = vcmp.eq.f32.partialorder %v1910, 8.507059e+37
  %v1912 = vand.u32 %v1673, 2147483648
  %v1913 = vor.u32 1.1754944e-38, %v1912
  %v1914 = vsel %vm1911, %v1913, %v1909
  %v1915 = vmul.f32 1.0, %v1914
  %v1916 = vrcp.pop %v1674
  %v1917 = vmul.f32 %v1674, %v1916
  %v1918 = vsub.f32 1.0, %v1917
  %v1919 = vmul.f32 %v1916, %v1918
  %v1920 = vadd.f32 %v1916, %v1919
  %vm1921 = vweird.f32 %v1674
  %vm1922 = vweird.f32 %v1916
  %vm1923 = vmor %vm1921, %vm1922
  %v1924 = vsel %vm1923, %v1916, %v1920
  %v1925 = vand.u32 2147483647, %v1674
  %vm1926 = vcmp.eq.f32.partialorder %v1925, 8.507059e+37
  %v1927 = vand.u32 %v1674, 2147483648
  %v1928 = vor.u32 1.1754944e-38, %v1927
  %v1929 = vsel %vm1926, %v1928, %v1924
  %v1930 = vmul.f32 1.0, %v1929
  %v1931 = vrcp.pop %v1675
  %v1932 = vmul.f32 %v1675, %v1931
  %v1933 = vsub.f32 1.0, %v1932
  %v1934 = vmul.f32 %v1931, %v1933
  %v1935 = vadd.f32 %v1931, %v1934
  %vm1936 = vweird.f32 %v1675
  %vm1937 = vweird.f32 %v1931
  %vm1938 = vmor %vm1936, %vm1937
  %v1939 = vsel %vm1938, %v1931, %v1935
  %v1940 = vand.u32 2147483647, %v1675
  %vm1941 = vcmp.eq.f32.partialorder %v1940, 8.507059e+37
  %v1942 = vand.u32 %v1675, 2147483648
  %v1943 = vor.u32 1.1754944e-38, %v1942
  %v1944 = vsel %vm1941, %v1943, %v1939
  %v1945 = vmul.f32 1.0, %v1944
  %v1946 = vrcp.pop %v1676
  %v1947 = vmul.f32 %v1676, %v1946
  %v1948 = vsub.f32 1.0, %v1947
  %v1949 = vmul.f32 %v1946, %v1948
  %v1950 = vadd.f32 %v1946, %v1949
  %vm1951 = vweird.f32 %v1676
  %vm1952 = vweird.f32 %v1946
  %vm1953 = vmor %vm1951, %vm1952
  %v1954 = vsel %vm1953, %v1946, %v1950
  %v1955 = vand.u32 2147483647, %v1676
  %vm1956 = vcmp.eq.f32.partialorder %v1955, 8.507059e+37
  %v1957 = vand.u32 %v1676, 2147483648
  %v1958 = vor.u32 1.1754944e-38, %v1957
  %v1959 = vsel %vm1956, %v1958, %v1954
  %v1960 = vmul.f32 1.0, %v1959
  %v1961 = vrcp.pop %v1677
  %v1962 = vmul.f32 %v1677, %v1961
  %v1963 = vsub.f32 1.0, %v1962
  %v1964 = vmul.f32 %v1961, %v1963
  %v1965 = vadd.f32 %v1961, %v1964
  %vm1966 = vweird.f32 %v1677
  %vm1967 = vweird.f32 %v1961
  %vm1968 = vmor %vm1966, %vm1967
  %v1969 = vsel %vm1968, %v1961, %v1965
  %v1970 = vand.u32 2147483647, %v1677
  %vm1971 = vcmp.eq.f32.partialorder %v1970, 8.507059e+37
  %v1972 = vand.u32 %v1677, 2147483648
  %v1973 = vor.u32 1.1754944e-38, %v1972
  %v1974 = vsel %vm1971, %v1973, %v1969
  %v1975 = vmul.f32 1.0, %v1974
  %v1976 = vrcp.pop %v1678
  %v1977 = vmul.f32 %v1678, %v1976
  %v1978 = vsub.f32 1.0, %v1977
  %v1979 = vmul.f32 %v1976, %v1978
  %v1980 = vadd.f32 %v1976, %v1979
  %vm1981 = vweird.f32 %v1678
  %vm1982 = vweird.f32 %v1976
  %vm1983 = vmor %vm1981, %vm1982
  %v1984 = vsel %vm1983, %v1976, %v1980
  %v1985 = vand.u32 2147483647, %v1678
  %vm1986 = vcmp.eq.f32.partialorder %v1985, 8.507059e+37
  %v1987 = vand.u32 %v1678, 2147483648
  %v1988 = vor.u32 1.1754944e-38, %v1987
  %v1989 = vsel %vm1986, %v1988, %v1984
  %v1990 = vmul.f32 1.0, %v1989
  %v1991 = vrcp.pop %v1679
  %v1992 = vmul.f32 %v1679, %v1991
  %v1993 = vsub.f32 1.0, %v1992
  %v1994 = vmul.f32 %v1991, %v1993
  %v1995 = vadd.f32 %v1991, %v1994
  %vm1996 = vweird.f32 %v1679
  %vm1997 = vweird.f32 %v1991
  %vm1998 = vmor %vm1996, %vm1997
  %v1999 = vsel %vm1998, %v1991, %v1995
  %v2000 = vand.u32 2147483647, %v1679
  %vm2001 = vcmp.eq.f32.partialorder %v2000, 8.507059e+37
  %v2002 = vand.u32 %v1679, 2147483648
  %v2003 = vor.u32 1.1754944e-38, %v2002
  %v2004 = vsel %vm2001, %v2003, %v1999
  %v2005 = vmul.f32 1.0, %v2004
  %v2006 = vrcp.pop %v1680
  %v2007 = vmul.f32 %v1680, %v2006
  %v2008 = vsub.f32 1.0, %v2007
  %v2009 = vmul.f32 %v2006, %v2008
  %v2010 = vadd.f32 %v2006, %v2009
  %vm2011 = vweird.f32 %v1680
  %vm2012 = vweird.f32 %v2006
  %vm2013 = vmor %vm2011, %vm2012
  %v2014 = vsel %vm2013, %v2006, %v2010
  %v2015 = vand.u32 2147483647, %v1680
  %vm2016 = vcmp.eq.f32.partialorder %v2015, 8.507059e+37
  %v2017 = vand.u32 %v1680, 2147483648
  %v2018 = vor.u32 1.1754944e-38, %v2017
  %v2019 = vsel %vm2016, %v2018, %v2014
  %v2020 = vmul.f32 1.0, %v2019
  %v2021 = vrcp.pop %v1681
  %v2022 = vmul.f32 %v1681, %v2021
  %v2023 = vsub.f32 1.0, %v2022
  %v2024 = vmul.f32 %v2021, %v2023
  %v2025 = vadd.f32 %v2021, %v2024
  %vm2026 = vweird.f32 %v1681
  %vm2027 = vweird.f32 %v2021
  %vm2028 = vmor %vm2026, %vm2027
  %v2029 = vsel %vm2028, %v2021, %v2025
  %v2030 = vand.u32 2147483647, %v1681
  %vm2031 = vcmp.eq.f32.partialorder %v2030, 8.507059e+37
  %v2032 = vand.u32 %v1681, 2147483648
  %v2033 = vor.u32 1.1754944e-38, %v2032
  %v2034 = vsel %vm2031, %v2033, %v2029
  %v2035 = vmul.f32 1.0, %v2034
  %v2036 = vrcp.pop %v1682
  %v2037 = vmul.f32 %v1682, %v2036
  %v2038 = vsub.f32 1.0, %v2037
  %v2039 = vmul.f32 %v2036, %v2038
  %v2040 = vadd.f32 %v2036, %v2039
  %vm2041 = vweird.f32 %v1682
  %vm2042 = vweird.f32 %v2036
  %vm2043 = vmor %vm2041, %vm2042
  %v2044 = vsel %vm2043, %v2036, %v2040
  %v2045 = vand.u32 2147483647, %v1682
  %vm2046 = vcmp.eq.f32.partialorder %v2045, 8.507059e+37
  %v2047 = vand.u32 %v1682, 2147483648
  %v2048 = vor.u32 1.1754944e-38, %v2047
  %v2049 = vsel %vm2046, %v2048, %v2044
  %v2050 = vmul.f32 1.0, %v2049
  %v2051 = vrcp.pop %v1683
  %v2052 = vmul.f32 %v1683, %v2051
  %v2053 = vsub.f32 1.0, %v2052
  %v2054 = vmul.f32 %v2051, %v2053
  %v2055 = vadd.f32 %v2051, %v2054
  %vm2056 = vweird.f32 %v1683
  %vm2057 = vweird.f32 %v2051
  %vm2058 = vmor %vm2056, %vm2057
  %v2059 = vsel %vm2058, %v2051, %v2055
  %v2060 = vand.u32 2147483647, %v1683
  %vm2061 = vcmp.eq.f32.partialorder %v2060, 8.507059e+37
  %v2062 = vand.u32 %v1683, 2147483648
  %v2063 = vor.u32 1.1754944e-38, %v2062
  %v2064 = vsel %vm2061, %v2063, %v2059
  %v2065 = vmul.f32 1.0, %v2064
  %v2066 = vrcp.pop %v1684
  %v2067 = vmul.f32 %v1684, %v2066
  %v2068 = vsub.f32 1.0, %v2067
  %v2069 = vmul.f32 %v2066, %v2068
  %v2070 = vadd.f32 %v2066, %v2069
  %vm2071 = vweird.f32 %v1684
  %vm2072 = vweird.f32 %v2066
  %vm2073 = vmor %vm2071, %vm2072
  %v2074 = vsel %vm2073, %v2066, %v2070
  %v2075 = vand.u32 2147483647, %v1684
  %vm2076 = vcmp.eq.f32.partialorder %v2075, 8.507059e+37
  %v2077 = vand.u32 %v1684, 2147483648
  %v2078 = vor.u32 1.1754944e-38, %v2077
  %v2079 = vsel %vm2076, %v2078, %v2074
  %v2080 = vmul.f32 1.0, %v2079
  %v2081 = vrcp.pop %v1685
  %v2082 = vmul.f32 %v1685, %v2081
  %v2083 = vsub.f32 1.0, %v2082
  %v2084 = vmul.f32 %v2081, %v2083
  %v2085 = vadd.f32 %v2081, %v2084
  %vm2086 = vweird.f32 %v1685
  %vm2087 = vweird.f32 %v2081
  %vm2088 = vmor %vm2086, %vm2087
  %v2089 = vsel %vm2088, %v2081, %v2085
  %v2090 = vand.u32 2147483647, %v1685
  %vm2091 = vcmp.eq.f32.partialorder %v2090, 8.507059e+37
  %v2092 = vand.u32 %v1685, 2147483648
  %v2093 = vor.u32 1.1754944e-38, %v2092
  %v2094 = vsel %vm2091, %v2093, %v2089
  %v2095 = vmul.f32 1.0, %v2094
  %v2096 = vrcp.pop %v1686
  %v2097 = vmul.f32 %v1686, %v2096
  %v2098 = vsub.f32 1.0, %v2097
  %v2099 = vmul.f32 %v2096, %v2098
  %v2100 = vadd.f32 %v2096, %v2099
  %vm2101 = vweird.f32 %v1686
  %vm2102 = vweird.f32 %v2096
  %vm2103 = vmor %vm2101, %vm2102
  %v2104 = vsel %vm2103, %v2096, %v2100
  %v2105 = vand.u32 2147483647, %v1686
  %vm2106 = vcmp.eq.f32.partialorder %v2105, 8.507059e+37
  %v2107 = vand.u32 %v1686, 2147483648
  %v2108 = vor.u32 1.1754944e-38, %v2107
  %v2109 = vsel %vm2106, %v2108, %v2104
  %v2110 = vmul.f32 1.0, %v2109
  %v2111 = vrcp.pop %v1687
  %v2112 = vmul.f32 %v1687, %v2111
  %v2113 = vsub.f32 1.0, %v2112
  %v2114 = vmul.f32 %v2111, %v2113
  %v2115 = vadd.f32 %v2111, %v2114
  %vm2116 = vweird.f32 %v1687
  %vm2117 = vweird.f32 %v2111
  %vm2118 = vmor %vm2116, %vm2117
  %v2119 = vsel %vm2118, %v2111, %v2115
  %v2120 = vand.u32 2147483647, %v1687
  %vm2121 = vcmp.eq.f32.partialorder %v2120, 8.507059e+37
  %v2122 = vand.u32 %v1687, 2147483648
  %v2123 = vor.u32 1.1754944e-38, %v2122
  %v2124 = vsel %vm2121, %v2123, %v2119
  %v2125 = vmul.f32 1.0, %v2124
  %v2126 = vrcp.pop %v1688
  %v2127 = vmul.f32 %v1688, %v2126
  %v2128 = vsub.f32 1.0, %v2127
  %v2129 = vmul.f32 %v2126, %v2128
  %v2130 = vadd.f32 %v2126, %v2129
  %vm2131 = vweird.f32 %v1688
  %vm2132 = vweird.f32 %v2126
  %vm2133 = vmor %vm2131, %vm2132
  %v2134 = vsel %vm2133, %v2126, %v2130
  %v2135 = vand.u32 2147483647, %v1688
  %vm2136 = vcmp.eq.f32.partialorder %v2135, 8.507059e+37
  %v2137 = vand.u32 %v1688, 2147483648
  %v2138 = vor.u32 1.1754944e-38, %v2137
  %v2139 = vsel %vm2136, %v2138, %v2134
  %v2140 = vmul.f32 1.0, %v2139
  %v2141 = vrcp.pop %v1689
  %v2142 = vmul.f32 %v1689, %v2141
  %v2143 = vsub.f32 1.0, %v2142
  %v2144 = vmul.f32 %v2141, %v2143
  %v2145 = vadd.f32 %v2141, %v2144
  %vm2146 = vweird.f32 %v1689
  %vm2147 = vweird.f32 %v2141
  %vm2148 = vmor %vm2146, %vm2147
  %v2149 = vsel %vm2148, %v2141, %v2145
  %v2150 = vand.u32 2147483647, %v1689
  %vm2151 = vcmp.eq.f32.partialorder %v2150, 8.507059e+37
  %v2152 = vand.u32 %v1689, 2147483648
  %v2153 = vor.u32 1.1754944e-38, %v2152
  %v2154 = vsel %vm2151, %v2153, %v2149
  %v2155 = vmul.f32 1.0, %v2154
  %v2156 = vrcp.pop %v1690
  %v2157 = vmul.f32 %v1690, %v2156
  %v2158 = vsub.f32 1.0, %v2157
  %v2159 = vmul.f32 %v2156, %v2158
  %v2160 = vadd.f32 %v2156, %v2159
  %vm2161 = vweird.f32 %v1690
  %vm2162 = vweird.f32 %v2156
  %vm2163 = vmor %vm2161, %vm2162
  %v2164 = vsel %vm2163, %v2156, %v2160
  %v2165 = vand.u32 2147483647, %v1690
  %vm2166 = vcmp.eq.f32.partialorder %v2165, 8.507059e+37
  %v2167 = vand.u32 %v1690, 2147483648
  %v2168 = vor.u32 1.1754944e-38, %v2167
  %v2169 = vsel %vm2166, %v2168, %v2164
  %v2170 = vmul.f32 1.0, %v2169
  %2203 = vrot.lane.b32.xlu0 %v1705, 112
  %v2204 = vpop.permute.xlu0 %2203
  %2205 = vrot.lane.b32.xlu0 %v1720, 112
  %v2206 = vpop.permute.xlu0 %2205
  %2207 = vrot.lane.b32.xlu0 %v1735, 112
  %v2208 = vpop.permute.xlu0 %2207
  %2209 = vrot.lane.b32.xlu0 %v1750, 112
  %v2210 = vpop.permute.xlu0 %2209
  %2211 = vrot.lane.b32.xlu0 %v1765, 112
  %v2212 = vpop.permute.xlu0 %2211
  %2213 = vrot.lane.b32.xlu0 %v1780, 112
  %v2214 = vpop.permute.xlu0 %2213
  %2215 = vrot.lane.b32.xlu0 %v1795, 112
  %v2216 = vpop.permute.xlu0 %2215
  %2217 = vrot.lane.b32.xlu0 %v1810, 112
  %v2218 = vpop.permute.xlu0 %2217
  %2219 = vrot.lane.b32.xlu0 %v1825, 112
  %v2220 = vpop.permute.xlu0 %2219
  %2221 = vrot.lane.b32.xlu0 %v1840, 112
  %v2222 = vpop.permute.xlu0 %2221
  %2223 = vrot.lane.b32.xlu0 %v1855, 112
  %v2224 = vpop.permute.xlu0 %2223
  %2225 = vrot.lane.b32.xlu0 %v1870, 112
  %v2226 = vpop.permute.xlu0 %2225
  %2227 = vrot.lane.b32.xlu0 %v1885, 112
  %v2228 = vpop.permute.xlu0 %2227
  %2229 = vrot.lane.b32.xlu0 %v1900, 112
  %v2230 = vpop.permute.xlu0 %2229
  %2231 = vrot.lane.b32.xlu0 %v1915, 112
  %v2232 = vpop.permute.xlu0 %2231
  %2233 = vrot.lane.b32.xlu0 %v1930, 112
  %v2234 = vpop.permute.xlu0 %2233
  %2235 = vrot.lane.b32.xlu0 %v1945, 112
  %v2236 = vpop.permute.xlu0 %2235
  %2237 = vrot.lane.b32.xlu0 %v1960, 112
  %v2238 = vpop.permute.xlu0 %2237
  %2239 = vrot.lane.b32.xlu0 %v1975, 112
  %v2240 = vpop.permute.xlu0 %2239
  %2241 = vrot.lane.b32.xlu0 %v1990, 112
  %v2242 = vpop.permute.xlu0 %2241
  %2243 = vrot.lane.b32.xlu0 %v2005, 112
  %v2244 = vpop.permute.xlu0 %2243
  %2245 = vrot.lane.b32.xlu0 %v2020, 112
  %v2246 = vpop.permute.xlu0 %2245
  %2247 = vrot.lane.b32.xlu0 %v2035, 112
  %v2248 = vpop.permute.xlu0 %2247
  %2249 = vrot.lane.b32.xlu0 %v2050, 112
  %v2250 = vpop.permute.xlu0 %2249
  %2251 = vrot.lane.b32.xlu0 %v2065, 112
  %v2252 = vpop.permute.xlu0 %2251
  %2253 = vrot.lane.b32.xlu0 %v2080, 112
  %v2254 = vpop.permute.xlu0 %2253
  %2255 = vrot.lane.b32.xlu0 %v2095, 112
  %v2256 = vpop.permute.xlu0 %2255
  %2257 = vrot.lane.b32.xlu0 %v2110, 112
  %v2258 = vpop.permute.xlu0 %2257
  %2259 = vrot.lane.b32.xlu0 %v2125, 112
  %v2260 = vpop.permute.xlu0 %2259
  %2261 = vrot.lane.b32.xlu0 %v2140, 112
  %v2262 = vpop.permute.xlu0 %2261
  %2263 = vrot.lane.b32.xlu0 %v2155, 112
  %v2264 = vpop.permute.xlu0 %2263
  %2265 = vrot.lane.b32.xlu0 %v2170, 112
  %v2266 = vpop.permute.xlu0 %2265
  %v2299 = vmul.f32 %v1531, %v2204
  %v2300 = vmul.f32 %v1532, %v2206
  %v2301 = vmul.f32 %v1533, %v2208
  %v2302 = vmul.f32 %v1534, %v2210
  %v2303 = vmul.f32 %v1535, %v2212
  %v2304 = vmul.f32 %v1536, %v2214
  %v2305 = vmul.f32 %v1537, %v2216
  %v2306 = vmul.f32 %v1538, %v2218
  %v2307 = vmul.f32 %v1539, %v2220
  %v2308 = vmul.f32 %v1540, %v2222
  %v2309 = vmul.f32 %v1541, %v2224
  %v2310 = vmul.f32 %v1542, %v2226
  %v2311 = vmul.f32 %v1543, %v2228
  %v2312 = vmul.f32 %v1544, %v2230
  %v2313 = vmul.f32 %v1545, %v2232
  %v2314 = vmul.f32 %v1546, %v2234
  %v2315 = vmul.f32 %v1547, %v2236
  %v2316 = vmul.f32 %v1548, %v2238
  %v2317 = vmul.f32 %v1549, %v2240
  %v2318 = vmul.f32 %v1550, %v2242
  %v2319 = vmul.f32 %v1551, %v2244
  %v2320 = vmul.f32 %v1552, %v2246
  %v2321 = vmul.f32 %v1553, %v2248
  %v2322 = vmul.f32 %v1554, %v2250
  %v2323 = vmul.f32 %v1555, %v2252
  %v2324 = vmul.f32 %v1556, %v2254
  %v2325 = vmul.f32 %v1557, %v2256
  %v2326 = vmul.f32 %v1558, %v2258
  %v2327 = vmul.f32 %v1559, %v2260
  %v2328 = vmul.f32 %v1560, %v2262
  %v2329 = vmul.f32 %v1561, %v2264
  %v2330 = vmul.f32 %v1562, %v2266
  %vm2331 = vcmask 130048
  %v2333 = vsel %vm2331, %v2299, 0
  %v2336 = vsel %vm2331, %v2300, 0
  %v2339 = vsel %vm2331, %v2301, 0
  %v2342 = vsel %vm2331, %v2302, 0
  %v2345 = vsel %vm2331, %v2303, 0
  %v2348 = vsel %vm2331, %v2304, 0
  %v2351 = vsel %vm2331, %v2305, 0
  %v2354 = vsel %vm2331, %v2306, 0
  %v2357 = vsel %vm2331, %v2307, 0
  %v2360 = vsel %vm2331, %v2308, 0
  %v2363 = vsel %vm2331, %v2309, 0
  %v2366 = vsel %vm2331, %v2310, 0
  %v2369 = vsel %vm2331, %v2311, 0
  %v2372 = vsel %vm2331, %v2312, 0
  %v2375 = vsel %vm2331, %v2313, 0
  %v2378 = vsel %vm2331, %v2314, 0
  %v2381 = vsel %vm2331, %v2315, 0
  %v2384 = vsel %vm2331, %v2316, 0
  %v2387 = vsel %vm2331, %v2317, 0
  %v2390 = vsel %vm2331, %v2318, 0
  %v2393 = vsel %vm2331, %v2319, 0
  %v2396 = vsel %vm2331, %v2320, 0
  %v2399 = vsel %vm2331, %v2321, 0
  %v2402 = vsel %vm2331, %v2322, 0
  %v2405 = vsel %vm2331, %v2323, 0
  %v2408 = vsel %vm2331, %v2324, 0
  %v2411 = vsel %vm2331, %v2325, 0
  %v2414 = vsel %vm2331, %v2326, 0
  %v2417 = vsel %vm2331, %v2327, 0
  %v2420 = vsel %vm2331, %v2328, 0
  %v2423 = vsel %vm2331, %v2329, 0
  %v2426 = vsel %vm2331, %v2330, 0
  %2428 = vmatpush.msra.mxu0 0.0
  %2429 = vmatpush.msra.mxu0 0.0
  %2430 = vmatpush.msra.mxu0 0.0
  %2431 = vmatpush.msra.mxu0 0.0
  %2432 = vmatpush.msra.mxu0 0.0
  %2433 = vmatpush.msra.mxu0 0.0
  %2434 = vmatpush.msra.mxu0 0.0
  %2435 = vmatpush.msra.mxu0 0.0
  %2436 = vmatpush.msra.mxu0 0.0
  %2437 = vmatpush.msra.mxu0 0.0
  %2438 = vmatpush.msra.mxu0 0.0
  %2439 = vmatpush.msra.mxu0 0.0
  %2440 = vmatpush.msra.mxu0 0.0
  %2441 = vmatpush.msra.mxu0 0.0
  %2442 = vmatpush.msra.mxu0 %v28
  %2443 = vmatpush.msra.mxu0 %v27
  %2444 = vmatmul.f32.gmra.mxu0 %v2333
  %v2445 = vpop.f32.mrf.mxu0
  %v2446 = vadd.f32 0.0, %v2445
  %2447 = vmatmul.f32.gmra.mxu0 %v2336
  %v2448 = vpop.f32.mrf.mxu0
  %v2449 = vadd.f32 0.0, %v2448
  %2450 = vmatmul.f32.gmra.mxu0 %v2339
  %v2451 = vpop.f32.mrf.mxu0
  %v2452 = vadd.f32 0.0, %v2451
  %2453 = vmatmul.f32.gmra.mxu0 %v2342
  %v2454 = vpop.f32.mrf.mxu0
  %v2455 = vadd.f32 0.0, %v2454
  %2456 = vmatmul.f32.gmra.mxu0 %v2345
  %v2457 = vpop.f32.mrf.mxu0
  %v2458 = vadd.f32 0.0, %v2457
  %2459 = vmatmul.f32.gmra.mxu0 %v2348
  %v2460 = vpop.f32.mrf.mxu0
  %v2461 = vadd.f32 0.0, %v2460
  %2462 = vmatmul.f32.gmra.mxu0 %v2351
  %v2463 = vpop.f32.mrf.mxu0
  %v2464 = vadd.f32 0.0, %v2463
  %2465 = vmatmul.f32.gmra.mxu0 %v2354
  %v2466 = vpop.f32.mrf.mxu0
  %v2467 = vadd.f32 0.0, %v2466
  %2468 = vmatmul.f32.gmra.mxu0 %v2357
  %v2469 = vpop.f32.mrf.mxu0
  %v2470 = vadd.f32 0.0, %v2469
  %2471 = vmatmul.f32.gmra.mxu0 %v2360
  %v2472 = vpop.f32.mrf.mxu0
  %v2473 = vadd.f32 0.0, %v2472
  %2474 = vmatmul.f32.gmra.mxu0 %v2363
  %v2475 = vpop.f32.mrf.mxu0
  %v2476 = vadd.f32 0.0, %v2475
  %2477 = vmatmul.f32.gmra.mxu0 %v2366
  %v2478 = vpop.f32.mrf.mxu0
  %v2479 = vadd.f32 0.0, %v2478
  %2480 = vmatmul.f32.gmra.mxu0 %v2369
  %v2481 = vpop.f32.mrf.mxu0
  %v2482 = vadd.f32 0.0, %v2481
  %2483 = vmatmul.f32.gmra.mxu0 %v2372
  %v2484 = vpop.f32.mrf.mxu0
  %v2485 = vadd.f32 0.0, %v2484
  %2486 = vmatmul.f32.gmra.mxu0 %v2375
  %v2487 = vpop.f32.mrf.mxu0
  %v2488 = vadd.f32 0.0, %v2487
  %2489 = vmatmul.f32.gmra.mxu0 %v2378
  %v2490 = vpop.f32.mrf.mxu0
  %v2491 = vadd.f32 0.0, %v2490
  %2492 = vmatmul.f32.gmra.mxu0 %v2381
  %v2493 = vpop.f32.mrf.mxu0
  %v2494 = vadd.f32 0.0, %v2493
  %2495 = vmatmul.f32.gmra.mxu0 %v2384
  %v2496 = vpop.f32.mrf.mxu0
  %v2497 = vadd.f32 0.0, %v2496
  %2498 = vmatmul.f32.gmra.mxu0 %v2387
  %v2499 = vpop.f32.mrf.mxu0
  %v2500 = vadd.f32 0.0, %v2499
  %2501 = vmatmul.f32.gmra.mxu0 %v2390
  %v2502 = vpop.f32.mrf.mxu0
  %v2503 = vadd.f32 0.0, %v2502
  %2504 = vmatmul.f32.gmra.mxu0 %v2393
  %v2505 = vpop.f32.mrf.mxu0
  %v2506 = vadd.f32 0.0, %v2505
  %2507 = vmatmul.f32.gmra.mxu0 %v2396
  %v2508 = vpop.f32.mrf.mxu0
  %v2509 = vadd.f32 0.0, %v2508
  %2510 = vmatmul.f32.gmra.mxu0 %v2399
  %v2511 = vpop.f32.mrf.mxu0
  %v2512 = vadd.f32 0.0, %v2511
  %2513 = vmatmul.f32.gmra.mxu0 %v2402
  %v2514 = vpop.f32.mrf.mxu0
  %v2515 = vadd.f32 0.0, %v2514
  %2516 = vmatmul.f32.gmra.mxu0 %v2405
  %v2517 = vpop.f32.mrf.mxu0
  %v2518 = vadd.f32 0.0, %v2517
  %2519 = vmatmul.f32.gmra.mxu0 %v2408
  %v2520 = vpop.f32.mrf.mxu0
  %v2521 = vadd.f32 0.0, %v2520
  %2522 = vmatmul.f32.gmra.mxu0 %v2411
  %v2523 = vpop.f32.mrf.mxu0
  %v2524 = vadd.f32 0.0, %v2523
  %2525 = vmatmul.f32.gmra.mxu0 %v2414
  %v2526 = vpop.f32.mrf.mxu0
  %v2527 = vadd.f32 0.0, %v2526
  %2528 = vmatmul.f32.gmra.mxu0 %v2417
  %v2529 = vpop.f32.mrf.mxu0
  %v2530 = vadd.f32 0.0, %v2529
  %2531 = vmatmul.f32.gmra.mxu0 %v2420
  %v2532 = vpop.f32.mrf.mxu0
  %v2533 = vadd.f32 0.0, %v2532
  %2534 = vmatmul.f32.gmra.mxu0 %v2423
  %v2535 = vpop.f32.mrf.mxu0
  %v2536 = vadd.f32 0.0, %v2535
  %2537 = vmatmul.f32.gmra.mxu0 %v2426
  %v2538 = vpop.f32.mrf.mxu0
  %v2539 = vadd.f32 0.0, %v2538
  %2540 = vdwg.mxu0
  %v2541 = vsel %vm66, %v2446, 0.0
  %v2542 = vrot.slane %v2541, 4
  %v2543 = vadd.f32 %v2541, %v2542
  %v2544 = vrot.slane %v2543, 2
  %v2545 = vadd.f32 %v2543, %v2544
  %v2546 = vrot.slane %v2545, 1
  %v2547 = vadd.f32 %v2545, %v2546
  %v2548 = vsel %vm66, %v2449, 0.0
  %v2549 = vrot.slane %v2548, 4
  %v2550 = vadd.f32 %v2548, %v2549
  %v2551 = vrot.slane %v2550, 2
  %v2552 = vadd.f32 %v2550, %v2551
  %v2553 = vrot.slane %v2552, 1
  %v2554 = vadd.f32 %v2552, %v2553
  %v2555 = vsel %vm66, %v2452, 0.0
  %v2556 = vrot.slane %v2555, 4
  %v2557 = vadd.f32 %v2555, %v2556
  %v2558 = vrot.slane %v2557, 2
  %v2559 = vadd.f32 %v2557, %v2558
  %v2560 = vrot.slane %v2559, 1
  %v2561 = vadd.f32 %v2559, %v2560
  %v2562 = vsel %vm66, %v2455, 0.0
  %v2563 = vrot.slane %v2562, 4
  %v2564 = vadd.f32 %v2562, %v2563
  %v2565 = vrot.slane %v2564, 2
  %v2566 = vadd.f32 %v2564, %v2565
  %v2567 = vrot.slane %v2566, 1
  %v2568 = vadd.f32 %v2566, %v2567
  %v2569 = vsel %vm66, %v2458, 0.0
  %v2570 = vrot.slane %v2569, 4
  %v2571 = vadd.f32 %v2569, %v2570
  %v2572 = vrot.slane %v2571, 2
  %v2573 = vadd.f32 %v2571, %v2572
  %v2574 = vrot.slane %v2573, 1
  %v2575 = vadd.f32 %v2573, %v2574
  %v2576 = vsel %vm66, %v2461, 0.0
  %v2577 = vrot.slane %v2576, 4
  %v2578 = vadd.f32 %v2576, %v2577
  %v2579 = vrot.slane %v2578, 2
  %v2580 = vadd.f32 %v2578, %v2579
  %v2581 = vrot.slane %v2580, 1
  %v2582 = vadd.f32 %v2580, %v2581
  %v2583 = vsel %vm66, %v2464, 0.0
  %v2584 = vrot.slane %v2583, 4
  %v2585 = vadd.f32 %v2583, %v2584
  %v2586 = vrot.slane %v2585, 2
  %v2587 = vadd.f32 %v2585, %v2586
  %v2588 = vrot.slane %v2587, 1
  %v2589 = vadd.f32 %v2587, %v2588
  %v2590 = vsel %vm66, %v2467, 0.0
  %v2591 = vrot.slane %v2590, 4
  %v2592 = vadd.f32 %v2590, %v2591
  %v2593 = vrot.slane %v2592, 2
  %v2594 = vadd.f32 %v2592, %v2593
  %v2595 = vrot.slane %v2594, 1
  %v2596 = vadd.f32 %v2594, %v2595
  %v2597 = vsel %vm66, %v2470, 0.0
  %v2598 = vrot.slane %v2597, 4
  %v2599 = vadd.f32 %v2597, %v2598
  %v2600 = vrot.slane %v2599, 2
  %v2601 = vadd.f32 %v2599, %v2600
  %v2602 = vrot.slane %v2601, 1
  %v2603 = vadd.f32 %v2601, %v2602
  %v2604 = vsel %vm66, %v2473, 0.0
  %v2605 = vrot.slane %v2604, 4
  %v2606 = vadd.f32 %v2604, %v2605
  %v2607 = vrot.slane %v2606, 2
  %v2608 = vadd.f32 %v2606, %v2607
  %v2609 = vrot.slane %v2608, 1
  %v2610 = vadd.f32 %v2608, %v2609
  %v2611 = vsel %vm66, %v2476, 0.0
  %v2612 = vrot.slane %v2611, 4
  %v2613 = vadd.f32 %v2611, %v2612
  %v2614 = vrot.slane %v2613, 2
  %v2615 = vadd.f32 %v2613, %v2614
  %v2616 = vrot.slane %v2615, 1
  %v2617 = vadd.f32 %v2615, %v2616
  %v2618 = vsel %vm66, %v2479, 0.0
  %v2619 = vrot.slane %v2618, 4
  %v2620 = vadd.f32 %v2618, %v2619
  %v2621 = vrot.slane %v2620, 2
  %v2622 = vadd.f32 %v2620, %v2621
  %v2623 = vrot.slane %v2622, 1
  %v2624 = vadd.f32 %v2622, %v2623
  %v2625 = vsel %vm66, %v2482, 0.0
  %v2626 = vrot.slane %v2625, 4
  %v2627 = vadd.f32 %v2625, %v2626
  %v2628 = vrot.slane %v2627, 2
  %v2629 = vadd.f32 %v2627, %v2628
  %v2630 = vrot.slane %v2629, 1
  %v2631 = vadd.f32 %v2629, %v2630
  %v2632 = vsel %vm66, %v2485, 0.0
  %v2633 = vrot.slane %v2632, 4
  %v2634 = vadd.f32 %v2632, %v2633
  %v2635 = vrot.slane %v2634, 2
  %v2636 = vadd.f32 %v2634, %v2635
  %v2637 = vrot.slane %v2636, 1
  %v2638 = vadd.f32 %v2636, %v2637
  %v2639 = vsel %vm66, %v2488, 0.0
  %v2640 = vrot.slane %v2639, 4
  %v2641 = vadd.f32 %v2639, %v2640
  %v2642 = vrot.slane %v2641, 2
  %v2643 = vadd.f32 %v2641, %v2642
  %v2644 = vrot.slane %v2643, 1
  %v2645 = vadd.f32 %v2643, %v2644
  %v2646 = vsel %vm66, %v2491, 0.0
  %v2647 = vrot.slane %v2646, 4
  %v2648 = vadd.f32 %v2646, %v2647
  %v2649 = vrot.slane %v2648, 2
  %v2650 = vadd.f32 %v2648, %v2649
  %v2651 = vrot.slane %v2650, 1
  %v2652 = vadd.f32 %v2650, %v2651
  %v2653 = vsel %vm66, %v2494, 0.0
  %v2654 = vrot.slane %v2653, 4
  %v2655 = vadd.f32 %v2653, %v2654
  %v2656 = vrot.slane %v2655, 2
  %v2657 = vadd.f32 %v2655, %v2656
  %v2658 = vrot.slane %v2657, 1
  %v2659 = vadd.f32 %v2657, %v2658
  %v2660 = vsel %vm66, %v2497, 0.0
  %v2661 = vrot.slane %v2660, 4
  %v2662 = vadd.f32 %v2660, %v2661
  %v2663 = vrot.slane %v2662, 2
  %v2664 = vadd.f32 %v2662, %v2663
  %v2665 = vrot.slane %v2664, 1
  %v2666 = vadd.f32 %v2664, %v2665
  %v2667 = vsel %vm66, %v2500, 0.0
  %v2668 = vrot.slane %v2667, 4
  %v2669 = vadd.f32 %v2667, %v2668
  %v2670 = vrot.slane %v2669, 2
  %v2671 = vadd.f32 %v2669, %v2670
  %v2672 = vrot.slane %v2671, 1
  %v2673 = vadd.f32 %v2671, %v2672
  %v2674 = vsel %vm66, %v2503, 0.0
  %v2675 = vrot.slane %v2674, 4
  %v2676 = vadd.f32 %v2674, %v2675
  %v2677 = vrot.slane %v2676, 2
  %v2678 = vadd.f32 %v2676, %v2677
  %v2679 = vrot.slane %v2678, 1
  %v2680 = vadd.f32 %v2678, %v2679
  %v2681 = vsel %vm66, %v2506, 0.0
  %v2682 = vrot.slane %v2681, 4
  %v2683 = vadd.f32 %v2681, %v2682
  %v2684 = vrot.slane %v2683, 2
  %v2685 = vadd.f32 %v2683, %v2684
  %v2686 = vrot.slane %v2685, 1
  %v2687 = vadd.f32 %v2685, %v2686
  %v2688 = vsel %vm66, %v2509, 0.0
  %v2689 = vrot.slane %v2688, 4
  %v2690 = vadd.f32 %v2688, %v2689
  %v2691 = vrot.slane %v2690, 2
  %v2692 = vadd.f32 %v2690, %v2691
  %v2693 = vrot.slane %v2692, 1
  %v2694 = vadd.f32 %v2692, %v2693
  %v2695 = vsel %vm66, %v2512, 0.0
  %v2696 = vrot.slane %v2695, 4
  %v2697 = vadd.f32 %v2695, %v2696
  %v2698 = vrot.slane %v2697, 2
  %v2699 = vadd.f32 %v2697, %v2698
  %v2700 = vrot.slane %v2699, 1
  %v2701 = vadd.f32 %v2699, %v2700
  %v2702 = vsel %vm66, %v2515, 0.0
  %v2703 = vrot.slane %v2702, 4
  %v2704 = vadd.f32 %v2702, %v2703
  %v2705 = vrot.slane %v2704, 2
  %v2706 = vadd.f32 %v2704, %v2705
  %v2707 = vrot.slane %v2706, 1
  %v2708 = vadd.f32 %v2706, %v2707
  %v2709 = vsel %vm66, %v2518, 0.0
  %v2710 = vrot.slane %v2709, 4
  %v2711 = vadd.f32 %v2709, %v2710
  %v2712 = vrot.slane %v2711, 2
  %v2713 = vadd.f32 %v2711, %v2712
  %v2714 = vrot.slane %v2713, 1
  %v2715 = vadd.f32 %v2713, %v2714
  %v2716 = vsel %vm66, %v2521, 0.0
  %v2717 = vrot.slane %v2716, 4
  %v2718 = vadd.f32 %v2716, %v2717
  %v2719 = vrot.slane %v2718, 2
  %v2720 = vadd.f32 %v2718, %v2719
  %v2721 = vrot.slane %v2720, 1
  %v2722 = vadd.f32 %v2720, %v2721
  %v2723 = vsel %vm66, %v2524, 0.0
  %v2724 = vrot.slane %v2723, 4
  %v2725 = vadd.f32 %v2723, %v2724
  %v2726 = vrot.slane %v2725, 2
  %v2727 = vadd.f32 %v2725, %v2726
  %v2728 = vrot.slane %v2727, 1
  %v2729 = vadd.f32 %v2727, %v2728
  %v2730 = vsel %vm66, %v2527, 0.0
  %v2731 = vrot.slane %v2730, 4
  %v2732 = vadd.f32 %v2730, %v2731
  %v2733 = vrot.slane %v2732, 2
  %v2734 = vadd.f32 %v2732, %v2733
  %v2735 = vrot.slane %v2734, 1
  %v2736 = vadd.f32 %v2734, %v2735
  %v2737 = vsel %vm66, %v2530, 0.0
  %v2738 = vrot.slane %v2737, 4
  %v2739 = vadd.f32 %v2737, %v2738
  %v2740 = vrot.slane %v2739, 2
  %v2741 = vadd.f32 %v2739, %v2740
  %v2742 = vrot.slane %v2741, 1
  %v2743 = vadd.f32 %v2741, %v2742
  %v2744 = vsel %vm66, %v2533, 0.0
  %v2745 = vrot.slane %v2744, 4
  %v2746 = vadd.f32 %v2744, %v2745
  %v2747 = vrot.slane %v2746, 2
  %v2748 = vadd.f32 %v2746, %v2747
  %v2749 = vrot.slane %v2748, 1
  %v2750 = vadd.f32 %v2748, %v2749
  %v2751 = vsel %vm66, %v2536, 0.0
  %v2752 = vrot.slane %v2751, 4
  %v2753 = vadd.f32 %v2751, %v2752
  %v2754 = vrot.slane %v2753, 2
  %v2755 = vadd.f32 %v2753, %v2754
  %v2756 = vrot.slane %v2755, 1
  %v2757 = vadd.f32 %v2755, %v2756
  %v2758 = vsel %vm66, %v2539, 0.0
  %v2759 = vrot.slane %v2758, 4
  %v2760 = vadd.f32 %v2758, %v2759
  %v2761 = vrot.slane %v2760, 2
  %v2762 = vadd.f32 %v2760, %v2761
  %v2763 = vrot.slane %v2762, 1
  %v2764 = vadd.f32 %v2762, %v2763
  %v2765 = vmul.f32 %v2547, %v506
  %v2766 = vmul.f32 %v2554, %v506
  %v2767 = vmul.f32 %v2561, %v506
  %v2768 = vmul.f32 %v2568, %v506
  %v2769 = vmul.f32 %v2575, %v506
  %v2770 = vmul.f32 %v2582, %v506
  %v2771 = vmul.f32 %v2589, %v506
  %v2772 = vmul.f32 %v2596, %v506
  %v2773 = vmul.f32 %v2603, %v506
  %v2774 = vmul.f32 %v2610, %v506
  %v2775 = vmul.f32 %v2617, %v506
  %v2776 = vmul.f32 %v2624, %v506
  %v2777 = vmul.f32 %v2631, %v506
  %v2778 = vmul.f32 %v2638, %v506
  %v2779 = vmul.f32 %v2645, %v506
  %v2780 = vmul.f32 %v2652, %v506
  %v2781 = vmul.f32 %v2659, %v506
  %v2782 = vmul.f32 %v2666, %v506
  %v2783 = vmul.f32 %v2673, %v506
  %v2784 = vmul.f32 %v2680, %v506
  %v2785 = vmul.f32 %v2687, %v506
  %v2786 = vmul.f32 %v2694, %v506
  %v2787 = vmul.f32 %v2701, %v506
  %v2788 = vmul.f32 %v2708, %v506
  %v2789 = vmul.f32 %v2715, %v506
  %v2790 = vmul.f32 %v2722, %v506
  %v2791 = vmul.f32 %v2729, %v506
  %v2792 = vmul.f32 %v2736, %v506
  %v2793 = vmul.f32 %v2743, %v506
  %v2794 = vmul.f32 %v2750, %v506
  %v2795 = vmul.f32 %v2757, %v506
  %v2796 = vmul.f32 %v2764, %v506
  %v2797 = vmul.f32 %v2446, %v2446
  %v2798 = vmul.f32 %v2449, %v2449
  %v2799 = vmul.f32 %v2452, %v2452
  %v2800 = vmul.f32 %v2455, %v2455
  %v2801 = vmul.f32 %v2458, %v2458
  %v2802 = vmul.f32 %v2461, %v2461
  %v2803 = vmul.f32 %v2464, %v2464
  %v2804 = vmul.f32 %v2467, %v2467
  %v2805 = vmul.f32 %v2470, %v2470
  %v2806 = vmul.f32 %v2473, %v2473
  %v2807 = vmul.f32 %v2476, %v2476
  %v2808 = vmul.f32 %v2479, %v2479
  %v2809 = vmul.f32 %v2482, %v2482
  %v2810 = vmul.f32 %v2485, %v2485
  %v2811 = vmul.f32 %v2488, %v2488
  %v2812 = vmul.f32 %v2491, %v2491
  %v2813 = vmul.f32 %v2494, %v2494
  %v2814 = vmul.f32 %v2497, %v2497
  %v2815 = vmul.f32 %v2500, %v2500
  %v2816 = vmul.f32 %v2503, %v2503
  %v2817 = vmul.f32 %v2506, %v2506
  %v2818 = vmul.f32 %v2509, %v2509
  %v2819 = vmul.f32 %v2512, %v2512
  %v2820 = vmul.f32 %v2515, %v2515
  %v2821 = vmul.f32 %v2518, %v2518
  %v2822 = vmul.f32 %v2521, %v2521
  %v2823 = vmul.f32 %v2524, %v2524
  %v2824 = vmul.f32 %v2527, %v2527
  %v2825 = vmul.f32 %v2530, %v2530
  %v2826 = vmul.f32 %v2533, %v2533
  %v2827 = vmul.f32 %v2536, %v2536
  %v2828 = vmul.f32 %v2539, %v2539
  %v2829 = vsel %vm66, %v2797, 0.0
  %v2830 = vrot.slane %v2829, 4
  %v2831 = vadd.f32 %v2829, %v2830
  %v2832 = vrot.slane %v2831, 2
  %v2833 = vadd.f32 %v2831, %v2832
  %v2834 = vrot.slane %v2833, 1
  %v2835 = vadd.f32 %v2833, %v2834
  %v2836 = vsel %vm66, %v2798, 0.0
  %v2837 = vrot.slane %v2836, 4
  %v2838 = vadd.f32 %v2836, %v2837
  %v2839 = vrot.slane %v2838, 2
  %v2840 = vadd.f32 %v2838, %v2839
  %v2841 = vrot.slane %v2840, 1
  %v2842 = vadd.f32 %v2840, %v2841
  %v2843 = vsel %vm66, %v2799, 0.0
  %v2844 = vrot.slane %v2843, 4
  %v2845 = vadd.f32 %v2843, %v2844
  %v2846 = vrot.slane %v2845, 2
  %v2847 = vadd.f32 %v2845, %v2846
  %v2848 = vrot.slane %v2847, 1
  %v2849 = vadd.f32 %v2847, %v2848
  %v2850 = vsel %vm66, %v2800, 0.0
  %v2851 = vrot.slane %v2850, 4
  %v2852 = vadd.f32 %v2850, %v2851
  %v2853 = vrot.slane %v2852, 2
  %v2854 = vadd.f32 %v2852, %v2853
  %v2855 = vrot.slane %v2854, 1
  %v2856 = vadd.f32 %v2854, %v2855
  %v2857 = vsel %vm66, %v2801, 0.0
  %v2858 = vrot.slane %v2857, 4
  %v2859 = vadd.f32 %v2857, %v2858
  %v2860 = vrot.slane %v2859, 2
  %v2861 = vadd.f32 %v2859, %v2860
  %v2862 = vrot.slane %v2861, 1
  %v2863 = vadd.f32 %v2861, %v2862
  %v2864 = vsel %vm66, %v2802, 0.0
  %v2865 = vrot.slane %v2864, 4
  %v2866 = vadd.f32 %v2864, %v2865
  %v2867 = vrot.slane %v2866, 2
  %v2868 = vadd.f32 %v2866, %v2867
  %v2869 = vrot.slane %v2868, 1
  %v2870 = vadd.f32 %v2868, %v2869
  %v2871 = vsel %vm66, %v2803, 0.0
  %v2872 = vrot.slane %v2871, 4
  %v2873 = vadd.f32 %v2871, %v2872
  %v2874 = vrot.slane %v2873, 2
  %v2875 = vadd.f32 %v2873, %v2874
  %v2876 = vrot.slane %v2875, 1
  %v2877 = vadd.f32 %v2875, %v2876
  %v2878 = vsel %vm66, %v2804, 0.0
  %v2879 = vrot.slane %v2878, 4
  %v2880 = vadd.f32 %v2878, %v2879
  %v2881 = vrot.slane %v2880, 2
  %v2882 = vadd.f32 %v2880, %v2881
  %v2883 = vrot.slane %v2882, 1
  %v2884 = vadd.f32 %v2882, %v2883
  %v2885 = vsel %vm66, %v2805, 0.0
  %v2886 = vrot.slane %v2885, 4
  %v2887 = vadd.f32 %v2885, %v2886
  %v2888 = vrot.slane %v2887, 2
  %v2889 = vadd.f32 %v2887, %v2888
  %v2890 = vrot.slane %v2889, 1
  %v2891 = vadd.f32 %v2889, %v2890
  %v2892 = vsel %vm66, %v2806, 0.0
  %v2893 = vrot.slane %v2892, 4
  %v2894 = vadd.f32 %v2892, %v2893
  %v2895 = vrot.slane %v2894, 2
  %v2896 = vadd.f32 %v2894, %v2895
  %v2897 = vrot.slane %v2896, 1
  %v2898 = vadd.f32 %v2896, %v2897
  %v2899 = vsel %vm66, %v2807, 0.0
  %v2900 = vrot.slane %v2899, 4
  %v2901 = vadd.f32 %v2899, %v2900
  %v2902 = vrot.slane %v2901, 2
  %v2903 = vadd.f32 %v2901, %v2902
  %v2904 = vrot.slane %v2903, 1
  %v2905 = vadd.f32 %v2903, %v2904
  %v2906 = vsel %vm66, %v2808, 0.0
  %v2907 = vrot.slane %v2906, 4
  %v2908 = vadd.f32 %v2906, %v2907
  %v2909 = vrot.slane %v2908, 2
  %v2910 = vadd.f32 %v2908, %v2909
  %v2911 = vrot.slane %v2910, 1
  %v2912 = vadd.f32 %v2910, %v2911
  %v2913 = vsel %vm66, %v2809, 0.0
  %v2914 = vrot.slane %v2913, 4
  %v2915 = vadd.f32 %v2913, %v2914
  %v2916 = vrot.slane %v2915, 2
  %v2917 = vadd.f32 %v2915, %v2916
  %v2918 = vrot.slane %v2917, 1
  %v2919 = vadd.f32 %v2917, %v2918
  %v2920 = vsel %vm66, %v2810, 0.0
  %v2921 = vrot.slane %v2920, 4
  %v2922 = vadd.f32 %v2920, %v2921
  %v2923 = vrot.slane %v2922, 2
  %v2924 = vadd.f32 %v2922, %v2923
  %v2925 = vrot.slane %v2924, 1
  %v2926 = vadd.f32 %v2924, %v2925
  %v2927 = vsel %vm66, %v2811, 0.0
  %v2928 = vrot.slane %v2927, 4
  %v2929 = vadd.f32 %v2927, %v2928
  %v2930 = vrot.slane %v2929, 2
  %v2931 = vadd.f32 %v2929, %v2930
  %v2932 = vrot.slane %v2931, 1
  %v2933 = vadd.f32 %v2931, %v2932
  %v2934 = vsel %vm66, %v2812, 0.0
  %v2935 = vrot.slane %v2934, 4
  %v2936 = vadd.f32 %v2934, %v2935
  %v2937 = vrot.slane %v2936, 2
  %v2938 = vadd.f32 %v2936, %v2937
  %v2939 = vrot.slane %v2938, 1
  %v2940 = vadd.f32 %v2938, %v2939
  %v2941 = vsel %vm66, %v2813, 0.0
  %v2942 = vrot.slane %v2941, 4
  %v2943 = vadd.f32 %v2941, %v2942
  %v2944 = vrot.slane %v2943, 2
  %v2945 = vadd.f32 %v2943, %v2944
  %v2946 = vrot.slane %v2945, 1
  %v2947 = vadd.f32 %v2945, %v2946
  %v2948 = vsel %vm66, %v2814, 0.0
  %v2949 = vrot.slane %v2948, 4
  %v2950 = vadd.f32 %v2948, %v2949
  %v2951 = vrot.slane %v2950, 2
  %v2952 = vadd.f32 %v2950, %v2951
  %v2953 = vrot.slane %v2952, 1
  %v2954 = vadd.f32 %v2952, %v2953
  %v2955 = vsel %vm66, %v2815, 0.0
  %v2956 = vrot.slane %v2955, 4
  %v2957 = vadd.f32 %v2955, %v2956
  %v2958 = vrot.slane %v2957, 2
  %v2959 = vadd.f32 %v2957, %v2958
  %v2960 = vrot.slane %v2959, 1
  %v2961 = vadd.f32 %v2959, %v2960
  %v2962 = vsel %vm66, %v2816, 0.0
  %v2963 = vrot.slane %v2962, 4
  %v2964 = vadd.f32 %v2962, %v2963
  %v2965 = vrot.slane %v2964, 2
  %v2966 = vadd.f32 %v2964, %v2965
  %v2967 = vrot.slane %v2966, 1
  %v2968 = vadd.f32 %v2966, %v2967
  %v2969 = vsel %vm66, %v2817, 0.0
  %v2970 = vrot.slane %v2969, 4
  %v2971 = vadd.f32 %v2969, %v2970
  %v2972 = vrot.slane %v2971, 2
  %v2973 = vadd.f32 %v2971, %v2972
  %v2974 = vrot.slane %v2973, 1
  %v2975 = vadd.f32 %v2973, %v2974
  %v2976 = vsel %vm66, %v2818, 0.0
  %v2977 = vrot.slane %v2976, 4
  %v2978 = vadd.f32 %v2976, %v2977
  %v2979 = vrot.slane %v2978, 2
  %v2980 = vadd.f32 %v2978, %v2979
  %v2981 = vrot.slane %v2980, 1
  %v2982 = vadd.f32 %v2980, %v2981
  %v2983 = vsel %vm66, %v2819, 0.0
  %v2984 = vrot.slane %v2983, 4
  %v2985 = vadd.f32 %v2983, %v2984
  %v2986 = vrot.slane %v2985, 2
  %v2987 = vadd.f32 %v2985, %v2986
  %v2988 = vrot.slane %v2987, 1
  %v2989 = vadd.f32 %v2987, %v2988
  %v2990 = vsel %vm66, %v2820, 0.0
  %v2991 = vrot.slane %v2990, 4
  %v2992 = vadd.f32 %v2990, %v2991
  %v2993 = vrot.slane %v2992, 2
  %v2994 = vadd.f32 %v2992, %v2993
  %v2995 = vrot.slane %v2994, 1
  %v2996 = vadd.f32 %v2994, %v2995
  %v2997 = vsel %vm66, %v2821, 0.0
  %v2998 = vrot.slane %v2997, 4
  %v2999 = vadd.f32 %v2997, %v2998
  %v3000 = vrot.slane %v2999, 2
  %v3001 = vadd.f32 %v2999, %v3000
  %v3002 = vrot.slane %v3001, 1
  %v3003 = vadd.f32 %v3001, %v3002
  %v3004 = vsel %vm66, %v2822, 0.0
  %v3005 = vrot.slane %v3004, 4
  %v3006 = vadd.f32 %v3004, %v3005
  %v3007 = vrot.slane %v3006, 2
  %v3008 = vadd.f32 %v3006, %v3007
  %v3009 = vrot.slane %v3008, 1
  %v3010 = vadd.f32 %v3008, %v3009
  %v3011 = vsel %vm66, %v2823, 0.0
  %v3012 = vrot.slane %v3011, 4
  %v3013 = vadd.f32 %v3011, %v3012
  %v3014 = vrot.slane %v3013, 2
  %v3015 = vadd.f32 %v3013, %v3014
  %v3016 = vrot.slane %v3015, 1
  %v3017 = vadd.f32 %v3015, %v3016
  %v3018 = vsel %vm66, %v2824, 0.0
  %v3019 = vrot.slane %v3018, 4
  %v3020 = vadd.f32 %v3018, %v3019
  %v3021 = vrot.slane %v3020, 2
  %v3022 = vadd.f32 %v3020, %v3021
  %v3023 = vrot.slane %v3022, 1
  %v3024 = vadd.f32 %v3022, %v3023
  %v3025 = vsel %vm66, %v2825, 0.0
  %v3026 = vrot.slane %v3025, 4
  %v3027 = vadd.f32 %v3025, %v3026
  %v3028 = vrot.slane %v3027, 2
  %v3029 = vadd.f32 %v3027, %v3028
  %v3030 = vrot.slane %v3029, 1
  %v3031 = vadd.f32 %v3029, %v3030
  %v3032 = vsel %vm66, %v2826, 0.0
  %v3033 = vrot.slane %v3032, 4
  %v3034 = vadd.f32 %v3032, %v3033
  %v3035 = vrot.slane %v3034, 2
  %v3036 = vadd.f32 %v3034, %v3035
  %v3037 = vrot.slane %v3036, 1
  %v3038 = vadd.f32 %v3036, %v3037
  %v3039 = vsel %vm66, %v2827, 0.0
  %v3040 = vrot.slane %v3039, 4
  %v3041 = vadd.f32 %v3039, %v3040
  %v3042 = vrot.slane %v3041, 2
  %v3043 = vadd.f32 %v3041, %v3042
  %v3044 = vrot.slane %v3043, 1
  %v3045 = vadd.f32 %v3043, %v3044
  %v3046 = vsel %vm66, %v2828, 0.0
  %v3047 = vrot.slane %v3046, 4
  %v3048 = vadd.f32 %v3046, %v3047
  %v3049 = vrot.slane %v3048, 2
  %v3050 = vadd.f32 %v3048, %v3049
  %v3051 = vrot.slane %v3050, 1
  %v3052 = vadd.f32 %v3050, %v3051
  %v3053 = vmul.f32 %v2835, %v506
  %v3054 = vmul.f32 %v2842, %v506
  %v3055 = vmul.f32 %v2849, %v506
  %v3056 = vmul.f32 %v2856, %v506
  %v3057 = vmul.f32 %v2863, %v506
  %v3058 = vmul.f32 %v2870, %v506
  %v3059 = vmul.f32 %v2877, %v506
  %v3060 = vmul.f32 %v2884, %v506
  %v3061 = vmul.f32 %v2891, %v506
  %v3062 = vmul.f32 %v2898, %v506
  %v3063 = vmul.f32 %v2905, %v506
  %v3064 = vmul.f32 %v2912, %v506
  %v3065 = vmul.f32 %v2919, %v506
  %v3066 = vmul.f32 %v2926, %v506
  %v3067 = vmul.f32 %v2933, %v506
  %v3068 = vmul.f32 %v2940, %v506
  %v3069 = vmul.f32 %v2947, %v506
  %v3070 = vmul.f32 %v2954, %v506
  %v3071 = vmul.f32 %v2961, %v506
  %v3072 = vmul.f32 %v2968, %v506
  %v3073 = vmul.f32 %v2975, %v506
  %v3074 = vmul.f32 %v2982, %v506
  %v3075 = vmul.f32 %v2989, %v506
  %v3076 = vmul.f32 %v2996, %v506
  %v3077 = vmul.f32 %v3003, %v506
  %v3078 = vmul.f32 %v3010, %v506
  %v3079 = vmul.f32 %v3017, %v506
  %v3080 = vmul.f32 %v3024, %v506
  %v3081 = vmul.f32 %v3031, %v506
  %v3082 = vmul.f32 %v3038, %v506
  %v3083 = vmul.f32 %v3045, %v506
  %v3084 = vmul.f32 %v3052, %v506
  %v3085 = vmul.f32 %v2765, %v2765
  %v3086 = vmul.f32 %v2766, %v2766
  %v3087 = vmul.f32 %v2767, %v2767
  %v3088 = vmul.f32 %v2768, %v2768
  %v3089 = vmul.f32 %v2769, %v2769
  %v3090 = vmul.f32 %v2770, %v2770
  %v3091 = vmul.f32 %v2771, %v2771
  %v3092 = vmul.f32 %v2772, %v2772
  %v3093 = vmul.f32 %v2773, %v2773
  %v3094 = vmul.f32 %v2774, %v2774
  %v3095 = vmul.f32 %v2775, %v2775
  %v3096 = vmul.f32 %v2776, %v2776
  %v3097 = vmul.f32 %v2777, %v2777
  %v3098 = vmul.f32 %v2778, %v2778
  %v3099 = vmul.f32 %v2779, %v2779
  %v3100 = vmul.f32 %v2780, %v2780
  %v3101 = vmul.f32 %v2781, %v2781
  %v3102 = vmul.f32 %v2782, %v2782
  %v3103 = vmul.f32 %v2783, %v2783
  %v3104 = vmul.f32 %v2784, %v2784
  %v3105 = vmul.f32 %v2785, %v2785
  %v3106 = vmul.f32 %v2786, %v2786
  %v3107 = vmul.f32 %v2787, %v2787
  %v3108 = vmul.f32 %v2788, %v2788
  %v3109 = vmul.f32 %v2789, %v2789
  %v3110 = vmul.f32 %v2790, %v2790
  %v3111 = vmul.f32 %v2791, %v2791
  %v3112 = vmul.f32 %v2792, %v2792
  %v3113 = vmul.f32 %v2793, %v2793
  %v3114 = vmul.f32 %v2794, %v2794
  %v3115 = vmul.f32 %v2795, %v2795
  %v3116 = vmul.f32 %v2796, %v2796
  %v3117 = vsub.f32 %v3053, %v3085
  %v3118 = vsub.f32 %v3054, %v3086
  %v3119 = vsub.f32 %v3055, %v3087
  %v3120 = vsub.f32 %v3056, %v3088
  %v3121 = vsub.f32 %v3057, %v3089
  %v3122 = vsub.f32 %v3058, %v3090
  %v3123 = vsub.f32 %v3059, %v3091
  %v3124 = vsub.f32 %v3060, %v3092
  %v3125 = vsub.f32 %v3061, %v3093
  %v3126 = vsub.f32 %v3062, %v3094
  %v3127 = vsub.f32 %v3063, %v3095
  %v3128 = vsub.f32 %v3064, %v3096
  %v3129 = vsub.f32 %v3065, %v3097
  %v3130 = vsub.f32 %v3066, %v3098
  %v3131 = vsub.f32 %v3067, %v3099
  %v3132 = vsub.f32 %v3068, %v3100
  %v3133 = vsub.f32 %v3069, %v3101
  %v3134 = vsub.f32 %v3070, %v3102
  %v3135 = vsub.f32 %v3071, %v3103
  %v3136 = vsub.f32 %v3072, %v3104
  %v3137 = vsub.f32 %v3073, %v3105
  %v3138 = vsub.f32 %v3074, %v3106
  %v3139 = vsub.f32 %v3075, %v3107
  %v3140 = vsub.f32 %v3076, %v3108
  %v3141 = vsub.f32 %v3077, %v3109
  %v3142 = vsub.f32 %v3078, %v3110
  %v3143 = vsub.f32 %v3079, %v3111
  %v3144 = vsub.f32 %v3080, %v3112
  %v3145 = vsub.f32 %v3081, %v3113
  %v3146 = vsub.f32 %v3082, %v3114
  %v3147 = vsub.f32 %v3083, %v3115
  %v3148 = vsub.f32 %v3084, %v3116
  %v3149 = vadd.f32 %v3117, 1e-05
  %v3150 = vadd.f32 %v3118, 1e-05
  %v3151 = vadd.f32 %v3119, 1e-05
  %v3152 = vadd.f32 %v3120, 1e-05
  %v3153 = vadd.f32 %v3121, 1e-05
  %v3154 = vadd.f32 %v3122, 1e-05
  %v3155 = vadd.f32 %v3123, 1e-05
  %v3156 = vadd.f32 %v3124, 1e-05
  %v3157 = vadd.f32 %v3125, 1e-05
  %v3158 = vadd.f32 %v3126, 1e-05
  %v3159 = vadd.f32 %v3127, 1e-05
  %v3160 = vadd.f32 %v3128, 1e-05
  %v3161 = vadd.f32 %v3129, 1e-05
  %v3162 = vadd.f32 %v3130, 1e-05
  %v3163 = vadd.f32 %v3131, 1e-05
  %v3164 = vadd.f32 %v3132, 1e-05
  %v3165 = vadd.f32 %v3133, 1e-05
  %v3166 = vadd.f32 %v3134, 1e-05
  %v3167 = vadd.f32 %v3135, 1e-05
  %v3168 = vadd.f32 %v3136, 1e-05
  %v3169 = vadd.f32 %v3137, 1e-05
  %v3170 = vadd.f32 %v3138, 1e-05
  %v3171 = vadd.f32 %v3139, 1e-05
  %v3172 = vadd.f32 %v3140, 1e-05
  %v3173 = vadd.f32 %v3141, 1e-05
  %v3174 = vadd.f32 %v3142, 1e-05
  %v3175 = vadd.f32 %v3143, 1e-05
  %v3176 = vadd.f32 %v3144, 1e-05
  %v3177 = vadd.f32 %v3145, 1e-05
  %v3178 = vadd.f32 %v3146, 1e-05
  %v3179 = vadd.f32 %v3147, 1e-05
  %v3180 = vadd.f32 %v3148, 1e-05
  %v3181 = vrsqrt.pop %v3149
  %v3182 = vmul.f32 %v3181, %v3149
  %v3183 = vmul.f32 %v3182, %v3181
  %v3184 = vmul.f32 0.5, %v3183
  %v3185 = vsub.f32 1.5, %v3184
  %v3186 = vmul.f32 %v3181, %v3185
  %vm3187 = vweird.f32 %v3149
  %vm3188 = vweird.f32 %v3181
  %vm3189 = vmor %vm3187, %vm3188
  %v3190 = vsel %vm3189, %v3181, %v3186
  %v3191 = vrsqrt.pop %v3150
  %v3192 = vmul.f32 %v3191, %v3150
  %v3193 = vmul.f32 %v3192, %v3191
  %v3194 = vmul.f32 0.5, %v3193
  %v3195 = vsub.f32 1.5, %v3194
  %v3196 = vmul.f32 %v3191, %v3195
  %vm3197 = vweird.f32 %v3150
  %vm3198 = vweird.f32 %v3191
  %vm3199 = vmor %vm3197, %vm3198
  %v3200 = vsel %vm3199, %v3191, %v3196
  %v3201 = vrsqrt.pop %v3151
  %v3202 = vmul.f32 %v3201, %v3151
  %v3203 = vmul.f32 %v3202, %v3201
  %v3204 = vmul.f32 0.5, %v3203
  %v3205 = vsub.f32 1.5, %v3204
  %v3206 = vmul.f32 %v3201, %v3205
  %vm3207 = vweird.f32 %v3151
  %vm3208 = vweird.f32 %v3201
  %vm3209 = vmor %vm3207, %vm3208
  %v3210 = vsel %vm3209, %v3201, %v3206
  %v3211 = vrsqrt.pop %v3152
  %v3212 = vmul.f32 %v3211, %v3152
  %v3213 = vmul.f32 %v3212, %v3211
  %v3214 = vmul.f32 0.5, %v3213
  %v3215 = vsub.f32 1.5, %v3214
  %v3216 = vmul.f32 %v3211, %v3215
  %vm3217 = vweird.f32 %v3152
  %vm3218 = vweird.f32 %v3211
  %vm3219 = vmor %vm3217, %vm3218
  %v3220 = vsel %vm3219, %v3211, %v3216
  %v3221 = vrsqrt.pop %v3153
  %v3222 = vmul.f32 %v3221, %v3153
  %v3223 = vmul.f32 %v3222, %v3221
  %v3224 = vmul.f32 0.5, %v3223
  %v3225 = vsub.f32 1.5, %v3224
  %v3226 = vmul.f32 %v3221, %v3225
  %vm3227 = vweird.f32 %v3153
  %vm3228 = vweird.f32 %v3221
  %vm3229 = vmor %vm3227, %vm3228
  %v3230 = vsel %vm3229, %v3221, %v3226
  %v3231 = vrsqrt.pop %v3154
  %v3232 = vmul.f32 %v3231, %v3154
  %v3233 = vmul.f32 %v3232, %v3231
  %v3234 = vmul.f32 0.5, %v3233
  %v3235 = vsub.f32 1.5, %v3234
  %v3236 = vmul.f32 %v3231, %v3235
  %vm3237 = vweird.f32 %v3154
  %vm3238 = vweird.f32 %v3231
  %vm3239 = vmor %vm3237, %vm3238
  %v3240 = vsel %vm3239, %v3231, %v3236
  %v3241 = vrsqrt.pop %v3155
  %v3242 = vmul.f32 %v3241, %v3155
  %v3243 = vmul.f32 %v3242, %v3241
  %v3244 = vmul.f32 0.5, %v3243
  %v3245 = vsub.f32 1.5, %v3244
  %v3246 = vmul.f32 %v3241, %v3245
  %vm3247 = vweird.f32 %v3155
  %vm3248 = vweird.f32 %v3241
  %vm3249 = vmor %vm3247, %vm3248
  %v3250 = vsel %vm3249, %v3241, %v3246
  %v3251 = vrsqrt.pop %v3156
  %v3252 = vmul.f32 %v3251, %v3156
  %v3253 = vmul.f32 %v3252, %v3251
  %v3254 = vmul.f32 0.5, %v3253
  %v3255 = vsub.f32 1.5, %v3254
  %v3256 = vmul.f32 %v3251, %v3255
  %vm3257 = vweird.f32 %v3156
  %vm3258 = vweird.f32 %v3251
  %vm3259 = vmor %vm3257, %vm3258
  %v3260 = vsel %vm3259, %v3251, %v3256
  %v3261 = vrsqrt.pop %v3157
  %v3262 = vmul.f32 %v3261, %v3157
  %v3263 = vmul.f32 %v3262, %v3261
  %v3264 = vmul.f32 0.5, %v3263
  %v3265 = vsub.f32 1.5, %v3264
  %v3266 = vmul.f32 %v3261, %v3265
  %vm3267 = vweird.f32 %v3157
  %vm3268 = vweird.f32 %v3261
  %vm3269 = vmor %vm3267, %vm3268
  %v3270 = vsel %vm3269, %v3261, %v3266
  %v3271 = vrsqrt.pop %v3158
  %v3272 = vmul.f32 %v3271, %v3158
  %v3273 = vmul.f32 %v3272, %v3271
  %v3274 = vmul.f32 0.5, %v3273
  %v3275 = vsub.f32 1.5, %v3274
  %v3276 = vmul.f32 %v3271, %v3275
  %vm3277 = vweird.f32 %v3158
  %vm3278 = vweird.f32 %v3271
  %vm3279 = vmor %vm3277, %vm3278
  %v3280 = vsel %vm3279, %v3271, %v3276
  %v3281 = vrsqrt.pop %v3159
  %v3282 = vmul.f32 %v3281, %v3159
  %v3283 = vmul.f32 %v3282, %v3281
  %v3284 = vmul.f32 0.5, %v3283
  %v3285 = vsub.f32 1.5, %v3284
  %v3286 = vmul.f32 %v3281, %v3285
  %vm3287 = vweird.f32 %v3159
  %vm3288 = vweird.f32 %v3281
  %vm3289 = vmor %vm3287, %vm3288
  %v3290 = vsel %vm3289, %v3281, %v3286
  %v3291 = vrsqrt.pop %v3160
  %v3292 = vmul.f32 %v3291, %v3160
  %v3293 = vmul.f32 %v3292, %v3291
  %v3294 = vmul.f32 0.5, %v3293
  %v3295 = vsub.f32 1.5, %v3294
  %v3296 = vmul.f32 %v3291, %v3295
  %vm3297 = vweird.f32 %v3160
  %vm3298 = vweird.f32 %v3291
  %vm3299 = vmor %vm3297, %vm3298
  %v3300 = vsel %vm3299, %v3291, %v3296
  %v3301 = vrsqrt.pop %v3161
  %v3302 = vmul.f32 %v3301, %v3161
  %v3303 = vmul.f32 %v3302, %v3301
  %v3304 = vmul.f32 0.5, %v3303
  %v3305 = vsub.f32 1.5, %v3304
  %v3306 = vmul.f32 %v3301, %v3305
  %vm3307 = vweird.f32 %v3161
  %vm3308 = vweird.f32 %v3301
  %vm3309 = vmor %vm3307, %vm3308
  %v3310 = vsel %vm3309, %v3301, %v3306
  %v3311 = vrsqrt.pop %v3162
  %v3312 = vmul.f32 %v3311, %v3162
  %v3313 = vmul.f32 %v3312, %v3311
  %v3314 = vmul.f32 0.5, %v3313
  %v3315 = vsub.f32 1.5, %v3314
  %v3316 = vmul.f32 %v3311, %v3315
  %vm3317 = vweird.f32 %v3162
  %vm3318 = vweird.f32 %v3311
  %vm3319 = vmor %vm3317, %vm3318
  %v3320 = vsel %vm3319, %v3311, %v3316
  %v3321 = vrsqrt.pop %v3163
  %v3322 = vmul.f32 %v3321, %v3163
  %v3323 = vmul.f32 %v3322, %v3321
  %v3324 = vmul.f32 0.5, %v3323
  %v3325 = vsub.f32 1.5, %v3324
  %v3326 = vmul.f32 %v3321, %v3325
  %vm3327 = vweird.f32 %v3163
  %vm3328 = vweird.f32 %v3321
  %vm3329 = vmor %vm3327, %vm3328
  %v3330 = vsel %vm3329, %v3321, %v3326
  %v3331 = vrsqrt.pop %v3164
  %v3332 = vmul.f32 %v3331, %v3164
  %v3333 = vmul.f32 %v3332, %v3331
  %v3334 = vmul.f32 0.5, %v3333
  %v3335 = vsub.f32 1.5, %v3334
  %v3336 = vmul.f32 %v3331, %v3335
  %vm3337 = vweird.f32 %v3164
  %vm3338 = vweird.f32 %v3331
  %vm3339 = vmor %vm3337, %vm3338
  %v3340 = vsel %vm3339, %v3331, %v3336
  %v3341 = vrsqrt.pop %v3165
  %v3342 = vmul.f32 %v3341, %v3165
  %v3343 = vmul.f32 %v3342, %v3341
  %v3344 = vmul.f32 0.5, %v3343
  %v3345 = vsub.f32 1.5, %v3344
  %v3346 = vmul.f32 %v3341, %v3345
  %vm3347 = vweird.f32 %v3165
  %vm3348 = vweird.f32 %v3341
  %vm3349 = vmor %vm3347, %vm3348
  %v3350 = vsel %vm3349, %v3341, %v3346
  %v3351 = vrsqrt.pop %v3166
  %v3352 = vmul.f32 %v3351, %v3166
  %v3353 = vmul.f32 %v3352, %v3351
  %v3354 = vmul.f32 0.5, %v3353
  %v3355 = vsub.f32 1.5, %v3354
  %v3356 = vmul.f32 %v3351, %v3355
  %vm3357 = vweird.f32 %v3166
  %vm3358 = vweird.f32 %v3351
  %vm3359 = vmor %vm3357, %vm3358
  %v3360 = vsel %vm3359, %v3351, %v3356
  %v3361 = vrsqrt.pop %v3167
  %v3362 = vmul.f32 %v3361, %v3167
  %v3363 = vmul.f32 %v3362, %v3361
  %v3364 = vmul.f32 0.5, %v3363
  %v3365 = vsub.f32 1.5, %v3364
  %v3366 = vmul.f32 %v3361, %v3365
  %vm3367 = vweird.f32 %v3167
  %vm3368 = vweird.f32 %v3361
  %vm3369 = vmor %vm3367, %vm3368
  %v3370 = vsel %vm3369, %v3361, %v3366
  %v3371 = vrsqrt.pop %v3168
  %v3372 = vmul.f32 %v3371, %v3168
  %v3373 = vmul.f32 %v3372, %v3371
  %v3374 = vmul.f32 0.5, %v3373
  %v3375 = vsub.f32 1.5, %v3374
  %v3376 = vmul.f32 %v3371, %v3375
  %vm3377 = vweird.f32 %v3168
  %vm3378 = vweird.f32 %v3371
  %vm3379 = vmor %vm3377, %vm3378
  %v3380 = vsel %vm3379, %v3371, %v3376
  %v3381 = vrsqrt.pop %v3169
  %v3382 = vmul.f32 %v3381, %v3169
  %v3383 = vmul.f32 %v3382, %v3381
  %v3384 = vmul.f32 0.5, %v3383
  %v3385 = vsub.f32 1.5, %v3384
  %v3386 = vmul.f32 %v3381, %v3385
  %vm3387 = vweird.f32 %v3169
  %vm3388 = vweird.f32 %v3381
  %vm3389 = vmor %vm3387, %vm3388
  %v3390 = vsel %vm3389, %v3381, %v3386
  %v3391 = vrsqrt.pop %v3170
  %v3392 = vmul.f32 %v3391, %v3170
  %v3393 = vmul.f32 %v3392, %v3391
  %v3394 = vmul.f32 0.5, %v3393
  %v3395 = vsub.f32 1.5, %v3394
  %v3396 = vmul.f32 %v3391, %v3395
  %vm3397 = vweird.f32 %v3170
  %vm3398 = vweird.f32 %v3391
  %vm3399 = vmor %vm3397, %vm3398
  %v3400 = vsel %vm3399, %v3391, %v3396
  %v3401 = vrsqrt.pop %v3171
  %v3402 = vmul.f32 %v3401, %v3171
  %v3403 = vmul.f32 %v3402, %v3401
  %v3404 = vmul.f32 0.5, %v3403
  %v3405 = vsub.f32 1.5, %v3404
  %v3406 = vmul.f32 %v3401, %v3405
  %vm3407 = vweird.f32 %v3171
  %vm3408 = vweird.f32 %v3401
  %vm3409 = vmor %vm3407, %vm3408
  %v3410 = vsel %vm3409, %v3401, %v3406
  %v3411 = vrsqrt.pop %v3172
  %v3412 = vmul.f32 %v3411, %v3172
  %v3413 = vmul.f32 %v3412, %v3411
  %v3414 = vmul.f32 0.5, %v3413
  %v3415 = vsub.f32 1.5, %v3414
  %v3416 = vmul.f32 %v3411, %v3415
  %vm3417 = vweird.f32 %v3172
  %vm3418 = vweird.f32 %v3411
  %vm3419 = vmor %vm3417, %vm3418
  %v3420 = vsel %vm3419, %v3411, %v3416
  %v3421 = vrsqrt.pop %v3173
  %v3422 = vmul.f32 %v3421, %v3173
  %v3423 = vmul.f32 %v3422, %v3421
  %v3424 = vmul.f32 0.5, %v3423
  %v3425 = vsub.f32 1.5, %v3424
  %v3426 = vmul.f32 %v3421, %v3425
  %vm3427 = vweird.f32 %v3173
  %vm3428 = vweird.f32 %v3421
  %vm3429 = vmor %vm3427, %vm3428
  %v3430 = vsel %vm3429, %v3421, %v3426
  %v3431 = vrsqrt.pop %v3174
  %v3432 = vmul.f32 %v3431, %v3174
  %v3433 = vmul.f32 %v3432, %v3431
  %v3434 = vmul.f32 0.5, %v3433
  %v3435 = vsub.f32 1.5, %v3434
  %v3436 = vmul.f32 %v3431, %v3435
  %vm3437 = vweird.f32 %v3174
  %vm3438 = vweird.f32 %v3431
  %vm3439 = vmor %vm3437, %vm3438
  %v3440 = vsel %vm3439, %v3431, %v3436
  %v3441 = vrsqrt.pop %v3175
  %v3442 = vmul.f32 %v3441, %v3175
  %v3443 = vmul.f32 %v3442, %v3441
  %v3444 = vmul.f32 0.5, %v3443
  %v3445 = vsub.f32 1.5, %v3444
  %v3446 = vmul.f32 %v3441, %v3445
  %vm3447 = vweird.f32 %v3175
  %vm3448 = vweird.f32 %v3441
  %vm3449 = vmor %vm3447, %vm3448
  %v3450 = vsel %vm3449, %v3441, %v3446
  %v3451 = vrsqrt.pop %v3176
  %v3452 = vmul.f32 %v3451, %v3176
  %v3453 = vmul.f32 %v3452, %v3451
  %v3454 = vmul.f32 0.5, %v3453
  %v3455 = vsub.f32 1.5, %v3454
  %v3456 = vmul.f32 %v3451, %v3455
  %vm3457 = vweird.f32 %v3176
  %vm3458 = vweird.f32 %v3451
  %vm3459 = vmor %vm3457, %vm3458
  %v3460 = vsel %vm3459, %v3451, %v3456
  %v3461 = vrsqrt.pop %v3177
  %v3462 = vmul.f32 %v3461, %v3177
  %v3463 = vmul.f32 %v3462, %v3461
  %v3464 = vmul.f32 0.5, %v3463
  %v3465 = vsub.f32 1.5, %v3464
  %v3466 = vmul.f32 %v3461, %v3465
  %vm3467 = vweird.f32 %v3177
  %vm3468 = vweird.f32 %v3461
  %vm3469 = vmor %vm3467, %vm3468
  %v3470 = vsel %vm3469, %v3461, %v3466
  %v3471 = vrsqrt.pop %v3178
  %v3472 = vmul.f32 %v3471, %v3178
  %v3473 = vmul.f32 %v3472, %v3471
  %v3474 = vmul.f32 0.5, %v3473
  %v3475 = vsub.f32 1.5, %v3474
  %v3476 = vmul.f32 %v3471, %v3475
  %vm3477 = vweird.f32 %v3178
  %vm3478 = vweird.f32 %v3471
  %vm3479 = vmor %vm3477, %vm3478
  %v3480 = vsel %vm3479, %v3471, %v3476
  %v3481 = vrsqrt.pop %v3179
  %v3482 = vmul.f32 %v3481, %v3179
  %v3483 = vmul.f32 %v3482, %v3481
  %v3484 = vmul.f32 0.5, %v3483
  %v3485 = vsub.f32 1.5, %v3484
  %v3486 = vmul.f32 %v3481, %v3485
  %vm3487 = vweird.f32 %v3179
  %vm3488 = vweird.f32 %v3481
  %vm3489 = vmor %vm3487, %vm3488
  %v3490 = vsel %vm3489, %v3481, %v3486
  %v3491 = vrsqrt.pop %v3180
  %v3492 = vmul.f32 %v3491, %v3180
  %v3493 = vmul.f32 %v3492, %v3491
  %v3494 = vmul.f32 0.5, %v3493
  %v3495 = vsub.f32 1.5, %v3494
  %v3496 = vmul.f32 %v3491, %v3495
  %vm3497 = vweird.f32 %v3180
  %vm3498 = vweird.f32 %v3491
  %vm3499 = vmor %vm3497, %vm3498
  %v3500 = vsel %vm3499, %v3491, %v3496
  %v3501 = vmul.f32 %v33, %v3190
  %v3502 = vmul.f32 %v33, %v3200
  %v3503 = vmul.f32 %v33, %v3210
  %v3504 = vmul.f32 %v33, %v3220
  %v3505 = vmul.f32 %v33, %v3230
  %v3506 = vmul.f32 %v33, %v3240
  %v3507 = vmul.f32 %v33, %v3250
  %v3508 = vmul.f32 %v33, %v3260
  %v3509 = vmul.f32 %v33, %v3270
  %v3510 = vmul.f32 %v33, %v3280
  %v3511 = vmul.f32 %v33, %v3290
  %v3512 = vmul.f32 %v33, %v3300
  %v3513 = vmul.f32 %v33, %v3310
  %v3514 = vmul.f32 %v33, %v3320
  %v3515 = vmul.f32 %v33, %v3330
  %v3516 = vmul.f32 %v33, %v3340
  %v3517 = vmul.f32 %v33, %v3350
  %v3518 = vmul.f32 %v33, %v3360
  %v3519 = vmul.f32 %v33, %v3370
  %v3520 = vmul.f32 %v33, %v3380
  %v3521 = vmul.f32 %v33, %v3390
  %v3522 = vmul.f32 %v33, %v3400
  %v3523 = vmul.f32 %v33, %v3410
  %v3524 = vmul.f32 %v33, %v3420
  %v3525 = vmul.f32 %v33, %v3430
  %v3526 = vmul.f32 %v33, %v3440
  %v3527 = vmul.f32 %v33, %v3450
  %v3528 = vmul.f32 %v33, %v3460
  %v3529 = vmul.f32 %v33, %v3470
  %v3530 = vmul.f32 %v33, %v3480
  %v3531 = vmul.f32 %v33, %v3490
  %v3532 = vmul.f32 %v33, %v3500
  %v3533 = vmul.f32 %v2765, %v3501
  %v3534 = vmul.f32 %v2766, %v3502
  %v3535 = vmul.f32 %v2767, %v3503
  %v3536 = vmul.f32 %v2768, %v3504
  %v3537 = vmul.f32 %v2769, %v3505
  %v3538 = vmul.f32 %v2770, %v3506
  %v3539 = vmul.f32 %v2771, %v3507
  %v3540 = vmul.f32 %v2772, %v3508
  %v3541 = vmul.f32 %v2773, %v3509
  %v3542 = vmul.f32 %v2774, %v3510
  %v3543 = vmul.f32 %v2775, %v3511
  %v3544 = vmul.f32 %v2776, %v3512
  %v3545 = vmul.f32 %v2777, %v3513
  %v3546 = vmul.f32 %v2778, %v3514
  %v3547 = vmul.f32 %v2779, %v3515
  %v3548 = vmul.f32 %v2780, %v3516
  %v3549 = vmul.f32 %v2781, %v3517
  %v3550 = vmul.f32 %v2782, %v3518
  %v3551 = vmul.f32 %v2783, %v3519
  %v3552 = vmul.f32 %v2784, %v3520
  %v3553 = vmul.f32 %v2785, %v3521
  %v3554 = vmul.f32 %v2786, %v3522
  %v3555 = vmul.f32 %v2787, %v3523
  %v3556 = vmul.f32 %v2788, %v3524
  %v3557 = vmul.f32 %v2789, %v3525
  %v3558 = vmul.f32 %v2790, %v3526
  %v3559 = vmul.f32 %v2791, %v3527
  %v3560 = vmul.f32 %v2792, %v3528
  %v3561 = vmul.f32 %v2793, %v3529
  %v3562 = vmul.f32 %v2794, %v3530
  %v3563 = vmul.f32 %v2795, %v3531
  %v3564 = vmul.f32 %v2796, %v3532
  %v3597 = vrot.slane %v3533, 7
  %v3598 = vrot.slane %v3534, 7
  %v3599 = vrot.slane %v3535, 7
  %v3600 = vrot.slane %v3536, 7
  %v3601 = vrot.slane %v3537, 7
  %v3602 = vrot.slane %v3538, 7
  %v3603 = vrot.slane %v3539, 7
  %v3604 = vrot.slane %v3540, 7
  %v3605 = vrot.slane %v3541, 7
  %v3606 = vrot.slane %v3542, 7
  %v3607 = vrot.slane %v3543, 7
  %v3608 = vrot.slane %v3544, 7
  %v3609 = vrot.slane %v3545, 7
  %v3610 = vrot.slane %v3546, 7
  %v3611 = vrot.slane %v3547, 7
  %v3612 = vrot.slane %v3548, 7
  %v3613 = vrot.slane %v3549, 7
  %v3614 = vrot.slane %v3550, 7
  %v3615 = vrot.slane %v3551, 7
  %v3616 = vrot.slane %v3552, 7
  %v3617 = vrot.slane %v3553, 7
  %v3618 = vrot.slane %v3554, 7
  %v3619 = vrot.slane %v3555, 7
  %v3620 = vrot.slane %v3556, 7
  %v3621 = vrot.slane %v3557, 7
  %v3622 = vrot.slane %v3558, 7
  %v3623 = vrot.slane %v3559, 7
  %v3624 = vrot.slane %v3560, 7
  %v3625 = vrot.slane %v3561, 7
  %v3626 = vrot.slane %v3562, 7
  %v3627 = vrot.slane %v3563, 7
  %v3628 = vrot.slane %v3564, 7
  %v3661 = vsub.f32 %v33, %v3597
  %v3662 = vsub.f32 %v33, %v3598
  %v3663 = vsub.f32 %v33, %v3599
  %v3664 = vsub.f32 %v33, %v3600
  %v3665 = vsub.f32 %v33, %v3601
  %v3666 = vsub.f32 %v33, %v3602
  %v3667 = vsub.f32 %v33, %v3603
  %v3668 = vsub.f32 %v33, %v3604
  %v3669 = vsub.f32 %v33, %v3605
  %v3670 = vsub.f32 %v33, %v3606
  %v3671 = vsub.f32 %v33, %v3607
  %v3672 = vsub.f32 %v33, %v3608
  %v3673 = vsub.f32 %v33, %v3609
  %v3674 = vsub.f32 %v33, %v3610
  %v3675 = vsub.f32 %v33, %v3611
  %v3676 = vsub.f32 %v33, %v3612
  %v3677 = vsub.f32 %v33, %v3613
  %v3678 = vsub.f32 %v33, %v3614
  %v3679 = vsub.f32 %v33, %v3615
  %v3680 = vsub.f32 %v33, %v3616
  %v3681 = vsub.f32 %v33, %v3617
  %v3682 = vsub.f32 %v33, %v3618
  %v3683 = vsub.f32 %v33, %v3619
  %v3684 = vsub.f32 %v33, %v3620
  %v3685 = vsub.f32 %v33, %v3621
  %v3686 = vsub.f32 %v33, %v3622
  %v3687 = vsub.f32 %v33, %v3623
  %v3688 = vsub.f32 %v33, %v3624
  %v3689 = vsub.f32 %v33, %v3625
  %v3690 = vsub.f32 %v33, %v3626
  %v3691 = vsub.f32 %v33, %v3627
  %v3692 = vsub.f32 %v33, %v3628
  %v3693 = vperm.slane %v3501, 2
  %v3694 = vperm.slane %v3502, 2
  %v3695 = vperm.slane %v3503, 2
  %v3696 = vperm.slane %v3504, 2
  %v3697 = vperm.slane %v3505, 2
  %v3698 = vperm.slane %v3506, 2
  %v3699 = vperm.slane %v3507, 2
  %v3700 = vperm.slane %v3508, 2
  %v3701 = vperm.slane %v3509, 2
  %v3702 = vperm.slane %v3510, 2
  %v3703 = vperm.slane %v3511, 2
  %v3704 = vperm.slane %v3512, 2
  %v3705 = vperm.slane %v3513, 2
  %v3706 = vperm.slane %v3514, 2
  %v3707 = vperm.slane %v3515, 2
  %v3708 = vperm.slane %v3516, 2
  %v3709 = vperm.slane %v3517, 2
  %v3710 = vperm.slane %v3518, 2
  %v3711 = vperm.slane %v3519, 2
  %v3712 = vperm.slane %v3520, 2
  %v3713 = vperm.slane %v3521, 2
  %v3714 = vperm.slane %v3522, 2
  %v3715 = vperm.slane %v3523, 2
  %v3716 = vperm.slane %v3524, 2
  %v3717 = vperm.slane %v3525, 2
  %v3718 = vperm.slane %v3526, 2
  %v3719 = vperm.slane %v3527, 2
  %v3720 = vperm.slane %v3528, 2
  %v3721 = vperm.slane %v3529, 2
  %v3722 = vperm.slane %v3530, 2
  %v3723 = vperm.slane %v3531, 2
  %v3724 = vperm.slane %v3532, 2
  %v3725 = vmul.f32 %v2446, %v3693
  %v3726 = vmul.f32 %v2449, %v3694
  %v3727 = vmul.f32 %v2452, %v3695
  %v3728 = vmul.f32 %v2455, %v3696
  %v3729 = vmul.f32 %v2458, %v3697
  %v3730 = vmul.f32 %v2461, %v3698
  %v3731 = vmul.f32 %v2464, %v3699
  %v3732 = vmul.f32 %v2467, %v3700
  %v3733 = vmul.f32 %v2470, %v3701
  %v3734 = vmul.f32 %v2473, %v3702
  %v3735 = vmul.f32 %v2476, %v3703
  %v3736 = vmul.f32 %v2479, %v3704
  %v3737 = vmul.f32 %v2482, %v3705
  %v3738 = vmul.f32 %v2485, %v3706
  %v3739 = vmul.f32 %v2488, %v3707
  %v3740 = vmul.f32 %v2491, %v3708
  %v3741 = vmul.f32 %v2494, %v3709
  %v3742 = vmul.f32 %v2497, %v3710
  %v3743 = vmul.f32 %v2500, %v3711
  %v3744 = vmul.f32 %v2503, %v3712
  %v3745 = vmul.f32 %v2506, %v3713
  %v3746 = vmul.f32 %v2509, %v3714
  %v3747 = vmul.f32 %v2512, %v3715
  %v3748 = vmul.f32 %v2515, %v3716
  %v3749 = vmul.f32 %v2518, %v3717
  %v3750 = vmul.f32 %v2521, %v3718
  %v3751 = vmul.f32 %v2524, %v3719
  %v3752 = vmul.f32 %v2527, %v3720
  %v3753 = vmul.f32 %v2530, %v3721
  %v3754 = vmul.f32 %v2533, %v3722
  %v3755 = vmul.f32 %v2536, %v3723
  %v3756 = vmul.f32 %v2539, %v3724
  %v3757 = vperm.slane %v3661, 3
  %v3758 = vperm.slane %v3662, 3
  %v3759 = vperm.slane %v3663, 3
  %v3760 = vperm.slane %v3664, 3
  %v3761 = vperm.slane %v3665, 3
  %v3762 = vperm.slane %v3666, 3
  %v3763 = vperm.slane %v3667, 3
  %v3764 = vperm.slane %v3668, 3
  %v3765 = vperm.slane %v3669, 3
  %v3766 = vperm.slane %v3670, 3
  %v3767 = vperm.slane %v3671, 3
  %v3768 = vperm.slane %v3672, 3
  %v3769 = vperm.slane %v3673, 3
  %v3770 = vperm.slane %v3674, 3
  %v3771 = vperm.slane %v3675, 3
  %v3772 = vperm.slane %v3676, 3
  %v3773 = vperm.slane %v3677, 3
  %v3774 = vperm.slane %v3678, 3
  %v3775 = vperm.slane %v3679, 3
  %v3776 = vperm.slane %v3680, 3
  %v3777 = vperm.slane %v3681, 3
  %v3778 = vperm.slane %v3682, 3
  %v3779 = vperm.slane %v3683, 3
  %v3780 = vperm.slane %v3684, 3
  %v3781 = vperm.slane %v3685, 3
  %v3782 = vperm.slane %v3686, 3
  %v3783 = vperm.slane %v3687, 3
  %v3784 = vperm.slane %v3688, 3
  %v3785 = vperm.slane %v3689, 3
  %v3786 = vperm.slane %v3690, 3
  %v3787 = vperm.slane %v3691, 3
  %v3788 = vperm.slane %v3692, 3
  %v3789 = vadd.f32 %v3725, %v3757
  %v3790 = vadd.f32 %v3726, %v3758
  %v3791 = vadd.f32 %v3727, %v3759
  %v3792 = vadd.f32 %v3728, %v3760
  %v3793 = vadd.f32 %v3729, %v3761
  %v3794 = vadd.f32 %v3730, %v3762
  %v3795 = vadd.f32 %v3731, %v3763
  %v3796 = vadd.f32 %v3732, %v3764
  %v3797 = vadd.f32 %v3733, %v3765
  %v3798 = vadd.f32 %v3734, %v3766
  %v3799 = vadd.f32 %v3735, %v3767
  %v3800 = vadd.f32 %v3736, %v3768
  %v3801 = vadd.f32 %v3737, %v3769
  %v3802 = vadd.f32 %v3738, %v3770
  %v3803 = vadd.f32 %v3739, %v3771
  %v3804 = vadd.f32 %v3740, %v3772
  %v3805 = vadd.f32 %v3741, %v3773
  %v3806 = vadd.f32 %v3742, %v3774
  %v3807 = vadd.f32 %v3743, %v3775
  %v3808 = vadd.f32 %v3744, %v3776
  %v3809 = vadd.f32 %v3745, %v3777
  %v3810 = vadd.f32 %v3746, %v3778
  %v3811 = vadd.f32 %v3747, %v3779
  %v3812 = vadd.f32 %v3748, %v3780
  %v3813 = vadd.f32 %v3749, %v3781
  %v3814 = vadd.f32 %v3750, %v3782
  %v3815 = vadd.f32 %v3751, %v3783
  %v3816 = vadd.f32 %v3752, %v3784
  %v3817 = vadd.f32 %v3753, %v3785
  %v3818 = vadd.f32 %v3754, %v3786
  %v3819 = vadd.f32 %v3755, %v3787
  %v3820 = vadd.f32 %v3756, %v3788
  %v3821 = vxor.u32 %v3789, 2147483648
  %v3822 = vxor.u32 %v3790, 2147483648
  %v3823 = vxor.u32 %v3791, 2147483648
  %v3824 = vxor.u32 %v3792, 2147483648
  %v3825 = vxor.u32 %v3793, 2147483648
  %v3826 = vxor.u32 %v3794, 2147483648
  %v3827 = vxor.u32 %v3795, 2147483648
  %v3828 = vxor.u32 %v3796, 2147483648
  %v3829 = vxor.u32 %v3797, 2147483648
  %v3830 = vxor.u32 %v3798, 2147483648
  %v3831 = vxor.u32 %v3799, 2147483648
  %v3832 = vxor.u32 %v3800, 2147483648
  %v3833 = vxor.u32 %v3801, 2147483648
  %v3834 = vxor.u32 %v3802, 2147483648
  %v3835 = vxor.u32 %v3803, 2147483648
  %v3836 = vxor.u32 %v3804, 2147483648
  %v3837 = vxor.u32 %v3805, 2147483648
  %v3838 = vxor.u32 %v3806, 2147483648
  %v3839 = vxor.u32 %v3807, 2147483648
  %v3840 = vxor.u32 %v3808, 2147483648
  %v3841 = vxor.u32 %v3809, 2147483648
  %v3842 = vxor.u32 %v3810, 2147483648
  %v3843 = vxor.u32 %v3811, 2147483648
  %v3844 = vxor.u32 %v3812, 2147483648
  %v3845 = vxor.u32 %v3813, 2147483648
  %v3846 = vxor.u32 %v3814, 2147483648
  %v3847 = vxor.u32 %v3815, 2147483648
  %v3848 = vxor.u32 %v3816, 2147483648
  %v3849 = vxor.u32 %v3817, 2147483648
  %v3850 = vxor.u32 %v3818, 2147483648
  %v3851 = vxor.u32 %v3819, 2147483648
  %v3852 = vxor.u32 %v3820, 2147483648
  %v3853 = vmul.f32 %v3821, 1.442695
  %v3854 = vpow.pop %v3853
  %v3855 = vmul.f32 %v3822, 1.442695
  %v3856 = vpow.pop %v3855
  %v3857 = vmul.f32 %v3823, 1.442695
  %v3858 = vpow.pop %v3857
  %v3859 = vmul.f32 %v3824, 1.442695
  %v3860 = vpow.pop %v3859
  %v3861 = vmul.f32 %v3825, 1.442695
  %v3862 = vpow.pop %v3861
  %v3863 = vmul.f32 %v3826, 1.442695
  %v3864 = vpow.pop %v3863
  %v3865 = vmul.f32 %v3827, 1.442695
  %v3866 = vpow.pop %v3865
  %v3867 = vmul.f32 %v3828, 1.442695
  %v3868 = vpow.pop %v3867
  %v3869 = vmul.f32 %v3829, 1.442695
  %v3870 = vpow.pop %v3869
  %v3871 = vmul.f32 %v3830, 1.442695
  %v3872 = vpow.pop %v3871
  %v3873 = vmul.f32 %v3831, 1.442695
  %v3874 = vpow.pop %v3873
  %v3875 = vmul.f32 %v3832, 1.442695
  %v3876 = vpow.pop %v3875
  %v3877 = vmul.f32 %v3833, 1.442695
  %v3878 = vpow.pop %v3877
  %v3879 = vmul.f32 %v3834, 1.442695
  %v3880 = vpow.pop %v3879
  %v3881 = vmul.f32 %v3835, 1.442695
  %v3882 = vpow.pop %v3881
  %v3883 = vmul.f32 %v3836, 1.442695
  %v3884 = vpow.pop %v3883
  %v3885 = vmul.f32 %v3837, 1.442695
  %v3886 = vpow.pop %v3885
  %v3887 = vmul.f32 %v3838, 1.442695
  %v3888 = vpow.pop %v3887
  %v3889 = vmul.f32 %v3839, 1.442695
  %v3890 = vpow.pop %v3889
  %v3891 = vmul.f32 %v3840, 1.442695
  %v3892 = vpow.pop %v3891
  %v3893 = vmul.f32 %v3841, 1.442695
  %v3894 = vpow.pop %v3893
  %v3895 = vmul.f32 %v3842, 1.442695
  %v3896 = vpow.pop %v3895
  %v3897 = vmul.f32 %v3843, 1.442695
  %v3898 = vpow.pop %v3897
  %v3899 = vmul.f32 %v3844, 1.442695
  %v3900 = vpow.pop %v3899
  %v3901 = vmul.f32 %v3845, 1.442695
  %v3902 = vpow.pop %v3901
  %v3903 = vmul.f32 %v3846, 1.442695
  %v3904 = vpow.pop %v3903
  %v3905 = vmul.f32 %v3847, 1.442695
  %v3906 = vpow.pop %v3905
  %v3907 = vmul.f32 %v3848, 1.442695
  %v3908 = vpow.pop %v3907
  %v3909 = vmul.f32 %v3849, 1.442695
  %v3910 = vpow.pop %v3909
  %v3911 = vmul.f32 %v3850, 1.442695
  %v3912 = vpow.pop %v3911
  %v3913 = vmul.f32 %v3851, 1.442695
  %v3914 = vpow.pop %v3913
  %v3915 = vmul.f32 %v3852, 1.442695
  %v3916 = vpow.pop %v3915
  %v3917 = vadd.f32 %v3854, 1.0
  %v3918 = vadd.f32 %v3856, 1.0
  %v3919 = vadd.f32 %v3858, 1.0
  %v3920 = vadd.f32 %v3860, 1.0
  %v3921 = vadd.f32 %v3862, 1.0
  %v3922 = vadd.f32 %v3864, 1.0
  %v3923 = vadd.f32 %v3866, 1.0
  %v3924 = vadd.f32 %v3868, 1.0
  %v3925 = vadd.f32 %v3870, 1.0
  %v3926 = vadd.f32 %v3872, 1.0
  %v3927 = vadd.f32 %v3874, 1.0
  %v3928 = vadd.f32 %v3876, 1.0
  %v3929 = vadd.f32 %v3878, 1.0
  %v3930 = vadd.f32 %v3880, 1.0
  %v3931 = vadd.f32 %v3882, 1.0
  %v3932 = vadd.f32 %v3884, 1.0
  %v3933 = vadd.f32 %v3886, 1.0
  %v3934 = vadd.f32 %v3888, 1.0
  %v3935 = vadd.f32 %v3890, 1.0
  %v3936 = vadd.f32 %v3892, 1.0
  %v3937 = vadd.f32 %v3894, 1.0
  %v3938 = vadd.f32 %v3896, 1.0
  %v3939 = vadd.f32 %v3898, 1.0
  %v3940 = vadd.f32 %v3900, 1.0
  %v3941 = vadd.f32 %v3902, 1.0
  %v3942 = vadd.f32 %v3904, 1.0
  %v3943 = vadd.f32 %v3906, 1.0
  %v3944 = vadd.f32 %v3908, 1.0
  %v3945 = vadd.f32 %v3910, 1.0
  %v3946 = vadd.f32 %v3912, 1.0
  %v3947 = vadd.f32 %v3914, 1.0
  %v3948 = vadd.f32 %v3916, 1.0
  %v3949 = vrcp.pop %v3917
  %v3950 = vmul.f32 %v3917, %v3949
  %v3951 = vsub.f32 1.0, %v3950
  %v3952 = vmul.f32 %v3949, %v3951
  %v3953 = vadd.f32 %v3949, %v3952
  %vm3954 = vweird.f32 %v3917
  %vm3955 = vweird.f32 %v3949
  %vm3956 = vmor %vm3954, %vm3955
  %v3957 = vsel %vm3956, %v3949, %v3953
  %v3958 = vand.u32 2147483647, %v3917
  %vm3959 = vcmp.eq.f32.partialorder %v3958, 8.507059e+37
  %v3960 = vand.u32 %v3917, 2147483648
  %v3961 = vor.u32 1.1754944e-38, %v3960
  %v3962 = vsel %vm3959, %v3961, %v3957
  %v3963 = vmul.f32 1.0, %v3962
  %v3964 = vrcp.pop %v3918
  %v3965 = vmul.f32 %v3918, %v3964
  %v3966 = vsub.f32 1.0, %v3965
  %v3967 = vmul.f32 %v3964, %v3966
  %v3968 = vadd.f32 %v3964, %v3967
  %vm3969 = vweird.f32 %v3918
  %vm3970 = vweird.f32 %v3964
  %vm3971 = vmor %vm3969, %vm3970
  %v3972 = vsel %vm3971, %v3964, %v3968
  %v3973 = vand.u32 2147483647, %v3918
  %vm3974 = vcmp.eq.f32.partialorder %v3973, 8.507059e+37
  %v3975 = vand.u32 %v3918, 2147483648
  %v3976 = vor.u32 1.1754944e-38, %v3975
  %v3977 = vsel %vm3974, %v3976, %v3972
  %v3978 = vmul.f32 1.0, %v3977
  %v3979 = vrcp.pop %v3919
  %v3980 = vmul.f32 %v3919, %v3979
  %v3981 = vsub.f32 1.0, %v3980
  %v3982 = vmul.f32 %v3979, %v3981
  %v3983 = vadd.f32 %v3979, %v3982
  %vm3984 = vweird.f32 %v3919
  %vm3985 = vweird.f32 %v3979
  %vm3986 = vmor %vm3984, %vm3985
  %v3987 = vsel %vm3986, %v3979, %v3983
  %v3988 = vand.u32 2147483647, %v3919
  %vm3989 = vcmp.eq.f32.partialorder %v3988, 8.507059e+37
  %v3990 = vand.u32 %v3919, 2147483648
  %v3991 = vor.u32 1.1754944e-38, %v3990
  %v3992 = vsel %vm3989, %v3991, %v3987
  %v3993 = vmul.f32 1.0, %v3992
  %v3994 = vrcp.pop %v3920
  %v3995 = vmul.f32 %v3920, %v3994
  %v3996 = vsub.f32 1.0, %v3995
  %v3997 = vmul.f32 %v3994, %v3996
  %v3998 = vadd.f32 %v3994, %v3997
  %vm3999 = vweird.f32 %v3920
  %vm4000 = vweird.f32 %v3994
  %vm4001 = vmor %vm3999, %vm4000
  %v4002 = vsel %vm4001, %v3994, %v3998
  %v4003 = vand.u32 2147483647, %v3920
  %vm4004 = vcmp.eq.f32.partialorder %v4003, 8.507059e+37
  %v4005 = vand.u32 %v3920, 2147483648
  %v4006 = vor.u32 1.1754944e-38, %v4005
  %v4007 = vsel %vm4004, %v4006, %v4002
  %v4008 = vmul.f32 1.0, %v4007
  %v4009 = vrcp.pop %v3921
  %v4010 = vmul.f32 %v3921, %v4009
  %v4011 = vsub.f32 1.0, %v4010
  %v4012 = vmul.f32 %v4009, %v4011
  %v4013 = vadd.f32 %v4009, %v4012
  %vm4014 = vweird.f32 %v3921
  %vm4015 = vweird.f32 %v4009
  %vm4016 = vmor %vm4014, %vm4015
  %v4017 = vsel %vm4016, %v4009, %v4013
  %v4018 = vand.u32 2147483647, %v3921
  %vm4019 = vcmp.eq.f32.partialorder %v4018, 8.507059e+37
  %v4020 = vand.u32 %v3921, 2147483648
  %v4021 = vor.u32 1.1754944e-38, %v4020
  %v4022 = vsel %vm4019, %v4021, %v4017
  %v4023 = vmul.f32 1.0, %v4022
  %v4024 = vrcp.pop %v3922
  %v4025 = vmul.f32 %v3922, %v4024
  %v4026 = vsub.f32 1.0, %v4025
  %v4027 = vmul.f32 %v4024, %v4026
  %v4028 = vadd.f32 %v4024, %v4027
  %vm4029 = vweird.f32 %v3922
  %vm4030 = vweird.f32 %v4024
  %vm4031 = vmor %vm4029, %vm4030
  %v4032 = vsel %vm4031, %v4024, %v4028
  %v4033 = vand.u32 2147483647, %v3922
  %vm4034 = vcmp.eq.f32.partialorder %v4033, 8.507059e+37
  %v4035 = vand.u32 %v3922, 2147483648
  %v4036 = vor.u32 1.1754944e-38, %v4035
  %v4037 = vsel %vm4034, %v4036, %v4032
  %v4038 = vmul.f32 1.0, %v4037
  %v4039 = vrcp.pop %v3923
  %v4040 = vmul.f32 %v3923, %v4039
  %v4041 = vsub.f32 1.0, %v4040
  %v4042 = vmul.f32 %v4039, %v4041
  %v4043 = vadd.f32 %v4039, %v4042
  %vm4044 = vweird.f32 %v3923
  %vm4045 = vweird.f32 %v4039
  %vm4046 = vmor %vm4044, %vm4045
  %v4047 = vsel %vm4046, %v4039, %v4043
  %v4048 = vand.u32 2147483647, %v3923
  %vm4049 = vcmp.eq.f32.partialorder %v4048, 8.507059e+37
  %v4050 = vand.u32 %v3923, 2147483648
  %v4051 = vor.u32 1.1754944e-38, %v4050
  %v4052 = vsel %vm4049, %v4051, %v4047
  %v4053 = vmul.f32 1.0, %v4052
  %v4054 = vrcp.pop %v3924
  %v4055 = vmul.f32 %v3924, %v4054
  %v4056 = vsub.f32 1.0, %v4055
  %v4057 = vmul.f32 %v4054, %v4056
  %v4058 = vadd.f32 %v4054, %v4057
  %vm4059 = vweird.f32 %v3924
  %vm4060 = vweird.f32 %v4054
  %vm4061 = vmor %vm4059, %vm4060
  %v4062 = vsel %vm4061, %v4054, %v4058
  %v4063 = vand.u32 2147483647, %v3924
  %vm4064 = vcmp.eq.f32.partialorder %v4063, 8.507059e+37
  %v4065 = vand.u32 %v3924, 2147483648
  %v4066 = vor.u32 1.1754944e-38, %v4065
  %v4067 = vsel %vm4064, %v4066, %v4062
  %v4068 = vmul.f32 1.0, %v4067
  %v4069 = vrcp.pop %v3925
  %v4070 = vmul.f32 %v3925, %v4069
  %v4071 = vsub.f32 1.0, %v4070
  %v4072 = vmul.f32 %v4069, %v4071
  %v4073 = vadd.f32 %v4069, %v4072
  %vm4074 = vweird.f32 %v3925
  %vm4075 = vweird.f32 %v4069
  %vm4076 = vmor %vm4074, %vm4075
  %v4077 = vsel %vm4076, %v4069, %v4073
  %v4078 = vand.u32 2147483647, %v3925
  %vm4079 = vcmp.eq.f32.partialorder %v4078, 8.507059e+37
  %v4080 = vand.u32 %v3925, 2147483648
  %v4081 = vor.u32 1.1754944e-38, %v4080
  %v4082 = vsel %vm4079, %v4081, %v4077
  %v4083 = vmul.f32 1.0, %v4082
  %v4084 = vrcp.pop %v3926
  %v4085 = vmul.f32 %v3926, %v4084
  %v4086 = vsub.f32 1.0, %v4085
  %v4087 = vmul.f32 %v4084, %v4086
  %v4088 = vadd.f32 %v4084, %v4087
  %vm4089 = vweird.f32 %v3926
  %vm4090 = vweird.f32 %v4084
  %vm4091 = vmor %vm4089, %vm4090
  %v4092 = vsel %vm4091, %v4084, %v4088
  %v4093 = vand.u32 2147483647, %v3926
  %vm4094 = vcmp.eq.f32.partialorder %v4093, 8.507059e+37
  %v4095 = vand.u32 %v3926, 2147483648
  %v4096 = vor.u32 1.1754944e-38, %v4095
  %v4097 = vsel %vm4094, %v4096, %v4092
  %v4098 = vmul.f32 1.0, %v4097
  %v4099 = vrcp.pop %v3927
  %v4100 = vmul.f32 %v3927, %v4099
  %v4101 = vsub.f32 1.0, %v4100
  %v4102 = vmul.f32 %v4099, %v4101
  %v4103 = vadd.f32 %v4099, %v4102
  %vm4104 = vweird.f32 %v3927
  %vm4105 = vweird.f32 %v4099
  %vm4106 = vmor %vm4104, %vm4105
  %v4107 = vsel %vm4106, %v4099, %v4103
  %v4108 = vand.u32 2147483647, %v3927
  %vm4109 = vcmp.eq.f32.partialorder %v4108, 8.507059e+37
  %v4110 = vand.u32 %v3927, 2147483648
  %v4111 = vor.u32 1.1754944e-38, %v4110
  %v4112 = vsel %vm4109, %v4111, %v4107
  %v4113 = vmul.f32 1.0, %v4112
  %v4114 = vrcp.pop %v3928
  %v4115 = vmul.f32 %v3928, %v4114
  %v4116 = vsub.f32 1.0, %v4115
  %v4117 = vmul.f32 %v4114, %v4116
  %v4118 = vadd.f32 %v4114, %v4117
  %vm4119 = vweird.f32 %v3928
  %vm4120 = vweird.f32 %v4114
  %vm4121 = vmor %vm4119, %vm4120
  %v4122 = vsel %vm4121, %v4114, %v4118
  %v4123 = vand.u32 2147483647, %v3928
  %vm4124 = vcmp.eq.f32.partialorder %v4123, 8.507059e+37
  %v4125 = vand.u32 %v3928, 2147483648
  %v4126 = vor.u32 1.1754944e-38, %v4125
  %v4127 = vsel %vm4124, %v4126, %v4122
  %v4128 = vmul.f32 1.0, %v4127
  %v4129 = vrcp.pop %v3929
  %v4130 = vmul.f32 %v3929, %v4129
  %v4131 = vsub.f32 1.0, %v4130
  %v4132 = vmul.f32 %v4129, %v4131
  %v4133 = vadd.f32 %v4129, %v4132
  %vm4134 = vweird.f32 %v3929
  %vm4135 = vweird.f32 %v4129
  %vm4136 = vmor %vm4134, %vm4135
  %v4137 = vsel %vm4136, %v4129, %v4133
  %v4138 = vand.u32 2147483647, %v3929
  %vm4139 = vcmp.eq.f32.partialorder %v4138, 8.507059e+37
  %v4140 = vand.u32 %v3929, 2147483648
  %v4141 = vor.u32 1.1754944e-38, %v4140
  %v4142 = vsel %vm4139, %v4141, %v4137
  %v4143 = vmul.f32 1.0, %v4142
  %v4144 = vrcp.pop %v3930
  %v4145 = vmul.f32 %v3930, %v4144
  %v4146 = vsub.f32 1.0, %v4145
  %v4147 = vmul.f32 %v4144, %v4146
  %v4148 = vadd.f32 %v4144, %v4147
  %vm4149 = vweird.f32 %v3930
  %vm4150 = vweird.f32 %v4144
  %vm4151 = vmor %vm4149, %vm4150
  %v4152 = vsel %vm4151, %v4144, %v4148
  %v4153 = vand.u32 2147483647, %v3930
  %vm4154 = vcmp.eq.f32.partialorder %v4153, 8.507059e+37
  %v4155 = vand.u32 %v3930, 2147483648
  %v4156 = vor.u32 1.1754944e-38, %v4155
  %v4157 = vsel %vm4154, %v4156, %v4152
  %v4158 = vmul.f32 1.0, %v4157
  %v4159 = vrcp.pop %v3931
  %v4160 = vmul.f32 %v3931, %v4159
  %v4161 = vsub.f32 1.0, %v4160
  %v4162 = vmul.f32 %v4159, %v4161
  %v4163 = vadd.f32 %v4159, %v4162
  %vm4164 = vweird.f32 %v3931
  %vm4165 = vweird.f32 %v4159
  %vm4166 = vmor %vm4164, %vm4165
  %v4167 = vsel %vm4166, %v4159, %v4163
  %v4168 = vand.u32 2147483647, %v3931
  %vm4169 = vcmp.eq.f32.partialorder %v4168, 8.507059e+37
  %v4170 = vand.u32 %v3931, 2147483648
  %v4171 = vor.u32 1.1754944e-38, %v4170
  %v4172 = vsel %vm4169, %v4171, %v4167
  %v4173 = vmul.f32 1.0, %v4172
  %v4174 = vrcp.pop %v3932
  %v4175 = vmul.f32 %v3932, %v4174
  %v4176 = vsub.f32 1.0, %v4175
  %v4177 = vmul.f32 %v4174, %v4176
  %v4178 = vadd.f32 %v4174, %v4177
  %vm4179 = vweird.f32 %v3932
  %vm4180 = vweird.f32 %v4174
  %vm4181 = vmor %vm4179, %vm4180
  %v4182 = vsel %vm4181, %v4174, %v4178
  %v4183 = vand.u32 2147483647, %v3932
  %vm4184 = vcmp.eq.f32.partialorder %v4183, 8.507059e+37
  %v4185 = vand.u32 %v3932, 2147483648
  %v4186 = vor.u32 1.1754944e-38, %v4185
  %v4187 = vsel %vm4184, %v4186, %v4182
  %v4188 = vmul.f32 1.0, %v4187
  %v4189 = vrcp.pop %v3933
  %v4190 = vmul.f32 %v3933, %v4189
  %v4191 = vsub.f32 1.0, %v4190
  %v4192 = vmul.f32 %v4189, %v4191
  %v4193 = vadd.f32 %v4189, %v4192
  %vm4194 = vweird.f32 %v3933
  %vm4195 = vweird.f32 %v4189
  %vm4196 = vmor %vm4194, %vm4195
  %v4197 = vsel %vm4196, %v4189, %v4193
  %v4198 = vand.u32 2147483647, %v3933
  %vm4199 = vcmp.eq.f32.partialorder %v4198, 8.507059e+37
  %v4200 = vand.u32 %v3933, 2147483648
  %v4201 = vor.u32 1.1754944e-38, %v4200
  %v4202 = vsel %vm4199, %v4201, %v4197
  %v4203 = vmul.f32 1.0, %v4202
  %v4204 = vrcp.pop %v3934
  %v4205 = vmul.f32 %v3934, %v4204
  %v4206 = vsub.f32 1.0, %v4205
  %v4207 = vmul.f32 %v4204, %v4206
  %v4208 = vadd.f32 %v4204, %v4207
  %vm4209 = vweird.f32 %v3934
  %vm4210 = vweird.f32 %v4204
  %vm4211 = vmor %vm4209, %vm4210
  %v4212 = vsel %vm4211, %v4204, %v4208
  %v4213 = vand.u32 2147483647, %v3934
  %vm4214 = vcmp.eq.f32.partialorder %v4213, 8.507059e+37
  %v4215 = vand.u32 %v3934, 2147483648
  %v4216 = vor.u32 1.1754944e-38, %v4215
  %v4217 = vsel %vm4214, %v4216, %v4212
  %v4218 = vmul.f32 1.0, %v4217
  %v4219 = vrcp.pop %v3935
  %v4220 = vmul.f32 %v3935, %v4219
  %v4221 = vsub.f32 1.0, %v4220
  %v4222 = vmul.f32 %v4219, %v4221
  %v4223 = vadd.f32 %v4219, %v4222
  %vm4224 = vweird.f32 %v3935
  %vm4225 = vweird.f32 %v4219
  %vm4226 = vmor %vm4224, %vm4225
  %v4227 = vsel %vm4226, %v4219, %v4223
  %v4228 = vand.u32 2147483647, %v3935
  %vm4229 = vcmp.eq.f32.partialorder %v4228, 8.507059e+37
  %v4230 = vand.u32 %v3935, 2147483648
  %v4231 = vor.u32 1.1754944e-38, %v4230
  %v4232 = vsel %vm4229, %v4231, %v4227
  %v4233 = vmul.f32 1.0, %v4232
  %v4234 = vrcp.pop %v3936
  %v4235 = vmul.f32 %v3936, %v4234
  %v4236 = vsub.f32 1.0, %v4235
  %v4237 = vmul.f32 %v4234, %v4236
  %v4238 = vadd.f32 %v4234, %v4237
  %vm4239 = vweird.f32 %v3936
  %vm4240 = vweird.f32 %v4234
  %vm4241 = vmor %vm4239, %vm4240
  %v4242 = vsel %vm4241, %v4234, %v4238
  %v4243 = vand.u32 2147483647, %v3936
  %vm4244 = vcmp.eq.f32.partialorder %v4243, 8.507059e+37
  %v4245 = vand.u32 %v3936, 2147483648
  %v4246 = vor.u32 1.1754944e-38, %v4245
  %v4247 = vsel %vm4244, %v4246, %v4242
  %v4248 = vmul.f32 1.0, %v4247
  %v4249 = vrcp.pop %v3937
  %v4250 = vmul.f32 %v3937, %v4249
  %v4251 = vsub.f32 1.0, %v4250
  %v4252 = vmul.f32 %v4249, %v4251
  %v4253 = vadd.f32 %v4249, %v4252
  %vm4254 = vweird.f32 %v3937
  %vm4255 = vweird.f32 %v4249
  %vm4256 = vmor %vm4254, %vm4255
  %v4257 = vsel %vm4256, %v4249, %v4253
  %v4258 = vand.u32 2147483647, %v3937
  %vm4259 = vcmp.eq.f32.partialorder %v4258, 8.507059e+37
  %v4260 = vand.u32 %v3937, 2147483648
  %v4261 = vor.u32 1.1754944e-38, %v4260
  %v4262 = vsel %vm4259, %v4261, %v4257
  %v4263 = vmul.f32 1.0, %v4262
  %v4264 = vrcp.pop %v3938
  %v4265 = vmul.f32 %v3938, %v4264
  %v4266 = vsub.f32 1.0, %v4265
  %v4267 = vmul.f32 %v4264, %v4266
  %v4268 = vadd.f32 %v4264, %v4267
  %vm4269 = vweird.f32 %v3938
  %vm4270 = vweird.f32 %v4264
  %vm4271 = vmor %vm4269, %vm4270
  %v4272 = vsel %vm4271, %v4264, %v4268
  %v4273 = vand.u32 2147483647, %v3938
  %vm4274 = vcmp.eq.f32.partialorder %v4273, 8.507059e+37
  %v4275 = vand.u32 %v3938, 2147483648
  %v4276 = vor.u32 1.1754944e-38, %v4275
  %v4277 = vsel %vm4274, %v4276, %v4272
  %v4278 = vmul.f32 1.0, %v4277
  %v4279 = vrcp.pop %v3939
  %v4280 = vmul.f32 %v3939, %v4279
  %v4281 = vsub.f32 1.0, %v4280
  %v4282 = vmul.f32 %v4279, %v4281
  %v4283 = vadd.f32 %v4279, %v4282
  %vm4284 = vweird.f32 %v3939
  %vm4285 = vweird.f32 %v4279
  %vm4286 = vmor %vm4284, %vm4285
  %v4287 = vsel %vm4286, %v4279, %v4283
  %v4288 = vand.u32 2147483647, %v3939
  %vm4289 = vcmp.eq.f32.partialorder %v4288, 8.507059e+37
  %v4290 = vand.u32 %v3939, 2147483648
  %v4291 = vor.u32 1.1754944e-38, %v4290
  %v4292 = vsel %vm4289, %v4291, %v4287
  %v4293 = vmul.f32 1.0, %v4292
  %v4294 = vrcp.pop %v3940
  %v4295 = vmul.f32 %v3940, %v4294
  %v4296 = vsub.f32 1.0, %v4295
  %v4297 = vmul.f32 %v4294, %v4296
  %v4298 = vadd.f32 %v4294, %v4297
  %vm4299 = vweird.f32 %v3940
  %vm4300 = vweird.f32 %v4294
  %vm4301 = vmor %vm4299, %vm4300
  %v4302 = vsel %vm4301, %v4294, %v4298
  %v4303 = vand.u32 2147483647, %v3940
  %vm4304 = vcmp.eq.f32.partialorder %v4303, 8.507059e+37
  %v4305 = vand.u32 %v3940, 2147483648
  %v4306 = vor.u32 1.1754944e-38, %v4305
  %v4307 = vsel %vm4304, %v4306, %v4302
  %v4308 = vmul.f32 1.0, %v4307
  %v4309 = vrcp.pop %v3941
  %v4310 = vmul.f32 %v3941, %v4309
  %v4311 = vsub.f32 1.0, %v4310
  %v4312 = vmul.f32 %v4309, %v4311
  %v4313 = vadd.f32 %v4309, %v4312
  %vm4314 = vweird.f32 %v3941
  %vm4315 = vweird.f32 %v4309
  %vm4316 = vmor %vm4314, %vm4315
  %v4317 = vsel %vm4316, %v4309, %v4313
  %v4318 = vand.u32 2147483647, %v3941
  %vm4319 = vcmp.eq.f32.partialorder %v4318, 8.507059e+37
  %v4320 = vand.u32 %v3941, 2147483648
  %v4321 = vor.u32 1.1754944e-38, %v4320
  %v4322 = vsel %vm4319, %v4321, %v4317
  %v4323 = vmul.f32 1.0, %v4322
  %v4324 = vrcp.pop %v3942
  %v4325 = vmul.f32 %v3942, %v4324
  %v4326 = vsub.f32 1.0, %v4325
  %v4327 = vmul.f32 %v4324, %v4326
  %v4328 = vadd.f32 %v4324, %v4327
  %vm4329 = vweird.f32 %v3942
  %vm4330 = vweird.f32 %v4324
  %vm4331 = vmor %vm4329, %vm4330
  %v4332 = vsel %vm4331, %v4324, %v4328
  %v4333 = vand.u32 2147483647, %v3942
  %vm4334 = vcmp.eq.f32.partialorder %v4333, 8.507059e+37
  %v4335 = vand.u32 %v3942, 2147483648
  %v4336 = vor.u32 1.1754944e-38, %v4335
  %v4337 = vsel %vm4334, %v4336, %v4332
  %v4338 = vmul.f32 1.0, %v4337
  %v4339 = vrcp.pop %v3943
  %v4340 = vmul.f32 %v3943, %v4339
  %v4341 = vsub.f32 1.0, %v4340
  %v4342 = vmul.f32 %v4339, %v4341
  %v4343 = vadd.f32 %v4339, %v4342
  %vm4344 = vweird.f32 %v3943
  %vm4345 = vweird.f32 %v4339
  %vm4346 = vmor %vm4344, %vm4345
  %v4347 = vsel %vm4346, %v4339, %v4343
  %v4348 = vand.u32 2147483647, %v3943
  %vm4349 = vcmp.eq.f32.partialorder %v4348, 8.507059e+37
  %v4350 = vand.u32 %v3943, 2147483648
  %v4351 = vor.u32 1.1754944e-38, %v4350
  %v4352 = vsel %vm4349, %v4351, %v4347
  %v4353 = vmul.f32 1.0, %v4352
  %v4354 = vrcp.pop %v3944
  %v4355 = vmul.f32 %v3944, %v4354
  %v4356 = vsub.f32 1.0, %v4355
  %v4357 = vmul.f32 %v4354, %v4356
  %v4358 = vadd.f32 %v4354, %v4357
  %vm4359 = vweird.f32 %v3944
  %vm4360 = vweird.f32 %v4354
  %vm4361 = vmor %vm4359, %vm4360
  %v4362 = vsel %vm4361, %v4354, %v4358
  %v4363 = vand.u32 2147483647, %v3944
  %vm4364 = vcmp.eq.f32.partialorder %v4363, 8.507059e+37
  %v4365 = vand.u32 %v3944, 2147483648
  %v4366 = vor.u32 1.1754944e-38, %v4365
  %v4367 = vsel %vm4364, %v4366, %v4362
  %v4368 = vmul.f32 1.0, %v4367
  %v4369 = vrcp.pop %v3945
  %v4370 = vmul.f32 %v3945, %v4369
  %v4371 = vsub.f32 1.0, %v4370
  %v4372 = vmul.f32 %v4369, %v4371
  %v4373 = vadd.f32 %v4369, %v4372
  %vm4374 = vweird.f32 %v3945
  %vm4375 = vweird.f32 %v4369
  %vm4376 = vmor %vm4374, %vm4375
  %v4377 = vsel %vm4376, %v4369, %v4373
  %v4378 = vand.u32 2147483647, %v3945
  %vm4379 = vcmp.eq.f32.partialorder %v4378, 8.507059e+37
  %v4380 = vand.u32 %v3945, 2147483648
  %v4381 = vor.u32 1.1754944e-38, %v4380
  %v4382 = vsel %vm4379, %v4381, %v4377
  %v4383 = vmul.f32 1.0, %v4382
  %v4384 = vrcp.pop %v3946
  %v4385 = vmul.f32 %v3946, %v4384
  %v4386 = vsub.f32 1.0, %v4385
  %v4387 = vmul.f32 %v4384, %v4386
  %v4388 = vadd.f32 %v4384, %v4387
  %vm4389 = vweird.f32 %v3946
  %vm4390 = vweird.f32 %v4384
  %vm4391 = vmor %vm4389, %vm4390
  %v4392 = vsel %vm4391, %v4384, %v4388
  %v4393 = vand.u32 2147483647, %v3946
  %vm4394 = vcmp.eq.f32.partialorder %v4393, 8.507059e+37
  %v4395 = vand.u32 %v3946, 2147483648
  %v4396 = vor.u32 1.1754944e-38, %v4395
  %v4397 = vsel %vm4394, %v4396, %v4392
  %v4398 = vmul.f32 1.0, %v4397
  %v4399 = vrcp.pop %v3947
  %v4400 = vmul.f32 %v3947, %v4399
  %v4401 = vsub.f32 1.0, %v4400
  %v4402 = vmul.f32 %v4399, %v4401
  %v4403 = vadd.f32 %v4399, %v4402
  %vm4404 = vweird.f32 %v3947
  %vm4405 = vweird.f32 %v4399
  %vm4406 = vmor %vm4404, %vm4405
  %v4407 = vsel %vm4406, %v4399, %v4403
  %v4408 = vand.u32 2147483647, %v3947
  %vm4409 = vcmp.eq.f32.partialorder %v4408, 8.507059e+37
  %v4410 = vand.u32 %v3947, 2147483648
  %v4411 = vor.u32 1.1754944e-38, %v4410
  %v4412 = vsel %vm4409, %v4411, %v4407
  %v4413 = vmul.f32 1.0, %v4412
  %v4414 = vrcp.pop %v3948
  %v4415 = vmul.f32 %v3948, %v4414
  %v4416 = vsub.f32 1.0, %v4415
  %v4417 = vmul.f32 %v4414, %v4416
  %v4418 = vadd.f32 %v4414, %v4417
  %vm4419 = vweird.f32 %v3948
  %vm4420 = vweird.f32 %v4414
  %vm4421 = vmor %vm4419, %vm4420
  %v4422 = vsel %vm4421, %v4414, %v4418
  %v4423 = vand.u32 2147483647, %v3948
  %vm4424 = vcmp.eq.f32.partialorder %v4423, 8.507059e+37
  %v4425 = vand.u32 %v3948, 2147483648
  %v4426 = vor.u32 1.1754944e-38, %v4425
  %v4427 = vsel %vm4424, %v4426, %v4422
  %v4428 = vmul.f32 1.0, %v4427
  %4461 = vrot.lane.b32.xlu0 %v3963, 112
  %v4462 = vpop.permute.xlu0 %4461
  %4463 = vrot.lane.b32.xlu0 %v3978, 112
  %v4464 = vpop.permute.xlu0 %4463
  %4465 = vrot.lane.b32.xlu0 %v3993, 112
  %v4466 = vpop.permute.xlu0 %4465
  %4467 = vrot.lane.b32.xlu0 %v4008, 112
  %v4468 = vpop.permute.xlu0 %4467
  %4469 = vrot.lane.b32.xlu0 %v4023, 112
  %v4470 = vpop.permute.xlu0 %4469
  %4471 = vrot.lane.b32.xlu0 %v4038, 112
  %v4472 = vpop.permute.xlu0 %4471
  %4473 = vrot.lane.b32.xlu0 %v4053, 112
  %v4474 = vpop.permute.xlu0 %4473
  %4475 = vrot.lane.b32.xlu0 %v4068, 112
  %v4476 = vpop.permute.xlu0 %4475
  %4477 = vrot.lane.b32.xlu0 %v4083, 112
  %v4478 = vpop.permute.xlu0 %4477
  %4479 = vrot.lane.b32.xlu0 %v4098, 112
  %v4480 = vpop.permute.xlu0 %4479
  %4481 = vrot.lane.b32.xlu0 %v4113, 112
  %v4482 = vpop.permute.xlu0 %4481
  %4483 = vrot.lane.b32.xlu0 %v4128, 112
  %v4484 = vpop.permute.xlu0 %4483
  %4485 = vrot.lane.b32.xlu0 %v4143, 112
  %v4486 = vpop.permute.xlu0 %4485
  %4487 = vrot.lane.b32.xlu0 %v4158, 112
  %v4488 = vpop.permute.xlu0 %4487
  %4489 = vrot.lane.b32.xlu0 %v4173, 112
  %v4490 = vpop.permute.xlu0 %4489
  %4491 = vrot.lane.b32.xlu0 %v4188, 112
  %v4492 = vpop.permute.xlu0 %4491
  %4493 = vrot.lane.b32.xlu0 %v4203, 112
  %v4494 = vpop.permute.xlu0 %4493
  %4495 = vrot.lane.b32.xlu0 %v4218, 112
  %v4496 = vpop.permute.xlu0 %4495
  %4497 = vrot.lane.b32.xlu0 %v4233, 112
  %v4498 = vpop.permute.xlu0 %4497
  %4499 = vrot.lane.b32.xlu0 %v4248, 112
  %v4500 = vpop.permute.xlu0 %4499
  %4501 = vrot.lane.b32.xlu0 %v4263, 112
  %v4502 = vpop.permute.xlu0 %4501
  %4503 = vrot.lane.b32.xlu0 %v4278, 112
  %v4504 = vpop.permute.xlu0 %4503
  %4505 = vrot.lane.b32.xlu0 %v4293, 112
  %v4506 = vpop.permute.xlu0 %4505
  %4507 = vrot.lane.b32.xlu0 %v4308, 112
  %v4508 = vpop.permute.xlu0 %4507
  %4509 = vrot.lane.b32.xlu0 %v4323, 112
  %v4510 = vpop.permute.xlu0 %4509
  %4511 = vrot.lane.b32.xlu0 %v4338, 112
  %v4512 = vpop.permute.xlu0 %4511
  %4513 = vrot.lane.b32.xlu0 %v4353, 112
  %v4514 = vpop.permute.xlu0 %4513
  %4515 = vrot.lane.b32.xlu0 %v4368, 112
  %v4516 = vpop.permute.xlu0 %4515
  %4517 = vrot.lane.b32.xlu0 %v4383, 112
  %v4518 = vpop.permute.xlu0 %4517
  %4519 = vrot.lane.b32.xlu0 %v4398, 112
  %v4520 = vpop.permute.xlu0 %4519
  %4521 = vrot.lane.b32.xlu0 %v4413, 112
  %v4522 = vpop.permute.xlu0 %4521
  %4523 = vrot.lane.b32.xlu0 %v4428, 112
  %v4524 = vpop.permute.xlu0 %4523
  %v4557 = vmul.f32 %v3789, %v4462
  %v4558 = vmul.f32 %v3790, %v4464
  %v4559 = vmul.f32 %v3791, %v4466
  %v4560 = vmul.f32 %v3792, %v4468
  %v4561 = vmul.f32 %v3793, %v4470
  %v4562 = vmul.f32 %v3794, %v4472
  %v4563 = vmul.f32 %v3795, %v4474
  %v4564 = vmul.f32 %v3796, %v4476
  %v4565 = vmul.f32 %v3797, %v4478
  %v4566 = vmul.f32 %v3798, %v4480
  %v4567 = vmul.f32 %v3799, %v4482
  %v4568 = vmul.f32 %v3800, %v4484
  %v4569 = vmul.f32 %v3801, %v4486
  %v4570 = vmul.f32 %v3802, %v4488
  %v4571 = vmul.f32 %v3803, %v4490
  %v4572 = vmul.f32 %v3804, %v4492
  %v4573 = vmul.f32 %v3805, %v4494
  %v4574 = vmul.f32 %v3806, %v4496
  %v4575 = vmul.f32 %v3807, %v4498
  %v4576 = vmul.f32 %v3808, %v4500
  %v4577 = vmul.f32 %v3809, %v4502
  %v4578 = vmul.f32 %v3810, %v4504
  %v4579 = vmul.f32 %v3811, %v4506
  %v4580 = vmul.f32 %v3812, %v4508
  %v4581 = vmul.f32 %v3813, %v4510
  %v4582 = vmul.f32 %v3814, %v4512
  %v4583 = vmul.f32 %v3815, %v4514
  %v4584 = vmul.f32 %v3816, %v4516
  %v4585 = vmul.f32 %v3817, %v4518
  %v4586 = vmul.f32 %v3818, %v4520
  %v4587 = vmul.f32 %v3819, %v4522
  %v4588 = vmul.f32 %v3820, %v4524
  %v4589 = vadd.f32 %v2299, %v4557
  %v4590 = vadd.f32 %v2300, %v4558
  %v4591 = vadd.f32 %v2301, %v4559
  %v4592 = vadd.f32 %v2302, %v4560
  %v4593 = vadd.f32 %v2303, %v4561
  %v4594 = vadd.f32 %v2304, %v4562
  %v4595 = vadd.f32 %v2305, %v4563
  %v4596 = vadd.f32 %v2306, %v4564
  %v4597 = vadd.f32 %v2307, %v4565
  %v4598 = vadd.f32 %v2308, %v4566
  %v4599 = vadd.f32 %v2309, %v4567
  %v4600 = vadd.f32 %v2310, %v4568
  %v4601 = vadd.f32 %v2311, %v4569
  %v4602 = vadd.f32 %v2312, %v4570
  %v4603 = vadd.f32 %v2313, %v4571
  %v4604 = vadd.f32 %v2314, %v4572
  %v4605 = vadd.f32 %v2315, %v4573
  %v4606 = vadd.f32 %v2316, %v4574
  %v4607 = vadd.f32 %v2317, %v4575
  %v4608 = vadd.f32 %v2318, %v4576
  %v4609 = vadd.f32 %v2319, %v4577
  %v4610 = vadd.f32 %v2320, %v4578
  %v4611 = vadd.f32 %v2321, %v4579
  %v4612 = vadd.f32 %v2322, %v4580
  %v4613 = vadd.f32 %v2323, %v4581
  %v4614 = vadd.f32 %v2324, %v4582
  %v4615 = vadd.f32 %v2325, %v4583
  %v4616 = vadd.f32 %v2326, %v4584
  %v4617 = vadd.f32 %v2327, %v4585
  %v4618 = vadd.f32 %v2328, %v4586
  %v4619 = vadd.f32 %v2329, %v4587
  %v4620 = vadd.f32 %v2330, %v4588
  %v4621 = vmul.f32 %v4589, 0.70710677
  %v4622 = vmul.f32 %v4590, 0.70710677
  %v4623 = vmul.f32 %v4591, 0.70710677
  %v4624 = vmul.f32 %v4592, 0.70710677
  %v4625 = vmul.f32 %v4593, 0.70710677
  %v4626 = vmul.f32 %v4594, 0.70710677
  %v4627 = vmul.f32 %v4595, 0.70710677
  %v4628 = vmul.f32 %v4596, 0.70710677
  %v4629 = vmul.f32 %v4597, 0.70710677
  %v4630 = vmul.f32 %v4598, 0.70710677
  %v4631 = vmul.f32 %v4599, 0.70710677
  %v4632 = vmul.f32 %v4600, 0.70710677
  %v4633 = vmul.f32 %v4601, 0.70710677
  %v4634 = vmul.f32 %v4602, 0.70710677
  %v4635 = vmul.f32 %v4603, 0.70710677
  %v4636 = vmul.f32 %v4604, 0.70710677
  %v4637 = vmul.f32 %v4605, 0.70710677
  %v4638 = vmul.f32 %v4606, 0.70710677
  %v4639 = vmul.f32 %v4607, 0.70710677
  %v4640 = vmul.f32 %v4608, 0.70710677
  %v4641 = vmul.f32 %v4609, 0.70710677
  %v4642 = vmul.f32 %v4610, 0.70710677
  %v4643 = vmul.f32 %v4611, 0.70710677
  %v4644 = vmul.f32 %v4612, 0.70710677
  %v4645 = vmul.f32 %v4613, 0.70710677
  %v4646 = vmul.f32 %v4614, 0.70710677
  %v4647 = vmul.f32 %v4615, 0.70710677
  %v4648 = vmul.f32 %v4616, 0.70710677
  %v4649 = vmul.f32 %v4617, 0.70710677
  %v4650 = vmul.f32 %v4618, 0.70710677
  %v4651 = vmul.f32 %v4619, 0.70710677
  %v4652 = vmul.f32 %v4620, 0.70710677
  %v4654 = vsel %vm2331, %v4621, 0
  %v4657 = vsel %vm2331, %v4622, 0
  %v4660 = vsel %vm2331, %v4623, 0
  %v4663 = vsel %vm2331, %v4624, 0
  %v4666 = vsel %vm2331, %v4625, 0
  %v4669 = vsel %vm2331, %v4626, 0
  %v4672 = vsel %vm2331, %v4627, 0
  %v4675 = vsel %vm2331, %v4628, 0
  %v4678 = vsel %vm2331, %v4629, 0
  %v4681 = vsel %vm2331, %v4630, 0
  %v4684 = vsel %vm2331, %v4631, 0
  %v4687 = vsel %vm2331, %v4632, 0
  %v4690 = vsel %vm2331, %v4633, 0
  %v4693 = vsel %vm2331, %v4634, 0
  %v4696 = vsel %vm2331, %v4635, 0
  %v4699 = vsel %vm2331, %v4636, 0
  %v4702 = vsel %vm2331, %v4637, 0
  %v4705 = vsel %vm2331, %v4638, 0
  %v4708 = vsel %vm2331, %v4639, 0
  %v4711 = vsel %vm2331, %v4640, 0
  %v4714 = vsel %vm2331, %v4641, 0
  %v4717 = vsel %vm2331, %v4642, 0
  %v4720 = vsel %vm2331, %v4643, 0
  %v4723 = vsel %vm2331, %v4644, 0
  %v4726 = vsel %vm2331, %v4645, 0
  %v4729 = vsel %vm2331, %v4646, 0
  %v4732 = vsel %vm2331, %v4647, 0
  %v4735 = vsel %vm2331, %v4648, 0
  %v4738 = vsel %vm2331, %v4649, 0
  %v4741 = vsel %vm2331, %v4650, 0
  %v4744 = vsel %vm2331, %v4651, 0
  %v4747 = vsel %vm2331, %v4652, 0
  %4749 = vmatpush.msra.mxu0 0.0
  %4750 = vmatpush.msra.mxu0 0.0
  %4751 = vmatpush.msra.mxu0 0.0
  %4752 = vmatpush.msra.mxu0 0.0
  %4753 = vmatpush.msra.mxu0 0.0
  %4754 = vmatpush.msra.mxu0 0.0
  %4755 = vmatpush.msra.mxu0 0.0
  %4756 = vmatpush.msra.mxu0 0.0
  %4757 = vmatpush.msra.mxu0 0.0
  %4758 = vmatpush.msra.mxu0 0.0
  %4759 = vmatpush.msra.mxu0 0.0
  %4760 = vmatpush.msra.mxu0 0.0
  %4761 = vmatpush.msra.mxu0 0.0
  %4762 = vmatpush.msra.mxu0 0.0
  %4763 = vmatpush.msra.mxu0 %v30
  %4764 = vmatpush.msra.mxu0 %v29
  %4765 = vmatmul.f32.gmra.mxu0 %v4654
  %v4766 = vpop.f32.mrf.mxu0
  %v4767 = vadd.f32 0.0, %v4766
  %4768 = vmatmul.f32.gmra.mxu0 %v4657
  %v4769 = vpop.f32.mrf.mxu0
  %v4770 = vadd.f32 0.0, %v4769
  %4771 = vmatmul.f32.gmra.mxu0 %v4660
  %v4772 = vpop.f32.mrf.mxu0
  %v4773 = vadd.f32 0.0, %v4772
  %4774 = vmatmul.f32.gmra.mxu0 %v4663
  %v4775 = vpop.f32.mrf.mxu0
  %v4776 = vadd.f32 0.0, %v4775
  %4777 = vmatmul.f32.gmra.mxu0 %v4666
  %v4778 = vpop.f32.mrf.mxu0
  %v4779 = vadd.f32 0.0, %v4778
  %4780 = vmatmul.f32.gmra.mxu0 %v4669
  %v4781 = vpop.f32.mrf.mxu0
  %v4782 = vadd.f32 0.0, %v4781
  %4783 = vmatmul.f32.gmra.mxu0 %v4672
  %v4784 = vpop.f32.mrf.mxu0
  %v4785 = vadd.f32 0.0, %v4784
  %4786 = vmatmul.f32.gmra.mxu0 %v4675
  %v4787 = vpop.f32.mrf.mxu0
  %v4788 = vadd.f32 0.0, %v4787
  %4789 = vmatmul.f32.gmra.mxu0 %v4678
  %v4790 = vpop.f32.mrf.mxu0
  %v4791 = vadd.f32 0.0, %v4790
  %4792 = vmatmul.f32.gmra.mxu0 %v4681
  %v4793 = vpop.f32.mrf.mxu0
  %v4794 = vadd.f32 0.0, %v4793
  %4795 = vmatmul.f32.gmra.mxu0 %v4684
  %v4796 = vpop.f32.mrf.mxu0
  %v4797 = vadd.f32 0.0, %v4796
  %4798 = vmatmul.f32.gmra.mxu0 %v4687
  %v4799 = vpop.f32.mrf.mxu0
  %v4800 = vadd.f32 0.0, %v4799
  %4801 = vmatmul.f32.gmra.mxu0 %v4690
  %v4802 = vpop.f32.mrf.mxu0
  %v4803 = vadd.f32 0.0, %v4802
  %4804 = vmatmul.f32.gmra.mxu0 %v4693
  %v4805 = vpop.f32.mrf.mxu0
  %v4806 = vadd.f32 0.0, %v4805
  %4807 = vmatmul.f32.gmra.mxu0 %v4696
  %v4808 = vpop.f32.mrf.mxu0
  %v4809 = vadd.f32 0.0, %v4808
  %4810 = vmatmul.f32.gmra.mxu0 %v4699
  %v4811 = vpop.f32.mrf.mxu0
  %v4812 = vadd.f32 0.0, %v4811
  %4813 = vmatmul.f32.gmra.mxu0 %v4702
  %v4814 = vpop.f32.mrf.mxu0
  %v4815 = vadd.f32 0.0, %v4814
  %4816 = vmatmul.f32.gmra.mxu0 %v4705
  %v4817 = vpop.f32.mrf.mxu0
  %v4818 = vadd.f32 0.0, %v4817
  %4819 = vmatmul.f32.gmra.mxu0 %v4708
  %v4820 = vpop.f32.mrf.mxu0
  %v4821 = vadd.f32 0.0, %v4820
  %4822 = vmatmul.f32.gmra.mxu0 %v4711
  %v4823 = vpop.f32.mrf.mxu0
  %v4824 = vadd.f32 0.0, %v4823
  %4825 = vmatmul.f32.gmra.mxu0 %v4714
  %v4826 = vpop.f32.mrf.mxu0
  %v4827 = vadd.f32 0.0, %v4826
  %4828 = vmatmul.f32.gmra.mxu0 %v4717
  %v4829 = vpop.f32.mrf.mxu0
  %v4830 = vadd.f32 0.0, %v4829
  %4831 = vmatmul.f32.gmra.mxu0 %v4720
  %v4832 = vpop.f32.mrf.mxu0
  %v4833 = vadd.f32 0.0, %v4832
  %4834 = vmatmul.f32.gmra.mxu0 %v4723
  %v4835 = vpop.f32.mrf.mxu0
  %v4836 = vadd.f32 0.0, %v4835
  %4837 = vmatmul.f32.gmra.mxu0 %v4726
  %v4838 = vpop.f32.mrf.mxu0
  %v4839 = vadd.f32 0.0, %v4838
  %4840 = vmatmul.f32.gmra.mxu0 %v4729
  %v4841 = vpop.f32.mrf.mxu0
  %v4842 = vadd.f32 0.0, %v4841
  %4843 = vmatmul.f32.gmra.mxu0 %v4732
  %v4844 = vpop.f32.mrf.mxu0
  %v4845 = vadd.f32 0.0, %v4844
  %4846 = vmatmul.f32.gmra.mxu0 %v4735
  %v4847 = vpop.f32.mrf.mxu0
  %v4848 = vadd.f32 0.0, %v4847
  %4849 = vmatmul.f32.gmra.mxu0 %v4738
  %v4850 = vpop.f32.mrf.mxu0
  %v4851 = vadd.f32 0.0, %v4850
  %4852 = vmatmul.f32.gmra.mxu0 %v4741
  %v4853 = vpop.f32.mrf.mxu0
  %v4854 = vadd.f32 0.0, %v4853
  %4855 = vmatmul.f32.gmra.mxu0 %v4744
  %v4856 = vpop.f32.mrf.mxu0
  %v4857 = vadd.f32 0.0, %v4856
  %4858 = vmatmul.f32.gmra.mxu0 %v4747
  %v4859 = vpop.f32.mrf.mxu0
  %v4860 = vadd.f32 0.0, %v4859
  %4861 = vdwg.mxu0
  %v4862 = vsel %vm66, %v4767, 0.0
  %v4863 = vrot.slane %v4862, 4
  %v4864 = vadd.f32 %v4862, %v4863
  %v4865 = vrot.slane %v4864, 2
  %v4866 = vadd.f32 %v4864, %v4865
  %v4867 = vrot.slane %v4866, 1
  %v4868 = vadd.f32 %v4866, %v4867
  %v4869 = vsel %vm66, %v4770, 0.0
  %v4870 = vrot.slane %v4869, 4
  %v4871 = vadd.f32 %v4869, %v4870
  %v4872 = vrot.slane %v4871, 2
  %v4873 = vadd.f32 %v4871, %v4872
  %v4874 = vrot.slane %v4873, 1
  %v4875 = vadd.f32 %v4873, %v4874
  %v4876 = vsel %vm66, %v4773, 0.0
  %v4877 = vrot.slane %v4876, 4
  %v4878 = vadd.f32 %v4876, %v4877
  %v4879 = vrot.slane %v4878, 2
  %v4880 = vadd.f32 %v4878, %v4879
  %v4881 = vrot.slane %v4880, 1
  %v4882 = vadd.f32 %v4880, %v4881
  %v4883 = vsel %vm66, %v4776, 0.0
  %v4884 = vrot.slane %v4883, 4
  %v4885 = vadd.f32 %v4883, %v4884
  %v4886 = vrot.slane %v4885, 2
  %v4887 = vadd.f32 %v4885, %v4886
  %v4888 = vrot.slane %v4887, 1
  %v4889 = vadd.f32 %v4887, %v4888
  %v4890 = vsel %vm66, %v4779, 0.0
  %v4891 = vrot.slane %v4890, 4
  %v4892 = vadd.f32 %v4890, %v4891
  %v4893 = vrot.slane %v4892, 2
  %v4894 = vadd.f32 %v4892, %v4893
  %v4895 = vrot.slane %v4894, 1
  %v4896 = vadd.f32 %v4894, %v4895
  %v4897 = vsel %vm66, %v4782, 0.0
  %v4898 = vrot.slane %v4897, 4
  %v4899 = vadd.f32 %v4897, %v4898
  %v4900 = vrot.slane %v4899, 2
  %v4901 = vadd.f32 %v4899, %v4900
  %v4902 = vrot.slane %v4901, 1
  %v4903 = vadd.f32 %v4901, %v4902
  %v4904 = vsel %vm66, %v4785, 0.0
  %v4905 = vrot.slane %v4904, 4
  %v4906 = vadd.f32 %v4904, %v4905
  %v4907 = vrot.slane %v4906, 2
  %v4908 = vadd.f32 %v4906, %v4907
  %v4909 = vrot.slane %v4908, 1
  %v4910 = vadd.f32 %v4908, %v4909
  %v4911 = vsel %vm66, %v4788, 0.0
  %v4912 = vrot.slane %v4911, 4
  %v4913 = vadd.f32 %v4911, %v4912
  %v4914 = vrot.slane %v4913, 2
  %v4915 = vadd.f32 %v4913, %v4914
  %v4916 = vrot.slane %v4915, 1
  %v4917 = vadd.f32 %v4915, %v4916
  %v4918 = vsel %vm66, %v4791, 0.0
  %v4919 = vrot.slane %v4918, 4
  %v4920 = vadd.f32 %v4918, %v4919
  %v4921 = vrot.slane %v4920, 2
  %v4922 = vadd.f32 %v4920, %v4921
  %v4923 = vrot.slane %v4922, 1
  %v4924 = vadd.f32 %v4922, %v4923
  %v4925 = vsel %vm66, %v4794, 0.0
  %v4926 = vrot.slane %v4925, 4
  %v4927 = vadd.f32 %v4925, %v4926
  %v4928 = vrot.slane %v4927, 2
  %v4929 = vadd.f32 %v4927, %v4928
  %v4930 = vrot.slane %v4929, 1
  %v4931 = vadd.f32 %v4929, %v4930
  %v4932 = vsel %vm66, %v4797, 0.0
  %v4933 = vrot.slane %v4932, 4
  %v4934 = vadd.f32 %v4932, %v4933
  %v4935 = vrot.slane %v4934, 2
  %v4936 = vadd.f32 %v4934, %v4935
  %v4937 = vrot.slane %v4936, 1
  %v4938 = vadd.f32 %v4936, %v4937
  %v4939 = vsel %vm66, %v4800, 0.0
  %v4940 = vrot.slane %v4939, 4
  %v4941 = vadd.f32 %v4939, %v4940
  %v4942 = vrot.slane %v4941, 2
  %v4943 = vadd.f32 %v4941, %v4942
  %v4944 = vrot.slane %v4943, 1
  %v4945 = vadd.f32 %v4943, %v4944
  %v4946 = vsel %vm66, %v4803, 0.0
  %v4947 = vrot.slane %v4946, 4
  %v4948 = vadd.f32 %v4946, %v4947
  %v4949 = vrot.slane %v4948, 2
  %v4950 = vadd.f32 %v4948, %v4949
  %v4951 = vrot.slane %v4950, 1
  %v4952 = vadd.f32 %v4950, %v4951
  %v4953 = vsel %vm66, %v4806, 0.0
  %v4954 = vrot.slane %v4953, 4
  %v4955 = vadd.f32 %v4953, %v4954
  %v4956 = vrot.slane %v4955, 2
  %v4957 = vadd.f32 %v4955, %v4956
  %v4958 = vrot.slane %v4957, 1
  %v4959 = vadd.f32 %v4957, %v4958
  %v4960 = vsel %vm66, %v4809, 0.0
  %v4961 = vrot.slane %v4960, 4
  %v4962 = vadd.f32 %v4960, %v4961
  %v4963 = vrot.slane %v4962, 2
  %v4964 = vadd.f32 %v4962, %v4963
  %v4965 = vrot.slane %v4964, 1
  %v4966 = vadd.f32 %v4964, %v4965
  %v4967 = vsel %vm66, %v4812, 0.0
  %v4968 = vrot.slane %v4967, 4
  %v4969 = vadd.f32 %v4967, %v4968
  %v4970 = vrot.slane %v4969, 2
  %v4971 = vadd.f32 %v4969, %v4970
  %v4972 = vrot.slane %v4971, 1
  %v4973 = vadd.f32 %v4971, %v4972
  %v4974 = vsel %vm66, %v4815, 0.0
  %v4975 = vrot.slane %v4974, 4
  %v4976 = vadd.f32 %v4974, %v4975
  %v4977 = vrot.slane %v4976, 2
  %v4978 = vadd.f32 %v4976, %v4977
  %v4979 = vrot.slane %v4978, 1
  %v4980 = vadd.f32 %v4978, %v4979
  %v4981 = vsel %vm66, %v4818, 0.0
  %v4982 = vrot.slane %v4981, 4
  %v4983 = vadd.f32 %v4981, %v4982
  %v4984 = vrot.slane %v4983, 2
  %v4985 = vadd.f32 %v4983, %v4984
  %v4986 = vrot.slane %v4985, 1
  %v4987 = vadd.f32 %v4985, %v4986
  %v4988 = vsel %vm66, %v4821, 0.0
  %v4989 = vrot.slane %v4988, 4
  %v4990 = vadd.f32 %v4988, %v4989
  %v4991 = vrot.slane %v4990, 2
  %v4992 = vadd.f32 %v4990, %v4991
  %v4993 = vrot.slane %v4992, 1
  %v4994 = vadd.f32 %v4992, %v4993
  %v4995 = vsel %vm66, %v4824, 0.0
  %v4996 = vrot.slane %v4995, 4
  %v4997 = vadd.f32 %v4995, %v4996
  %v4998 = vrot.slane %v4997, 2
  %v4999 = vadd.f32 %v4997, %v4998
  %v5000 = vrot.slane %v4999, 1
  %v5001 = vadd.f32 %v4999, %v5000
  %v5002 = vsel %vm66, %v4827, 0.0
  %v5003 = vrot.slane %v5002, 4
  %v5004 = vadd.f32 %v5002, %v5003
  %v5005 = vrot.slane %v5004, 2
  %v5006 = vadd.f32 %v5004, %v5005
  %v5007 = vrot.slane %v5006, 1
  %v5008 = vadd.f32 %v5006, %v5007
  %v5009 = vsel %vm66, %v4830, 0.0
  %v5010 = vrot.slane %v5009, 4
  %v5011 = vadd.f32 %v5009, %v5010
  %v5012 = vrot.slane %v5011, 2
  %v5013 = vadd.f32 %v5011, %v5012
  %v5014 = vrot.slane %v5013, 1
  %v5015 = vadd.f32 %v5013, %v5014
  %v5016 = vsel %vm66, %v4833, 0.0
  %v5017 = vrot.slane %v5016, 4
  %v5018 = vadd.f32 %v5016, %v5017
  %v5019 = vrot.slane %v5018, 2
  %v5020 = vadd.f32 %v5018, %v5019
  %v5021 = vrot.slane %v5020, 1
  %v5022 = vadd.f32 %v5020, %v5021
  %v5023 = vsel %vm66, %v4836, 0.0
  %v5024 = vrot.slane %v5023, 4
  %v5025 = vadd.f32 %v5023, %v5024
  %v5026 = vrot.slane %v5025, 2
  %v5027 = vadd.f32 %v5025, %v5026
  %v5028 = vrot.slane %v5027, 1
  %v5029 = vadd.f32 %v5027, %v5028
  %v5030 = vsel %vm66, %v4839, 0.0
  %v5031 = vrot.slane %v5030, 4
  %v5032 = vadd.f32 %v5030, %v5031
  %v5033 = vrot.slane %v5032, 2
  %v5034 = vadd.f32 %v5032, %v5033
  %v5035 = vrot.slane %v5034, 1
  %v5036 = vadd.f32 %v5034, %v5035
  %v5037 = vsel %vm66, %v4842, 0.0
  %v5038 = vrot.slane %v5037, 4
  %v5039 = vadd.f32 %v5037, %v5038
  %v5040 = vrot.slane %v5039, 2
  %v5041 = vadd.f32 %v5039, %v5040
  %v5042 = vrot.slane %v5041, 1
  %v5043 = vadd.f32 %v5041, %v5042
  %v5044 = vsel %vm66, %v4845, 0.0
  %v5045 = vrot.slane %v5044, 4
  %v5046 = vadd.f32 %v5044, %v5045
  %v5047 = vrot.slane %v5046, 2
  %v5048 = vadd.f32 %v5046, %v5047
  %v5049 = vrot.slane %v5048, 1
  %v5050 = vadd.f32 %v5048, %v5049
  %v5051 = vsel %vm66, %v4848, 0.0
  %v5052 = vrot.slane %v5051, 4
  %v5053 = vadd.f32 %v5051, %v5052
  %v5054 = vrot.slane %v5053, 2
  %v5055 = vadd.f32 %v5053, %v5054
  %v5056 = vrot.slane %v5055, 1
  %v5057 = vadd.f32 %v5055, %v5056
  %v5058 = vsel %vm66, %v4851, 0.0
  %v5059 = vrot.slane %v5058, 4
  %v5060 = vadd.f32 %v5058, %v5059
  %v5061 = vrot.slane %v5060, 2
  %v5062 = vadd.f32 %v5060, %v5061
  %v5063 = vrot.slane %v5062, 1
  %v5064 = vadd.f32 %v5062, %v5063
  %v5065 = vsel %vm66, %v4854, 0.0
  %v5066 = vrot.slane %v5065, 4
  %v5067 = vadd.f32 %v5065, %v5066
  %v5068 = vrot.slane %v5067, 2
  %v5069 = vadd.f32 %v5067, %v5068
  %v5070 = vrot.slane %v5069, 1
  %v5071 = vadd.f32 %v5069, %v5070
  %v5072 = vsel %vm66, %v4857, 0.0
  %v5073 = vrot.slane %v5072, 4
  %v5074 = vadd.f32 %v5072, %v5073
  %v5075 = vrot.slane %v5074, 2
  %v5076 = vadd.f32 %v5074, %v5075
  %v5077 = vrot.slane %v5076, 1
  %v5078 = vadd.f32 %v5076, %v5077
  %v5079 = vsel %vm66, %v4860, 0.0
  %v5080 = vrot.slane %v5079, 4
  %v5081 = vadd.f32 %v5079, %v5080
  %v5082 = vrot.slane %v5081, 2
  %v5083 = vadd.f32 %v5081, %v5082
  %v5084 = vrot.slane %v5083, 1
  %v5085 = vadd.f32 %v5083, %v5084
  %v5086 = vmul.f32 %v4868, %v506
  %v5087 = vmul.f32 %v4875, %v506
  %v5088 = vmul.f32 %v4882, %v506
  %v5089 = vmul.f32 %v4889, %v506
  %v5090 = vmul.f32 %v4896, %v506
  %v5091 = vmul.f32 %v4903, %v506
  %v5092 = vmul.f32 %v4910, %v506
  %v5093 = vmul.f32 %v4917, %v506
  %v5094 = vmul.f32 %v4924, %v506
  %v5095 = vmul.f32 %v4931, %v506
  %v5096 = vmul.f32 %v4938, %v506
  %v5097 = vmul.f32 %v4945, %v506
  %v5098 = vmul.f32 %v4952, %v506
  %v5099 = vmul.f32 %v4959, %v506
  %v5100 = vmul.f32 %v4966, %v506
  %v5101 = vmul.f32 %v4973, %v506
  %v5102 = vmul.f32 %v4980, %v506
  %v5103 = vmul.f32 %v4987, %v506
  %v5104 = vmul.f32 %v4994, %v506
  %v5105 = vmul.f32 %v5001, %v506
  %v5106 = vmul.f32 %v5008, %v506
  %v5107 = vmul.f32 %v5015, %v506
  %v5108 = vmul.f32 %v5022, %v506
  %v5109 = vmul.f32 %v5029, %v506
  %v5110 = vmul.f32 %v5036, %v506
  %v5111 = vmul.f32 %v5043, %v506
  %v5112 = vmul.f32 %v5050, %v506
  %v5113 = vmul.f32 %v5057, %v506
  %v5114 = vmul.f32 %v5064, %v506
  %v5115 = vmul.f32 %v5071, %v506
  %v5116 = vmul.f32 %v5078, %v506
  %v5117 = vmul.f32 %v5085, %v506
  %v5118 = vmul.f32 %v4767, %v4767
  %v5119 = vmul.f32 %v4770, %v4770
  %v5120 = vmul.f32 %v4773, %v4773
  %v5121 = vmul.f32 %v4776, %v4776
  %v5122 = vmul.f32 %v4779, %v4779
  %v5123 = vmul.f32 %v4782, %v4782
  %v5124 = vmul.f32 %v4785, %v4785
  %v5125 = vmul.f32 %v4788, %v4788
  %v5126 = vmul.f32 %v4791, %v4791
  %v5127 = vmul.f32 %v4794, %v4794
  %v5128 = vmul.f32 %v4797, %v4797
  %v5129 = vmul.f32 %v4800, %v4800
  %v5130 = vmul.f32 %v4803, %v4803
  %v5131 = vmul.f32 %v4806, %v4806
  %v5132 = vmul.f32 %v4809, %v4809
  %v5133 = vmul.f32 %v4812, %v4812
  %v5134 = vmul.f32 %v4815, %v4815
  %v5135 = vmul.f32 %v4818, %v4818
  %v5136 = vmul.f32 %v4821, %v4821
  %v5137 = vmul.f32 %v4824, %v4824
  %v5138 = vmul.f32 %v4827, %v4827
  %v5139 = vmul.f32 %v4830, %v4830
  %v5140 = vmul.f32 %v4833, %v4833
  %v5141 = vmul.f32 %v4836, %v4836
  %v5142 = vmul.f32 %v4839, %v4839
  %v5143 = vmul.f32 %v4842, %v4842
  %v5144 = vmul.f32 %v4845, %v4845
  %v5145 = vmul.f32 %v4848, %v4848
  %v5146 = vmul.f32 %v4851, %v4851
  %v5147 = vmul.f32 %v4854, %v4854
  %v5148 = vmul.f32 %v4857, %v4857
  %v5149 = vmul.f32 %v4860, %v4860
  %v5150 = vsel %vm66, %v5118, 0.0
  %v5151 = vrot.slane %v5150, 4
  %v5152 = vadd.f32 %v5150, %v5151
  %v5153 = vrot.slane %v5152, 2
  %v5154 = vadd.f32 %v5152, %v5153
  %v5155 = vrot.slane %v5154, 1
  %v5156 = vadd.f32 %v5154, %v5155
  %v5157 = vsel %vm66, %v5119, 0.0
  %v5158 = vrot.slane %v5157, 4
  %v5159 = vadd.f32 %v5157, %v5158
  %v5160 = vrot.slane %v5159, 2
  %v5161 = vadd.f32 %v5159, %v5160
  %v5162 = vrot.slane %v5161, 1
  %v5163 = vadd.f32 %v5161, %v5162
  %v5164 = vsel %vm66, %v5120, 0.0
  %v5165 = vrot.slane %v5164, 4
  %v5166 = vadd.f32 %v5164, %v5165
  %v5167 = vrot.slane %v5166, 2
  %v5168 = vadd.f32 %v5166, %v5167
  %v5169 = vrot.slane %v5168, 1
  %v5170 = vadd.f32 %v5168, %v5169
  %v5171 = vsel %vm66, %v5121, 0.0
  %v5172 = vrot.slane %v5171, 4
  %v5173 = vadd.f32 %v5171, %v5172
  %v5174 = vrot.slane %v5173, 2
  %v5175 = vadd.f32 %v5173, %v5174
  %v5176 = vrot.slane %v5175, 1
  %v5177 = vadd.f32 %v5175, %v5176
  %v5178 = vsel %vm66, %v5122, 0.0
  %v5179 = vrot.slane %v5178, 4
  %v5180 = vadd.f32 %v5178, %v5179
  %v5181 = vrot.slane %v5180, 2
  %v5182 = vadd.f32 %v5180, %v5181
  %v5183 = vrot.slane %v5182, 1
  %v5184 = vadd.f32 %v5182, %v5183
  %v5185 = vsel %vm66, %v5123, 0.0
  %v5186 = vrot.slane %v5185, 4
  %v5187 = vadd.f32 %v5185, %v5186
  %v5188 = vrot.slane %v5187, 2
  %v5189 = vadd.f32 %v5187, %v5188
  %v5190 = vrot.slane %v5189, 1
  %v5191 = vadd.f32 %v5189, %v5190
  %v5192 = vsel %vm66, %v5124, 0.0
  %v5193 = vrot.slane %v5192, 4
  %v5194 = vadd.f32 %v5192, %v5193
  %v5195 = vrot.slane %v5194, 2
  %v5196 = vadd.f32 %v5194, %v5195
  %v5197 = vrot.slane %v5196, 1
  %v5198 = vadd.f32 %v5196, %v5197
  %v5199 = vsel %vm66, %v5125, 0.0
  %v5200 = vrot.slane %v5199, 4
  %v5201 = vadd.f32 %v5199, %v5200
  %v5202 = vrot.slane %v5201, 2
  %v5203 = vadd.f32 %v5201, %v5202
  %v5204 = vrot.slane %v5203, 1
  %v5205 = vadd.f32 %v5203, %v5204
  %v5206 = vsel %vm66, %v5126, 0.0
  %v5207 = vrot.slane %v5206, 4
  %v5208 = vadd.f32 %v5206, %v5207
  %v5209 = vrot.slane %v5208, 2
  %v5210 = vadd.f32 %v5208, %v5209
  %v5211 = vrot.slane %v5210, 1
  %v5212 = vadd.f32 %v5210, %v5211
  %v5213 = vsel %vm66, %v5127, 0.0
  %v5214 = vrot.slane %v5213, 4
  %v5215 = vadd.f32 %v5213, %v5214
  %v5216 = vrot.slane %v5215, 2
  %v5217 = vadd.f32 %v5215, %v5216
  %v5218 = vrot.slane %v5217, 1
  %v5219 = vadd.f32 %v5217, %v5218
  %v5220 = vsel %vm66, %v5128, 0.0
  %v5221 = vrot.slane %v5220, 4
  %v5222 = vadd.f32 %v5220, %v5221
  %v5223 = vrot.slane %v5222, 2
  %v5224 = vadd.f32 %v5222, %v5223
  %v5225 = vrot.slane %v5224, 1
  %v5226 = vadd.f32 %v5224, %v5225
  %v5227 = vsel %vm66, %v5129, 0.0
  %v5228 = vrot.slane %v5227, 4
  %v5229 = vadd.f32 %v5227, %v5228
  %v5230 = vrot.slane %v5229, 2
  %v5231 = vadd.f32 %v5229, %v5230
  %v5232 = vrot.slane %v5231, 1
  %v5233 = vadd.f32 %v5231, %v5232
  %v5234 = vsel %vm66, %v5130, 0.0
  %v5235 = vrot.slane %v5234, 4
  %v5236 = vadd.f32 %v5234, %v5235
  %v5237 = vrot.slane %v5236, 2
  %v5238 = vadd.f32 %v5236, %v5237
  %v5239 = vrot.slane %v5238, 1
  %v5240 = vadd.f32 %v5238, %v5239
  %v5241 = vsel %vm66, %v5131, 0.0
  %v5242 = vrot.slane %v5241, 4
  %v5243 = vadd.f32 %v5241, %v5242
  %v5244 = vrot.slane %v5243, 2
  %v5245 = vadd.f32 %v5243, %v5244
  %v5246 = vrot.slane %v5245, 1
  %v5247 = vadd.f32 %v5245, %v5246
  %v5248 = vsel %vm66, %v5132, 0.0
  %v5249 = vrot.slane %v5248, 4
  %v5250 = vadd.f32 %v5248, %v5249
  %v5251 = vrot.slane %v5250, 2
  %v5252 = vadd.f32 %v5250, %v5251
  %v5253 = vrot.slane %v5252, 1
  %v5254 = vadd.f32 %v5252, %v5253
  %v5255 = vsel %vm66, %v5133, 0.0
  %v5256 = vrot.slane %v5255, 4
  %v5257 = vadd.f32 %v5255, %v5256
  %v5258 = vrot.slane %v5257, 2
  %v5259 = vadd.f32 %v5257, %v5258
  %v5260 = vrot.slane %v5259, 1
  %v5261 = vadd.f32 %v5259, %v5260
  %v5262 = vsel %vm66, %v5134, 0.0
  %v5263 = vrot.slane %v5262, 4
  %v5264 = vadd.f32 %v5262, %v5263
  %v5265 = vrot.slane %v5264, 2
  %v5266 = vadd.f32 %v5264, %v5265
  %v5267 = vrot.slane %v5266, 1
  %v5268 = vadd.f32 %v5266, %v5267
  %v5269 = vsel %vm66, %v5135, 0.0
  %v5270 = vrot.slane %v5269, 4
  %v5271 = vadd.f32 %v5269, %v5270
  %v5272 = vrot.slane %v5271, 2
  %v5273 = vadd.f32 %v5271, %v5272
  %v5274 = vrot.slane %v5273, 1
  %v5275 = vadd.f32 %v5273, %v5274
  %v5276 = vsel %vm66, %v5136, 0.0
  %v5277 = vrot.slane %v5276, 4
  %v5278 = vadd.f32 %v5276, %v5277
  %v5279 = vrot.slane %v5278, 2
  %v5280 = vadd.f32 %v5278, %v5279
  %v5281 = vrot.slane %v5280, 1
  %v5282 = vadd.f32 %v5280, %v5281
  %v5283 = vsel %vm66, %v5137, 0.0
  %v5284 = vrot.slane %v5283, 4
  %v5285 = vadd.f32 %v5283, %v5284
  %v5286 = vrot.slane %v5285, 2
  %v5287 = vadd.f32 %v5285, %v5286
  %v5288 = vrot.slane %v5287, 1
  %v5289 = vadd.f32 %v5287, %v5288
  %v5290 = vsel %vm66, %v5138, 0.0
  %v5291 = vrot.slane %v5290, 4
  %v5292 = vadd.f32 %v5290, %v5291
  %v5293 = vrot.slane %v5292, 2
  %v5294 = vadd.f32 %v5292, %v5293
  %v5295 = vrot.slane %v5294, 1
  %v5296 = vadd.f32 %v5294, %v5295
  %v5297 = vsel %vm66, %v5139, 0.0
  %v5298 = vrot.slane %v5297, 4
  %v5299 = vadd.f32 %v5297, %v5298
  %v5300 = vrot.slane %v5299, 2
  %v5301 = vadd.f32 %v5299, %v5300
  %v5302 = vrot.slane %v5301, 1
  %v5303 = vadd.f32 %v5301, %v5302
  %v5304 = vsel %vm66, %v5140, 0.0
  %v5305 = vrot.slane %v5304, 4
  %v5306 = vadd.f32 %v5304, %v5305
  %v5307 = vrot.slane %v5306, 2
  %v5308 = vadd.f32 %v5306, %v5307
  %v5309 = vrot.slane %v5308, 1
  %v5310 = vadd.f32 %v5308, %v5309
  %v5311 = vsel %vm66, %v5141, 0.0
  %v5312 = vrot.slane %v5311, 4
  %v5313 = vadd.f32 %v5311, %v5312
  %v5314 = vrot.slane %v5313, 2
  %v5315 = vadd.f32 %v5313, %v5314
  %v5316 = vrot.slane %v5315, 1
  %v5317 = vadd.f32 %v5315, %v5316
  %v5318 = vsel %vm66, %v5142, 0.0
  %v5319 = vrot.slane %v5318, 4
  %v5320 = vadd.f32 %v5318, %v5319
  %v5321 = vrot.slane %v5320, 2
  %v5322 = vadd.f32 %v5320, %v5321
  %v5323 = vrot.slane %v5322, 1
  %v5324 = vadd.f32 %v5322, %v5323
  %v5325 = vsel %vm66, %v5143, 0.0
  %v5326 = vrot.slane %v5325, 4
  %v5327 = vadd.f32 %v5325, %v5326
  %v5328 = vrot.slane %v5327, 2
  %v5329 = vadd.f32 %v5327, %v5328
  %v5330 = vrot.slane %v5329, 1
  %v5331 = vadd.f32 %v5329, %v5330
  %v5332 = vsel %vm66, %v5144, 0.0
  %v5333 = vrot.slane %v5332, 4
  %v5334 = vadd.f32 %v5332, %v5333
  %v5335 = vrot.slane %v5334, 2
  %v5336 = vadd.f32 %v5334, %v5335
  %v5337 = vrot.slane %v5336, 1
  %v5338 = vadd.f32 %v5336, %v5337
  %v5339 = vsel %vm66, %v5145, 0.0
  %v5340 = vrot.slane %v5339, 4
  %v5341 = vadd.f32 %v5339, %v5340
  %v5342 = vrot.slane %v5341, 2
  %v5343 = vadd.f32 %v5341, %v5342
  %v5344 = vrot.slane %v5343, 1
  %v5345 = vadd.f32 %v5343, %v5344
  %v5346 = vsel %vm66, %v5146, 0.0
  %v5347 = vrot.slane %v5346, 4
  %v5348 = vadd.f32 %v5346, %v5347
  %v5349 = vrot.slane %v5348, 2
  %v5350 = vadd.f32 %v5348, %v5349
  %v5351 = vrot.slane %v5350, 1
  %v5352 = vadd.f32 %v5350, %v5351
  %v5353 = vsel %vm66, %v5147, 0.0
  %v5354 = vrot.slane %v5353, 4
  %v5355 = vadd.f32 %v5353, %v5354
  %v5356 = vrot.slane %v5355, 2
  %v5357 = vadd.f32 %v5355, %v5356
  %v5358 = vrot.slane %v5357, 1
  %v5359 = vadd.f32 %v5357, %v5358
  %v5360 = vsel %vm66, %v5148, 0.0
  %v5361 = vrot.slane %v5360, 4
  %v5362 = vadd.f32 %v5360, %v5361
  %v5363 = vrot.slane %v5362, 2
  %v5364 = vadd.f32 %v5362, %v5363
  %v5365 = vrot.slane %v5364, 1
  %v5366 = vadd.f32 %v5364, %v5365
  %v5367 = vsel %vm66, %v5149, 0.0
  %v5368 = vrot.slane %v5367, 4
  %v5369 = vadd.f32 %v5367, %v5368
  %v5370 = vrot.slane %v5369, 2
  %v5371 = vadd.f32 %v5369, %v5370
  %v5372 = vrot.slane %v5371, 1
  %v5373 = vadd.f32 %v5371, %v5372
  %v5374 = vmul.f32 %v5156, %v506
  %v5375 = vmul.f32 %v5163, %v506
  %v5376 = vmul.f32 %v5170, %v506
  %v5377 = vmul.f32 %v5177, %v506
  %v5378 = vmul.f32 %v5184, %v506
  %v5379 = vmul.f32 %v5191, %v506
  %v5380 = vmul.f32 %v5198, %v506
  %v5381 = vmul.f32 %v5205, %v506
  %v5382 = vmul.f32 %v5212, %v506
  %v5383 = vmul.f32 %v5219, %v506
  %v5384 = vmul.f32 %v5226, %v506
  %v5385 = vmul.f32 %v5233, %v506
  %v5386 = vmul.f32 %v5240, %v506
  %v5387 = vmul.f32 %v5247, %v506
  %v5388 = vmul.f32 %v5254, %v506
  %v5389 = vmul.f32 %v5261, %v506
  %v5390 = vmul.f32 %v5268, %v506
  %v5391 = vmul.f32 %v5275, %v506
  %v5392 = vmul.f32 %v5282, %v506
  %v5393 = vmul.f32 %v5289, %v506
  %v5394 = vmul.f32 %v5296, %v506
  %v5395 = vmul.f32 %v5303, %v506
  %v5396 = vmul.f32 %v5310, %v506
  %v5397 = vmul.f32 %v5317, %v506
  %v5398 = vmul.f32 %v5324, %v506
  %v5399 = vmul.f32 %v5331, %v506
  %v5400 = vmul.f32 %v5338, %v506
  %v5401 = vmul.f32 %v5345, %v506
  %v5402 = vmul.f32 %v5352, %v506
  %v5403 = vmul.f32 %v5359, %v506
  %v5404 = vmul.f32 %v5366, %v506
  %v5405 = vmul.f32 %v5373, %v506
  %v5406 = vmul.f32 %v5086, %v5086
  %v5407 = vmul.f32 %v5087, %v5087
  %v5408 = vmul.f32 %v5088, %v5088
  %v5409 = vmul.f32 %v5089, %v5089
  %v5410 = vmul.f32 %v5090, %v5090
  %v5411 = vmul.f32 %v5091, %v5091
  %v5412 = vmul.f32 %v5092, %v5092
  %v5413 = vmul.f32 %v5093, %v5093
  %v5414 = vmul.f32 %v5094, %v5094
  %v5415 = vmul.f32 %v5095, %v5095
  %v5416 = vmul.f32 %v5096, %v5096
  %v5417 = vmul.f32 %v5097, %v5097
  %v5418 = vmul.f32 %v5098, %v5098
  %v5419 = vmul.f32 %v5099, %v5099
  %v5420 = vmul.f32 %v5100, %v5100
  %v5421 = vmul.f32 %v5101, %v5101
  %v5422 = vmul.f32 %v5102, %v5102
  %v5423 = vmul.f32 %v5103, %v5103
  %v5424 = vmul.f32 %v5104, %v5104
  %v5425 = vmul.f32 %v5105, %v5105
  %v5426 = vmul.f32 %v5106, %v5106
  %v5427 = vmul.f32 %v5107, %v5107
  %v5428 = vmul.f32 %v5108, %v5108
  %v5429 = vmul.f32 %v5109, %v5109
  %v5430 = vmul.f32 %v5110, %v5110
  %v5431 = vmul.f32 %v5111, %v5111
  %v5432 = vmul.f32 %v5112, %v5112
  %v5433 = vmul.f32 %v5113, %v5113
  %v5434 = vmul.f32 %v5114, %v5114
  %v5435 = vmul.f32 %v5115, %v5115
  %v5436 = vmul.f32 %v5116, %v5116
  %v5437 = vmul.f32 %v5117, %v5117
  %v5438 = vsub.f32 %v5374, %v5406
  %v5439 = vsub.f32 %v5375, %v5407
  %v5440 = vsub.f32 %v5376, %v5408
  %v5441 = vsub.f32 %v5377, %v5409
  %v5442 = vsub.f32 %v5378, %v5410
  %v5443 = vsub.f32 %v5379, %v5411
  %v5444 = vsub.f32 %v5380, %v5412
  %v5445 = vsub.f32 %v5381, %v5413
  %v5446 = vsub.f32 %v5382, %v5414
  %v5447 = vsub.f32 %v5383, %v5415
  %v5448 = vsub.f32 %v5384, %v5416
  %v5449 = vsub.f32 %v5385, %v5417
  %v5450 = vsub.f32 %v5386, %v5418
  %v5451 = vsub.f32 %v5387, %v5419
  %v5452 = vsub.f32 %v5388, %v5420
  %v5453 = vsub.f32 %v5389, %v5421
  %v5454 = vsub.f32 %v5390, %v5422
  %v5455 = vsub.f32 %v5391, %v5423
  %v5456 = vsub.f32 %v5392, %v5424
  %v5457 = vsub.f32 %v5393, %v5425
  %v5458 = vsub.f32 %v5394, %v5426
  %v5459 = vsub.f32 %v5395, %v5427
  %v5460 = vsub.f32 %v5396, %v5428
  %v5461 = vsub.f32 %v5397, %v5429
  %v5462 = vsub.f32 %v5398, %v5430
  %v5463 = vsub.f32 %v5399, %v5431
  %v5464 = vsub.f32 %v5400, %v5432
  %v5465 = vsub.f32 %v5401, %v5433
  %v5466 = vsub.f32 %v5402, %v5434
  %v5467 = vsub.f32 %v5403, %v5435
  %v5468 = vsub.f32 %v5404, %v5436
  %v5469 = vsub.f32 %v5405, %v5437
  %v5470 = vadd.f32 %v5438, 1e-05
  %v5471 = vadd.f32 %v5439, 1e-05
  %v5472 = vadd.f32 %v5440, 1e-05
  %v5473 = vadd.f32 %v5441, 1e-05
  %v5474 = vadd.f32 %v5442, 1e-05
  %v5475 = vadd.f32 %v5443, 1e-05
  %v5476 = vadd.f32 %v5444, 1e-05
  %v5477 = vadd.f32 %v5445, 1e-05
  %v5478 = vadd.f32 %v5446, 1e-05
  %v5479 = vadd.f32 %v5447, 1e-05
  %v5480 = vadd.f32 %v5448, 1e-05
  %v5481 = vadd.f32 %v5449, 1e-05
  %v5482 = vadd.f32 %v5450, 1e-05
  %v5483 = vadd.f32 %v5451, 1e-05
  %v5484 = vadd.f32 %v5452, 1e-05
  %v5485 = vadd.f32 %v5453, 1e-05
  %v5486 = vadd.f32 %v5454, 1e-05
  %v5487 = vadd.f32 %v5455, 1e-05
  %v5488 = vadd.f32 %v5456, 1e-05
  %v5489 = vadd.f32 %v5457, 1e-05
  %v5490 = vadd.f32 %v5458, 1e-05
  %v5491 = vadd.f32 %v5459, 1e-05
  %v5492 = vadd.f32 %v5460, 1e-05
  %v5493 = vadd.f32 %v5461, 1e-05
  %v5494 = vadd.f32 %v5462, 1e-05
  %v5495 = vadd.f32 %v5463, 1e-05
  %v5496 = vadd.f32 %v5464, 1e-05
  %v5497 = vadd.f32 %v5465, 1e-05
  %v5498 = vadd.f32 %v5466, 1e-05
  %v5499 = vadd.f32 %v5467, 1e-05
  %v5500 = vadd.f32 %v5468, 1e-05
  %v5501 = vadd.f32 %v5469, 1e-05
  %v5502 = vrsqrt.pop %v5470
  %v5503 = vmul.f32 %v5502, %v5470
  %v5504 = vmul.f32 %v5503, %v5502
  %v5505 = vmul.f32 0.5, %v5504
  %v5506 = vsub.f32 1.5, %v5505
  %v5507 = vmul.f32 %v5502, %v5506
  %vm5508 = vweird.f32 %v5470
  %vm5509 = vweird.f32 %v5502
  %vm5510 = vmor %vm5508, %vm5509
  %v5511 = vsel %vm5510, %v5502, %v5507
  %v5512 = vrsqrt.pop %v5471
  %v5513 = vmul.f32 %v5512, %v5471
  %v5514 = vmul.f32 %v5513, %v5512
  %v5515 = vmul.f32 0.5, %v5514
  %v5516 = vsub.f32 1.5, %v5515
  %v5517 = vmul.f32 %v5512, %v5516
  %vm5518 = vweird.f32 %v5471
  %vm5519 = vweird.f32 %v5512
  %vm5520 = vmor %vm5518, %vm5519
  %v5521 = vsel %vm5520, %v5512, %v5517
  %v5522 = vrsqrt.pop %v5472
  %v5523 = vmul.f32 %v5522, %v5472
  %v5524 = vmul.f32 %v5523, %v5522
  %v5525 = vmul.f32 0.5, %v5524
  %v5526 = vsub.f32 1.5, %v5525
  %v5527 = vmul.f32 %v5522, %v5526
  %vm5528 = vweird.f32 %v5472
  %vm5529 = vweird.f32 %v5522
  %vm5530 = vmor %vm5528, %vm5529
  %v5531 = vsel %vm5530, %v5522, %v5527
  %v5532 = vrsqrt.pop %v5473
  %v5533 = vmul.f32 %v5532, %v5473
  %v5534 = vmul.f32 %v5533, %v5532
  %v5535 = vmul.f32 0.5, %v5534
  %v5536 = vsub.f32 1.5, %v5535
  %v5537 = vmul.f32 %v5532, %v5536
  %vm5538 = vweird.f32 %v5473
  %vm5539 = vweird.f32 %v5532
  %vm5540 = vmor %vm5538, %vm5539
  %v5541 = vsel %vm5540, %v5532, %v5537
  %v5542 = vrsqrt.pop %v5474
  %v5543 = vmul.f32 %v5542, %v5474
  %v5544 = vmul.f32 %v5543, %v5542
  %v5545 = vmul.f32 0.5, %v5544
  %v5546 = vsub.f32 1.5, %v5545
  %v5547 = vmul.f32 %v5542, %v5546
  %vm5548 = vweird.f32 %v5474
  %vm5549 = vweird.f32 %v5542
  %vm5550 = vmor %vm5548, %vm5549
  %v5551 = vsel %vm5550, %v5542, %v5547
  %v5552 = vrsqrt.pop %v5475
  %v5553 = vmul.f32 %v5552, %v5475
  %v5554 = vmul.f32 %v5553, %v5552
  %v5555 = vmul.f32 0.5, %v5554
  %v5556 = vsub.f32 1.5, %v5555
  %v5557 = vmul.f32 %v5552, %v5556
  %vm5558 = vweird.f32 %v5475
  %vm5559 = vweird.f32 %v5552
  %vm5560 = vmor %vm5558, %vm5559
  %v5561 = vsel %vm5560, %v5552, %v5557
  %v5562 = vrsqrt.pop %v5476
  %v5563 = vmul.f32 %v5562, %v5476
  %v5564 = vmul.f32 %v5563, %v5562
  %v5565 = vmul.f32 0.5, %v5564
  %v5566 = vsub.f32 1.5, %v5565
  %v5567 = vmul.f32 %v5562, %v5566
  %vm5568 = vweird.f32 %v5476
  %vm5569 = vweird.f32 %v5562
  %vm5570 = vmor %vm5568, %vm5569
  %v5571 = vsel %vm5570, %v5562, %v5567
  %v5572 = vrsqrt.pop %v5477
  %v5573 = vmul.f32 %v5572, %v5477
  %v5574 = vmul.f32 %v5573, %v5572
  %v5575 = vmul.f32 0.5, %v5574
  %v5576 = vsub.f32 1.5, %v5575
  %v5577 = vmul.f32 %v5572, %v5576
  %vm5578 = vweird.f32 %v5477
  %vm5579 = vweird.f32 %v5572
  %vm5580 = vmor %vm5578, %vm5579
  %v5581 = vsel %vm5580, %v5572, %v5577
  %v5582 = vrsqrt.pop %v5478
  %v5583 = vmul.f32 %v5582, %v5478
  %v5584 = vmul.f32 %v5583, %v5582
  %v5585 = vmul.f32 0.5, %v5584
  %v5586 = vsub.f32 1.5, %v5585
  %v5587 = vmul.f32 %v5582, %v5586
  %vm5588 = vweird.f32 %v5478
  %vm5589 = vweird.f32 %v5582
  %vm5590 = vmor %vm5588, %vm5589
  %v5591 = vsel %vm5590, %v5582, %v5587
  %v5592 = vrsqrt.pop %v5479
  %v5593 = vmul.f32 %v5592, %v5479
  %v5594 = vmul.f32 %v5593, %v5592
  %v5595 = vmul.f32 0.5, %v5594
  %v5596 = vsub.f32 1.5, %v5595
  %v5597 = vmul.f32 %v5592, %v5596
  %vm5598 = vweird.f32 %v5479
  %vm5599 = vweird.f32 %v5592
  %vm5600 = vmor %vm5598, %vm5599
  %v5601 = vsel %vm5600, %v5592, %v5597
  %v5602 = vrsqrt.pop %v5480
  %v5603 = vmul.f32 %v5602, %v5480
  %v5604 = vmul.f32 %v5603, %v5602
  %v5605 = vmul.f32 0.5, %v5604
  %v5606 = vsub.f32 1.5, %v5605
  %v5607 = vmul.f32 %v5602, %v5606
  %vm5608 = vweird.f32 %v5480
  %vm5609 = vweird.f32 %v5602
  %vm5610 = vmor %vm5608, %vm5609
  %v5611 = vsel %vm5610, %v5602, %v5607
  %v5612 = vrsqrt.pop %v5481
  %v5613 = vmul.f32 %v5612, %v5481
  %v5614 = vmul.f32 %v5613, %v5612
  %v5615 = vmul.f32 0.5, %v5614
  %v5616 = vsub.f32 1.5, %v5615
  %v5617 = vmul.f32 %v5612, %v5616
  %vm5618 = vweird.f32 %v5481
  %vm5619 = vweird.f32 %v5612
  %vm5620 = vmor %vm5618, %vm5619
  %v5621 = vsel %vm5620, %v5612, %v5617
  %v5622 = vrsqrt.pop %v5482
  %v5623 = vmul.f32 %v5622, %v5482
  %v5624 = vmul.f32 %v5623, %v5622
  %v5625 = vmul.f32 0.5, %v5624
  %v5626 = vsub.f32 1.5, %v5625
  %v5627 = vmul.f32 %v5622, %v5626
  %vm5628 = vweird.f32 %v5482
  %vm5629 = vweird.f32 %v5622
  %vm5630 = vmor %vm5628, %vm5629
  %v5631 = vsel %vm5630, %v5622, %v5627
  %v5632 = vrsqrt.pop %v5483
  %v5633 = vmul.f32 %v5632, %v5483
  %v5634 = vmul.f32 %v5633, %v5632
  %v5635 = vmul.f32 0.5, %v5634
  %v5636 = vsub.f32 1.5, %v5635
  %v5637 = vmul.f32 %v5632, %v5636
  %vm5638 = vweird.f32 %v5483
  %vm5639 = vweird.f32 %v5632
  %vm5640 = vmor %vm5638, %vm5639
  %v5641 = vsel %vm5640, %v5632, %v5637
  %v5642 = vrsqrt.pop %v5484
  %v5643 = vmul.f32 %v5642, %v5484
  %v5644 = vmul.f32 %v5643, %v5642
  %v5645 = vmul.f32 0.5, %v5644
  %v5646 = vsub.f32 1.5, %v5645
  %v5647 = vmul.f32 %v5642, %v5646
  %vm5648 = vweird.f32 %v5484
  %vm5649 = vweird.f32 %v5642
  %vm5650 = vmor %vm5648, %vm5649
  %v5651 = vsel %vm5650, %v5642, %v5647
  %v5652 = vrsqrt.pop %v5485
  %v5653 = vmul.f32 %v5652, %v5485
  %v5654 = vmul.f32 %v5653, %v5652
  %v5655 = vmul.f32 0.5, %v5654
  %v5656 = vsub.f32 1.5, %v5655
  %v5657 = vmul.f32 %v5652, %v5656
  %vm5658 = vweird.f32 %v5485
  %vm5659 = vweird.f32 %v5652
  %vm5660 = vmor %vm5658, %vm5659
  %v5661 = vsel %vm5660, %v5652, %v5657
  %v5662 = vrsqrt.pop %v5486
  %v5663 = vmul.f32 %v5662, %v5486
  %v5664 = vmul.f32 %v5663, %v5662
  %v5665 = vmul.f32 0.5, %v5664
  %v5666 = vsub.f32 1.5, %v5665
  %v5667 = vmul.f32 %v5662, %v5666
  %vm5668 = vweird.f32 %v5486
  %vm5669 = vweird.f32 %v5662
  %vm5670 = vmor %vm5668, %vm5669
  %v5671 = vsel %vm5670, %v5662, %v5667
  %v5672 = vrsqrt.pop %v5487
  %v5673 = vmul.f32 %v5672, %v5487
  %v5674 = vmul.f32 %v5673, %v5672
  %v5675 = vmul.f32 0.5, %v5674
  %v5676 = vsub.f32 1.5, %v5675
  %v5677 = vmul.f32 %v5672, %v5676
  %vm5678 = vweird.f32 %v5487
  %vm5679 = vweird.f32 %v5672
  %vm5680 = vmor %vm5678, %vm5679
  %v5681 = vsel %vm5680, %v5672, %v5677
  %v5682 = vrsqrt.pop %v5488
  %v5683 = vmul.f32 %v5682, %v5488
  %v5684 = vmul.f32 %v5683, %v5682
  %v5685 = vmul.f32 0.5, %v5684
  %v5686 = vsub.f32 1.5, %v5685
  %v5687 = vmul.f32 %v5682, %v5686
  %vm5688 = vweird.f32 %v5488
  %vm5689 = vweird.f32 %v5682
  %vm5690 = vmor %vm5688, %vm5689
  %v5691 = vsel %vm5690, %v5682, %v5687
  %v5692 = vrsqrt.pop %v5489
  %v5693 = vmul.f32 %v5692, %v5489
  %v5694 = vmul.f32 %v5693, %v5692
  %v5695 = vmul.f32 0.5, %v5694
  %v5696 = vsub.f32 1.5, %v5695
  %v5697 = vmul.f32 %v5692, %v5696
  %vm5698 = vweird.f32 %v5489
  %vm5699 = vweird.f32 %v5692
  %vm5700 = vmor %vm5698, %vm5699
  %v5701 = vsel %vm5700, %v5692, %v5697
  %v5702 = vrsqrt.pop %v5490
  %v5703 = vmul.f32 %v5702, %v5490
  %v5704 = vmul.f32 %v5703, %v5702
  %v5705 = vmul.f32 0.5, %v5704
  %v5706 = vsub.f32 1.5, %v5705
  %v5707 = vmul.f32 %v5702, %v5706
  %vm5708 = vweird.f32 %v5490
  %vm5709 = vweird.f32 %v5702
  %vm5710 = vmor %vm5708, %vm5709
  %v5711 = vsel %vm5710, %v5702, %v5707
  %v5712 = vrsqrt.pop %v5491
  %v5713 = vmul.f32 %v5712, %v5491
  %v5714 = vmul.f32 %v5713, %v5712
  %v5715 = vmul.f32 0.5, %v5714
  %v5716 = vsub.f32 1.5, %v5715
  %v5717 = vmul.f32 %v5712, %v5716
  %vm5718 = vweird.f32 %v5491
  %vm5719 = vweird.f32 %v5712
  %vm5720 = vmor %vm5718, %vm5719
  %v5721 = vsel %vm5720, %v5712, %v5717
  %v5722 = vrsqrt.pop %v5492
  %v5723 = vmul.f32 %v5722, %v5492
  %v5724 = vmul.f32 %v5723, %v5722
  %v5725 = vmul.f32 0.5, %v5724
  %v5726 = vsub.f32 1.5, %v5725
  %v5727 = vmul.f32 %v5722, %v5726
  %vm5728 = vweird.f32 %v5492
  %vm5729 = vweird.f32 %v5722
  %vm5730 = vmor %vm5728, %vm5729
  %v5731 = vsel %vm5730, %v5722, %v5727
  %v5732 = vrsqrt.pop %v5493
  %v5733 = vmul.f32 %v5732, %v5493
  %v5734 = vmul.f32 %v5733, %v5732
  %v5735 = vmul.f32 0.5, %v5734
  %v5736 = vsub.f32 1.5, %v5735
  %v5737 = vmul.f32 %v5732, %v5736
  %vm5738 = vweird.f32 %v5493
  %vm5739 = vweird.f32 %v5732
  %vm5740 = vmor %vm5738, %vm5739
  %v5741 = vsel %vm5740, %v5732, %v5737
  %v5742 = vrsqrt.pop %v5494
  %v5743 = vmul.f32 %v5742, %v5494
  %v5744 = vmul.f32 %v5743, %v5742
  %v5745 = vmul.f32 0.5, %v5744
  %v5746 = vsub.f32 1.5, %v5745
  %v5747 = vmul.f32 %v5742, %v5746
  %vm5748 = vweird.f32 %v5494
  %vm5749 = vweird.f32 %v5742
  %vm5750 = vmor %vm5748, %vm5749
  %v5751 = vsel %vm5750, %v5742, %v5747
  %v5752 = vrsqrt.pop %v5495
  %v5753 = vmul.f32 %v5752, %v5495
  %v5754 = vmul.f32 %v5753, %v5752
  %v5755 = vmul.f32 0.5, %v5754
  %v5756 = vsub.f32 1.5, %v5755
  %v5757 = vmul.f32 %v5752, %v5756
  %vm5758 = vweird.f32 %v5495
  %vm5759 = vweird.f32 %v5752
  %vm5760 = vmor %vm5758, %vm5759
  %v5761 = vsel %vm5760, %v5752, %v5757
  %v5762 = vrsqrt.pop %v5496
  %v5763 = vmul.f32 %v5762, %v5496
  %v5764 = vmul.f32 %v5763, %v5762
  %v5765 = vmul.f32 0.5, %v5764
  %v5766 = vsub.f32 1.5, %v5765
  %v5767 = vmul.f32 %v5762, %v5766
  %vm5768 = vweird.f32 %v5496
  %vm5769 = vweird.f32 %v5762
  %vm5770 = vmor %vm5768, %vm5769
  %v5771 = vsel %vm5770, %v5762, %v5767
  %v5772 = vrsqrt.pop %v5497
  %v5773 = vmul.f32 %v5772, %v5497
  %v5774 = vmul.f32 %v5773, %v5772
  %v5775 = vmul.f32 0.5, %v5774
  %v5776 = vsub.f32 1.5, %v5775
  %v5777 = vmul.f32 %v5772, %v5776
  %vm5778 = vweird.f32 %v5497
  %vm5779 = vweird.f32 %v5772
  %vm5780 = vmor %vm5778, %vm5779
  %v5781 = vsel %vm5780, %v5772, %v5777
  %v5782 = vrsqrt.pop %v5498
  %v5783 = vmul.f32 %v5782, %v5498
  %v5784 = vmul.f32 %v5783, %v5782
  %v5785 = vmul.f32 0.5, %v5784
  %v5786 = vsub.f32 1.5, %v5785
  %v5787 = vmul.f32 %v5782, %v5786
  %vm5788 = vweird.f32 %v5498
  %vm5789 = vweird.f32 %v5782
  %vm5790 = vmor %vm5788, %vm5789
  %v5791 = vsel %vm5790, %v5782, %v5787
  %v5792 = vrsqrt.pop %v5499
  %v5793 = vmul.f32 %v5792, %v5499
  %v5794 = vmul.f32 %v5793, %v5792
  %v5795 = vmul.f32 0.5, %v5794
  %v5796 = vsub.f32 1.5, %v5795
  %v5797 = vmul.f32 %v5792, %v5796
  %vm5798 = vweird.f32 %v5499
  %vm5799 = vweird.f32 %v5792
  %vm5800 = vmor %vm5798, %vm5799
  %v5801 = vsel %vm5800, %v5792, %v5797
  %v5802 = vrsqrt.pop %v5500
  %v5803 = vmul.f32 %v5802, %v5500
  %v5804 = vmul.f32 %v5803, %v5802
  %v5805 = vmul.f32 0.5, %v5804
  %v5806 = vsub.f32 1.5, %v5805
  %v5807 = vmul.f32 %v5802, %v5806
  %vm5808 = vweird.f32 %v5500
  %vm5809 = vweird.f32 %v5802
  %vm5810 = vmor %vm5808, %vm5809
  %v5811 = vsel %vm5810, %v5802, %v5807
  %v5812 = vrsqrt.pop %v5501
  %v5813 = vmul.f32 %v5812, %v5501
  %v5814 = vmul.f32 %v5813, %v5812
  %v5815 = vmul.f32 0.5, %v5814
  %v5816 = vsub.f32 1.5, %v5815
  %v5817 = vmul.f32 %v5812, %v5816
  %vm5818 = vweird.f32 %v5501
  %vm5819 = vweird.f32 %v5812
  %vm5820 = vmor %vm5818, %vm5819
  %v5821 = vsel %vm5820, %v5812, %v5817
  %v5822 = vmul.f32 %v33, %v5511
  %v5823 = vmul.f32 %v33, %v5521
  %v5824 = vmul.f32 %v33, %v5531
  %v5825 = vmul.f32 %v33, %v5541
  %v5826 = vmul.f32 %v33, %v5551
  %v5827 = vmul.f32 %v33, %v5561
  %v5828 = vmul.f32 %v33, %v5571
  %v5829 = vmul.f32 %v33, %v5581
  %v5830 = vmul.f32 %v33, %v5591
  %v5831 = vmul.f32 %v33, %v5601
  %v5832 = vmul.f32 %v33, %v5611
  %v5833 = vmul.f32 %v33, %v5621
  %v5834 = vmul.f32 %v33, %v5631
  %v5835 = vmul.f32 %v33, %v5641
  %v5836 = vmul.f32 %v33, %v5651
  %v5837 = vmul.f32 %v33, %v5661
  %v5838 = vmul.f32 %v33, %v5671
  %v5839 = vmul.f32 %v33, %v5681
  %v5840 = vmul.f32 %v33, %v5691
  %v5841 = vmul.f32 %v33, %v5701
  %v5842 = vmul.f32 %v33, %v5711
  %v5843 = vmul.f32 %v33, %v5721
  %v5844 = vmul.f32 %v33, %v5731
  %v5845 = vmul.f32 %v33, %v5741
  %v5846 = vmul.f32 %v33, %v5751
  %v5847 = vmul.f32 %v33, %v5761
  %v5848 = vmul.f32 %v33, %v5771
  %v5849 = vmul.f32 %v33, %v5781
  %v5850 = vmul.f32 %v33, %v5791
  %v5851 = vmul.f32 %v33, %v5801
  %v5852 = vmul.f32 %v33, %v5811
  %v5853 = vmul.f32 %v33, %v5821
  %v5854 = vmul.f32 %v5086, %v5822
  %v5855 = vmul.f32 %v5087, %v5823
  %v5856 = vmul.f32 %v5088, %v5824
  %v5857 = vmul.f32 %v5089, %v5825
  %v5858 = vmul.f32 %v5090, %v5826
  %v5859 = vmul.f32 %v5091, %v5827
  %v5860 = vmul.f32 %v5092, %v5828
  %v5861 = vmul.f32 %v5093, %v5829
  %v5862 = vmul.f32 %v5094, %v5830
  %v5863 = vmul.f32 %v5095, %v5831
  %v5864 = vmul.f32 %v5096, %v5832
  %v5865 = vmul.f32 %v5097, %v5833
  %v5866 = vmul.f32 %v5098, %v5834
  %v5867 = vmul.f32 %v5099, %v5835
  %v5868 = vmul.f32 %v5100, %v5836
  %v5869 = vmul.f32 %v5101, %v5837
  %v5870 = vmul.f32 %v5102, %v5838
  %v5871 = vmul.f32 %v5103, %v5839
  %v5872 = vmul.f32 %v5104, %v5840
  %v5873 = vmul.f32 %v5105, %v5841
  %v5874 = vmul.f32 %v5106, %v5842
  %v5875 = vmul.f32 %v5107, %v5843
  %v5876 = vmul.f32 %v5108, %v5844
  %v5877 = vmul.f32 %v5109, %v5845
  %v5878 = vmul.f32 %v5110, %v5846
  %v5879 = vmul.f32 %v5111, %v5847
  %v5880 = vmul.f32 %v5112, %v5848
  %v5881 = vmul.f32 %v5113, %v5849
  %v5882 = vmul.f32 %v5114, %v5850
  %v5883 = vmul.f32 %v5115, %v5851
  %v5884 = vmul.f32 %v5116, %v5852
  %v5885 = vmul.f32 %v5117, %v5853
  %v5918 = vrot.slane %v5854, 7
  %v5919 = vrot.slane %v5855, 7
  %v5920 = vrot.slane %v5856, 7
  %v5921 = vrot.slane %v5857, 7
  %v5922 = vrot.slane %v5858, 7
  %v5923 = vrot.slane %v5859, 7
  %v5924 = vrot.slane %v5860, 7
  %v5925 = vrot.slane %v5861, 7
  %v5926 = vrot.slane %v5862, 7
  %v5927 = vrot.slane %v5863, 7
  %v5928 = vrot.slane %v5864, 7
  %v5929 = vrot.slane %v5865, 7
  %v5930 = vrot.slane %v5866, 7
  %v5931 = vrot.slane %v5867, 7
  %v5932 = vrot.slane %v5868, 7
  %v5933 = vrot.slane %v5869, 7
  %v5934 = vrot.slane %v5870, 7
  %v5935 = vrot.slane %v5871, 7
  %v5936 = vrot.slane %v5872, 7
  %v5937 = vrot.slane %v5873, 7
  %v5938 = vrot.slane %v5874, 7
  %v5939 = vrot.slane %v5875, 7
  %v5940 = vrot.slane %v5876, 7
  %v5941 = vrot.slane %v5877, 7
  %v5942 = vrot.slane %v5878, 7
  %v5943 = vrot.slane %v5879, 7
  %v5944 = vrot.slane %v5880, 7
  %v5945 = vrot.slane %v5881, 7
  %v5946 = vrot.slane %v5882, 7
  %v5947 = vrot.slane %v5883, 7
  %v5948 = vrot.slane %v5884, 7
  %v5949 = vrot.slane %v5885, 7
  %v5982 = vsub.f32 %v33, %v5918
  %v5983 = vsub.f32 %v33, %v5919
  %v5984 = vsub.f32 %v33, %v5920
  %v5985 = vsub.f32 %v33, %v5921
  %v5986 = vsub.f32 %v33, %v5922
  %v5987 = vsub.f32 %v33, %v5923
  %v5988 = vsub.f32 %v33, %v5924
  %v5989 = vsub.f32 %v33, %v5925
  %v5990 = vsub.f32 %v33, %v5926
  %v5991 = vsub.f32 %v33, %v5927
  %v5992 = vsub.f32 %v33, %v5928
  %v5993 = vsub.f32 %v33, %v5929
  %v5994 = vsub.f32 %v33, %v5930
  %v5995 = vsub.f32 %v33, %v5931
  %v5996 = vsub.f32 %v33, %v5932
  %v5997 = vsub.f32 %v33, %v5933
  %v5998 = vsub.f32 %v33, %v5934
  %v5999 = vsub.f32 %v33, %v5935
  %v6000 = vsub.f32 %v33, %v5936
  %v6001 = vsub.f32 %v33, %v5937
  %v6002 = vsub.f32 %v33, %v5938
  %v6003 = vsub.f32 %v33, %v5939
  %v6004 = vsub.f32 %v33, %v5940
  %v6005 = vsub.f32 %v33, %v5941
  %v6006 = vsub.f32 %v33, %v5942
  %v6007 = vsub.f32 %v33, %v5943
  %v6008 = vsub.f32 %v33, %v5944
  %v6009 = vsub.f32 %v33, %v5945
  %v6010 = vsub.f32 %v33, %v5946
  %v6011 = vsub.f32 %v33, %v5947
  %v6012 = vsub.f32 %v33, %v5948
  %v6013 = vsub.f32 %v33, %v5949
  %v6014 = vperm.slane %v5822, 4
  %v6015 = vperm.slane %v5823, 4
  %v6016 = vperm.slane %v5824, 4
  %v6017 = vperm.slane %v5825, 4
  %v6018 = vperm.slane %v5826, 4
  %v6019 = vperm.slane %v5827, 4
  %v6020 = vperm.slane %v5828, 4
  %v6021 = vperm.slane %v5829, 4
  %v6022 = vperm.slane %v5830, 4
  %v6023 = vperm.slane %v5831, 4
  %v6024 = vperm.slane %v5832, 4
  %v6025 = vperm.slane %v5833, 4
  %v6026 = vperm.slane %v5834, 4
  %v6027 = vperm.slane %v5835, 4
  %v6028 = vperm.slane %v5836, 4
  %v6029 = vperm.slane %v5837, 4
  %v6030 = vperm.slane %v5838, 4
  %v6031 = vperm.slane %v5839, 4
  %v6032 = vperm.slane %v5840, 4
  %v6033 = vperm.slane %v5841, 4
  %v6034 = vperm.slane %v5842, 4
  %v6035 = vperm.slane %v5843, 4
  %v6036 = vperm.slane %v5844, 4
  %v6037 = vperm.slane %v5845, 4
  %v6038 = vperm.slane %v5846, 4
  %v6039 = vperm.slane %v5847, 4
  %v6040 = vperm.slane %v5848, 4
  %v6041 = vperm.slane %v5849, 4
  %v6042 = vperm.slane %v5850, 4
  %v6043 = vperm.slane %v5851, 4
  %v6044 = vperm.slane %v5852, 4
  %v6045 = vperm.slane %v5853, 4
  %v6046 = vmul.f32 %v4767, %v6014
  %v6047 = vmul.f32 %v4770, %v6015
  %v6048 = vmul.f32 %v4773, %v6016
  %v6049 = vmul.f32 %v4776, %v6017
  %v6050 = vmul.f32 %v4779, %v6018
  %v6051 = vmul.f32 %v4782, %v6019
  %v6052 = vmul.f32 %v4785, %v6020
  %v6053 = vmul.f32 %v4788, %v6021
  %v6054 = vmul.f32 %v4791, %v6022
  %v6055 = vmul.f32 %v4794, %v6023
  %v6056 = vmul.f32 %v4797, %v6024
  %v6057 = vmul.f32 %v4800, %v6025
  %v6058 = vmul.f32 %v4803, %v6026
  %v6059 = vmul.f32 %v4806, %v6027
  %v6060 = vmul.f32 %v4809, %v6028
  %v6061 = vmul.f32 %v4812, %v6029
  %v6062 = vmul.f32 %v4815, %v6030
  %v6063 = vmul.f32 %v4818, %v6031
  %v6064 = vmul.f32 %v4821, %v6032
  %v6065 = vmul.f32 %v4824, %v6033
  %v6066 = vmul.f32 %v4827, %v6034
  %v6067 = vmul.f32 %v4830, %v6035
  %v6068 = vmul.f32 %v4833, %v6036
  %v6069 = vmul.f32 %v4836, %v6037
  %v6070 = vmul.f32 %v4839, %v6038
  %v6071 = vmul.f32 %v4842, %v6039
  %v6072 = vmul.f32 %v4845, %v6040
  %v6073 = vmul.f32 %v4848, %v6041
  %v6074 = vmul.f32 %v4851, %v6042
  %v6075 = vmul.f32 %v4854, %v6043
  %v6076 = vmul.f32 %v4857, %v6044
  %v6077 = vmul.f32 %v4860, %v6045
  %v6078 = vperm.slane %v5982, 5
  %v6079 = vperm.slane %v5983, 5
  %v6080 = vperm.slane %v5984, 5
  %v6081 = vperm.slane %v5985, 5
  %v6082 = vperm.slane %v5986, 5
  %v6083 = vperm.slane %v5987, 5
  %v6084 = vperm.slane %v5988, 5
  %v6085 = vperm.slane %v5989, 5
  %v6086 = vperm.slane %v5990, 5
  %v6087 = vperm.slane %v5991, 5
  %v6088 = vperm.slane %v5992, 5
  %v6089 = vperm.slane %v5993, 5
  %v6090 = vperm.slane %v5994, 5
  %v6091 = vperm.slane %v5995, 5
  %v6092 = vperm.slane %v5996, 5
  %v6093 = vperm.slane %v5997, 5
  %v6094 = vperm.slane %v5998, 5
  %v6095 = vperm.slane %v5999, 5
  %v6096 = vperm.slane %v6000, 5
  %v6097 = vperm.slane %v6001, 5
  %v6098 = vperm.slane %v6002, 5
  %v6099 = vperm.slane %v6003, 5
  %v6100 = vperm.slane %v6004, 5
  %v6101 = vperm.slane %v6005, 5
  %v6102 = vperm.slane %v6006, 5
  %v6103 = vperm.slane %v6007, 5
  %v6104 = vperm.slane %v6008, 5
  %v6105 = vperm.slane %v6009, 5
  %v6106 = vperm.slane %v6010, 5
  %v6107 = vperm.slane %v6011, 5
  %v6108 = vperm.slane %v6012, 5
  %v6109 = vperm.slane %v6013, 5
  %v6110 = vadd.f32 %v6046, %v6078
  %v6111 = vadd.f32 %v6047, %v6079
  %v6112 = vadd.f32 %v6048, %v6080
  %v6113 = vadd.f32 %v6049, %v6081
  %v6114 = vadd.f32 %v6050, %v6082
  %v6115 = vadd.f32 %v6051, %v6083
  %v6116 = vadd.f32 %v6052, %v6084
  %v6117 = vadd.f32 %v6053, %v6085
  %v6118 = vadd.f32 %v6054, %v6086
  %v6119 = vadd.f32 %v6055, %v6087
  %v6120 = vadd.f32 %v6056, %v6088
  %v6121 = vadd.f32 %v6057, %v6089
  %v6122 = vadd.f32 %v6058, %v6090
  %v6123 = vadd.f32 %v6059, %v6091
  %v6124 = vadd.f32 %v6060, %v6092
  %v6125 = vadd.f32 %v6061, %v6093
  %v6126 = vadd.f32 %v6062, %v6094
  %v6127 = vadd.f32 %v6063, %v6095
  %v6128 = vadd.f32 %v6064, %v6096
  %v6129 = vadd.f32 %v6065, %v6097
  %v6130 = vadd.f32 %v6066, %v6098
  %v6131 = vadd.f32 %v6067, %v6099
  %v6132 = vadd.f32 %v6068, %v6100
  %v6133 = vadd.f32 %v6069, %v6101
  %v6134 = vadd.f32 %v6070, %v6102
  %v6135 = vadd.f32 %v6071, %v6103
  %v6136 = vadd.f32 %v6072, %v6104
  %v6137 = vadd.f32 %v6073, %v6105
  %v6138 = vadd.f32 %v6074, %v6106
  %v6139 = vadd.f32 %v6075, %v6107
  %v6140 = vadd.f32 %v6076, %v6108
  %v6141 = vadd.f32 %v6077, %v6109
  %v6142 = vxor.u32 %v6110, 2147483648
  %v6143 = vxor.u32 %v6111, 2147483648
  %v6144 = vxor.u32 %v6112, 2147483648
  %v6145 = vxor.u32 %v6113, 2147483648
  %v6146 = vxor.u32 %v6114, 2147483648
  %v6147 = vxor.u32 %v6115, 2147483648
  %v6148 = vxor.u32 %v6116, 2147483648
  %v6149 = vxor.u32 %v6117, 2147483648
  %v6150 = vxor.u32 %v6118, 2147483648
  %v6151 = vxor.u32 %v6119, 2147483648
  %v6152 = vxor.u32 %v6120, 2147483648
  %v6153 = vxor.u32 %v6121, 2147483648
  %v6154 = vxor.u32 %v6122, 2147483648
  %v6155 = vxor.u32 %v6123, 2147483648
  %v6156 = vxor.u32 %v6124, 2147483648
  %v6157 = vxor.u32 %v6125, 2147483648
  %v6158 = vxor.u32 %v6126, 2147483648
  %v6159 = vxor.u32 %v6127, 2147483648
  %v6160 = vxor.u32 %v6128, 2147483648
  %v6161 = vxor.u32 %v6129, 2147483648
  %v6162 = vxor.u32 %v6130, 2147483648
  %v6163 = vxor.u32 %v6131, 2147483648
  %v6164 = vxor.u32 %v6132, 2147483648
  %v6165 = vxor.u32 %v6133, 2147483648
  %v6166 = vxor.u32 %v6134, 2147483648
  %v6167 = vxor.u32 %v6135, 2147483648
  %v6168 = vxor.u32 %v6136, 2147483648
  %v6169 = vxor.u32 %v6137, 2147483648
  %v6170 = vxor.u32 %v6138, 2147483648
  %v6171 = vxor.u32 %v6139, 2147483648
  %v6172 = vxor.u32 %v6140, 2147483648
  %v6173 = vxor.u32 %v6141, 2147483648
  %v6174 = vmul.f32 %v6142, 1.442695
  %v6175 = vpow.pop %v6174
  %v6176 = vmul.f32 %v6143, 1.442695
  %v6177 = vpow.pop %v6176
  %v6178 = vmul.f32 %v6144, 1.442695
  %v6179 = vpow.pop %v6178
  %v6180 = vmul.f32 %v6145, 1.442695
  %v6181 = vpow.pop %v6180
  %v6182 = vmul.f32 %v6146, 1.442695
  %v6183 = vpow.pop %v6182
  %v6184 = vmul.f32 %v6147, 1.442695
  %v6185 = vpow.pop %v6184
  %v6186 = vmul.f32 %v6148, 1.442695
  %v6187 = vpow.pop %v6186
  %v6188 = vmul.f32 %v6149, 1.442695
  %v6189 = vpow.pop %v6188
  %v6190 = vmul.f32 %v6150, 1.442695
  %v6191 = vpow.pop %v6190
  %v6192 = vmul.f32 %v6151, 1.442695
  %v6193 = vpow.pop %v6192
  %v6194 = vmul.f32 %v6152, 1.442695
  %v6195 = vpow.pop %v6194
  %v6196 = vmul.f32 %v6153, 1.442695
  %v6197 = vpow.pop %v6196
  %v6198 = vmul.f32 %v6154, 1.442695
  %v6199 = vpow.pop %v6198
  %v6200 = vmul.f32 %v6155, 1.442695
  %v6201 = vpow.pop %v6200
  %v6202 = vmul.f32 %v6156, 1.442695
  %v6203 = vpow.pop %v6202
  %v6204 = vmul.f32 %v6157, 1.442695
  %v6205 = vpow.pop %v6204
  %v6206 = vmul.f32 %v6158, 1.442695
  %v6207 = vpow.pop %v6206
  %v6208 = vmul.f32 %v6159, 1.442695
  %v6209 = vpow.pop %v6208
  %v6210 = vmul.f32 %v6160, 1.442695
  %v6211 = vpow.pop %v6210
  %v6212 = vmul.f32 %v6161, 1.442695
  %v6213 = vpow.pop %v6212
  %v6214 = vmul.f32 %v6162, 1.442695
  %v6215 = vpow.pop %v6214
  %v6216 = vmul.f32 %v6163, 1.442695
  %v6217 = vpow.pop %v6216
  %v6218 = vmul.f32 %v6164, 1.442695
  %v6219 = vpow.pop %v6218
  %v6220 = vmul.f32 %v6165, 1.442695
  %v6221 = vpow.pop %v6220
  %v6222 = vmul.f32 %v6166, 1.442695
  %v6223 = vpow.pop %v6222
  %v6224 = vmul.f32 %v6167, 1.442695
  %v6225 = vpow.pop %v6224
  %v6226 = vmul.f32 %v6168, 1.442695
  %v6227 = vpow.pop %v6226
  %v6228 = vmul.f32 %v6169, 1.442695
  %v6229 = vpow.pop %v6228
  %v6230 = vmul.f32 %v6170, 1.442695
  %v6231 = vpow.pop %v6230
  %v6232 = vmul.f32 %v6171, 1.442695
  %v6233 = vpow.pop %v6232
  %v6234 = vmul.f32 %v6172, 1.442695
  %v6235 = vpow.pop %v6234
  %v6236 = vmul.f32 %v6173, 1.442695
  %v6237 = vpow.pop %v6236
  %v6238 = vadd.f32 %v6175, 1.0
  %v6239 = vadd.f32 %v6177, 1.0
  %v6240 = vadd.f32 %v6179, 1.0
  %v6241 = vadd.f32 %v6181, 1.0
  %v6242 = vadd.f32 %v6183, 1.0
  %v6243 = vadd.f32 %v6185, 1.0
  %v6244 = vadd.f32 %v6187, 1.0
  %v6245 = vadd.f32 %v6189, 1.0
  %v6246 = vadd.f32 %v6191, 1.0
  %v6247 = vadd.f32 %v6193, 1.0
  %v6248 = vadd.f32 %v6195, 1.0
  %v6249 = vadd.f32 %v6197, 1.0
  %v6250 = vadd.f32 %v6199, 1.0
  %v6251 = vadd.f32 %v6201, 1.0
  %v6252 = vadd.f32 %v6203, 1.0
  %v6253 = vadd.f32 %v6205, 1.0
  %v6254 = vadd.f32 %v6207, 1.0
  %v6255 = vadd.f32 %v6209, 1.0
  %v6256 = vadd.f32 %v6211, 1.0
  %v6257 = vadd.f32 %v6213, 1.0
  %v6258 = vadd.f32 %v6215, 1.0
  %v6259 = vadd.f32 %v6217, 1.0
  %v6260 = vadd.f32 %v6219, 1.0
  %v6261 = vadd.f32 %v6221, 1.0
  %v6262 = vadd.f32 %v6223, 1.0
  %v6263 = vadd.f32 %v6225, 1.0
  %v6264 = vadd.f32 %v6227, 1.0
  %v6265 = vadd.f32 %v6229, 1.0
  %v6266 = vadd.f32 %v6231, 1.0
  %v6267 = vadd.f32 %v6233, 1.0
  %v6268 = vadd.f32 %v6235, 1.0
  %v6269 = vadd.f32 %v6237, 1.0
  %v6270 = vrcp.pop %v6238
  %v6271 = vmul.f32 %v6238, %v6270
  %v6272 = vsub.f32 1.0, %v6271
  %v6273 = vmul.f32 %v6270, %v6272
  %v6274 = vadd.f32 %v6270, %v6273
  %vm6275 = vweird.f32 %v6238
  %vm6276 = vweird.f32 %v6270
  %vm6277 = vmor %vm6275, %vm6276
  %v6278 = vsel %vm6277, %v6270, %v6274
  %v6279 = vand.u32 2147483647, %v6238
  %vm6280 = vcmp.eq.f32.partialorder %v6279, 8.507059e+37
  %v6281 = vand.u32 %v6238, 2147483648
  %v6282 = vor.u32 1.1754944e-38, %v6281
  %v6283 = vsel %vm6280, %v6282, %v6278
  %v6284 = vmul.f32 1.0, %v6283
  %v6285 = vrcp.pop %v6239
  %v6286 = vmul.f32 %v6239, %v6285
  %v6287 = vsub.f32 1.0, %v6286
  %v6288 = vmul.f32 %v6285, %v6287
  %v6289 = vadd.f32 %v6285, %v6288
  %vm6290 = vweird.f32 %v6239
  %vm6291 = vweird.f32 %v6285
  %vm6292 = vmor %vm6290, %vm6291
  %v6293 = vsel %vm6292, %v6285, %v6289
  %v6294 = vand.u32 2147483647, %v6239
  %vm6295 = vcmp.eq.f32.partialorder %v6294, 8.507059e+37
  %v6296 = vand.u32 %v6239, 2147483648
  %v6297 = vor.u32 1.1754944e-38, %v6296
  %v6298 = vsel %vm6295, %v6297, %v6293
  %v6299 = vmul.f32 1.0, %v6298
  %v6300 = vrcp.pop %v6240
  %v6301 = vmul.f32 %v6240, %v6300
  %v6302 = vsub.f32 1.0, %v6301
  %v6303 = vmul.f32 %v6300, %v6302
  %v6304 = vadd.f32 %v6300, %v6303
  %vm6305 = vweird.f32 %v6240
  %vm6306 = vweird.f32 %v6300
  %vm6307 = vmor %vm6305, %vm6306
  %v6308 = vsel %vm6307, %v6300, %v6304
  %v6309 = vand.u32 2147483647, %v6240
  %vm6310 = vcmp.eq.f32.partialorder %v6309, 8.507059e+37
  %v6311 = vand.u32 %v6240, 2147483648
  %v6312 = vor.u32 1.1754944e-38, %v6311
  %v6313 = vsel %vm6310, %v6312, %v6308
  %v6314 = vmul.f32 1.0, %v6313
  %v6315 = vrcp.pop %v6241
  %v6316 = vmul.f32 %v6241, %v6315
  %v6317 = vsub.f32 1.0, %v6316
  %v6318 = vmul.f32 %v6315, %v6317
  %v6319 = vadd.f32 %v6315, %v6318
  %vm6320 = vweird.f32 %v6241
  %vm6321 = vweird.f32 %v6315
  %vm6322 = vmor %vm6320, %vm6321
  %v6323 = vsel %vm6322, %v6315, %v6319
  %v6324 = vand.u32 2147483647, %v6241
  %vm6325 = vcmp.eq.f32.partialorder %v6324, 8.507059e+37
  %v6326 = vand.u32 %v6241, 2147483648
  %v6327 = vor.u32 1.1754944e-38, %v6326
  %v6328 = vsel %vm6325, %v6327, %v6323
  %v6329 = vmul.f32 1.0, %v6328
  %v6330 = vrcp.pop %v6242
  %v6331 = vmul.f32 %v6242, %v6330
  %v6332 = vsub.f32 1.0, %v6331
  %v6333 = vmul.f32 %v6330, %v6332
  %v6334 = vadd.f32 %v6330, %v6333
  %vm6335 = vweird.f32 %v6242
  %vm6336 = vweird.f32 %v6330
  %vm6337 = vmor %vm6335, %vm6336
  %v6338 = vsel %vm6337, %v6330, %v6334
  %v6339 = vand.u32 2147483647, %v6242
  %vm6340 = vcmp.eq.f32.partialorder %v6339, 8.507059e+37
  %v6341 = vand.u32 %v6242, 2147483648
  %v6342 = vor.u32 1.1754944e-38, %v6341
  %v6343 = vsel %vm6340, %v6342, %v6338
  %v6344 = vmul.f32 1.0, %v6343
  %v6345 = vrcp.pop %v6243
  %v6346 = vmul.f32 %v6243, %v6345
  %v6347 = vsub.f32 1.0, %v6346
  %v6348 = vmul.f32 %v6345, %v6347
  %v6349 = vadd.f32 %v6345, %v6348
  %vm6350 = vweird.f32 %v6243
  %vm6351 = vweird.f32 %v6345
  %vm6352 = vmor %vm6350, %vm6351
  %v6353 = vsel %vm6352, %v6345, %v6349
  %v6354 = vand.u32 2147483647, %v6243
  %vm6355 = vcmp.eq.f32.partialorder %v6354, 8.507059e+37
  %v6356 = vand.u32 %v6243, 2147483648
  %v6357 = vor.u32 1.1754944e-38, %v6356
  %v6358 = vsel %vm6355, %v6357, %v6353
  %v6359 = vmul.f32 1.0, %v6358
  %v6360 = vrcp.pop %v6244
  %v6361 = vmul.f32 %v6244, %v6360
  %v6362 = vsub.f32 1.0, %v6361
  %v6363 = vmul.f32 %v6360, %v6362
  %v6364 = vadd.f32 %v6360, %v6363
  %vm6365 = vweird.f32 %v6244
  %vm6366 = vweird.f32 %v6360
  %vm6367 = vmor %vm6365, %vm6366
  %v6368 = vsel %vm6367, %v6360, %v6364
  %v6369 = vand.u32 2147483647, %v6244
  %vm6370 = vcmp.eq.f32.partialorder %v6369, 8.507059e+37
  %v6371 = vand.u32 %v6244, 2147483648
  %v6372 = vor.u32 1.1754944e-38, %v6371
  %v6373 = vsel %vm6370, %v6372, %v6368
  %v6374 = vmul.f32 1.0, %v6373
  %v6375 = vrcp.pop %v6245
  %v6376 = vmul.f32 %v6245, %v6375
  %v6377 = vsub.f32 1.0, %v6376
  %v6378 = vmul.f32 %v6375, %v6377
  %v6379 = vadd.f32 %v6375, %v6378
  %vm6380 = vweird.f32 %v6245
  %vm6381 = vweird.f32 %v6375
  %vm6382 = vmor %vm6380, %vm6381
  %v6383 = vsel %vm6382, %v6375, %v6379
  %v6384 = vand.u32 2147483647, %v6245
  %vm6385 = vcmp.eq.f32.partialorder %v6384, 8.507059e+37
  %v6386 = vand.u32 %v6245, 2147483648
  %v6387 = vor.u32 1.1754944e-38, %v6386
  %v6388 = vsel %vm6385, %v6387, %v6383
  %v6389 = vmul.f32 1.0, %v6388
  %v6390 = vrcp.pop %v6246
  %v6391 = vmul.f32 %v6246, %v6390
  %v6392 = vsub.f32 1.0, %v6391
  %v6393 = vmul.f32 %v6390, %v6392
  %v6394 = vadd.f32 %v6390, %v6393
  %vm6395 = vweird.f32 %v6246
  %vm6396 = vweird.f32 %v6390
  %vm6397 = vmor %vm6395, %vm6396
  %v6398 = vsel %vm6397, %v6390, %v6394
  %v6399 = vand.u32 2147483647, %v6246
  %vm6400 = vcmp.eq.f32.partialorder %v6399, 8.507059e+37
  %v6401 = vand.u32 %v6246, 2147483648
  %v6402 = vor.u32 1.1754944e-38, %v6401
  %v6403 = vsel %vm6400, %v6402, %v6398
  %v6404 = vmul.f32 1.0, %v6403
  %v6405 = vrcp.pop %v6247
  %v6406 = vmul.f32 %v6247, %v6405
  %v6407 = vsub.f32 1.0, %v6406
  %v6408 = vmul.f32 %v6405, %v6407
  %v6409 = vadd.f32 %v6405, %v6408
  %vm6410 = vweird.f32 %v6247
  %vm6411 = vweird.f32 %v6405
  %vm6412 = vmor %vm6410, %vm6411
  %v6413 = vsel %vm6412, %v6405, %v6409
  %v6414 = vand.u32 2147483647, %v6247
  %vm6415 = vcmp.eq.f32.partialorder %v6414, 8.507059e+37
  %v6416 = vand.u32 %v6247, 2147483648
  %v6417 = vor.u32 1.1754944e-38, %v6416
  %v6418 = vsel %vm6415, %v6417, %v6413
  %v6419 = vmul.f32 1.0, %v6418
  %v6420 = vrcp.pop %v6248
  %v6421 = vmul.f32 %v6248, %v6420
  %v6422 = vsub.f32 1.0, %v6421
  %v6423 = vmul.f32 %v6420, %v6422
  %v6424 = vadd.f32 %v6420, %v6423
  %vm6425 = vweird.f32 %v6248
  %vm6426 = vweird.f32 %v6420
  %vm6427 = vmor %vm6425, %vm6426
  %v6428 = vsel %vm6427, %v6420, %v6424
  %v6429 = vand.u32 2147483647, %v6248
  %vm6430 = vcmp.eq.f32.partialorder %v6429, 8.507059e+37
  %v6431 = vand.u32 %v6248, 2147483648
  %v6432 = vor.u32 1.1754944e-38, %v6431
  %v6433 = vsel %vm6430, %v6432, %v6428
  %v6434 = vmul.f32 1.0, %v6433
  %v6435 = vrcp.pop %v6249
  %v6436 = vmul.f32 %v6249, %v6435
  %v6437 = vsub.f32 1.0, %v6436
  %v6438 = vmul.f32 %v6435, %v6437
  %v6439 = vadd.f32 %v6435, %v6438
  %vm6440 = vweird.f32 %v6249
  %vm6441 = vweird.f32 %v6435
  %vm6442 = vmor %vm6440, %vm6441
  %v6443 = vsel %vm6442, %v6435, %v6439
  %v6444 = vand.u32 2147483647, %v6249
  %vm6445 = vcmp.eq.f32.partialorder %v6444, 8.507059e+37
  %v6446 = vand.u32 %v6249, 2147483648
  %v6447 = vor.u32 1.1754944e-38, %v6446
  %v6448 = vsel %vm6445, %v6447, %v6443
  %v6449 = vmul.f32 1.0, %v6448
  %v6450 = vrcp.pop %v6250
  %v6451 = vmul.f32 %v6250, %v6450
  %v6452 = vsub.f32 1.0, %v6451
  %v6453 = vmul.f32 %v6450, %v6452
  %v6454 = vadd.f32 %v6450, %v6453
  %vm6455 = vweird.f32 %v6250
  %vm6456 = vweird.f32 %v6450
  %vm6457 = vmor %vm6455, %vm6456
  %v6458 = vsel %vm6457, %v6450, %v6454
  %v6459 = vand.u32 2147483647, %v6250
  %vm6460 = vcmp.eq.f32.partialorder %v6459, 8.507059e+37
  %v6461 = vand.u32 %v6250, 2147483648
  %v6462 = vor.u32 1.1754944e-38, %v6461
  %v6463 = vsel %vm6460, %v6462, %v6458
  %v6464 = vmul.f32 1.0, %v6463
  %v6465 = vrcp.pop %v6251
  %v6466 = vmul.f32 %v6251, %v6465
  %v6467 = vsub.f32 1.0, %v6466
  %v6468 = vmul.f32 %v6465, %v6467
  %v6469 = vadd.f32 %v6465, %v6468
  %vm6470 = vweird.f32 %v6251
  %vm6471 = vweird.f32 %v6465
  %vm6472 = vmor %vm6470, %vm6471
  %v6473 = vsel %vm6472, %v6465, %v6469
  %v6474 = vand.u32 2147483647, %v6251
  %vm6475 = vcmp.eq.f32.partialorder %v6474, 8.507059e+37
  %v6476 = vand.u32 %v6251, 2147483648
  %v6477 = vor.u32 1.1754944e-38, %v6476
  %v6478 = vsel %vm6475, %v6477, %v6473
  %v6479 = vmul.f32 1.0, %v6478
  %v6480 = vrcp.pop %v6252
  %v6481 = vmul.f32 %v6252, %v6480
  %v6482 = vsub.f32 1.0, %v6481
  %v6483 = vmul.f32 %v6480, %v6482
  %v6484 = vadd.f32 %v6480, %v6483
  %vm6485 = vweird.f32 %v6252
  %vm6486 = vweird.f32 %v6480
  %vm6487 = vmor %vm6485, %vm6486
  %v6488 = vsel %vm6487, %v6480, %v6484
  %v6489 = vand.u32 2147483647, %v6252
  %vm6490 = vcmp.eq.f32.partialorder %v6489, 8.507059e+37
  %v6491 = vand.u32 %v6252, 2147483648
  %v6492 = vor.u32 1.1754944e-38, %v6491
  %v6493 = vsel %vm6490, %v6492, %v6488
  %v6494 = vmul.f32 1.0, %v6493
  %v6495 = vrcp.pop %v6253
  %v6496 = vmul.f32 %v6253, %v6495
  %v6497 = vsub.f32 1.0, %v6496
  %v6498 = vmul.f32 %v6495, %v6497
  %v6499 = vadd.f32 %v6495, %v6498
  %vm6500 = vweird.f32 %v6253
  %vm6501 = vweird.f32 %v6495
  %vm6502 = vmor %vm6500, %vm6501
  %v6503 = vsel %vm6502, %v6495, %v6499
  %v6504 = vand.u32 2147483647, %v6253
  %vm6505 = vcmp.eq.f32.partialorder %v6504, 8.507059e+37
  %v6506 = vand.u32 %v6253, 2147483648
  %v6507 = vor.u32 1.1754944e-38, %v6506
  %v6508 = vsel %vm6505, %v6507, %v6503
  %v6509 = vmul.f32 1.0, %v6508
  %v6510 = vrcp.pop %v6254
  %v6511 = vmul.f32 %v6254, %v6510
  %v6512 = vsub.f32 1.0, %v6511
  %v6513 = vmul.f32 %v6510, %v6512
  %v6514 = vadd.f32 %v6510, %v6513
  %vm6515 = vweird.f32 %v6254
  %vm6516 = vweird.f32 %v6510
  %vm6517 = vmor %vm6515, %vm6516
  %v6518 = vsel %vm6517, %v6510, %v6514
  %v6519 = vand.u32 2147483647, %v6254
  %vm6520 = vcmp.eq.f32.partialorder %v6519, 8.507059e+37
  %v6521 = vand.u32 %v6254, 2147483648
  %v6522 = vor.u32 1.1754944e-38, %v6521
  %v6523 = vsel %vm6520, %v6522, %v6518
  %v6524 = vmul.f32 1.0, %v6523
  %v6525 = vrcp.pop %v6255
  %v6526 = vmul.f32 %v6255, %v6525
  %v6527 = vsub.f32 1.0, %v6526
  %v6528 = vmul.f32 %v6525, %v6527
  %v6529 = vadd.f32 %v6525, %v6528
  %vm6530 = vweird.f32 %v6255
  %vm6531 = vweird.f32 %v6525
  %vm6532 = vmor %vm6530, %vm6531
  %v6533 = vsel %vm6532, %v6525, %v6529
  %v6534 = vand.u32 2147483647, %v6255
  %vm6535 = vcmp.eq.f32.partialorder %v6534, 8.507059e+37
  %v6536 = vand.u32 %v6255, 2147483648
  %v6537 = vor.u32 1.1754944e-38, %v6536
  %v6538 = vsel %vm6535, %v6537, %v6533
  %v6539 = vmul.f32 1.0, %v6538
  %v6540 = vrcp.pop %v6256
  %v6541 = vmul.f32 %v6256, %v6540
  %v6542 = vsub.f32 1.0, %v6541
  %v6543 = vmul.f32 %v6540, %v6542
  %v6544 = vadd.f32 %v6540, %v6543
  %vm6545 = vweird.f32 %v6256
  %vm6546 = vweird.f32 %v6540
  %vm6547 = vmor %vm6545, %vm6546
  %v6548 = vsel %vm6547, %v6540, %v6544
  %v6549 = vand.u32 2147483647, %v6256
  %vm6550 = vcmp.eq.f32.partialorder %v6549, 8.507059e+37
  %v6551 = vand.u32 %v6256, 2147483648
  %v6552 = vor.u32 1.1754944e-38, %v6551
  %v6553 = vsel %vm6550, %v6552, %v6548
  %v6554 = vmul.f32 1.0, %v6553
  %v6555 = vrcp.pop %v6257
  %v6556 = vmul.f32 %v6257, %v6555
  %v6557 = vsub.f32 1.0, %v6556
  %v6558 = vmul.f32 %v6555, %v6557
  %v6559 = vadd.f32 %v6555, %v6558
  %vm6560 = vweird.f32 %v6257
  %vm6561 = vweird.f32 %v6555
  %vm6562 = vmor %vm6560, %vm6561
  %v6563 = vsel %vm6562, %v6555, %v6559
  %v6564 = vand.u32 2147483647, %v6257
  %vm6565 = vcmp.eq.f32.partialorder %v6564, 8.507059e+37
  %v6566 = vand.u32 %v6257, 2147483648
  %v6567 = vor.u32 1.1754944e-38, %v6566
  %v6568 = vsel %vm6565, %v6567, %v6563
  %v6569 = vmul.f32 1.0, %v6568
  %v6570 = vrcp.pop %v6258
  %v6571 = vmul.f32 %v6258, %v6570
  %v6572 = vsub.f32 1.0, %v6571
  %v6573 = vmul.f32 %v6570, %v6572
  %v6574 = vadd.f32 %v6570, %v6573
  %vm6575 = vweird.f32 %v6258
  %vm6576 = vweird.f32 %v6570
  %vm6577 = vmor %vm6575, %vm6576
  %v6578 = vsel %vm6577, %v6570, %v6574
  %v6579 = vand.u32 2147483647, %v6258
  %vm6580 = vcmp.eq.f32.partialorder %v6579, 8.507059e+37
  %v6581 = vand.u32 %v6258, 2147483648
  %v6582 = vor.u32 1.1754944e-38, %v6581
  %v6583 = vsel %vm6580, %v6582, %v6578
  %v6584 = vmul.f32 1.0, %v6583
  %v6585 = vrcp.pop %v6259
  %v6586 = vmul.f32 %v6259, %v6585
  %v6587 = vsub.f32 1.0, %v6586
  %v6588 = vmul.f32 %v6585, %v6587
  %v6589 = vadd.f32 %v6585, %v6588
  %vm6590 = vweird.f32 %v6259
  %vm6591 = vweird.f32 %v6585
  %vm6592 = vmor %vm6590, %vm6591
  %v6593 = vsel %vm6592, %v6585, %v6589
  %v6594 = vand.u32 2147483647, %v6259
  %vm6595 = vcmp.eq.f32.partialorder %v6594, 8.507059e+37
  %v6596 = vand.u32 %v6259, 2147483648
  %v6597 = vor.u32 1.1754944e-38, %v6596
  %v6598 = vsel %vm6595, %v6597, %v6593
  %v6599 = vmul.f32 1.0, %v6598
  %v6600 = vrcp.pop %v6260
  %v6601 = vmul.f32 %v6260, %v6600
  %v6602 = vsub.f32 1.0, %v6601
  %v6603 = vmul.f32 %v6600, %v6602
  %v6604 = vadd.f32 %v6600, %v6603
  %vm6605 = vweird.f32 %v6260
  %vm6606 = vweird.f32 %v6600
  %vm6607 = vmor %vm6605, %vm6606
  %v6608 = vsel %vm6607, %v6600, %v6604
  %v6609 = vand.u32 2147483647, %v6260
  %vm6610 = vcmp.eq.f32.partialorder %v6609, 8.507059e+37
  %v6611 = vand.u32 %v6260, 2147483648
  %v6612 = vor.u32 1.1754944e-38, %v6611
  %v6613 = vsel %vm6610, %v6612, %v6608
  %v6614 = vmul.f32 1.0, %v6613
  %v6615 = vrcp.pop %v6261
  %v6616 = vmul.f32 %v6261, %v6615
  %v6617 = vsub.f32 1.0, %v6616
  %v6618 = vmul.f32 %v6615, %v6617
  %v6619 = vadd.f32 %v6615, %v6618
  %vm6620 = vweird.f32 %v6261
  %vm6621 = vweird.f32 %v6615
  %vm6622 = vmor %vm6620, %vm6621
  %v6623 = vsel %vm6622, %v6615, %v6619
  %v6624 = vand.u32 2147483647, %v6261
  %vm6625 = vcmp.eq.f32.partialorder %v6624, 8.507059e+37
  %v6626 = vand.u32 %v6261, 2147483648
  %v6627 = vor.u32 1.1754944e-38, %v6626
  %v6628 = vsel %vm6625, %v6627, %v6623
  %v6629 = vmul.f32 1.0, %v6628
  %v6630 = vrcp.pop %v6262
  %v6631 = vmul.f32 %v6262, %v6630
  %v6632 = vsub.f32 1.0, %v6631
  %v6633 = vmul.f32 %v6630, %v6632
  %v6634 = vadd.f32 %v6630, %v6633
  %vm6635 = vweird.f32 %v6262
  %vm6636 = vweird.f32 %v6630
  %vm6637 = vmor %vm6635, %vm6636
  %v6638 = vsel %vm6637, %v6630, %v6634
  %v6639 = vand.u32 2147483647, %v6262
  %vm6640 = vcmp.eq.f32.partialorder %v6639, 8.507059e+37
  %v6641 = vand.u32 %v6262, 2147483648
  %v6642 = vor.u32 1.1754944e-38, %v6641
  %v6643 = vsel %vm6640, %v6642, %v6638
  %v6644 = vmul.f32 1.0, %v6643
  %v6645 = vrcp.pop %v6263
  %v6646 = vmul.f32 %v6263, %v6645
  %v6647 = vsub.f32 1.0, %v6646
  %v6648 = vmul.f32 %v6645, %v6647
  %v6649 = vadd.f32 %v6645, %v6648
  %vm6650 = vweird.f32 %v6263
  %vm6651 = vweird.f32 %v6645
  %vm6652 = vmor %vm6650, %vm6651
  %v6653 = vsel %vm6652, %v6645, %v6649
  %v6654 = vand.u32 2147483647, %v6263
  %vm6655 = vcmp.eq.f32.partialorder %v6654, 8.507059e+37
  %v6656 = vand.u32 %v6263, 2147483648
  %v6657 = vor.u32 1.1754944e-38, %v6656
  %v6658 = vsel %vm6655, %v6657, %v6653
  %v6659 = vmul.f32 1.0, %v6658
  %v6660 = vrcp.pop %v6264
  %v6661 = vmul.f32 %v6264, %v6660
  %v6662 = vsub.f32 1.0, %v6661
  %v6663 = vmul.f32 %v6660, %v6662
  %v6664 = vadd.f32 %v6660, %v6663
  %vm6665 = vweird.f32 %v6264
  %vm6666 = vweird.f32 %v6660
  %vm6667 = vmor %vm6665, %vm6666
  %v6668 = vsel %vm6667, %v6660, %v6664
  %v6669 = vand.u32 2147483647, %v6264
  %vm6670 = vcmp.eq.f32.partialorder %v6669, 8.507059e+37
  %v6671 = vand.u32 %v6264, 2147483648
  %v6672 = vor.u32 1.1754944e-38, %v6671
  %v6673 = vsel %vm6670, %v6672, %v6668
  %v6674 = vmul.f32 1.0, %v6673
  %v6675 = vrcp.pop %v6265
  %v6676 = vmul.f32 %v6265, %v6675
  %v6677 = vsub.f32 1.0, %v6676
  %v6678 = vmul.f32 %v6675, %v6677
  %v6679 = vadd.f32 %v6675, %v6678
  %vm6680 = vweird.f32 %v6265
  %vm6681 = vweird.f32 %v6675
  %vm6682 = vmor %vm6680, %vm6681
  %v6683 = vsel %vm6682, %v6675, %v6679
  %v6684 = vand.u32 2147483647, %v6265
  %vm6685 = vcmp.eq.f32.partialorder %v6684, 8.507059e+37
  %v6686 = vand.u32 %v6265, 2147483648
  %v6687 = vor.u32 1.1754944e-38, %v6686
  %v6688 = vsel %vm6685, %v6687, %v6683
  %v6689 = vmul.f32 1.0, %v6688
  %v6690 = vrcp.pop %v6266
  %v6691 = vmul.f32 %v6266, %v6690
  %v6692 = vsub.f32 1.0, %v6691
  %v6693 = vmul.f32 %v6690, %v6692
  %v6694 = vadd.f32 %v6690, %v6693
  %vm6695 = vweird.f32 %v6266
  %vm6696 = vweird.f32 %v6690
  %vm6697 = vmor %vm6695, %vm6696
  %v6698 = vsel %vm6697, %v6690, %v6694
  %v6699 = vand.u32 2147483647, %v6266
  %vm6700 = vcmp.eq.f32.partialorder %v6699, 8.507059e+37
  %v6701 = vand.u32 %v6266, 2147483648
  %v6702 = vor.u32 1.1754944e-38, %v6701
  %v6703 = vsel %vm6700, %v6702, %v6698
  %v6704 = vmul.f32 1.0, %v6703
  %v6705 = vrcp.pop %v6267
  %v6706 = vmul.f32 %v6267, %v6705
  %v6707 = vsub.f32 1.0, %v6706
  %v6708 = vmul.f32 %v6705, %v6707
  %v6709 = vadd.f32 %v6705, %v6708
  %vm6710 = vweird.f32 %v6267
  %vm6711 = vweird.f32 %v6705
  %vm6712 = vmor %vm6710, %vm6711
  %v6713 = vsel %vm6712, %v6705, %v6709
  %v6714 = vand.u32 2147483647, %v6267
  %vm6715 = vcmp.eq.f32.partialorder %v6714, 8.507059e+37
  %v6716 = vand.u32 %v6267, 2147483648
  %v6717 = vor.u32 1.1754944e-38, %v6716
  %v6718 = vsel %vm6715, %v6717, %v6713
  %v6719 = vmul.f32 1.0, %v6718
  %v6720 = vrcp.pop %v6268
  %v6721 = vmul.f32 %v6268, %v6720
  %v6722 = vsub.f32 1.0, %v6721
  %v6723 = vmul.f32 %v6720, %v6722
  %v6724 = vadd.f32 %v6720, %v6723
  %vm6725 = vweird.f32 %v6268
  %vm6726 = vweird.f32 %v6720
  %vm6727 = vmor %vm6725, %vm6726
  %v6728 = vsel %vm6727, %v6720, %v6724
  %v6729 = vand.u32 2147483647, %v6268
  %vm6730 = vcmp.eq.f32.partialorder %v6729, 8.507059e+37
  %v6731 = vand.u32 %v6268, 2147483648
  %v6732 = vor.u32 1.1754944e-38, %v6731
  %v6733 = vsel %vm6730, %v6732, %v6728
  %v6734 = vmul.f32 1.0, %v6733
  %v6735 = vrcp.pop %v6269
  %v6736 = vmul.f32 %v6269, %v6735
  %v6737 = vsub.f32 1.0, %v6736
  %v6738 = vmul.f32 %v6735, %v6737
  %v6739 = vadd.f32 %v6735, %v6738
  %vm6740 = vweird.f32 %v6269
  %vm6741 = vweird.f32 %v6735
  %vm6742 = vmor %vm6740, %vm6741
  %v6743 = vsel %vm6742, %v6735, %v6739
  %v6744 = vand.u32 2147483647, %v6269
  %vm6745 = vcmp.eq.f32.partialorder %v6744, 8.507059e+37
  %v6746 = vand.u32 %v6269, 2147483648
  %v6747 = vor.u32 1.1754944e-38, %v6746
  %v6748 = vsel %vm6745, %v6747, %v6743
  %v6749 = vmul.f32 1.0, %v6748
  %6782 = vrot.lane.b32.xlu0 %v6284, 112
  %v6783 = vpop.permute.xlu0 %6782
  %6784 = vrot.lane.b32.xlu0 %v6299, 112
  %v6785 = vpop.permute.xlu0 %6784
  %6786 = vrot.lane.b32.xlu0 %v6314, 112
  %v6787 = vpop.permute.xlu0 %6786
  %6788 = vrot.lane.b32.xlu0 %v6329, 112
  %v6789 = vpop.permute.xlu0 %6788
  %6790 = vrot.lane.b32.xlu0 %v6344, 112
  %v6791 = vpop.permute.xlu0 %6790
  %6792 = vrot.lane.b32.xlu0 %v6359, 112
  %v6793 = vpop.permute.xlu0 %6792
  %6794 = vrot.lane.b32.xlu0 %v6374, 112
  %v6795 = vpop.permute.xlu0 %6794
  %6796 = vrot.lane.b32.xlu0 %v6389, 112
  %v6797 = vpop.permute.xlu0 %6796
  %6798 = vrot.lane.b32.xlu0 %v6404, 112
  %v6799 = vpop.permute.xlu0 %6798
  %6800 = vrot.lane.b32.xlu0 %v6419, 112
  %v6801 = vpop.permute.xlu0 %6800
  %6802 = vrot.lane.b32.xlu0 %v6434, 112
  %v6803 = vpop.permute.xlu0 %6802
  %6804 = vrot.lane.b32.xlu0 %v6449, 112
  %v6805 = vpop.permute.xlu0 %6804
  %6806 = vrot.lane.b32.xlu0 %v6464, 112
  %v6807 = vpop.permute.xlu0 %6806
  %6808 = vrot.lane.b32.xlu0 %v6479, 112
  %v6809 = vpop.permute.xlu0 %6808
  %6810 = vrot.lane.b32.xlu0 %v6494, 112
  %v6811 = vpop.permute.xlu0 %6810
  %6812 = vrot.lane.b32.xlu0 %v6509, 112
  %v6813 = vpop.permute.xlu0 %6812
  %6814 = vrot.lane.b32.xlu0 %v6524, 112
  %v6815 = vpop.permute.xlu0 %6814
  %6816 = vrot.lane.b32.xlu0 %v6539, 112
  %v6817 = vpop.permute.xlu0 %6816
  %6818 = vrot.lane.b32.xlu0 %v6554, 112
  %v6819 = vpop.permute.xlu0 %6818
  %6820 = vrot.lane.b32.xlu0 %v6569, 112
  %v6821 = vpop.permute.xlu0 %6820
  %6822 = vrot.lane.b32.xlu0 %v6584, 112
  %v6823 = vpop.permute.xlu0 %6822
  %6824 = vrot.lane.b32.xlu0 %v6599, 112
  %v6825 = vpop.permute.xlu0 %6824
  %6826 = vrot.lane.b32.xlu0 %v6614, 112
  %v6827 = vpop.permute.xlu0 %6826
  %6828 = vrot.lane.b32.xlu0 %v6629, 112
  %v6829 = vpop.permute.xlu0 %6828
  %6830 = vrot.lane.b32.xlu0 %v6644, 112
  %v6831 = vpop.permute.xlu0 %6830
  %6832 = vrot.lane.b32.xlu0 %v6659, 112
  %v6833 = vpop.permute.xlu0 %6832
  %6834 = vrot.lane.b32.xlu0 %v6674, 112
  %v6835 = vpop.permute.xlu0 %6834
  %6836 = vrot.lane.b32.xlu0 %v6689, 112
  %v6837 = vpop.permute.xlu0 %6836
  %6838 = vrot.lane.b32.xlu0 %v6704, 112
  %v6839 = vpop.permute.xlu0 %6838
  %6840 = vrot.lane.b32.xlu0 %v6719, 112
  %v6841 = vpop.permute.xlu0 %6840
  %6842 = vrot.lane.b32.xlu0 %v6734, 112
  %v6843 = vpop.permute.xlu0 %6842
  %6844 = vrot.lane.b32.xlu0 %v6749, 112
  %v6845 = vpop.permute.xlu0 %6844
  %v6878 = vmul.f32 %v6110, %v6783
  %v6879 = vmul.f32 %v6111, %v6785
  %v6880 = vmul.f32 %v6112, %v6787
  %v6881 = vmul.f32 %v6113, %v6789
  %v6882 = vmul.f32 %v6114, %v6791
  %v6883 = vmul.f32 %v6115, %v6793
  %v6884 = vmul.f32 %v6116, %v6795
  %v6885 = vmul.f32 %v6117, %v6797
  %v6886 = vmul.f32 %v6118, %v6799
  %v6887 = vmul.f32 %v6119, %v6801
  %v6888 = vmul.f32 %v6120, %v6803
  %v6889 = vmul.f32 %v6121, %v6805
  %v6890 = vmul.f32 %v6122, %v6807
  %v6891 = vmul.f32 %v6123, %v6809
  %v6892 = vmul.f32 %v6124, %v6811
  %v6893 = vmul.f32 %v6125, %v6813
  %v6894 = vmul.f32 %v6126, %v6815
  %v6895 = vmul.f32 %v6127, %v6817
  %v6896 = vmul.f32 %v6128, %v6819
  %v6897 = vmul.f32 %v6129, %v6821
  %v6898 = vmul.f32 %v6130, %v6823
  %v6899 = vmul.f32 %v6131, %v6825
  %v6900 = vmul.f32 %v6132, %v6827
  %v6901 = vmul.f32 %v6133, %v6829
  %v6902 = vmul.f32 %v6134, %v6831
  %v6903 = vmul.f32 %v6135, %v6833
  %v6904 = vmul.f32 %v6136, %v6835
  %v6905 = vmul.f32 %v6137, %v6837
  %v6906 = vmul.f32 %v6138, %v6839
  %v6907 = vmul.f32 %v6139, %v6841
  %v6908 = vmul.f32 %v6140, %v6843
  %v6909 = vmul.f32 %v6141, %v6845
  %v6910 = vadd.f32 %v4621, %v6878
  %v6911 = vadd.f32 %v4622, %v6879
  %v6912 = vadd.f32 %v4623, %v6880
  %v6913 = vadd.f32 %v4624, %v6881
  %v6914 = vadd.f32 %v4625, %v6882
  %v6915 = vadd.f32 %v4626, %v6883
  %v6916 = vadd.f32 %v4627, %v6884
  %v6917 = vadd.f32 %v4628, %v6885
  %v6918 = vadd.f32 %v4629, %v6886
  %v6919 = vadd.f32 %v4630, %v6887
  %v6920 = vadd.f32 %v4631, %v6888
  %v6921 = vadd.f32 %v4632, %v6889
  %v6922 = vadd.f32 %v4633, %v6890
  %v6923 = vadd.f32 %v4634, %v6891
  %v6924 = vadd.f32 %v4635, %v6892
  %v6925 = vadd.f32 %v4636, %v6893
  %v6926 = vadd.f32 %v4637, %v6894
  %v6927 = vadd.f32 %v4638, %v6895
  %v6928 = vadd.f32 %v4639, %v6896
  %v6929 = vadd.f32 %v4640, %v6897
  %v6930 = vadd.f32 %v4641, %v6898
  %v6931 = vadd.f32 %v4642, %v6899
  %v6932 = vadd.f32 %v4643, %v6900
  %v6933 = vadd.f32 %v4644, %v6901
  %v6934 = vadd.f32 %v4645, %v6902
  %v6935 = vadd.f32 %v4646, %v6903
  %v6936 = vadd.f32 %v4647, %v6904
  %v6937 = vadd.f32 %v4648, %v6905
  %v6938 = vadd.f32 %v4649, %v6906
  %v6939 = vadd.f32 %v4650, %v6907
  %v6940 = vadd.f32 %v4651, %v6908
  %v6941 = vadd.f32 %v4652, %v6909
  %v6942 = vmul.f32 %v6910, 0.70710677
  %v6943 = vmul.f32 %v6911, 0.70710677
  %v6944 = vmul.f32 %v6912, 0.70710677
  %v6945 = vmul.f32 %v6913, 0.70710677
  %v6946 = vmul.f32 %v6914, 0.70710677
  %v6947 = vmul.f32 %v6915, 0.70710677
  %v6948 = vmul.f32 %v6916, 0.70710677
  %v6949 = vmul.f32 %v6917, 0.70710677
  %v6950 = vmul.f32 %v6918, 0.70710677
  %v6951 = vmul.f32 %v6919, 0.70710677
  %v6952 = vmul.f32 %v6920, 0.70710677
  %v6953 = vmul.f32 %v6921, 0.70710677
  %v6954 = vmul.f32 %v6922, 0.70710677
  %v6955 = vmul.f32 %v6923, 0.70710677
  %v6956 = vmul.f32 %v6924, 0.70710677
  %v6957 = vmul.f32 %v6925, 0.70710677
  %v6958 = vmul.f32 %v6926, 0.70710677
  %v6959 = vmul.f32 %v6927, 0.70710677
  %v6960 = vmul.f32 %v6928, 0.70710677
  %v6961 = vmul.f32 %v6929, 0.70710677
  %v6962 = vmul.f32 %v6930, 0.70710677
  %v6963 = vmul.f32 %v6931, 0.70710677
  %v6964 = vmul.f32 %v6932, 0.70710677
  %v6965 = vmul.f32 %v6933, 0.70710677
  %v6966 = vmul.f32 %v6934, 0.70710677
  %v6967 = vmul.f32 %v6935, 0.70710677
  %v6968 = vmul.f32 %v6936, 0.70710677
  %v6969 = vmul.f32 %v6937, 0.70710677
  %v6970 = vmul.f32 %v6938, 0.70710677
  %v6971 = vmul.f32 %v6939, 0.70710677
  %v6972 = vmul.f32 %v6940, 0.70710677
  %v6973 = vmul.f32 %v6941, 0.70710677
  %v6975 = vsel %vm2331, %v6942, 0
  %v6978 = vsel %vm2331, %v6943, 0
  %v6981 = vsel %vm2331, %v6944, 0
  %v6984 = vsel %vm2331, %v6945, 0
  %v6987 = vsel %vm2331, %v6946, 0
  %v6990 = vsel %vm2331, %v6947, 0
  %v6993 = vsel %vm2331, %v6948, 0
  %v6996 = vsel %vm2331, %v6949, 0
  %v6999 = vsel %vm2331, %v6950, 0
  %v7002 = vsel %vm2331, %v6951, 0
  %v7005 = vsel %vm2331, %v6952, 0
  %v7008 = vsel %vm2331, %v6953, 0
  %v7011 = vsel %vm2331, %v6954, 0
  %v7014 = vsel %vm2331, %v6955, 0
  %v7017 = vsel %vm2331, %v6956, 0
  %v7020 = vsel %vm2331, %v6957, 0
  %v7023 = vsel %vm2331, %v6958, 0
  %v7026 = vsel %vm2331, %v6959, 0
  %v7029 = vsel %vm2331, %v6960, 0
  %v7032 = vsel %vm2331, %v6961, 0
  %v7035 = vsel %vm2331, %v6962, 0
  %v7038 = vsel %vm2331, %v6963, 0
  %v7041 = vsel %vm2331, %v6964, 0
  %v7044 = vsel %vm2331, %v6965, 0
  %v7047 = vsel %vm2331, %v6966, 0
  %v7050 = vsel %vm2331, %v6967, 0
  %v7053 = vsel %vm2331, %v6968, 0
  %v7056 = vsel %vm2331, %v6969, 0
  %v7059 = vsel %vm2331, %v6970, 0
  %v7062 = vsel %vm2331, %v6971, 0
  %v7065 = vsel %vm2331, %v6972, 0
  %v7068 = vsel %vm2331, %v6973, 0
  %7070 = vmatpush.msra.mxu0 0.0
  %7071 = vmatpush.msra.mxu0 0.0
  %7072 = vmatpush.msra.mxu0 0.0
  %7073 = vmatpush.msra.mxu0 0.0
  %7074 = vmatpush.msra.mxu0 0.0
  %7075 = vmatpush.msra.mxu0 0.0
  %7076 = vmatpush.msra.mxu0 0.0
  %7077 = vmatpush.msra.mxu0 0.0
  %7078 = vmatpush.msra.mxu0 0.0
  %7079 = vmatpush.msra.mxu0 0.0
  %7080 = vmatpush.msra.mxu0 0.0
  %7081 = vmatpush.msra.mxu0 0.0
  %7082 = vmatpush.msra.mxu0 0.0
  %7083 = vmatpush.msra.mxu0 0.0
  %7084 = vmatpush.msra.mxu0 %v32
  %7085 = vmatpush.msra.mxu0 %v31
  %7086 = vmatmul.f32.gmra.mxu0 %v6975
  %v7087 = vpop.f32.mrf.mxu0
  %v7088 = vadd.f32 0.0, %v7087
  %7089 = vmatmul.f32.gmra.mxu0 %v6978
  %v7090 = vpop.f32.mrf.mxu0
  %v7091 = vadd.f32 0.0, %v7090
  %7092 = vmatmul.f32.gmra.mxu0 %v6981
  %v7093 = vpop.f32.mrf.mxu0
  %v7094 = vadd.f32 0.0, %v7093
  %7095 = vmatmul.f32.gmra.mxu0 %v6984
  %v7096 = vpop.f32.mrf.mxu0
  %v7097 = vadd.f32 0.0, %v7096
  %7098 = vmatmul.f32.gmra.mxu0 %v6987
  %v7099 = vpop.f32.mrf.mxu0
  %v7100 = vadd.f32 0.0, %v7099
  %7101 = vmatmul.f32.gmra.mxu0 %v6990
  %v7102 = vpop.f32.mrf.mxu0
  %v7103 = vadd.f32 0.0, %v7102
  %7104 = vmatmul.f32.gmra.mxu0 %v6993
  %v7105 = vpop.f32.mrf.mxu0
  %v7106 = vadd.f32 0.0, %v7105
  %7107 = vmatmul.f32.gmra.mxu0 %v6996
  %v7108 = vpop.f32.mrf.mxu0
  %v7109 = vadd.f32 0.0, %v7108
  %7110 = vmatmul.f32.gmra.mxu0 %v6999
  %v7111 = vpop.f32.mrf.mxu0
  %v7112 = vadd.f32 0.0, %v7111
  %7113 = vmatmul.f32.gmra.mxu0 %v7002
  %v7114 = vpop.f32.mrf.mxu0
  %v7115 = vadd.f32 0.0, %v7114
  %7116 = vmatmul.f32.gmra.mxu0 %v7005
  %v7117 = vpop.f32.mrf.mxu0
  %v7118 = vadd.f32 0.0, %v7117
  %7119 = vmatmul.f32.gmra.mxu0 %v7008
  %v7120 = vpop.f32.mrf.mxu0
  %v7121 = vadd.f32 0.0, %v7120
  %7122 = vmatmul.f32.gmra.mxu0 %v7011
  %v7123 = vpop.f32.mrf.mxu0
  %v7124 = vadd.f32 0.0, %v7123
  %7125 = vmatmul.f32.gmra.mxu0 %v7014
  %v7126 = vpop.f32.mrf.mxu0
  %v7127 = vadd.f32 0.0, %v7126
  %7128 = vmatmul.f32.gmra.mxu0 %v7017
  %v7129 = vpop.f32.mrf.mxu0
  %v7130 = vadd.f32 0.0, %v7129
  %7131 = vmatmul.f32.gmra.mxu0 %v7020
  %v7132 = vpop.f32.mrf.mxu0
  %v7133 = vadd.f32 0.0, %v7132
  %7134 = vmatmul.f32.gmra.mxu0 %v7023
  %v7135 = vpop.f32.mrf.mxu0
  %v7136 = vadd.f32 0.0, %v7135
  %7137 = vmatmul.f32.gmra.mxu0 %v7026
  %v7138 = vpop.f32.mrf.mxu0
  %v7139 = vadd.f32 0.0, %v7138
  %7140 = vmatmul.f32.gmra.mxu0 %v7029
  %v7141 = vpop.f32.mrf.mxu0
  %v7142 = vadd.f32 0.0, %v7141
  %7143 = vmatmul.f32.gmra.mxu0 %v7032
  %v7144 = vpop.f32.mrf.mxu0
  %v7145 = vadd.f32 0.0, %v7144
  %7146 = vmatmul.f32.gmra.mxu0 %v7035
  %v7147 = vpop.f32.mrf.mxu0
  %v7148 = vadd.f32 0.0, %v7147
  %7149 = vmatmul.f32.gmra.mxu0 %v7038
  %v7150 = vpop.f32.mrf.mxu0
  %v7151 = vadd.f32 0.0, %v7150
  %7152 = vmatmul.f32.gmra.mxu0 %v7041
  %v7153 = vpop.f32.mrf.mxu0
  %v7154 = vadd.f32 0.0, %v7153
  %7155 = vmatmul.f32.gmra.mxu0 %v7044
  %v7156 = vpop.f32.mrf.mxu0
  %v7157 = vadd.f32 0.0, %v7156
  %7158 = vmatmul.f32.gmra.mxu0 %v7047
  %v7159 = vpop.f32.mrf.mxu0
  %v7160 = vadd.f32 0.0, %v7159
  %7161 = vmatmul.f32.gmra.mxu0 %v7050
  %v7162 = vpop.f32.mrf.mxu0
  %v7163 = vadd.f32 0.0, %v7162
  %7164 = vmatmul.f32.gmra.mxu0 %v7053
  %v7165 = vpop.f32.mrf.mxu0
  %v7166 = vadd.f32 0.0, %v7165
  %7167 = vmatmul.f32.gmra.mxu0 %v7056
  %v7168 = vpop.f32.mrf.mxu0
  %v7169 = vadd.f32 0.0, %v7168
  %7170 = vmatmul.f32.gmra.mxu0 %v7059
  %v7171 = vpop.f32.mrf.mxu0
  %v7172 = vadd.f32 0.0, %v7171
  %7173 = vmatmul.f32.gmra.mxu0 %v7062
  %v7174 = vpop.f32.mrf.mxu0
  %v7175 = vadd.f32 0.0, %v7174
  %7176 = vmatmul.f32.gmra.mxu0 %v7065
  %v7177 = vpop.f32.mrf.mxu0
  %v7178 = vadd.f32 0.0, %v7177
  %7179 = vmatmul.f32.gmra.mxu0 %v7068
  %v7180 = vpop.f32.mrf.mxu0
  %v7181 = vadd.f32 0.0, %v7180
  %7182 = vdwg.mxu0
  %v7183 = vsel %vm66, %v7088, 0.0
  %v7184 = vrot.slane %v7183, 4
  %v7185 = vadd.f32 %v7183, %v7184
  %v7186 = vrot.slane %v7185, 2
  %v7187 = vadd.f32 %v7185, %v7186
  %v7188 = vrot.slane %v7187, 1
  %v7189 = vadd.f32 %v7187, %v7188
  %v7190 = vsel %vm66, %v7091, 0.0
  %v7191 = vrot.slane %v7190, 4
  %v7192 = vadd.f32 %v7190, %v7191
  %v7193 = vrot.slane %v7192, 2
  %v7194 = vadd.f32 %v7192, %v7193
  %v7195 = vrot.slane %v7194, 1
  %v7196 = vadd.f32 %v7194, %v7195
  %v7197 = vsel %vm66, %v7094, 0.0
  %v7198 = vrot.slane %v7197, 4
  %v7199 = vadd.f32 %v7197, %v7198
  %v7200 = vrot.slane %v7199, 2
  %v7201 = vadd.f32 %v7199, %v7200
  %v7202 = vrot.slane %v7201, 1
  %v7203 = vadd.f32 %v7201, %v7202
  %v7204 = vsel %vm66, %v7097, 0.0
  %v7205 = vrot.slane %v7204, 4
  %v7206 = vadd.f32 %v7204, %v7205
  %v7207 = vrot.slane %v7206, 2
  %v7208 = vadd.f32 %v7206, %v7207
  %v7209 = vrot.slane %v7208, 1
  %v7210 = vadd.f32 %v7208, %v7209
  %v7211 = vsel %vm66, %v7100, 0.0
  %v7212 = vrot.slane %v7211, 4
  %v7213 = vadd.f32 %v7211, %v7212
  %v7214 = vrot.slane %v7213, 2
  %v7215 = vadd.f32 %v7213, %v7214
  %v7216 = vrot.slane %v7215, 1
  %v7217 = vadd.f32 %v7215, %v7216
  %v7218 = vsel %vm66, %v7103, 0.0
  %v7219 = vrot.slane %v7218, 4
  %v7220 = vadd.f32 %v7218, %v7219
  %v7221 = vrot.slane %v7220, 2
  %v7222 = vadd.f32 %v7220, %v7221
  %v7223 = vrot.slane %v7222, 1
  %v7224 = vadd.f32 %v7222, %v7223
  %v7225 = vsel %vm66, %v7106, 0.0
  %v7226 = vrot.slane %v7225, 4
  %v7227 = vadd.f32 %v7225, %v7226
  %v7228 = vrot.slane %v7227, 2
  %v7229 = vadd.f32 %v7227, %v7228
  %v7230 = vrot.slane %v7229, 1
  %v7231 = vadd.f32 %v7229, %v7230
  %v7232 = vsel %vm66, %v7109, 0.0
  %v7233 = vrot.slane %v7232, 4
  %v7234 = vadd.f32 %v7232, %v7233
  %v7235 = vrot.slane %v7234, 2
  %v7236 = vadd.f32 %v7234, %v7235
  %v7237 = vrot.slane %v7236, 1
  %v7238 = vadd.f32 %v7236, %v7237
  %v7239 = vsel %vm66, %v7112, 0.0
  %v7240 = vrot.slane %v7239, 4
  %v7241 = vadd.f32 %v7239, %v7240
  %v7242 = vrot.slane %v7241, 2
  %v7243 = vadd.f32 %v7241, %v7242
  %v7244 = vrot.slane %v7243, 1
  %v7245 = vadd.f32 %v7243, %v7244
  %v7246 = vsel %vm66, %v7115, 0.0
  %v7247 = vrot.slane %v7246, 4
  %v7248 = vadd.f32 %v7246, %v7247
  %v7249 = vrot.slane %v7248, 2
  %v7250 = vadd.f32 %v7248, %v7249
  %v7251 = vrot.slane %v7250, 1
  %v7252 = vadd.f32 %v7250, %v7251
  %v7253 = vsel %vm66, %v7118, 0.0
  %v7254 = vrot.slane %v7253, 4
  %v7255 = vadd.f32 %v7253, %v7254
  %v7256 = vrot.slane %v7255, 2
  %v7257 = vadd.f32 %v7255, %v7256
  %v7258 = vrot.slane %v7257, 1
  %v7259 = vadd.f32 %v7257, %v7258
  %v7260 = vsel %vm66, %v7121, 0.0
  %v7261 = vrot.slane %v7260, 4
  %v7262 = vadd.f32 %v7260, %v7261
  %v7263 = vrot.slane %v7262, 2
  %v7264 = vadd.f32 %v7262, %v7263
  %v7265 = vrot.slane %v7264, 1
  %v7266 = vadd.f32 %v7264, %v7265
  %v7267 = vsel %vm66, %v7124, 0.0
  %v7268 = vrot.slane %v7267, 4
  %v7269 = vadd.f32 %v7267, %v7268
  %v7270 = vrot.slane %v7269, 2
  %v7271 = vadd.f32 %v7269, %v7270
  %v7272 = vrot.slane %v7271, 1
  %v7273 = vadd.f32 %v7271, %v7272
  %v7274 = vsel %vm66, %v7127, 0.0
  %v7275 = vrot.slane %v7274, 4
  %v7276 = vadd.f32 %v7274, %v7275
  %v7277 = vrot.slane %v7276, 2
  %v7278 = vadd.f32 %v7276, %v7277
  %v7279 = vrot.slane %v7278, 1
  %v7280 = vadd.f32 %v7278, %v7279
  %v7281 = vsel %vm66, %v7130, 0.0
  %v7282 = vrot.slane %v7281, 4
  %v7283 = vadd.f32 %v7281, %v7282
  %v7284 = vrot.slane %v7283, 2
  %v7285 = vadd.f32 %v7283, %v7284
  %v7286 = vrot.slane %v7285, 1
  %v7287 = vadd.f32 %v7285, %v7286
  %v7288 = vsel %vm66, %v7133, 0.0
  %v7289 = vrot.slane %v7288, 4
  %v7290 = vadd.f32 %v7288, %v7289
  %v7291 = vrot.slane %v7290, 2
  %v7292 = vadd.f32 %v7290, %v7291
  %v7293 = vrot.slane %v7292, 1
  %v7294 = vadd.f32 %v7292, %v7293
  %v7295 = vsel %vm66, %v7136, 0.0
  %v7296 = vrot.slane %v7295, 4
  %v7297 = vadd.f32 %v7295, %v7296
  %v7298 = vrot.slane %v7297, 2
  %v7299 = vadd.f32 %v7297, %v7298
  %v7300 = vrot.slane %v7299, 1
  %v7301 = vadd.f32 %v7299, %v7300
  %v7302 = vsel %vm66, %v7139, 0.0
  %v7303 = vrot.slane %v7302, 4
  %v7304 = vadd.f32 %v7302, %v7303
  %v7305 = vrot.slane %v7304, 2
  %v7306 = vadd.f32 %v7304, %v7305
  %v7307 = vrot.slane %v7306, 1
  %v7308 = vadd.f32 %v7306, %v7307
  %v7309 = vsel %vm66, %v7142, 0.0
  %v7310 = vrot.slane %v7309, 4
  %v7311 = vadd.f32 %v7309, %v7310
  %v7312 = vrot.slane %v7311, 2
  %v7313 = vadd.f32 %v7311, %v7312
  %v7314 = vrot.slane %v7313, 1
  %v7315 = vadd.f32 %v7313, %v7314
  %v7316 = vsel %vm66, %v7145, 0.0
  %v7317 = vrot.slane %v7316, 4
  %v7318 = vadd.f32 %v7316, %v7317
  %v7319 = vrot.slane %v7318, 2
  %v7320 = vadd.f32 %v7318, %v7319
  %v7321 = vrot.slane %v7320, 1
  %v7322 = vadd.f32 %v7320, %v7321
  %v7323 = vsel %vm66, %v7148, 0.0
  %v7324 = vrot.slane %v7323, 4
  %v7325 = vadd.f32 %v7323, %v7324
  %v7326 = vrot.slane %v7325, 2
  %v7327 = vadd.f32 %v7325, %v7326
  %v7328 = vrot.slane %v7327, 1
  %v7329 = vadd.f32 %v7327, %v7328
  %v7330 = vsel %vm66, %v7151, 0.0
  %v7331 = vrot.slane %v7330, 4
  %v7332 = vadd.f32 %v7330, %v7331
  %v7333 = vrot.slane %v7332, 2
  %v7334 = vadd.f32 %v7332, %v7333
  %v7335 = vrot.slane %v7334, 1
  %v7336 = vadd.f32 %v7334, %v7335
  %v7337 = vsel %vm66, %v7154, 0.0
  %v7338 = vrot.slane %v7337, 4
  %v7339 = vadd.f32 %v7337, %v7338
  %v7340 = vrot.slane %v7339, 2
  %v7341 = vadd.f32 %v7339, %v7340
  %v7342 = vrot.slane %v7341, 1
  %v7343 = vadd.f32 %v7341, %v7342
  %v7344 = vsel %vm66, %v7157, 0.0
  %v7345 = vrot.slane %v7344, 4
  %v7346 = vadd.f32 %v7344, %v7345
  %v7347 = vrot.slane %v7346, 2
  %v7348 = vadd.f32 %v7346, %v7347
  %v7349 = vrot.slane %v7348, 1
  %v7350 = vadd.f32 %v7348, %v7349
  %v7351 = vsel %vm66, %v7160, 0.0
  %v7352 = vrot.slane %v7351, 4
  %v7353 = vadd.f32 %v7351, %v7352
  %v7354 = vrot.slane %v7353, 2
  %v7355 = vadd.f32 %v7353, %v7354
  %v7356 = vrot.slane %v7355, 1
  %v7357 = vadd.f32 %v7355, %v7356
  %v7358 = vsel %vm66, %v7163, 0.0
  %v7359 = vrot.slane %v7358, 4
  %v7360 = vadd.f32 %v7358, %v7359
  %v7361 = vrot.slane %v7360, 2
  %v7362 = vadd.f32 %v7360, %v7361
  %v7363 = vrot.slane %v7362, 1
  %v7364 = vadd.f32 %v7362, %v7363
  %v7365 = vsel %vm66, %v7166, 0.0
  %v7366 = vrot.slane %v7365, 4
  %v7367 = vadd.f32 %v7365, %v7366
  %v7368 = vrot.slane %v7367, 2
  %v7369 = vadd.f32 %v7367, %v7368
  %v7370 = vrot.slane %v7369, 1
  %v7371 = vadd.f32 %v7369, %v7370
  %v7372 = vsel %vm66, %v7169, 0.0
  %v7373 = vrot.slane %v7372, 4
  %v7374 = vadd.f32 %v7372, %v7373
  %v7375 = vrot.slane %v7374, 2
  %v7376 = vadd.f32 %v7374, %v7375
  %v7377 = vrot.slane %v7376, 1
  %v7378 = vadd.f32 %v7376, %v7377
  %v7379 = vsel %vm66, %v7172, 0.0
  %v7380 = vrot.slane %v7379, 4
  %v7381 = vadd.f32 %v7379, %v7380
  %v7382 = vrot.slane %v7381, 2
  %v7383 = vadd.f32 %v7381, %v7382
  %v7384 = vrot.slane %v7383, 1
  %v7385 = vadd.f32 %v7383, %v7384
  %v7386 = vsel %vm66, %v7175, 0.0
  %v7387 = vrot.slane %v7386, 4
  %v7388 = vadd.f32 %v7386, %v7387
  %v7389 = vrot.slane %v7388, 2
  %v7390 = vadd.f32 %v7388, %v7389
  %v7391 = vrot.slane %v7390, 1
  %v7392 = vadd.f32 %v7390, %v7391
  %v7393 = vsel %vm66, %v7178, 0.0
  %v7394 = vrot.slane %v7393, 4
  %v7395 = vadd.f32 %v7393, %v7394
  %v7396 = vrot.slane %v7395, 2
  %v7397 = vadd.f32 %v7395, %v7396
  %v7398 = vrot.slane %v7397, 1
  %v7399 = vadd.f32 %v7397, %v7398
  %v7400 = vsel %vm66, %v7181, 0.0
  %v7401 = vrot.slane %v7400, 4
  %v7402 = vadd.f32 %v7400, %v7401
  %v7403 = vrot.slane %v7402, 2
  %v7404 = vadd.f32 %v7402, %v7403
  %v7405 = vrot.slane %v7404, 1
  %v7406 = vadd.f32 %v7404, %v7405
  %v7407 = vmul.f32 %v7189, %v506
  %v7408 = vmul.f32 %v7196, %v506
  %v7409 = vmul.f32 %v7203, %v506
  %v7410 = vmul.f32 %v7210, %v506
  %v7411 = vmul.f32 %v7217, %v506
  %v7412 = vmul.f32 %v7224, %v506
  %v7413 = vmul.f32 %v7231, %v506
  %v7414 = vmul.f32 %v7238, %v506
  %v7415 = vmul.f32 %v7245, %v506
  %v7416 = vmul.f32 %v7252, %v506
  %v7417 = vmul.f32 %v7259, %v506
  %v7418 = vmul.f32 %v7266, %v506
  %v7419 = vmul.f32 %v7273, %v506
  %v7420 = vmul.f32 %v7280, %v506
  %v7421 = vmul.f32 %v7287, %v506
  %v7422 = vmul.f32 %v7294, %v506
  %v7423 = vmul.f32 %v7301, %v506
  %v7424 = vmul.f32 %v7308, %v506
  %v7425 = vmul.f32 %v7315, %v506
  %v7426 = vmul.f32 %v7322, %v506
  %v7427 = vmul.f32 %v7329, %v506
  %v7428 = vmul.f32 %v7336, %v506
  %v7429 = vmul.f32 %v7343, %v506
  %v7430 = vmul.f32 %v7350, %v506
  %v7431 = vmul.f32 %v7357, %v506
  %v7432 = vmul.f32 %v7364, %v506
  %v7433 = vmul.f32 %v7371, %v506
  %v7434 = vmul.f32 %v7378, %v506
  %v7435 = vmul.f32 %v7385, %v506
  %v7436 = vmul.f32 %v7392, %v506
  %v7437 = vmul.f32 %v7399, %v506
  %v7438 = vmul.f32 %v7406, %v506
  %v7439 = vmul.f32 %v7088, %v7088
  %v7440 = vmul.f32 %v7091, %v7091
  %v7441 = vmul.f32 %v7094, %v7094
  %v7442 = vmul.f32 %v7097, %v7097
  %v7443 = vmul.f32 %v7100, %v7100
  %v7444 = vmul.f32 %v7103, %v7103
  %v7445 = vmul.f32 %v7106, %v7106
  %v7446 = vmul.f32 %v7109, %v7109
  %v7447 = vmul.f32 %v7112, %v7112
  %v7448 = vmul.f32 %v7115, %v7115
  %v7449 = vmul.f32 %v7118, %v7118
  %v7450 = vmul.f32 %v7121, %v7121
  %v7451 = vmul.f32 %v7124, %v7124
  %v7452 = vmul.f32 %v7127, %v7127
  %v7453 = vmul.f32 %v7130, %v7130
  %v7454 = vmul.f32 %v7133, %v7133
  %v7455 = vmul.f32 %v7136, %v7136
  %v7456 = vmul.f32 %v7139, %v7139
  %v7457 = vmul.f32 %v7142, %v7142
  %v7458 = vmul.f32 %v7145, %v7145
  %v7459 = vmul.f32 %v7148, %v7148
  %v7460 = vmul.f32 %v7151, %v7151
  %v7461 = vmul.f32 %v7154, %v7154
  %v7462 = vmul.f32 %v7157, %v7157
  %v7463 = vmul.f32 %v7160, %v7160
  %v7464 = vmul.f32 %v7163, %v7163
  %v7465 = vmul.f32 %v7166, %v7166
  %v7466 = vmul.f32 %v7169, %v7169
  %v7467 = vmul.f32 %v7172, %v7172
  %v7468 = vmul.f32 %v7175, %v7175
  %v7469 = vmul.f32 %v7178, %v7178
  %v7470 = vmul.f32 %v7181, %v7181
  %v7471 = vsel %vm66, %v7439, 0.0
  %v7472 = vrot.slane %v7471, 4
  %v7473 = vadd.f32 %v7471, %v7472
  %v7474 = vrot.slane %v7473, 2
  %v7475 = vadd.f32 %v7473, %v7474
  %v7476 = vrot.slane %v7475, 1
  %v7477 = vadd.f32 %v7475, %v7476
  %v7478 = vsel %vm66, %v7440, 0.0
  %v7479 = vrot.slane %v7478, 4
  %v7480 = vadd.f32 %v7478, %v7479
  %v7481 = vrot.slane %v7480, 2
  %v7482 = vadd.f32 %v7480, %v7481
  %v7483 = vrot.slane %v7482, 1
  %v7484 = vadd.f32 %v7482, %v7483
  %v7485 = vsel %vm66, %v7441, 0.0
  %v7486 = vrot.slane %v7485, 4
  %v7487 = vadd.f32 %v7485, %v7486
  %v7488 = vrot.slane %v7487, 2
  %v7489 = vadd.f32 %v7487, %v7488
  %v7490 = vrot.slane %v7489, 1
  %v7491 = vadd.f32 %v7489, %v7490
  %v7492 = vsel %vm66, %v7442, 0.0
  %v7493 = vrot.slane %v7492, 4
  %v7494 = vadd.f32 %v7492, %v7493
  %v7495 = vrot.slane %v7494, 2
  %v7496 = vadd.f32 %v7494, %v7495
  %v7497 = vrot.slane %v7496, 1
  %v7498 = vadd.f32 %v7496, %v7497
  %v7499 = vsel %vm66, %v7443, 0.0
  %v7500 = vrot.slane %v7499, 4
  %v7501 = vadd.f32 %v7499, %v7500
  %v7502 = vrot.slane %v7501, 2
  %v7503 = vadd.f32 %v7501, %v7502
  %v7504 = vrot.slane %v7503, 1
  %v7505 = vadd.f32 %v7503, %v7504
  %v7506 = vsel %vm66, %v7444, 0.0
  %v7507 = vrot.slane %v7506, 4
  %v7508 = vadd.f32 %v7506, %v7507
  %v7509 = vrot.slane %v7508, 2
  %v7510 = vadd.f32 %v7508, %v7509
  %v7511 = vrot.slane %v7510, 1
  %v7512 = vadd.f32 %v7510, %v7511
  %v7513 = vsel %vm66, %v7445, 0.0
  %v7514 = vrot.slane %v7513, 4
  %v7515 = vadd.f32 %v7513, %v7514
  %v7516 = vrot.slane %v7515, 2
  %v7517 = vadd.f32 %v7515, %v7516
  %v7518 = vrot.slane %v7517, 1
  %v7519 = vadd.f32 %v7517, %v7518
  %v7520 = vsel %vm66, %v7446, 0.0
  %v7521 = vrot.slane %v7520, 4
  %v7522 = vadd.f32 %v7520, %v7521
  %v7523 = vrot.slane %v7522, 2
  %v7524 = vadd.f32 %v7522, %v7523
  %v7525 = vrot.slane %v7524, 1
  %v7526 = vadd.f32 %v7524, %v7525
  %v7527 = vsel %vm66, %v7447, 0.0
  %v7528 = vrot.slane %v7527, 4
  %v7529 = vadd.f32 %v7527, %v7528
  %v7530 = vrot.slane %v7529, 2
  %v7531 = vadd.f32 %v7529, %v7530
  %v7532 = vrot.slane %v7531, 1
  %v7533 = vadd.f32 %v7531, %v7532
  %v7534 = vsel %vm66, %v7448, 0.0
  %v7535 = vrot.slane %v7534, 4
  %v7536 = vadd.f32 %v7534, %v7535
  %v7537 = vrot.slane %v7536, 2
  %v7538 = vadd.f32 %v7536, %v7537
  %v7539 = vrot.slane %v7538, 1
  %v7540 = vadd.f32 %v7538, %v7539
  %v7541 = vsel %vm66, %v7449, 0.0
  %v7542 = vrot.slane %v7541, 4
  %v7543 = vadd.f32 %v7541, %v7542
  %v7544 = vrot.slane %v7543, 2
  %v7545 = vadd.f32 %v7543, %v7544
  %v7546 = vrot.slane %v7545, 1
  %v7547 = vadd.f32 %v7545, %v7546
  %v7548 = vsel %vm66, %v7450, 0.0
  %v7549 = vrot.slane %v7548, 4
  %v7550 = vadd.f32 %v7548, %v7549
  %v7551 = vrot.slane %v7550, 2
  %v7552 = vadd.f32 %v7550, %v7551
  %v7553 = vrot.slane %v7552, 1
  %v7554 = vadd.f32 %v7552, %v7553
  %v7555 = vsel %vm66, %v7451, 0.0
  %v7556 = vrot.slane %v7555, 4
  %v7557 = vadd.f32 %v7555, %v7556
  %v7558 = vrot.slane %v7557, 2
  %v7559 = vadd.f32 %v7557, %v7558
  %v7560 = vrot.slane %v7559, 1
  %v7561 = vadd.f32 %v7559, %v7560
  %v7562 = vsel %vm66, %v7452, 0.0
  %v7563 = vrot.slane %v7562, 4
  %v7564 = vadd.f32 %v7562, %v7563
  %v7565 = vrot.slane %v7564, 2
  %v7566 = vadd.f32 %v7564, %v7565
  %v7567 = vrot.slane %v7566, 1
  %v7568 = vadd.f32 %v7566, %v7567
  %v7569 = vsel %vm66, %v7453, 0.0
  %v7570 = vrot.slane %v7569, 4
  %v7571 = vadd.f32 %v7569, %v7570
  %v7572 = vrot.slane %v7571, 2
  %v7573 = vadd.f32 %v7571, %v7572
  %v7574 = vrot.slane %v7573, 1
  %v7575 = vadd.f32 %v7573, %v7574
  %v7576 = vsel %vm66, %v7454, 0.0
  %v7577 = vrot.slane %v7576, 4
  %v7578 = vadd.f32 %v7576, %v7577
  %v7579 = vrot.slane %v7578, 2
  %v7580 = vadd.f32 %v7578, %v7579
  %v7581 = vrot.slane %v7580, 1
  %v7582 = vadd.f32 %v7580, %v7581
  %v7583 = vsel %vm66, %v7455, 0.0
  %v7584 = vrot.slane %v7583, 4
  %v7585 = vadd.f32 %v7583, %v7584
  %v7586 = vrot.slane %v7585, 2
  %v7587 = vadd.f32 %v7585, %v7586
  %v7588 = vrot.slane %v7587, 1
  %v7589 = vadd.f32 %v7587, %v7588
  %v7590 = vsel %vm66, %v7456, 0.0
  %v7591 = vrot.slane %v7590, 4
  %v7592 = vadd.f32 %v7590, %v7591
  %v7593 = vrot.slane %v7592, 2
  %v7594 = vadd.f32 %v7592, %v7593
  %v7595 = vrot.slane %v7594, 1
  %v7596 = vadd.f32 %v7594, %v7595
  %v7597 = vsel %vm66, %v7457, 0.0
  %v7598 = vrot.slane %v7597, 4
  %v7599 = vadd.f32 %v7597, %v7598
  %v7600 = vrot.slane %v7599, 2
  %v7601 = vadd.f32 %v7599, %v7600
  %v7602 = vrot.slane %v7601, 1
  %v7603 = vadd.f32 %v7601, %v7602
  %v7604 = vsel %vm66, %v7458, 0.0
  %v7605 = vrot.slane %v7604, 4
  %v7606 = vadd.f32 %v7604, %v7605
  %v7607 = vrot.slane %v7606, 2
  %v7608 = vadd.f32 %v7606, %v7607
  %v7609 = vrot.slane %v7608, 1
  %v7610 = vadd.f32 %v7608, %v7609
  %v7611 = vsel %vm66, %v7459, 0.0
  %v7612 = vrot.slane %v7611, 4
  %v7613 = vadd.f32 %v7611, %v7612
  %v7614 = vrot.slane %v7613, 2
  %v7615 = vadd.f32 %v7613, %v7614
  %v7616 = vrot.slane %v7615, 1
  %v7617 = vadd.f32 %v7615, %v7616
  %v7618 = vsel %vm66, %v7460, 0.0
  %v7619 = vrot.slane %v7618, 4
  %v7620 = vadd.f32 %v7618, %v7619
  %v7621 = vrot.slane %v7620, 2
  %v7622 = vadd.f32 %v7620, %v7621
  %v7623 = vrot.slane %v7622, 1
  %v7624 = vadd.f32 %v7622, %v7623
  %v7625 = vsel %vm66, %v7461, 0.0
  %v7626 = vrot.slane %v7625, 4
  %v7627 = vadd.f32 %v7625, %v7626
  %v7628 = vrot.slane %v7627, 2
  %v7629 = vadd.f32 %v7627, %v7628
  %v7630 = vrot.slane %v7629, 1
  %v7631 = vadd.f32 %v7629, %v7630
  %v7632 = vsel %vm66, %v7462, 0.0
  %v7633 = vrot.slane %v7632, 4
  %v7634 = vadd.f32 %v7632, %v7633
  %v7635 = vrot.slane %v7634, 2
  %v7636 = vadd.f32 %v7634, %v7635
  %v7637 = vrot.slane %v7636, 1
  %v7638 = vadd.f32 %v7636, %v7637
  %v7639 = vsel %vm66, %v7463, 0.0
  %v7640 = vrot.slane %v7639, 4
  %v7641 = vadd.f32 %v7639, %v7640
  %v7642 = vrot.slane %v7641, 2
  %v7643 = vadd.f32 %v7641, %v7642
  %v7644 = vrot.slane %v7643, 1
  %v7645 = vadd.f32 %v7643, %v7644
  %v7646 = vsel %vm66, %v7464, 0.0
  %v7647 = vrot.slane %v7646, 4
  %v7648 = vadd.f32 %v7646, %v7647
  %v7649 = vrot.slane %v7648, 2
  %v7650 = vadd.f32 %v7648, %v7649
  %v7651 = vrot.slane %v7650, 1
  %v7652 = vadd.f32 %v7650, %v7651
  %v7653 = vsel %vm66, %v7465, 0.0
  %v7654 = vrot.slane %v7653, 4
  %v7655 = vadd.f32 %v7653, %v7654
  %v7656 = vrot.slane %v7655, 2
  %v7657 = vadd.f32 %v7655, %v7656
  %v7658 = vrot.slane %v7657, 1
  %v7659 = vadd.f32 %v7657, %v7658
  %v7660 = vsel %vm66, %v7466, 0.0
  %v7661 = vrot.slane %v7660, 4
  %v7662 = vadd.f32 %v7660, %v7661
  %v7663 = vrot.slane %v7662, 2
  %v7664 = vadd.f32 %v7662, %v7663
  %v7665 = vrot.slane %v7664, 1
  %v7666 = vadd.f32 %v7664, %v7665
  %v7667 = vsel %vm66, %v7467, 0.0
  %v7668 = vrot.slane %v7667, 4
  %v7669 = vadd.f32 %v7667, %v7668
  %v7670 = vrot.slane %v7669, 2
  %v7671 = vadd.f32 %v7669, %v7670
  %v7672 = vrot.slane %v7671, 1
  %v7673 = vadd.f32 %v7671, %v7672
  %v7674 = vsel %vm66, %v7468, 0.0
  %v7675 = vrot.slane %v7674, 4
  %v7676 = vadd.f32 %v7674, %v7675
  %v7677 = vrot.slane %v7676, 2
  %v7678 = vadd.f32 %v7676, %v7677
  %v7679 = vrot.slane %v7678, 1
  %v7680 = vadd.f32 %v7678, %v7679
  %v7681 = vsel %vm66, %v7469, 0.0
  %v7682 = vrot.slane %v7681, 4
  %v7683 = vadd.f32 %v7681, %v7682
  %v7684 = vrot.slane %v7683, 2
  %v7685 = vadd.f32 %v7683, %v7684
  %v7686 = vrot.slane %v7685, 1
  %v7687 = vadd.f32 %v7685, %v7686
  %v7688 = vsel %vm66, %v7470, 0.0
  %v7689 = vrot.slane %v7688, 4
  %v7690 = vadd.f32 %v7688, %v7689
  %v7691 = vrot.slane %v7690, 2
  %v7692 = vadd.f32 %v7690, %v7691
  %v7693 = vrot.slane %v7692, 1
  %v7694 = vadd.f32 %v7692, %v7693
  %v7695 = vmul.f32 %v7477, %v506
  %v7696 = vmul.f32 %v7484, %v506
  %v7697 = vmul.f32 %v7491, %v506
  %v7698 = vmul.f32 %v7498, %v506
  %v7699 = vmul.f32 %v7505, %v506
  %v7700 = vmul.f32 %v7512, %v506
  %v7701 = vmul.f32 %v7519, %v506
  %v7702 = vmul.f32 %v7526, %v506
  %v7703 = vmul.f32 %v7533, %v506
  %v7704 = vmul.f32 %v7540, %v506
  %v7705 = vmul.f32 %v7547, %v506
  %v7706 = vmul.f32 %v7554, %v506
  %v7707 = vmul.f32 %v7561, %v506
  %v7708 = vmul.f32 %v7568, %v506
  %v7709 = vmul.f32 %v7575, %v506
  %v7710 = vmul.f32 %v7582, %v506
  %v7711 = vmul.f32 %v7589, %v506
  %v7712 = vmul.f32 %v7596, %v506
  %v7713 = vmul.f32 %v7603, %v506
  %v7714 = vmul.f32 %v7610, %v506
  %v7715 = vmul.f32 %v7617, %v506
  %v7716 = vmul.f32 %v7624, %v506
  %v7717 = vmul.f32 %v7631, %v506
  %v7718 = vmul.f32 %v7638, %v506
  %v7719 = vmul.f32 %v7645, %v506
  %v7720 = vmul.f32 %v7652, %v506
  %v7721 = vmul.f32 %v7659, %v506
  %v7722 = vmul.f32 %v7666, %v506
  %v7723 = vmul.f32 %v7673, %v506
  %v7724 = vmul.f32 %v7680, %v506
  %v7725 = vmul.f32 %v7687, %v506
  %v7726 = vmul.f32 %v7694, %v506
  %v7727 = vmul.f32 %v7407, %v7407
  %v7728 = vmul.f32 %v7408, %v7408
  %v7729 = vmul.f32 %v7409, %v7409
  %v7730 = vmul.f32 %v7410, %v7410
  %v7731 = vmul.f32 %v7411, %v7411
  %v7732 = vmul.f32 %v7412, %v7412
  %v7733 = vmul.f32 %v7413, %v7413
  %v7734 = vmul.f32 %v7414, %v7414
  %v7735 = vmul.f32 %v7415, %v7415
  %v7736 = vmul.f32 %v7416, %v7416
  %v7737 = vmul.f32 %v7417, %v7417
  %v7738 = vmul.f32 %v7418, %v7418
  %v7739 = vmul.f32 %v7419, %v7419
  %v7740 = vmul.f32 %v7420, %v7420
  %v7741 = vmul.f32 %v7421, %v7421
  %v7742 = vmul.f32 %v7422, %v7422
  %v7743 = vmul.f32 %v7423, %v7423
  %v7744 = vmul.f32 %v7424, %v7424
  %v7745 = vmul.f32 %v7425, %v7425
  %v7746 = vmul.f32 %v7426, %v7426
  %v7747 = vmul.f32 %v7427, %v7427
  %v7748 = vmul.f32 %v7428, %v7428
  %v7749 = vmul.f32 %v7429, %v7429
  %v7750 = vmul.f32 %v7430, %v7430
  %v7751 = vmul.f32 %v7431, %v7431
  %v7752 = vmul.f32 %v7432, %v7432
  %v7753 = vmul.f32 %v7433, %v7433
  %v7754 = vmul.f32 %v7434, %v7434
  %v7755 = vmul.f32 %v7435, %v7435
  %v7756 = vmul.f32 %v7436, %v7436
  %v7757 = vmul.f32 %v7437, %v7437
  %v7758 = vmul.f32 %v7438, %v7438
  %v7759 = vsub.f32 %v7695, %v7727
  %v7760 = vsub.f32 %v7696, %v7728
  %v7761 = vsub.f32 %v7697, %v7729
  %v7762 = vsub.f32 %v7698, %v7730
  %v7763 = vsub.f32 %v7699, %v7731
  %v7764 = vsub.f32 %v7700, %v7732
  %v7765 = vsub.f32 %v7701, %v7733
  %v7766 = vsub.f32 %v7702, %v7734
  %v7767 = vsub.f32 %v7703, %v7735
  %v7768 = vsub.f32 %v7704, %v7736
  %v7769 = vsub.f32 %v7705, %v7737
  %v7770 = vsub.f32 %v7706, %v7738
  %v7771 = vsub.f32 %v7707, %v7739
  %v7772 = vsub.f32 %v7708, %v7740
  %v7773 = vsub.f32 %v7709, %v7741
  %v7774 = vsub.f32 %v7710, %v7742
  %v7775 = vsub.f32 %v7711, %v7743
  %v7776 = vsub.f32 %v7712, %v7744
  %v7777 = vsub.f32 %v7713, %v7745
  %v7778 = vsub.f32 %v7714, %v7746
  %v7779 = vsub.f32 %v7715, %v7747
  %v7780 = vsub.f32 %v7716, %v7748
  %v7781 = vsub.f32 %v7717, %v7749
  %v7782 = vsub.f32 %v7718, %v7750
  %v7783 = vsub.f32 %v7719, %v7751
  %v7784 = vsub.f32 %v7720, %v7752
  %v7785 = vsub.f32 %v7721, %v7753
  %v7786 = vsub.f32 %v7722, %v7754
  %v7787 = vsub.f32 %v7723, %v7755
  %v7788 = vsub.f32 %v7724, %v7756
  %v7789 = vsub.f32 %v7725, %v7757
  %v7790 = vsub.f32 %v7726, %v7758
  %v7791 = vadd.f32 %v7759, 1e-05
  %v7792 = vadd.f32 %v7760, 1e-05
  %v7793 = vadd.f32 %v7761, 1e-05
  %v7794 = vadd.f32 %v7762, 1e-05
  %v7795 = vadd.f32 %v7763, 1e-05
  %v7796 = vadd.f32 %v7764, 1e-05
  %v7797 = vadd.f32 %v7765, 1e-05
  %v7798 = vadd.f32 %v7766, 1e-05
  %v7799 = vadd.f32 %v7767, 1e-05
  %v7800 = vadd.f32 %v7768, 1e-05
  %v7801 = vadd.f32 %v7769, 1e-05
  %v7802 = vadd.f32 %v7770, 1e-05
  %v7803 = vadd.f32 %v7771, 1e-05
  %v7804 = vadd.f32 %v7772, 1e-05
  %v7805 = vadd.f32 %v7773, 1e-05
  %v7806 = vadd.f32 %v7774, 1e-05
  %v7807 = vadd.f32 %v7775, 1e-05
  %v7808 = vadd.f32 %v7776, 1e-05
  %v7809 = vadd.f32 %v7777, 1e-05
  %v7810 = vadd.f32 %v7778, 1e-05
  %v7811 = vadd.f32 %v7779, 1e-05
  %v7812 = vadd.f32 %v7780, 1e-05
  %v7813 = vadd.f32 %v7781, 1e-05
  %v7814 = vadd.f32 %v7782, 1e-05
  %v7815 = vadd.f32 %v7783, 1e-05
  %v7816 = vadd.f32 %v7784, 1e-05
  %v7817 = vadd.f32 %v7785, 1e-05
  %v7818 = vadd.f32 %v7786, 1e-05
  %v7819 = vadd.f32 %v7787, 1e-05
  %v7820 = vadd.f32 %v7788, 1e-05
  %v7821 = vadd.f32 %v7789, 1e-05
  %v7822 = vadd.f32 %v7790, 1e-05
  %v7823 = vrsqrt.pop %v7791
  %v7824 = vmul.f32 %v7823, %v7791
  %v7825 = vmul.f32 %v7824, %v7823
  %v7826 = vmul.f32 0.5, %v7825
  %v7827 = vsub.f32 1.5, %v7826
  %v7828 = vmul.f32 %v7823, %v7827
  %vm7829 = vweird.f32 %v7791
  %vm7830 = vweird.f32 %v7823
  %vm7831 = vmor %vm7829, %vm7830
  %v7832 = vsel %vm7831, %v7823, %v7828
  %v7833 = vrsqrt.pop %v7792
  %v7834 = vmul.f32 %v7833, %v7792
  %v7835 = vmul.f32 %v7834, %v7833
  %v7836 = vmul.f32 0.5, %v7835
  %v7837 = vsub.f32 1.5, %v7836
  %v7838 = vmul.f32 %v7833, %v7837
  %vm7839 = vweird.f32 %v7792
  %vm7840 = vweird.f32 %v7833
  %vm7841 = vmor %vm7839, %vm7840
  %v7842 = vsel %vm7841, %v7833, %v7838
  %v7843 = vrsqrt.pop %v7793
  %v7844 = vmul.f32 %v7843, %v7793
  %v7845 = vmul.f32 %v7844, %v7843
  %v7846 = vmul.f32 0.5, %v7845
  %v7847 = vsub.f32 1.5, %v7846
  %v7848 = vmul.f32 %v7843, %v7847
  %vm7849 = vweird.f32 %v7793
  %vm7850 = vweird.f32 %v7843
  %vm7851 = vmor %vm7849, %vm7850
  %v7852 = vsel %vm7851, %v7843, %v7848
  %v7853 = vrsqrt.pop %v7794
  %v7854 = vmul.f32 %v7853, %v7794
  %v7855 = vmul.f32 %v7854, %v7853
  %v7856 = vmul.f32 0.5, %v7855
  %v7857 = vsub.f32 1.5, %v7856
  %v7858 = vmul.f32 %v7853, %v7857
  %vm7859 = vweird.f32 %v7794
  %vm7860 = vweird.f32 %v7853
  %vm7861 = vmor %vm7859, %vm7860
  %v7862 = vsel %vm7861, %v7853, %v7858
  %v7863 = vrsqrt.pop %v7795
  %v7864 = vmul.f32 %v7863, %v7795
  %v7865 = vmul.f32 %v7864, %v7863
  %v7866 = vmul.f32 0.5, %v7865
  %v7867 = vsub.f32 1.5, %v7866
  %v7868 = vmul.f32 %v7863, %v7867
  %vm7869 = vweird.f32 %v7795
  %vm7870 = vweird.f32 %v7863
  %vm7871 = vmor %vm7869, %vm7870
  %v7872 = vsel %vm7871, %v7863, %v7868
  %v7873 = vrsqrt.pop %v7796
  %v7874 = vmul.f32 %v7873, %v7796
  %v7875 = vmul.f32 %v7874, %v7873
  %v7876 = vmul.f32 0.5, %v7875
  %v7877 = vsub.f32 1.5, %v7876
  %v7878 = vmul.f32 %v7873, %v7877
  %vm7879 = vweird.f32 %v7796
  %vm7880 = vweird.f32 %v7873
  %vm7881 = vmor %vm7879, %vm7880
  %v7882 = vsel %vm7881, %v7873, %v7878
  %v7883 = vrsqrt.pop %v7797
  %v7884 = vmul.f32 %v7883, %v7797
  %v7885 = vmul.f32 %v7884, %v7883
  %v7886 = vmul.f32 0.5, %v7885
  %v7887 = vsub.f32 1.5, %v7886
  %v7888 = vmul.f32 %v7883, %v7887
  %vm7889 = vweird.f32 %v7797
  %vm7890 = vweird.f32 %v7883
  %vm7891 = vmor %vm7889, %vm7890
  %v7892 = vsel %vm7891, %v7883, %v7888
  %v7893 = vrsqrt.pop %v7798
  %v7894 = vmul.f32 %v7893, %v7798
  %v7895 = vmul.f32 %v7894, %v7893
  %v7896 = vmul.f32 0.5, %v7895
  %v7897 = vsub.f32 1.5, %v7896
  %v7898 = vmul.f32 %v7893, %v7897
  %vm7899 = vweird.f32 %v7798
  %vm7900 = vweird.f32 %v7893
  %vm7901 = vmor %vm7899, %vm7900
  %v7902 = vsel %vm7901, %v7893, %v7898
  %v7903 = vrsqrt.pop %v7799
  %v7904 = vmul.f32 %v7903, %v7799
  %v7905 = vmul.f32 %v7904, %v7903
  %v7906 = vmul.f32 0.5, %v7905
  %v7907 = vsub.f32 1.5, %v7906
  %v7908 = vmul.f32 %v7903, %v7907
  %vm7909 = vweird.f32 %v7799
  %vm7910 = vweird.f32 %v7903
  %vm7911 = vmor %vm7909, %vm7910
  %v7912 = vsel %vm7911, %v7903, %v7908
  %v7913 = vrsqrt.pop %v7800
  %v7914 = vmul.f32 %v7913, %v7800
  %v7915 = vmul.f32 %v7914, %v7913
  %v7916 = vmul.f32 0.5, %v7915
  %v7917 = vsub.f32 1.5, %v7916
  %v7918 = vmul.f32 %v7913, %v7917
  %vm7919 = vweird.f32 %v7800
  %vm7920 = vweird.f32 %v7913
  %vm7921 = vmor %vm7919, %vm7920
  %v7922 = vsel %vm7921, %v7913, %v7918
  %v7923 = vrsqrt.pop %v7801
  %v7924 = vmul.f32 %v7923, %v7801
  %v7925 = vmul.f32 %v7924, %v7923
  %v7926 = vmul.f32 0.5, %v7925
  %v7927 = vsub.f32 1.5, %v7926
  %v7928 = vmul.f32 %v7923, %v7927
  %vm7929 = vweird.f32 %v7801
  %vm7930 = vweird.f32 %v7923
  %vm7931 = vmor %vm7929, %vm7930
  %v7932 = vsel %vm7931, %v7923, %v7928
  %v7933 = vrsqrt.pop %v7802
  %v7934 = vmul.f32 %v7933, %v7802
  %v7935 = vmul.f32 %v7934, %v7933
  %v7936 = vmul.f32 0.5, %v7935
  %v7937 = vsub.f32 1.5, %v7936
  %v7938 = vmul.f32 %v7933, %v7937
  %vm7939 = vweird.f32 %v7802
  %vm7940 = vweird.f32 %v7933
  %vm7941 = vmor %vm7939, %vm7940
  %v7942 = vsel %vm7941, %v7933, %v7938
  %v7943 = vrsqrt.pop %v7803
  %v7944 = vmul.f32 %v7943, %v7803
  %v7945 = vmul.f32 %v7944, %v7943
  %v7946 = vmul.f32 0.5, %v7945
  %v7947 = vsub.f32 1.5, %v7946
  %v7948 = vmul.f32 %v7943, %v7947
  %vm7949 = vweird.f32 %v7803
  %vm7950 = vweird.f32 %v7943
  %vm7951 = vmor %vm7949, %vm7950
  %v7952 = vsel %vm7951, %v7943, %v7948
  %v7953 = vrsqrt.pop %v7804
  %v7954 = vmul.f32 %v7953, %v7804
  %v7955 = vmul.f32 %v7954, %v7953
  %v7956 = vmul.f32 0.5, %v7955
  %v7957 = vsub.f32 1.5, %v7956
  %v7958 = vmul.f32 %v7953, %v7957
  %vm7959 = vweird.f32 %v7804
  %vm7960 = vweird.f32 %v7953
  %vm7961 = vmor %vm7959, %vm7960
  %v7962 = vsel %vm7961, %v7953, %v7958
  %v7963 = vrsqrt.pop %v7805
  %v7964 = vmul.f32 %v7963, %v7805
  %v7965 = vmul.f32 %v7964, %v7963
  %v7966 = vmul.f32 0.5, %v7965
  %v7967 = vsub.f32 1.5, %v7966
  %v7968 = vmul.f32 %v7963, %v7967
  %vm7969 = vweird.f32 %v7805
  %vm7970 = vweird.f32 %v7963
  %vm7971 = vmor %vm7969, %vm7970
  %v7972 = vsel %vm7971, %v7963, %v7968
  %v7973 = vrsqrt.pop %v7806
  %v7974 = vmul.f32 %v7973, %v7806
  %v7975 = vmul.f32 %v7974, %v7973
  %v7976 = vmul.f32 0.5, %v7975
  %v7977 = vsub.f32 1.5, %v7976
  %v7978 = vmul.f32 %v7973, %v7977
  %vm7979 = vweird.f32 %v7806
  %vm7980 = vweird.f32 %v7973
  %vm7981 = vmor %vm7979, %vm7980
  %v7982 = vsel %vm7981, %v7973, %v7978
  %v7983 = vrsqrt.pop %v7807
  %v7984 = vmul.f32 %v7983, %v7807
  %v7985 = vmul.f32 %v7984, %v7983
  %v7986 = vmul.f32 0.5, %v7985
  %v7987 = vsub.f32 1.5, %v7986
  %v7988 = vmul.f32 %v7983, %v7987
  %vm7989 = vweird.f32 %v7807
  %vm7990 = vweird.f32 %v7983
  %vm7991 = vmor %vm7989, %vm7990
  %v7992 = vsel %vm7991, %v7983, %v7988
  %v7993 = vrsqrt.pop %v7808
  %v7994 = vmul.f32 %v7993, %v7808
  %v7995 = vmul.f32 %v7994, %v7993
  %v7996 = vmul.f32 0.5, %v7995
  %v7997 = vsub.f32 1.5, %v7996
  %v7998 = vmul.f32 %v7993, %v7997
  %vm7999 = vweird.f32 %v7808
  %vm8000 = vweird.f32 %v7993
  %vm8001 = vmor %vm7999, %vm8000
  %v8002 = vsel %vm8001, %v7993, %v7998
  %v8003 = vrsqrt.pop %v7809
  %v8004 = vmul.f32 %v8003, %v7809
  %v8005 = vmul.f32 %v8004, %v8003
  %v8006 = vmul.f32 0.5, %v8005
  %v8007 = vsub.f32 1.5, %v8006
  %v8008 = vmul.f32 %v8003, %v8007
  %vm8009 = vweird.f32 %v7809
  %vm8010 = vweird.f32 %v8003
  %vm8011 = vmor %vm8009, %vm8010
  %v8012 = vsel %vm8011, %v8003, %v8008
  %v8013 = vrsqrt.pop %v7810
  %v8014 = vmul.f32 %v8013, %v7810
  %v8015 = vmul.f32 %v8014, %v8013
  %v8016 = vmul.f32 0.5, %v8015
  %v8017 = vsub.f32 1.5, %v8016
  %v8018 = vmul.f32 %v8013, %v8017
  %vm8019 = vweird.f32 %v7810
  %vm8020 = vweird.f32 %v8013
  %vm8021 = vmor %vm8019, %vm8020
  %v8022 = vsel %vm8021, %v8013, %v8018
  %v8023 = vrsqrt.pop %v7811
  %v8024 = vmul.f32 %v8023, %v7811
  %v8025 = vmul.f32 %v8024, %v8023
  %v8026 = vmul.f32 0.5, %v8025
  %v8027 = vsub.f32 1.5, %v8026
  %v8028 = vmul.f32 %v8023, %v8027
  %vm8029 = vweird.f32 %v7811
  %vm8030 = vweird.f32 %v8023
  %vm8031 = vmor %vm8029, %vm8030
  %v8032 = vsel %vm8031, %v8023, %v8028
  %v8033 = vrsqrt.pop %v7812
  %v8034 = vmul.f32 %v8033, %v7812
  %v8035 = vmul.f32 %v8034, %v8033
  %v8036 = vmul.f32 0.5, %v8035
  %v8037 = vsub.f32 1.5, %v8036
  %v8038 = vmul.f32 %v8033, %v8037
  %vm8039 = vweird.f32 %v7812
  %vm8040 = vweird.f32 %v8033
  %vm8041 = vmor %vm8039, %vm8040
  %v8042 = vsel %vm8041, %v8033, %v8038
  %v8043 = vrsqrt.pop %v7813
  %v8044 = vmul.f32 %v8043, %v7813
  %v8045 = vmul.f32 %v8044, %v8043
  %v8046 = vmul.f32 0.5, %v8045
  %v8047 = vsub.f32 1.5, %v8046
  %v8048 = vmul.f32 %v8043, %v8047
  %vm8049 = vweird.f32 %v7813
  %vm8050 = vweird.f32 %v8043
  %vm8051 = vmor %vm8049, %vm8050
  %v8052 = vsel %vm8051, %v8043, %v8048
  %v8053 = vrsqrt.pop %v7814
  %v8054 = vmul.f32 %v8053, %v7814
  %v8055 = vmul.f32 %v8054, %v8053
  %v8056 = vmul.f32 0.5, %v8055
  %v8057 = vsub.f32 1.5, %v8056
  %v8058 = vmul.f32 %v8053, %v8057
  %vm8059 = vweird.f32 %v7814
  %vm8060 = vweird.f32 %v8053
  %vm8061 = vmor %vm8059, %vm8060
  %v8062 = vsel %vm8061, %v8053, %v8058
  %v8063 = vrsqrt.pop %v7815
  %v8064 = vmul.f32 %v8063, %v7815
  %v8065 = vmul.f32 %v8064, %v8063
  %v8066 = vmul.f32 0.5, %v8065
  %v8067 = vsub.f32 1.5, %v8066
  %v8068 = vmul.f32 %v8063, %v8067
  %vm8069 = vweird.f32 %v7815
  %vm8070 = vweird.f32 %v8063
  %vm8071 = vmor %vm8069, %vm8070
  %v8072 = vsel %vm8071, %v8063, %v8068
  %v8073 = vrsqrt.pop %v7816
  %v8074 = vmul.f32 %v8073, %v7816
  %v8075 = vmul.f32 %v8074, %v8073
  %v8076 = vmul.f32 0.5, %v8075
  %v8077 = vsub.f32 1.5, %v8076
  %v8078 = vmul.f32 %v8073, %v8077
  %vm8079 = vweird.f32 %v7816
  %vm8080 = vweird.f32 %v8073
  %vm8081 = vmor %vm8079, %vm8080
  %v8082 = vsel %vm8081, %v8073, %v8078
  %v8083 = vrsqrt.pop %v7817
  %v8084 = vmul.f32 %v8083, %v7817
  %v8085 = vmul.f32 %v8084, %v8083
  %v8086 = vmul.f32 0.5, %v8085
  %v8087 = vsub.f32 1.5, %v8086
  %v8088 = vmul.f32 %v8083, %v8087
  %vm8089 = vweird.f32 %v7817
  %vm8090 = vweird.f32 %v8083
  %vm8091 = vmor %vm8089, %vm8090
  %v8092 = vsel %vm8091, %v8083, %v8088
  %v8093 = vrsqrt.pop %v7818
  %v8094 = vmul.f32 %v8093, %v7818
  %v8095 = vmul.f32 %v8094, %v8093
  %v8096 = vmul.f32 0.5, %v8095
  %v8097 = vsub.f32 1.5, %v8096
  %v8098 = vmul.f32 %v8093, %v8097
  %vm8099 = vweird.f32 %v7818
  %vm8100 = vweird.f32 %v8093
  %vm8101 = vmor %vm8099, %vm8100
  %v8102 = vsel %vm8101, %v8093, %v8098
  %v8103 = vrsqrt.pop %v7819
  %v8104 = vmul.f32 %v8103, %v7819
  %v8105 = vmul.f32 %v8104, %v8103
  %v8106 = vmul.f32 0.5, %v8105
  %v8107 = vsub.f32 1.5, %v8106
  %v8108 = vmul.f32 %v8103, %v8107
  %vm8109 = vweird.f32 %v7819
  %vm8110 = vweird.f32 %v8103
  %vm8111 = vmor %vm8109, %vm8110
  %v8112 = vsel %vm8111, %v8103, %v8108
  %v8113 = vrsqrt.pop %v7820
  %v8114 = vmul.f32 %v8113, %v7820
  %v8115 = vmul.f32 %v8114, %v8113
  %v8116 = vmul.f32 0.5, %v8115
  %v8117 = vsub.f32 1.5, %v8116
  %v8118 = vmul.f32 %v8113, %v8117
  %vm8119 = vweird.f32 %v7820
  %vm8120 = vweird.f32 %v8113
  %vm8121 = vmor %vm8119, %vm8120
  %v8122 = vsel %vm8121, %v8113, %v8118
  %v8123 = vrsqrt.pop %v7821
  %v8124 = vmul.f32 %v8123, %v7821
  %v8125 = vmul.f32 %v8124, %v8123
  %v8126 = vmul.f32 0.5, %v8125
  %v8127 = vsub.f32 1.5, %v8126
  %v8128 = vmul.f32 %v8123, %v8127
  %vm8129 = vweird.f32 %v7821
  %vm8130 = vweird.f32 %v8123
  %vm8131 = vmor %vm8129, %vm8130
  %v8132 = vsel %vm8131, %v8123, %v8128
  %v8133 = vrsqrt.pop %v7822
  %v8134 = vmul.f32 %v8133, %v7822
  %v8135 = vmul.f32 %v8134, %v8133
  %v8136 = vmul.f32 0.5, %v8135
  %v8137 = vsub.f32 1.5, %v8136
  %v8138 = vmul.f32 %v8133, %v8137
  %vm8139 = vweird.f32 %v7822
  %vm8140 = vweird.f32 %v8133
  %vm8141 = vmor %vm8139, %vm8140
  %v8142 = vsel %vm8141, %v8133, %v8138
  %v8143 = vmul.f32 %v33, %v7832
  %v8144 = vmul.f32 %v33, %v7842
  %v8145 = vmul.f32 %v33, %v7852
  %v8146 = vmul.f32 %v33, %v7862
  %v8147 = vmul.f32 %v33, %v7872
  %v8148 = vmul.f32 %v33, %v7882
  %v8149 = vmul.f32 %v33, %v7892
  %v8150 = vmul.f32 %v33, %v7902
  %v8151 = vmul.f32 %v33, %v7912
  %v8152 = vmul.f32 %v33, %v7922
  %v8153 = vmul.f32 %v33, %v7932
  %v8154 = vmul.f32 %v33, %v7942
  %v8155 = vmul.f32 %v33, %v7952
  %v8156 = vmul.f32 %v33, %v7962
  %v8157 = vmul.f32 %v33, %v7972
  %v8158 = vmul.f32 %v33, %v7982
  %v8159 = vmul.f32 %v33, %v7992
  %v8160 = vmul.f32 %v33, %v8002
  %v8161 = vmul.f32 %v33, %v8012
  %v8162 = vmul.f32 %v33, %v8022
  %v8163 = vmul.f32 %v33, %v8032
  %v8164 = vmul.f32 %v33, %v8042
  %v8165 = vmul.f32 %v33, %v8052
  %v8166 = vmul.f32 %v33, %v8062
  %v8167 = vmul.f32 %v33, %v8072
  %v8168 = vmul.f32 %v33, %v8082
  %v8169 = vmul.f32 %v33, %v8092
  %v8170 = vmul.f32 %v33, %v8102
  %v8171 = vmul.f32 %v33, %v8112
  %v8172 = vmul.f32 %v33, %v8122
  %v8173 = vmul.f32 %v33, %v8132
  %v8174 = vmul.f32 %v33, %v8142
  %v8175 = vmul.f32 %v7407, %v8143
  %v8176 = vmul.f32 %v7408, %v8144
  %v8177 = vmul.f32 %v7409, %v8145
  %v8178 = vmul.f32 %v7410, %v8146
  %v8179 = vmul.f32 %v7411, %v8147
  %v8180 = vmul.f32 %v7412, %v8148
  %v8181 = vmul.f32 %v7413, %v8149
  %v8182 = vmul.f32 %v7414, %v8150
  %v8183 = vmul.f32 %v7415, %v8151
  %v8184 = vmul.f32 %v7416, %v8152
  %v8185 = vmul.f32 %v7417, %v8153
  %v8186 = vmul.f32 %v7418, %v8154
  %v8187 = vmul.f32 %v7419, %v8155
  %v8188 = vmul.f32 %v7420, %v8156
  %v8189 = vmul.f32 %v7421, %v8157
  %v8190 = vmul.f32 %v7422, %v8158
  %v8191 = vmul.f32 %v7423, %v8159
  %v8192 = vmul.f32 %v7424, %v8160
  %v8193 = vmul.f32 %v7425, %v8161
  %v8194 = vmul.f32 %v7426, %v8162
  %v8195 = vmul.f32 %v7427, %v8163
  %v8196 = vmul.f32 %v7428, %v8164
  %v8197 = vmul.f32 %v7429, %v8165
  %v8198 = vmul.f32 %v7430, %v8166
  %v8199 = vmul.f32 %v7431, %v8167
  %v8200 = vmul.f32 %v7432, %v8168
  %v8201 = vmul.f32 %v7433, %v8169
  %v8202 = vmul.f32 %v7434, %v8170
  %v8203 = vmul.f32 %v7435, %v8171
  %v8204 = vmul.f32 %v7436, %v8172
  %v8205 = vmul.f32 %v7437, %v8173
  %v8206 = vmul.f32 %v7438, %v8174
  %v8239 = vrot.slane %v8175, 7
  %v8240 = vrot.slane %v8176, 7
  %v8241 = vrot.slane %v8177, 7
  %v8242 = vrot.slane %v8178, 7
  %v8243 = vrot.slane %v8179, 7
  %v8244 = vrot.slane %v8180, 7
  %v8245 = vrot.slane %v8181, 7
  %v8246 = vrot.slane %v8182, 7
  %v8247 = vrot.slane %v8183, 7
  %v8248 = vrot.slane %v8184, 7
  %v8249 = vrot.slane %v8185, 7
  %v8250 = vrot.slane %v8186, 7
  %v8251 = vrot.slane %v8187, 7
  %v8252 = vrot.slane %v8188, 7
  %v8253 = vrot.slane %v8189, 7
  %v8254 = vrot.slane %v8190, 7
  %v8255 = vrot.slane %v8191, 7
  %v8256 = vrot.slane %v8192, 7
  %v8257 = vrot.slane %v8193, 7
  %v8258 = vrot.slane %v8194, 7
  %v8259 = vrot.slane %v8195, 7
  %v8260 = vrot.slane %v8196, 7
  %v8261 = vrot.slane %v8197, 7
  %v8262 = vrot.slane %v8198, 7
  %v8263 = vrot.slane %v8199, 7
  %v8264 = vrot.slane %v8200, 7
  %v8265 = vrot.slane %v8201, 7
  %v8266 = vrot.slane %v8202, 7
  %v8267 = vrot.slane %v8203, 7
  %v8268 = vrot.slane %v8204, 7
  %v8269 = vrot.slane %v8205, 7
  %v8270 = vrot.slane %v8206, 7
  %v8303 = vsub.f32 %v33, %v8239
  %v8304 = vsub.f32 %v33, %v8240
  %v8305 = vsub.f32 %v33, %v8241
  %v8306 = vsub.f32 %v33, %v8242
  %v8307 = vsub.f32 %v33, %v8243
  %v8308 = vsub.f32 %v33, %v8244
  %v8309 = vsub.f32 %v33, %v8245
  %v8310 = vsub.f32 %v33, %v8246
  %v8311 = vsub.f32 %v33, %v8247
  %v8312 = vsub.f32 %v33, %v8248
  %v8313 = vsub.f32 %v33, %v8249
  %v8314 = vsub.f32 %v33, %v8250
  %v8315 = vsub.f32 %v33, %v8251
  %v8316 = vsub.f32 %v33, %v8252
  %v8317 = vsub.f32 %v33, %v8253
  %v8318 = vsub.f32 %v33, %v8254
  %v8319 = vsub.f32 %v33, %v8255
  %v8320 = vsub.f32 %v33, %v8256
  %v8321 = vsub.f32 %v33, %v8257
  %v8322 = vsub.f32 %v33, %v8258
  %v8323 = vsub.f32 %v33, %v8259
  %v8324 = vsub.f32 %v33, %v8260
  %v8325 = vsub.f32 %v33, %v8261
  %v8326 = vsub.f32 %v33, %v8262
  %v8327 = vsub.f32 %v33, %v8263
  %v8328 = vsub.f32 %v33, %v8264
  %v8329 = vsub.f32 %v33, %v8265
  %v8330 = vsub.f32 %v33, %v8266
  %v8331 = vsub.f32 %v33, %v8267
  %v8332 = vsub.f32 %v33, %v8268
  %v8333 = vsub.f32 %v33, %v8269
  %v8334 = vsub.f32 %v33, %v8270
  %v8335 = vperm.slane %v8143, 6
  %v8336 = vperm.slane %v8144, 6
  %v8337 = vperm.slane %v8145, 6
  %v8338 = vperm.slane %v8146, 6
  %v8339 = vperm.slane %v8147, 6
  %v8340 = vperm.slane %v8148, 6
  %v8341 = vperm.slane %v8149, 6
  %v8342 = vperm.slane %v8150, 6
  %v8343 = vperm.slane %v8151, 6
  %v8344 = vperm.slane %v8152, 6
  %v8345 = vperm.slane %v8153, 6
  %v8346 = vperm.slane %v8154, 6
  %v8347 = vperm.slane %v8155, 6
  %v8348 = vperm.slane %v8156, 6
  %v8349 = vperm.slane %v8157, 6
  %v8350 = vperm.slane %v8158, 6
  %v8351 = vperm.slane %v8159, 6
  %v8352 = vperm.slane %v8160, 6
  %v8353 = vperm.slane %v8161, 6
  %v8354 = vperm.slane %v8162, 6
  %v8355 = vperm.slane %v8163, 6
  %v8356 = vperm.slane %v8164, 6
  %v8357 = vperm.slane %v8165, 6
  %v8358 = vperm.slane %v8166, 6
  %v8359 = vperm.slane %v8167, 6
  %v8360 = vperm.slane %v8168, 6
  %v8361 = vperm.slane %v8169, 6
  %v8362 = vperm.slane %v8170, 6
  %v8363 = vperm.slane %v8171, 6
  %v8364 = vperm.slane %v8172, 6
  %v8365 = vperm.slane %v8173, 6
  %v8366 = vperm.slane %v8174, 6
  %v8367 = vmul.f32 %v7088, %v8335
  %v8368 = vmul.f32 %v7091, %v8336
  %v8369 = vmul.f32 %v7094, %v8337
  %v8370 = vmul.f32 %v7097, %v8338
  %v8371 = vmul.f32 %v7100, %v8339
  %v8372 = vmul.f32 %v7103, %v8340
  %v8373 = vmul.f32 %v7106, %v8341
  %v8374 = vmul.f32 %v7109, %v8342
  %v8375 = vmul.f32 %v7112, %v8343
  %v8376 = vmul.f32 %v7115, %v8344
  %v8377 = vmul.f32 %v7118, %v8345
  %v8378 = vmul.f32 %v7121, %v8346
  %v8379 = vmul.f32 %v7124, %v8347
  %v8380 = vmul.f32 %v7127, %v8348
  %v8381 = vmul.f32 %v7130, %v8349
  %v8382 = vmul.f32 %v7133, %v8350
  %v8383 = vmul.f32 %v7136, %v8351
  %v8384 = vmul.f32 %v7139, %v8352
  %v8385 = vmul.f32 %v7142, %v8353
  %v8386 = vmul.f32 %v7145, %v8354
  %v8387 = vmul.f32 %v7148, %v8355
  %v8388 = vmul.f32 %v7151, %v8356
  %v8389 = vmul.f32 %v7154, %v8357
  %v8390 = vmul.f32 %v7157, %v8358
  %v8391 = vmul.f32 %v7160, %v8359
  %v8392 = vmul.f32 %v7163, %v8360
  %v8393 = vmul.f32 %v7166, %v8361
  %v8394 = vmul.f32 %v7169, %v8362
  %v8395 = vmul.f32 %v7172, %v8363
  %v8396 = vmul.f32 %v7175, %v8364
  %v8397 = vmul.f32 %v7178, %v8365
  %v8398 = vmul.f32 %v7181, %v8366
  %v8399 = vperm.slane %v8303, 7
  %v8400 = vperm.slane %v8304, 7
  %v8401 = vperm.slane %v8305, 7
  %v8402 = vperm.slane %v8306, 7
  %v8403 = vperm.slane %v8307, 7
  %v8404 = vperm.slane %v8308, 7
  %v8405 = vperm.slane %v8309, 7
  %v8406 = vperm.slane %v8310, 7
  %v8407 = vperm.slane %v8311, 7
  %v8408 = vperm.slane %v8312, 7
  %v8409 = vperm.slane %v8313, 7
  %v8410 = vperm.slane %v8314, 7
  %v8411 = vperm.slane %v8315, 7
  %v8412 = vperm.slane %v8316, 7
  %v8413 = vperm.slane %v8317, 7
  %v8414 = vperm.slane %v8318, 7
  %v8415 = vperm.slane %v8319, 7
  %v8416 = vperm.slane %v8320, 7
  %v8417 = vperm.slane %v8321, 7
  %v8418 = vperm.slane %v8322, 7
  %v8419 = vperm.slane %v8323, 7
  %v8420 = vperm.slane %v8324, 7
  %v8421 = vperm.slane %v8325, 7
  %v8422 = vperm.slane %v8326, 7
  %v8423 = vperm.slane %v8327, 7
  %v8424 = vperm.slane %v8328, 7
  %v8425 = vperm.slane %v8329, 7
  %v8426 = vperm.slane %v8330, 7
  %v8427 = vperm.slane %v8331, 7
  %v8428 = vperm.slane %v8332, 7
  %v8429 = vperm.slane %v8333, 7
  %v8430 = vperm.slane %v8334, 7
  %v8431 = vadd.f32 %v8367, %v8399
  %v8432 = vadd.f32 %v8368, %v8400
  %v8433 = vadd.f32 %v8369, %v8401
  %v8434 = vadd.f32 %v8370, %v8402
  %v8435 = vadd.f32 %v8371, %v8403
  %v8436 = vadd.f32 %v8372, %v8404
  %v8437 = vadd.f32 %v8373, %v8405
  %v8438 = vadd.f32 %v8374, %v8406
  %v8439 = vadd.f32 %v8375, %v8407
  %v8440 = vadd.f32 %v8376, %v8408
  %v8441 = vadd.f32 %v8377, %v8409
  %v8442 = vadd.f32 %v8378, %v8410
  %v8443 = vadd.f32 %v8379, %v8411
  %v8444 = vadd.f32 %v8380, %v8412
  %v8445 = vadd.f32 %v8381, %v8413
  %v8446 = vadd.f32 %v8382, %v8414
  %v8447 = vadd.f32 %v8383, %v8415
  %v8448 = vadd.f32 %v8384, %v8416
  %v8449 = vadd.f32 %v8385, %v8417
  %v8450 = vadd.f32 %v8386, %v8418
  %v8451 = vadd.f32 %v8387, %v8419
  %v8452 = vadd.f32 %v8388, %v8420
  %v8453 = vadd.f32 %v8389, %v8421
  %v8454 = vadd.f32 %v8390, %v8422
  %v8455 = vadd.f32 %v8391, %v8423
  %v8456 = vadd.f32 %v8392, %v8424
  %v8457 = vadd.f32 %v8393, %v8425
  %v8458 = vadd.f32 %v8394, %v8426
  %v8459 = vadd.f32 %v8395, %v8427
  %v8460 = vadd.f32 %v8396, %v8428
  %v8461 = vadd.f32 %v8397, %v8429
  %v8462 = vadd.f32 %v8398, %v8430
  %v8463 = vxor.u32 %v8431, 2147483648
  %v8464 = vxor.u32 %v8432, 2147483648
  %v8465 = vxor.u32 %v8433, 2147483648
  %v8466 = vxor.u32 %v8434, 2147483648
  %v8467 = vxor.u32 %v8435, 2147483648
  %v8468 = vxor.u32 %v8436, 2147483648
  %v8469 = vxor.u32 %v8437, 2147483648
  %v8470 = vxor.u32 %v8438, 2147483648
  %v8471 = vxor.u32 %v8439, 2147483648
  %v8472 = vxor.u32 %v8440, 2147483648
  %v8473 = vxor.u32 %v8441, 2147483648
  %v8474 = vxor.u32 %v8442, 2147483648
  %v8475 = vxor.u32 %v8443, 2147483648
  %v8476 = vxor.u32 %v8444, 2147483648
  %v8477 = vxor.u32 %v8445, 2147483648
  %v8478 = vxor.u32 %v8446, 2147483648
  %v8479 = vxor.u32 %v8447, 2147483648
  %v8480 = vxor.u32 %v8448, 2147483648
  %v8481 = vxor.u32 %v8449, 2147483648
  %v8482 = vxor.u32 %v8450, 2147483648
  %v8483 = vxor.u32 %v8451, 2147483648
  %v8484 = vxor.u32 %v8452, 2147483648
  %v8485 = vxor.u32 %v8453, 2147483648
  %v8486 = vxor.u32 %v8454, 2147483648
  %v8487 = vxor.u32 %v8455, 2147483648
  %v8488 = vxor.u32 %v8456, 2147483648
  %v8489 = vxor.u32 %v8457, 2147483648
  %v8490 = vxor.u32 %v8458, 2147483648
  %v8491 = vxor.u32 %v8459, 2147483648
  %v8492 = vxor.u32 %v8460, 2147483648
  %v8493 = vxor.u32 %v8461, 2147483648
  %v8494 = vxor.u32 %v8462, 2147483648
  %v8495 = vmul.f32 %v8463, 1.442695
  %v8496 = vpow.pop %v8495
  %v8497 = vmul.f32 %v8464, 1.442695
  %v8498 = vpow.pop %v8497
  %v8499 = vmul.f32 %v8465, 1.442695
  %v8500 = vpow.pop %v8499
  %v8501 = vmul.f32 %v8466, 1.442695
  %v8502 = vpow.pop %v8501
  %v8503 = vmul.f32 %v8467, 1.442695
  %v8504 = vpow.pop %v8503
  %v8505 = vmul.f32 %v8468, 1.442695
  %v8506 = vpow.pop %v8505
  %v8507 = vmul.f32 %v8469, 1.442695
  %v8508 = vpow.pop %v8507
  %v8509 = vmul.f32 %v8470, 1.442695
  %v8510 = vpow.pop %v8509
  %v8511 = vmul.f32 %v8471, 1.442695
  %v8512 = vpow.pop %v8511
  %v8513 = vmul.f32 %v8472, 1.442695
  %v8514 = vpow.pop %v8513
  %v8515 = vmul.f32 %v8473, 1.442695
  %v8516 = vpow.pop %v8515
  %v8517 = vmul.f32 %v8474, 1.442695
  %v8518 = vpow.pop %v8517
  %v8519 = vmul.f32 %v8475, 1.442695
  %v8520 = vpow.pop %v8519
  %v8521 = vmul.f32 %v8476, 1.442695
  %v8522 = vpow.pop %v8521
  %v8523 = vmul.f32 %v8477, 1.442695
  %v8524 = vpow.pop %v8523
  %v8525 = vmul.f32 %v8478, 1.442695
  %v8526 = vpow.pop %v8525
  %v8527 = vmul.f32 %v8479, 1.442695
  %v8528 = vpow.pop %v8527
  %v8529 = vmul.f32 %v8480, 1.442695
  %v8530 = vpow.pop %v8529
  %v8531 = vmul.f32 %v8481, 1.442695
  %v8532 = vpow.pop %v8531
  %v8533 = vmul.f32 %v8482, 1.442695
  %v8534 = vpow.pop %v8533
  %v8535 = vmul.f32 %v8483, 1.442695
  %v8536 = vpow.pop %v8535
  %v8537 = vmul.f32 %v8484, 1.442695
  %v8538 = vpow.pop %v8537
  %v8539 = vmul.f32 %v8485, 1.442695
  %v8540 = vpow.pop %v8539
  %v8541 = vmul.f32 %v8486, 1.442695
  %v8542 = vpow.pop %v8541
  %v8543 = vmul.f32 %v8487, 1.442695
  %v8544 = vpow.pop %v8543
  %v8545 = vmul.f32 %v8488, 1.442695
  %v8546 = vpow.pop %v8545
  %v8547 = vmul.f32 %v8489, 1.442695
  %v8548 = vpow.pop %v8547
  %v8549 = vmul.f32 %v8490, 1.442695
  %v8550 = vpow.pop %v8549
  %v8551 = vmul.f32 %v8491, 1.442695
  %v8552 = vpow.pop %v8551
  %v8553 = vmul.f32 %v8492, 1.442695
  %v8554 = vpow.pop %v8553
  %v8555 = vmul.f32 %v8493, 1.442695
  %v8556 = vpow.pop %v8555
  %v8557 = vmul.f32 %v8494, 1.442695
  %v8558 = vpow.pop %v8557
  %v8559 = vadd.f32 %v8496, 1.0
  %v8560 = vadd.f32 %v8498, 1.0
  %v8561 = vadd.f32 %v8500, 1.0
  %v8562 = vadd.f32 %v8502, 1.0
  %v8563 = vadd.f32 %v8504, 1.0
  %v8564 = vadd.f32 %v8506, 1.0
  %v8565 = vadd.f32 %v8508, 1.0
  %v8566 = vadd.f32 %v8510, 1.0
  %v8567 = vadd.f32 %v8512, 1.0
  %v8568 = vadd.f32 %v8514, 1.0
  %v8569 = vadd.f32 %v8516, 1.0
  %v8570 = vadd.f32 %v8518, 1.0
  %v8571 = vadd.f32 %v8520, 1.0
  %v8572 = vadd.f32 %v8522, 1.0
  %v8573 = vadd.f32 %v8524, 1.0
  %v8574 = vadd.f32 %v8526, 1.0
  %v8575 = vadd.f32 %v8528, 1.0
  %v8576 = vadd.f32 %v8530, 1.0
  %v8577 = vadd.f32 %v8532, 1.0
  %v8578 = vadd.f32 %v8534, 1.0
  %v8579 = vadd.f32 %v8536, 1.0
  %v8580 = vadd.f32 %v8538, 1.0
  %v8581 = vadd.f32 %v8540, 1.0
  %v8582 = vadd.f32 %v8542, 1.0
  %v8583 = vadd.f32 %v8544, 1.0
  %v8584 = vadd.f32 %v8546, 1.0
  %v8585 = vadd.f32 %v8548, 1.0
  %v8586 = vadd.f32 %v8550, 1.0
  %v8587 = vadd.f32 %v8552, 1.0
  %v8588 = vadd.f32 %v8554, 1.0
  %v8589 = vadd.f32 %v8556, 1.0
  %v8590 = vadd.f32 %v8558, 1.0
  %v8591 = vrcp.pop %v8559
  %v8592 = vmul.f32 %v8559, %v8591
  %v8593 = vsub.f32 1.0, %v8592
  %v8594 = vmul.f32 %v8591, %v8593
  %v8595 = vadd.f32 %v8591, %v8594
  %vm8596 = vweird.f32 %v8559
  %vm8597 = vweird.f32 %v8591
  %vm8598 = vmor %vm8596, %vm8597
  %v8599 = vsel %vm8598, %v8591, %v8595
  %v8600 = vand.u32 2147483647, %v8559
  %vm8601 = vcmp.eq.f32.partialorder %v8600, 8.507059e+37
  %v8602 = vand.u32 %v8559, 2147483648
  %v8603 = vor.u32 1.1754944e-38, %v8602
  %v8604 = vsel %vm8601, %v8603, %v8599
  %v8605 = vmul.f32 1.0, %v8604
  %v8606 = vrcp.pop %v8560
  %v8607 = vmul.f32 %v8560, %v8606
  %v8608 = vsub.f32 1.0, %v8607
  %v8609 = vmul.f32 %v8606, %v8608
  %v8610 = vadd.f32 %v8606, %v8609
  %vm8611 = vweird.f32 %v8560
  %vm8612 = vweird.f32 %v8606
  %vm8613 = vmor %vm8611, %vm8612
  %v8614 = vsel %vm8613, %v8606, %v8610
  %v8615 = vand.u32 2147483647, %v8560
  %vm8616 = vcmp.eq.f32.partialorder %v8615, 8.507059e+37
  %v8617 = vand.u32 %v8560, 2147483648
  %v8618 = vor.u32 1.1754944e-38, %v8617
  %v8619 = vsel %vm8616, %v8618, %v8614
  %v8620 = vmul.f32 1.0, %v8619
  %v8621 = vrcp.pop %v8561
  %v8622 = vmul.f32 %v8561, %v8621
  %v8623 = vsub.f32 1.0, %v8622
  %v8624 = vmul.f32 %v8621, %v8623
  %v8625 = vadd.f32 %v8621, %v8624
  %vm8626 = vweird.f32 %v8561
  %vm8627 = vweird.f32 %v8621
  %vm8628 = vmor %vm8626, %vm8627
  %v8629 = vsel %vm8628, %v8621, %v8625
  %v8630 = vand.u32 2147483647, %v8561
  %vm8631 = vcmp.eq.f32.partialorder %v8630, 8.507059e+37
  %v8632 = vand.u32 %v8561, 2147483648
  %v8633 = vor.u32 1.1754944e-38, %v8632
  %v8634 = vsel %vm8631, %v8633, %v8629
  %v8635 = vmul.f32 1.0, %v8634
  %v8636 = vrcp.pop %v8562
  %v8637 = vmul.f32 %v8562, %v8636
  %v8638 = vsub.f32 1.0, %v8637
  %v8639 = vmul.f32 %v8636, %v8638
  %v8640 = vadd.f32 %v8636, %v8639
  %vm8641 = vweird.f32 %v8562
  %vm8642 = vweird.f32 %v8636
  %vm8643 = vmor %vm8641, %vm8642
  %v8644 = vsel %vm8643, %v8636, %v8640
  %v8645 = vand.u32 2147483647, %v8562
  %vm8646 = vcmp.eq.f32.partialorder %v8645, 8.507059e+37
  %v8647 = vand.u32 %v8562, 2147483648
  %v8648 = vor.u32 1.1754944e-38, %v8647
  %v8649 = vsel %vm8646, %v8648, %v8644
  %v8650 = vmul.f32 1.0, %v8649
  %v8651 = vrcp.pop %v8563
  %v8652 = vmul.f32 %v8563, %v8651
  %v8653 = vsub.f32 1.0, %v8652
  %v8654 = vmul.f32 %v8651, %v8653
  %v8655 = vadd.f32 %v8651, %v8654
  %vm8656 = vweird.f32 %v8563
  %vm8657 = vweird.f32 %v8651
  %vm8658 = vmor %vm8656, %vm8657
  %v8659 = vsel %vm8658, %v8651, %v8655
  %v8660 = vand.u32 2147483647, %v8563
  %vm8661 = vcmp.eq.f32.partialorder %v8660, 8.507059e+37
  %v8662 = vand.u32 %v8563, 2147483648
  %v8663 = vor.u32 1.1754944e-38, %v8662
  %v8664 = vsel %vm8661, %v8663, %v8659
  %v8665 = vmul.f32 1.0, %v8664
  %v8666 = vrcp.pop %v8564
  %v8667 = vmul.f32 %v8564, %v8666
  %v8668 = vsub.f32 1.0, %v8667
  %v8669 = vmul.f32 %v8666, %v8668
  %v8670 = vadd.f32 %v8666, %v8669
  %vm8671 = vweird.f32 %v8564
  %vm8672 = vweird.f32 %v8666
  %vm8673 = vmor %vm8671, %vm8672
  %v8674 = vsel %vm8673, %v8666, %v8670
  %v8675 = vand.u32 2147483647, %v8564
  %vm8676 = vcmp.eq.f32.partialorder %v8675, 8.507059e+37
  %v8677 = vand.u32 %v8564, 2147483648
  %v8678 = vor.u32 1.1754944e-38, %v8677
  %v8679 = vsel %vm8676, %v8678, %v8674
  %v8680 = vmul.f32 1.0, %v8679
  %v8681 = vrcp.pop %v8565
  %v8682 = vmul.f32 %v8565, %v8681
  %v8683 = vsub.f32 1.0, %v8682
  %v8684 = vmul.f32 %v8681, %v8683
  %v8685 = vadd.f32 %v8681, %v8684
  %vm8686 = vweird.f32 %v8565
  %vm8687 = vweird.f32 %v8681
  %vm8688 = vmor %vm8686, %vm8687
  %v8689 = vsel %vm8688, %v8681, %v8685
  %v8690 = vand.u32 2147483647, %v8565
  %vm8691 = vcmp.eq.f32.partialorder %v8690, 8.507059e+37
  %v8692 = vand.u32 %v8565, 2147483648
  %v8693 = vor.u32 1.1754944e-38, %v8692
  %v8694 = vsel %vm8691, %v8693, %v8689
  %v8695 = vmul.f32 1.0, %v8694
  %v8696 = vrcp.pop %v8566
  %v8697 = vmul.f32 %v8566, %v8696
  %v8698 = vsub.f32 1.0, %v8697
  %v8699 = vmul.f32 %v8696, %v8698
  %v8700 = vadd.f32 %v8696, %v8699
  %vm8701 = vweird.f32 %v8566
  %vm8702 = vweird.f32 %v8696
  %vm8703 = vmor %vm8701, %vm8702
  %v8704 = vsel %vm8703, %v8696, %v8700
  %v8705 = vand.u32 2147483647, %v8566
  %vm8706 = vcmp.eq.f32.partialorder %v8705, 8.507059e+37
  %v8707 = vand.u32 %v8566, 2147483648
  %v8708 = vor.u32 1.1754944e-38, %v8707
  %v8709 = vsel %vm8706, %v8708, %v8704
  %v8710 = vmul.f32 1.0, %v8709
  %v8711 = vrcp.pop %v8567
  %v8712 = vmul.f32 %v8567, %v8711
  %v8713 = vsub.f32 1.0, %v8712
  %v8714 = vmul.f32 %v8711, %v8713
  %v8715 = vadd.f32 %v8711, %v8714
  %vm8716 = vweird.f32 %v8567
  %vm8717 = vweird.f32 %v8711
  %vm8718 = vmor %vm8716, %vm8717
  %v8719 = vsel %vm8718, %v8711, %v8715
  %v8720 = vand.u32 2147483647, %v8567
  %vm8721 = vcmp.eq.f32.partialorder %v8720, 8.507059e+37
  %v8722 = vand.u32 %v8567, 2147483648
  %v8723 = vor.u32 1.1754944e-38, %v8722
  %v8724 = vsel %vm8721, %v8723, %v8719
  %v8725 = vmul.f32 1.0, %v8724
  %v8726 = vrcp.pop %v8568
  %v8727 = vmul.f32 %v8568, %v8726
  %v8728 = vsub.f32 1.0, %v8727
  %v8729 = vmul.f32 %v8726, %v8728
  %v8730 = vadd.f32 %v8726, %v8729
  %vm8731 = vweird.f32 %v8568
  %vm8732 = vweird.f32 %v8726
  %vm8733 = vmor %vm8731, %vm8732
  %v8734 = vsel %vm8733, %v8726, %v8730
  %v8735 = vand.u32 2147483647, %v8568
  %vm8736 = vcmp.eq.f32.partialorder %v8735, 8.507059e+37
  %v8737 = vand.u32 %v8568, 2147483648
  %v8738 = vor.u32 1.1754944e-38, %v8737
  %v8739 = vsel %vm8736, %v8738, %v8734
  %v8740 = vmul.f32 1.0, %v8739
  %v8741 = vrcp.pop %v8569
  %v8742 = vmul.f32 %v8569, %v8741
  %v8743 = vsub.f32 1.0, %v8742
  %v8744 = vmul.f32 %v8741, %v8743
  %v8745 = vadd.f32 %v8741, %v8744
  %vm8746 = vweird.f32 %v8569
  %vm8747 = vweird.f32 %v8741
  %vm8748 = vmor %vm8746, %vm8747
  %v8749 = vsel %vm8748, %v8741, %v8745
  %v8750 = vand.u32 2147483647, %v8569
  %vm8751 = vcmp.eq.f32.partialorder %v8750, 8.507059e+37
  %v8752 = vand.u32 %v8569, 2147483648
  %v8753 = vor.u32 1.1754944e-38, %v8752
  %v8754 = vsel %vm8751, %v8753, %v8749
  %v8755 = vmul.f32 1.0, %v8754
  %v8756 = vrcp.pop %v8570
  %v8757 = vmul.f32 %v8570, %v8756
  %v8758 = vsub.f32 1.0, %v8757
  %v8759 = vmul.f32 %v8756, %v8758
  %v8760 = vadd.f32 %v8756, %v8759
  %vm8761 = vweird.f32 %v8570
  %vm8762 = vweird.f32 %v8756
  %vm8763 = vmor %vm8761, %vm8762
  %v8764 = vsel %vm8763, %v8756, %v8760
  %v8765 = vand.u32 2147483647, %v8570
  %vm8766 = vcmp.eq.f32.partialorder %v8765, 8.507059e+37
  %v8767 = vand.u32 %v8570, 2147483648
  %v8768 = vor.u32 1.1754944e-38, %v8767
  %v8769 = vsel %vm8766, %v8768, %v8764
  %v8770 = vmul.f32 1.0, %v8769
  %v8771 = vrcp.pop %v8571
  %v8772 = vmul.f32 %v8571, %v8771
  %v8773 = vsub.f32 1.0, %v8772
  %v8774 = vmul.f32 %v8771, %v8773
  %v8775 = vadd.f32 %v8771, %v8774
  %vm8776 = vweird.f32 %v8571
  %vm8777 = vweird.f32 %v8771
  %vm8778 = vmor %vm8776, %vm8777
  %v8779 = vsel %vm8778, %v8771, %v8775
  %v8780 = vand.u32 2147483647, %v8571
  %vm8781 = vcmp.eq.f32.partialorder %v8780, 8.507059e+37
  %v8782 = vand.u32 %v8571, 2147483648
  %v8783 = vor.u32 1.1754944e-38, %v8782
  %v8784 = vsel %vm8781, %v8783, %v8779
  %v8785 = vmul.f32 1.0, %v8784
  %v8786 = vrcp.pop %v8572
  %v8787 = vmul.f32 %v8572, %v8786
  %v8788 = vsub.f32 1.0, %v8787
  %v8789 = vmul.f32 %v8786, %v8788
  %v8790 = vadd.f32 %v8786, %v8789
  %vm8791 = vweird.f32 %v8572
  %vm8792 = vweird.f32 %v8786
  %vm8793 = vmor %vm8791, %vm8792
  %v8794 = vsel %vm8793, %v8786, %v8790
  %v8795 = vand.u32 2147483647, %v8572
  %vm8796 = vcmp.eq.f32.partialorder %v8795, 8.507059e+37
  %v8797 = vand.u32 %v8572, 2147483648
  %v8798 = vor.u32 1.1754944e-38, %v8797
  %v8799 = vsel %vm8796, %v8798, %v8794
  %v8800 = vmul.f32 1.0, %v8799
  %v8801 = vrcp.pop %v8573
  %v8802 = vmul.f32 %v8573, %v8801
  %v8803 = vsub.f32 1.0, %v8802
  %v8804 = vmul.f32 %v8801, %v8803
  %v8805 = vadd.f32 %v8801, %v8804
  %vm8806 = vweird.f32 %v8573
  %vm8807 = vweird.f32 %v8801
  %vm8808 = vmor %vm8806, %vm8807
  %v8809 = vsel %vm8808, %v8801, %v8805
  %v8810 = vand.u32 2147483647, %v8573
  %vm8811 = vcmp.eq.f32.partialorder %v8810, 8.507059e+37
  %v8812 = vand.u32 %v8573, 2147483648
  %v8813 = vor.u32 1.1754944e-38, %v8812
  %v8814 = vsel %vm8811, %v8813, %v8809
  %v8815 = vmul.f32 1.0, %v8814
  %v8816 = vrcp.pop %v8574
  %v8817 = vmul.f32 %v8574, %v8816
  %v8818 = vsub.f32 1.0, %v8817
  %v8819 = vmul.f32 %v8816, %v8818
  %v8820 = vadd.f32 %v8816, %v8819
  %vm8821 = vweird.f32 %v8574
  %vm8822 = vweird.f32 %v8816
  %vm8823 = vmor %vm8821, %vm8822
  %v8824 = vsel %vm8823, %v8816, %v8820
  %v8825 = vand.u32 2147483647, %v8574
  %vm8826 = vcmp.eq.f32.partialorder %v8825, 8.507059e+37
  %v8827 = vand.u32 %v8574, 2147483648
  %v8828 = vor.u32 1.1754944e-38, %v8827
  %v8829 = vsel %vm8826, %v8828, %v8824
  %v8830 = vmul.f32 1.0, %v8829
  %v8831 = vrcp.pop %v8575
  %v8832 = vmul.f32 %v8575, %v8831
  %v8833 = vsub.f32 1.0, %v8832
  %v8834 = vmul.f32 %v8831, %v8833
  %v8835 = vadd.f32 %v8831, %v8834
  %vm8836 = vweird.f32 %v8575
  %vm8837 = vweird.f32 %v8831
  %vm8838 = vmor %vm8836, %vm8837
  %v8839 = vsel %vm8838, %v8831, %v8835
  %v8840 = vand.u32 2147483647, %v8575
  %vm8841 = vcmp.eq.f32.partialorder %v8840, 8.507059e+37
  %v8842 = vand.u32 %v8575, 2147483648
  %v8843 = vor.u32 1.1754944e-38, %v8842
  %v8844 = vsel %vm8841, %v8843, %v8839
  %v8845 = vmul.f32 1.0, %v8844
  %v8846 = vrcp.pop %v8576
  %v8847 = vmul.f32 %v8576, %v8846
  %v8848 = vsub.f32 1.0, %v8847
  %v8849 = vmul.f32 %v8846, %v8848
  %v8850 = vadd.f32 %v8846, %v8849
  %vm8851 = vweird.f32 %v8576
  %vm8852 = vweird.f32 %v8846
  %vm8853 = vmor %vm8851, %vm8852
  %v8854 = vsel %vm8853, %v8846, %v8850
  %v8855 = vand.u32 2147483647, %v8576
  %vm8856 = vcmp.eq.f32.partialorder %v8855, 8.507059e+37
  %v8857 = vand.u32 %v8576, 2147483648
  %v8858 = vor.u32 1.1754944e-38, %v8857
  %v8859 = vsel %vm8856, %v8858, %v8854
  %v8860 = vmul.f32 1.0, %v8859
  %v8861 = vrcp.pop %v8577
  %v8862 = vmul.f32 %v8577, %v8861
  %v8863 = vsub.f32 1.0, %v8862
  %v8864 = vmul.f32 %v8861, %v8863
  %v8865 = vadd.f32 %v8861, %v8864
  %vm8866 = vweird.f32 %v8577
  %vm8867 = vweird.f32 %v8861
  %vm8868 = vmor %vm8866, %vm8867
  %v8869 = vsel %vm8868, %v8861, %v8865
  %v8870 = vand.u32 2147483647, %v8577
  %vm8871 = vcmp.eq.f32.partialorder %v8870, 8.507059e+37
  %v8872 = vand.u32 %v8577, 2147483648
  %v8873 = vor.u32 1.1754944e-38, %v8872
  %v8874 = vsel %vm8871, %v8873, %v8869
  %v8875 = vmul.f32 1.0, %v8874
  %v8876 = vrcp.pop %v8578
  %v8877 = vmul.f32 %v8578, %v8876
  %v8878 = vsub.f32 1.0, %v8877
  %v8879 = vmul.f32 %v8876, %v8878
  %v8880 = vadd.f32 %v8876, %v8879
  %vm8881 = vweird.f32 %v8578
  %vm8882 = vweird.f32 %v8876
  %vm8883 = vmor %vm8881, %vm8882
  %v8884 = vsel %vm8883, %v8876, %v8880
  %v8885 = vand.u32 2147483647, %v8578
  %vm8886 = vcmp.eq.f32.partialorder %v8885, 8.507059e+37
  %v8887 = vand.u32 %v8578, 2147483648
  %v8888 = vor.u32 1.1754944e-38, %v8887
  %v8889 = vsel %vm8886, %v8888, %v8884
  %v8890 = vmul.f32 1.0, %v8889
  %v8891 = vrcp.pop %v8579
  %v8892 = vmul.f32 %v8579, %v8891
  %v8893 = vsub.f32 1.0, %v8892
  %v8894 = vmul.f32 %v8891, %v8893
  %v8895 = vadd.f32 %v8891, %v8894
  %vm8896 = vweird.f32 %v8579
  %vm8897 = vweird.f32 %v8891
  %vm8898 = vmor %vm8896, %vm8897
  %v8899 = vsel %vm8898, %v8891, %v8895
  %v8900 = vand.u32 2147483647, %v8579
  %vm8901 = vcmp.eq.f32.partialorder %v8900, 8.507059e+37
  %v8902 = vand.u32 %v8579, 2147483648
  %v8903 = vor.u32 1.1754944e-38, %v8902
  %v8904 = vsel %vm8901, %v8903, %v8899
  %v8905 = vmul.f32 1.0, %v8904
  %v8906 = vrcp.pop %v8580
  %v8907 = vmul.f32 %v8580, %v8906
  %v8908 = vsub.f32 1.0, %v8907
  %v8909 = vmul.f32 %v8906, %v8908
  %v8910 = vadd.f32 %v8906, %v8909
  %vm8911 = vweird.f32 %v8580
  %vm8912 = vweird.f32 %v8906
  %vm8913 = vmor %vm8911, %vm8912
  %v8914 = vsel %vm8913, %v8906, %v8910
  %v8915 = vand.u32 2147483647, %v8580
  %vm8916 = vcmp.eq.f32.partialorder %v8915, 8.507059e+37
  %v8917 = vand.u32 %v8580, 2147483648
  %v8918 = vor.u32 1.1754944e-38, %v8917
  %v8919 = vsel %vm8916, %v8918, %v8914
  %v8920 = vmul.f32 1.0, %v8919
  %v8921 = vrcp.pop %v8581
  %v8922 = vmul.f32 %v8581, %v8921
  %v8923 = vsub.f32 1.0, %v8922
  %v8924 = vmul.f32 %v8921, %v8923
  %v8925 = vadd.f32 %v8921, %v8924
  %vm8926 = vweird.f32 %v8581
  %vm8927 = vweird.f32 %v8921
  %vm8928 = vmor %vm8926, %vm8927
  %v8929 = vsel %vm8928, %v8921, %v8925
  %v8930 = vand.u32 2147483647, %v8581
  %vm8931 = vcmp.eq.f32.partialorder %v8930, 8.507059e+37
  %v8932 = vand.u32 %v8581, 2147483648
  %v8933 = vor.u32 1.1754944e-38, %v8932
  %v8934 = vsel %vm8931, %v8933, %v8929
  %v8935 = vmul.f32 1.0, %v8934
  %v8936 = vrcp.pop %v8582
  %v8937 = vmul.f32 %v8582, %v8936
  %v8938 = vsub.f32 1.0, %v8937
  %v8939 = vmul.f32 %v8936, %v8938
  %v8940 = vadd.f32 %v8936, %v8939
  %vm8941 = vweird.f32 %v8582
  %vm8942 = vweird.f32 %v8936
  %vm8943 = vmor %vm8941, %vm8942
  %v8944 = vsel %vm8943, %v8936, %v8940
  %v8945 = vand.u32 2147483647, %v8582
  %vm8946 = vcmp.eq.f32.partialorder %v8945, 8.507059e+37
  %v8947 = vand.u32 %v8582, 2147483648
  %v8948 = vor.u32 1.1754944e-38, %v8947
  %v8949 = vsel %vm8946, %v8948, %v8944
  %v8950 = vmul.f32 1.0, %v8949
  %v8951 = vrcp.pop %v8583
  %v8952 = vmul.f32 %v8583, %v8951
  %v8953 = vsub.f32 1.0, %v8952
  %v8954 = vmul.f32 %v8951, %v8953
  %v8955 = vadd.f32 %v8951, %v8954
  %vm8956 = vweird.f32 %v8583
  %vm8957 = vweird.f32 %v8951
  %vm8958 = vmor %vm8956, %vm8957
  %v8959 = vsel %vm8958, %v8951, %v8955
  %v8960 = vand.u32 2147483647, %v8583
  %vm8961 = vcmp.eq.f32.partialorder %v8960, 8.507059e+37
  %v8962 = vand.u32 %v8583, 2147483648
  %v8963 = vor.u32 1.1754944e-38, %v8962
  %v8964 = vsel %vm8961, %v8963, %v8959
  %v8965 = vmul.f32 1.0, %v8964
  %v8966 = vrcp.pop %v8584
  %v8967 = vmul.f32 %v8584, %v8966
  %v8968 = vsub.f32 1.0, %v8967
  %v8969 = vmul.f32 %v8966, %v8968
  %v8970 = vadd.f32 %v8966, %v8969
  %vm8971 = vweird.f32 %v8584
  %vm8972 = vweird.f32 %v8966
  %vm8973 = vmor %vm8971, %vm8972
  %v8974 = vsel %vm8973, %v8966, %v8970
  %v8975 = vand.u32 2147483647, %v8584
  %vm8976 = vcmp.eq.f32.partialorder %v8975, 8.507059e+37
  %v8977 = vand.u32 %v8584, 2147483648
  %v8978 = vor.u32 1.1754944e-38, %v8977
  %v8979 = vsel %vm8976, %v8978, %v8974
  %v8980 = vmul.f32 1.0, %v8979
  %v8981 = vrcp.pop %v8585
  %v8982 = vmul.f32 %v8585, %v8981
  %v8983 = vsub.f32 1.0, %v8982
  %v8984 = vmul.f32 %v8981, %v8983
  %v8985 = vadd.f32 %v8981, %v8984
  %vm8986 = vweird.f32 %v8585
  %vm8987 = vweird.f32 %v8981
  %vm8988 = vmor %vm8986, %vm8987
  %v8989 = vsel %vm8988, %v8981, %v8985
  %v8990 = vand.u32 2147483647, %v8585
  %vm8991 = vcmp.eq.f32.partialorder %v8990, 8.507059e+37
  %v8992 = vand.u32 %v8585, 2147483648
  %v8993 = vor.u32 1.1754944e-38, %v8992
  %v8994 = vsel %vm8991, %v8993, %v8989
  %v8995 = vmul.f32 1.0, %v8994
  %v8996 = vrcp.pop %v8586
  %v8997 = vmul.f32 %v8586, %v8996
  %v8998 = vsub.f32 1.0, %v8997
  %v8999 = vmul.f32 %v8996, %v8998
  %v9000 = vadd.f32 %v8996, %v8999
  %vm9001 = vweird.f32 %v8586
  %vm9002 = vweird.f32 %v8996
  %vm9003 = vmor %vm9001, %vm9002
  %v9004 = vsel %vm9003, %v8996, %v9000
  %v9005 = vand.u32 2147483647, %v8586
  %vm9006 = vcmp.eq.f32.partialorder %v9005, 8.507059e+37
  %v9007 = vand.u32 %v8586, 2147483648
  %v9008 = vor.u32 1.1754944e-38, %v9007
  %v9009 = vsel %vm9006, %v9008, %v9004
  %v9010 = vmul.f32 1.0, %v9009
  %v9011 = vrcp.pop %v8587
  %v9012 = vmul.f32 %v8587, %v9011
  %v9013 = vsub.f32 1.0, %v9012
  %v9014 = vmul.f32 %v9011, %v9013
  %v9015 = vadd.f32 %v9011, %v9014
  %vm9016 = vweird.f32 %v8587
  %vm9017 = vweird.f32 %v9011
  %vm9018 = vmor %vm9016, %vm9017
  %v9019 = vsel %vm9018, %v9011, %v9015
  %v9020 = vand.u32 2147483647, %v8587
  %vm9021 = vcmp.eq.f32.partialorder %v9020, 8.507059e+37
  %v9022 = vand.u32 %v8587, 2147483648
  %v9023 = vor.u32 1.1754944e-38, %v9022
  %v9024 = vsel %vm9021, %v9023, %v9019
  %v9025 = vmul.f32 1.0, %v9024
  %v9026 = vrcp.pop %v8588
  %v9027 = vmul.f32 %v8588, %v9026
  %v9028 = vsub.f32 1.0, %v9027
  %v9029 = vmul.f32 %v9026, %v9028
  %v9030 = vadd.f32 %v9026, %v9029
  %vm9031 = vweird.f32 %v8588
  %vm9032 = vweird.f32 %v9026
  %vm9033 = vmor %vm9031, %vm9032
  %v9034 = vsel %vm9033, %v9026, %v9030
  %v9035 = vand.u32 2147483647, %v8588
  %vm9036 = vcmp.eq.f32.partialorder %v9035, 8.507059e+37
  %v9037 = vand.u32 %v8588, 2147483648
  %v9038 = vor.u32 1.1754944e-38, %v9037
  %v9039 = vsel %vm9036, %v9038, %v9034
  %v9040 = vmul.f32 1.0, %v9039
  %v9041 = vrcp.pop %v8589
  %v9042 = vmul.f32 %v8589, %v9041
  %v9043 = vsub.f32 1.0, %v9042
  %v9044 = vmul.f32 %v9041, %v9043
  %v9045 = vadd.f32 %v9041, %v9044
  %vm9046 = vweird.f32 %v8589
  %vm9047 = vweird.f32 %v9041
  %vm9048 = vmor %vm9046, %vm9047
  %v9049 = vsel %vm9048, %v9041, %v9045
  %v9050 = vand.u32 2147483647, %v8589
  %vm9051 = vcmp.eq.f32.partialorder %v9050, 8.507059e+37
  %v9052 = vand.u32 %v8589, 2147483648
  %v9053 = vor.u32 1.1754944e-38, %v9052
  %v9054 = vsel %vm9051, %v9053, %v9049
  %v9055 = vmul.f32 1.0, %v9054
  %v9056 = vrcp.pop %v8590
  %v9057 = vmul.f32 %v8590, %v9056
  %v9058 = vsub.f32 1.0, %v9057
  %v9059 = vmul.f32 %v9056, %v9058
  %v9060 = vadd.f32 %v9056, %v9059
  %vm9061 = vweird.f32 %v8590
  %vm9062 = vweird.f32 %v9056
  %vm9063 = vmor %vm9061, %vm9062
  %v9064 = vsel %vm9063, %v9056, %v9060
  %v9065 = vand.u32 2147483647, %v8590
  %vm9066 = vcmp.eq.f32.partialorder %v9065, 8.507059e+37
  %v9067 = vand.u32 %v8590, 2147483648
  %v9068 = vor.u32 1.1754944e-38, %v9067
  %v9069 = vsel %vm9066, %v9068, %v9064
  %v9070 = vmul.f32 1.0, %v9069
  %9103 = vrot.lane.b32.xlu0 %v8605, 112
  %v9104 = vpop.permute.xlu0 %9103
  %9105 = vrot.lane.b32.xlu0 %v8620, 112
  %v9106 = vpop.permute.xlu0 %9105
  %9107 = vrot.lane.b32.xlu0 %v8635, 112
  %v9108 = vpop.permute.xlu0 %9107
  %9109 = vrot.lane.b32.xlu0 %v8650, 112
  %v9110 = vpop.permute.xlu0 %9109
  %9111 = vrot.lane.b32.xlu0 %v8665, 112
  %v9112 = vpop.permute.xlu0 %9111
  %9113 = vrot.lane.b32.xlu0 %v8680, 112
  %v9114 = vpop.permute.xlu0 %9113
  %9115 = vrot.lane.b32.xlu0 %v8695, 112
  %v9116 = vpop.permute.xlu0 %9115
  %9117 = vrot.lane.b32.xlu0 %v8710, 112
  %v9118 = vpop.permute.xlu0 %9117
  %9119 = vrot.lane.b32.xlu0 %v8725, 112
  %v9120 = vpop.permute.xlu0 %9119
  %9121 = vrot.lane.b32.xlu0 %v8740, 112
  %v9122 = vpop.permute.xlu0 %9121
  %9123 = vrot.lane.b32.xlu0 %v8755, 112
  %v9124 = vpop.permute.xlu0 %9123
  %9125 = vrot.lane.b32.xlu0 %v8770, 112
  %v9126 = vpop.permute.xlu0 %9125
  %9127 = vrot.lane.b32.xlu0 %v8785, 112
  %v9128 = vpop.permute.xlu0 %9127
  %9129 = vrot.lane.b32.xlu0 %v8800, 112
  %v9130 = vpop.permute.xlu0 %9129
  %9131 = vrot.lane.b32.xlu0 %v8815, 112
  %v9132 = vpop.permute.xlu0 %9131
  %9133 = vrot.lane.b32.xlu0 %v8830, 112
  %v9134 = vpop.permute.xlu0 %9133
  %9135 = vrot.lane.b32.xlu0 %v8845, 112
  %v9136 = vpop.permute.xlu0 %9135
  %9137 = vrot.lane.b32.xlu0 %v8860, 112
  %v9138 = vpop.permute.xlu0 %9137
  %9139 = vrot.lane.b32.xlu0 %v8875, 112
  %v9140 = vpop.permute.xlu0 %9139
  %9141 = vrot.lane.b32.xlu0 %v8890, 112
  %v9142 = vpop.permute.xlu0 %9141
  %9143 = vrot.lane.b32.xlu0 %v8905, 112
  %v9144 = vpop.permute.xlu0 %9143
  %9145 = vrot.lane.b32.xlu0 %v8920, 112
  %v9146 = vpop.permute.xlu0 %9145
  %9147 = vrot.lane.b32.xlu0 %v8935, 112
  %v9148 = vpop.permute.xlu0 %9147
  %9149 = vrot.lane.b32.xlu0 %v8950, 112
  %v9150 = vpop.permute.xlu0 %9149
  %9151 = vrot.lane.b32.xlu0 %v8965, 112
  %v9152 = vpop.permute.xlu0 %9151
  %9153 = vrot.lane.b32.xlu0 %v8980, 112
  %v9154 = vpop.permute.xlu0 %9153
  %9155 = vrot.lane.b32.xlu0 %v8995, 112
  %v9156 = vpop.permute.xlu0 %9155
  %9157 = vrot.lane.b32.xlu0 %v9010, 112
  %v9158 = vpop.permute.xlu0 %9157
  %9159 = vrot.lane.b32.xlu0 %v9025, 112
  %v9160 = vpop.permute.xlu0 %9159
  %9161 = vrot.lane.b32.xlu0 %v9040, 112
  %v9162 = vpop.permute.xlu0 %9161
  %9163 = vrot.lane.b32.xlu0 %v9055, 112
  %v9164 = vpop.permute.xlu0 %9163
  %9165 = vrot.lane.b32.xlu0 %v9070, 112
  %v9166 = vpop.permute.xlu0 %9165
  %v9199 = vmul.f32 %v8431, %v9104
  %v9200 = vmul.f32 %v8432, %v9106
  %v9201 = vmul.f32 %v8433, %v9108
  %v9202 = vmul.f32 %v8434, %v9110
  %v9203 = vmul.f32 %v8435, %v9112
  %v9204 = vmul.f32 %v8436, %v9114
  %v9205 = vmul.f32 %v8437, %v9116
  %v9206 = vmul.f32 %v8438, %v9118
  %v9207 = vmul.f32 %v8439, %v9120
  %v9208 = vmul.f32 %v8440, %v9122
  %v9209 = vmul.f32 %v8441, %v9124
  %v9210 = vmul.f32 %v8442, %v9126
  %v9211 = vmul.f32 %v8443, %v9128
  %v9212 = vmul.f32 %v8444, %v9130
  %v9213 = vmul.f32 %v8445, %v9132
  %v9214 = vmul.f32 %v8446, %v9134
  %v9215 = vmul.f32 %v8447, %v9136
  %v9216 = vmul.f32 %v8448, %v9138
  %v9217 = vmul.f32 %v8449, %v9140
  %v9218 = vmul.f32 %v8450, %v9142
  %v9219 = vmul.f32 %v8451, %v9144
  %v9220 = vmul.f32 %v8452, %v9146
  %v9221 = vmul.f32 %v8453, %v9148
  %v9222 = vmul.f32 %v8454, %v9150
  %v9223 = vmul.f32 %v8455, %v9152
  %v9224 = vmul.f32 %v8456, %v9154
  %v9225 = vmul.f32 %v8457, %v9156
  %v9226 = vmul.f32 %v8458, %v9158
  %v9227 = vmul.f32 %v8459, %v9160
  %v9228 = vmul.f32 %v8460, %v9162
  %v9229 = vmul.f32 %v8461, %v9164
  %v9230 = vmul.f32 %v8462, %v9166
  %v9231 = vadd.f32 %v6942, %v9199
  %v9232 = vadd.f32 %v6943, %v9200
  %v9233 = vadd.f32 %v6944, %v9201
  %v9234 = vadd.f32 %v6945, %v9202
  %v9235 = vadd.f32 %v6946, %v9203
  %v9236 = vadd.f32 %v6947, %v9204
  %v9237 = vadd.f32 %v6948, %v9205
  %v9238 = vadd.f32 %v6949, %v9206
  %v9239 = vadd.f32 %v6950, %v9207
  %v9240 = vadd.f32 %v6951, %v9208
  %v9241 = vadd.f32 %v6952, %v9209
  %v9242 = vadd.f32 %v6953, %v9210
  %v9243 = vadd.f32 %v6954, %v9211
  %v9244 = vadd.f32 %v6955, %v9212
  %v9245 = vadd.f32 %v6956, %v9213
  %v9246 = vadd.f32 %v6957, %v9214
  %v9247 = vadd.f32 %v6958, %v9215
  %v9248 = vadd.f32 %v6959, %v9216
  %v9249 = vadd.f32 %v6960, %v9217
  %v9250 = vadd.f32 %v6961, %v9218
  %v9251 = vadd.f32 %v6962, %v9219
  %v9252 = vadd.f32 %v6963, %v9220
  %v9253 = vadd.f32 %v6964, %v9221
  %v9254 = vadd.f32 %v6965, %v9222
  %v9255 = vadd.f32 %v6966, %v9223
  %v9256 = vadd.f32 %v6967, %v9224
  %v9257 = vadd.f32 %v6968, %v9225
  %v9258 = vadd.f32 %v6969, %v9226
  %v9259 = vadd.f32 %v6970, %v9227
  %v9260 = vadd.f32 %v6971, %v9228
  %v9261 = vadd.f32 %v6972, %v9229
  %v9262 = vadd.f32 %v6973, %v9230
  %v9263 = vmul.f32 %v9231, 0.70710677
  %v9264 = vmul.f32 %v9232, 0.70710677
  %v9265 = vmul.f32 %v9233, 0.70710677
  %v9266 = vmul.f32 %v9234, 0.70710677
  %v9267 = vmul.f32 %v9235, 0.70710677
  %v9268 = vmul.f32 %v9236, 0.70710677
  %v9269 = vmul.f32 %v9237, 0.70710677
  %v9270 = vmul.f32 %v9238, 0.70710677
  %v9271 = vmul.f32 %v9239, 0.70710677
  %v9272 = vmul.f32 %v9240, 0.70710677
  %v9273 = vmul.f32 %v9241, 0.70710677
  %v9274 = vmul.f32 %v9242, 0.70710677
  %v9275 = vmul.f32 %v9243, 0.70710677
  %v9276 = vmul.f32 %v9244, 0.70710677
  %v9277 = vmul.f32 %v9245, 0.70710677
  %v9278 = vmul.f32 %v9246, 0.70710677
  %v9279 = vmul.f32 %v9247, 0.70710677
  %v9280 = vmul.f32 %v9248, 0.70710677
  %v9281 = vmul.f32 %v9249, 0.70710677
  %v9282 = vmul.f32 %v9250, 0.70710677
  %v9283 = vmul.f32 %v9251, 0.70710677
  %v9284 = vmul.f32 %v9252, 0.70710677
  %v9285 = vmul.f32 %v9253, 0.70710677
  %v9286 = vmul.f32 %v9254, 0.70710677
  %v9287 = vmul.f32 %v9255, 0.70710677
  %v9288 = vmul.f32 %v9256, 0.70710677
  %v9289 = vmul.f32 %v9257, 0.70710677
  %v9290 = vmul.f32 %v9258, 0.70710677
  %v9291 = vmul.f32 %v9259, 0.70710677
  %v9292 = vmul.f32 %v9260, 0.70710677
  %v9293 = vmul.f32 %v9261, 0.70710677
  %v9294 = vmul.f32 %v9262, 0.70710677
  %9295 = vst.msk [vmem:[%s6] sm:$0xff] %vm2331, %v9263
  %9296 = vst.msk [vmem:[%s6 + $0x8] sm:$0xff] %vm2331, %v9264
  %9297 = vst.msk [vmem:[%s6 + $0x10] sm:$0xff] %vm2331, %v9265
  %9298 = vst.msk [vmem:[%s6 + $0x18] sm:$0xff] %vm2331, %v9266
  %9299 = vst.msk [vmem:[%s6 + $0x20] sm:$0xff] %vm2331, %v9267
  %9300 = vst.msk [vmem:[%s6 + $0x28] sm:$0xff] %vm2331, %v9268
  %9301 = vst.msk [vmem:[%s6 + $0x30] sm:$0xff] %vm2331, %v9269
  %9302 = vst.msk [vmem:[%s6 + $0x38] sm:$0xff] %vm2331, %v9270
  %9303 = vst.msk [vmem:[%s6 + $0x40] sm:$0xff] %vm2331, %v9271
  %9304 = vst.msk [vmem:[%s6 + $0x48] sm:$0xff] %vm2331, %v9272
  %9305 = vst.msk [vmem:[%s6 + $0x50] sm:$0xff] %vm2331, %v9273
  %9306 = vst.msk [vmem:[%s6 + $0x58] sm:$0xff] %vm2331, %v9274
  %9307 = vst.msk [vmem:[%s6 + $0x60] sm:$0xff] %vm2331, %v9275
  %9308 = vst.msk [vmem:[%s6 + $0x68] sm:$0xff] %vm2331, %v9276
  %9309 = vst.msk [vmem:[%s6 + $0x70] sm:$0xff] %vm2331, %v9277
  %9310 = vst.msk [vmem:[%s6 + $0x78] sm:$0xff] %vm2331, %v9278
  %9311 = vst.msk [vmem:[%s6 + $0x80] sm:$0xff] %vm2331, %v9279
  %9312 = vst.msk [vmem:[%s6 + $0x88] sm:$0xff] %vm2331, %v9280
  %9313 = vst.msk [vmem:[%s6 + $0x90] sm:$0xff] %vm2331, %v9281
  %9314 = vst.msk [vmem:[%s6 + $0x98] sm:$0xff] %vm2331, %v9282
  %9315 = vst.msk [vmem:[%s6 + $0xa0] sm:$0xff] %vm2331, %v9283
  %9316 = vst.msk [vmem:[%s6 + $0xa8] sm:$0xff] %vm2331, %v9284
  %9317 = vst.msk [vmem:[%s6 + $0xb0] sm:$0xff] %vm2331, %v9285
  %9318 = vst.msk [vmem:[%s6 + $0xb8] sm:$0xff] %vm2331, %v9286
  %9319 = vst.msk [vmem:[%s6 + $0xc0] sm:$0xff] %vm2331, %v9287
  %9320 = vst.msk [vmem:[%s6 + $0xc8] sm:$0xff] %vm2331, %v9288
  %9321 = vst.msk [vmem:[%s6 + $0xd0] sm:$0xff] %vm2331, %v9289
  %9322 = vst.msk [vmem:[%s6 + $0xd8] sm:$0xff] %vm2331, %v9290
  %9323 = vst.msk [vmem:[%s6 + $0xe0] sm:$0xff] %vm2331, %v9291
  %9324 = vst.msk [vmem:[%s6 + $0xe8] sm:$0xff] %vm2331, %v9292
  %9325 = vst.msk [vmem:[%s6 + $0xf0] sm:$0xff] %vm2331, %v9293
  %9326 = vst.msk [vmem:[%s6 + $0xf8] sm:$0xff] %vm2331, %v9294
  // Predicated region
  $region26: #{tpu_custom_call.1} parent=0 // pred_check
    _
  $region27: #{tpu_custom_call.1} parent=0 // pred_check_branch
    %9328 = sbr.rel (0) target = $region29
  $region28: #{tpu_custom_call.1} parent=0 // pred_region
    _
  $region29: #{tpu_custom_call.1} parent=0 // pred_fallthru
    _
  // Predicated region
  $region30: #{tpu_custom_call.1} parent=0 // pred_check
    _
  $region31: #{tpu_custom_call.1} parent=0 // pred_check_branch
    %9330 = sbr.rel (0) target = $region33
  $region32: #{tpu_custom_call.1} parent=0 // pred_region
    _
  $region33: #{tpu_custom_call.1} parent=0 // pred_fallthru
    _

</llo_original>
